<compile_context>
chip_gen: v5e
topology: v5e:2x2
jax: 0.10.0
libtpu: 0.0.40
codegen_flags: <defaults>
</compile_context>

<pallas_src>
import math

import jax
import jax.numpy as jnp
from jax.experimental import pallas as pl
from jax.experimental.pallas import tpu as pltpu


def _round_up(v, m):
    return (v + m - 1) // m * m


# ---------------------------------------------------------------------------
# Kernel
# ---------------------------------------------------------------------------
def _fc_fused_kernel(x_ref,
                     w1_ref, b1_ref,
                     w2_ref, b2_ref,
                     w3_ref, b3_ref,
                     w4_ref, b4_ref,
                     o_ref):
    """relu(relu(relu(relu(x@W1+b1)@W2+b2)@W3+b3)@W4+b4) on one batch tile.

    x arrives in native f32 and is cast to bf16 in-kernel; matmuls run in bf16
    on the MXU with f32 accumulation; bias/ReLU epilogues stay in f32; the
    final store is bf16.
    """
    h = x_ref[...].astype(jnp.bfloat16)
    # fc1 + relu
    a = jnp.dot(h, w1_ref[...], preferred_element_type=jnp.float32) + b1_ref[...]
    h = jnp.maximum(a, 0.0).astype(jnp.bfloat16)
    # fc2 + relu
    a = jnp.dot(h, w2_ref[...], preferred_element_type=jnp.float32) + b2_ref[...]
    h = jnp.maximum(a, 0.0).astype(jnp.bfloat16)
    # fc3 + relu
    a = jnp.dot(h, w3_ref[...], preferred_element_type=jnp.float32) + b3_ref[...]
    h = jnp.maximum(a, 0.0).astype(jnp.bfloat16)
    # fc4 + relu (the PyTorch module applies ReLU to fc4's output too)
    a = jnp.dot(h, w4_ref[...], preferred_element_type=jnp.float32) + b4_ref[...]
    o_ref[...] = jnp.maximum(a, 0.0).astype(o_ref.dtype)


# ---------------------------------------------------------------------------
# Parameter init (torch nn.Linear layout/init) and packing for the kernel
# ---------------------------------------------------------------------------
def init_fc_params(key, input_size, classes):
    """nn.Linear-style init: W (out, in), b (out,), U(-1/sqrt(fan_in), +)."""
    dims = [(input_size, 1024), (1024, 800), (800, 400), (400, classes)]
    params = []
    for fan_in, fan_out in dims:
        key, kw, kb = jax.random.split(key, 3)
        bound = 1.0 / math.sqrt(fan_in)
        w = jax.random.uniform(kw, (fan_out, fan_in), jnp.float32, -bound, bound)
        b = jax.random.uniform(kb, (fan_out,), jnp.float32, -bound, bound)
        params.append((w, b))
    return params


def pack_params_for_kernel(raw_params, input_size, classes):
    """Transpose to (in, out), zero-pad every dim to a multiple of 128,
    cast weights to bf16, biases to f32 rows (1, out_pad).

    Padding invariant: padded weight columns/rows and bias entries are zero,
    so ReLU(0) = 0 and padding is mathematically inert.
    """
    in0 = _round_up(input_size, 128)       # 256 for 16x16 input
    h1 = _round_up(1024, 128)              # 1024
    h2 = _round_up(800, 128)               # 896
    h3 = _round_up(400, 128)               # 512
    cp = _round_up(classes, 128)           # 128

    pads = [(in0, h1), (h1, h2), (h2, h3), (h3, cp)]
    packed = []
    for (w, b), (rows_pad, cols_pad) in zip(raw_params, pads):
        wt = jnp.asarray(w, jnp.float32).T                      # (in, out)
        wt = jnp.pad(wt, ((0, rows_pad - wt.shape[0]),
                          (0, cols_pad - wt.shape[1])))
        bp = jnp.pad(jnp.asarray(b, jnp.float32),
                     (0, cols_pad - b.shape[0])).reshape(1, cols_pad)
        packed.append((wt.astype(jnp.bfloat16), bp))
    return packed


# ---------------------------------------------------------------------------
# Tiling choice
# ---------------------------------------------------------------------------
def _pick_tile(batch, tm_max=512):
    """Return (tm, padded_batch)."""
    if batch <= tm_max:
        tm = max(16, _round_up(batch, 16))   # bf16 packs 16 sublanes / vreg
        return tm, tm
    best = None
    for tm in (512, 256, 128):
        padded = _round_up(batch, tm)
        key = (padded, padded // tm)         # least waste, then fewest steps
        if best is None or key < best[0]:
            best = (key, tm, padded)
    return best[1], best[2]


# ---------------------------------------------------------------------------
# Forward wrapper
# ---------------------------------------------------------------------------
def fc_forward(x, packed_params, classes):
    """Pallas implementation of FC.forward.

    x: (batch, input_size) or (batch, 1, h, w) with h*w == input_size.
    """
    if x.ndim == 4:
        batch, chan, h, w = x.shape
        assert chan == 1, "FC.forward squeeze(1) semantics require chan == 1"
        x = x.reshape(batch, h * w)
    x = x.astype(jnp.float32)
    batch, feat = x.shape

    (w1, b1), (w2, b2), (w3, b3), (w4, b4) = packed_params
    in0 = w1.shape[0]
    cp = w4.shape[1]

    tm, padded_batch = _pick_tile(batch)
    n_steps = padded_batch // tm

    # Only pad when actually required; x stays f32 (cast happens in-kernel).
    if padded_batch != batch or feat != in0:
        xp = jnp.pad(x, ((0, padded_batch - batch), (0, in0 - feat)))
    else:
        xp = x

    # Megacore: only shard the batch axis across TCs when there is real
    # batch parallelism (avoids duplicating the weight stream at small batch).
    semantics = ("parallel",) if n_steps > 1 else ("arbitrary",)

    flops = 2 * padded_batch * sum(w.shape[0] * w.shape[1]
                                   for (w, _) in packed_params)
    bytes_accessed = (xp.size * 4
                      + sum(w.size * 2 + b.size * 4 for (w, b) in packed_params)
                      + padded_batch * cp * 2)

    def build(single_buffer_weights):
        def wspec(shape):
            if single_buffer_weights:
                return pl.BlockSpec(shape, lambda i: (0, 0),
                                    pipeline_mode=pl.Buffered(1))
            return pl.BlockSpec(shape, lambda i: (0, 0))

        return pl.pallas_call(
            _fc_fused_kernel,
            out_shape=jax.ShapeDtypeStruct((padded_batch, cp), jnp.bfloat16),
            grid=(n_steps,),
            in_specs=[
                # x: one batch tile per grid step (double-buffered by default)
                pl.BlockSpec((tm, in0), lambda i: (i, 0)),
                # weights / biases: constant index_map -> VMEM-resident
                wspec(w1.shape), wspec(b1.shape),
                wspec(w2.shape), wspec(b2.shape),
                wspec(w3.shape), wspec(b3.shape),
                wspec(w4.shape), wspec(b4.shape),
            ],
            out_specs=pl.BlockSpec((tm, cp), lambda i: (i, 0)),
            compiler_params=pltpu.CompilerParams(
                dimension_semantics=semantics,
                vmem_limit_bytes=24 * 1024 * 1024,
            ),
            cost_estimate=pl.CostEstimate(
                flops=int(flops), transcendentals=0,
                bytes_accessed=int(bytes_accessed)),
        )

    args = (xp, w1, b1, w2, b2, w3, b3, w4, b4)
    try:
        out = build(True)(*args)
    except Exception:
        # Fallback if this JAX build rejects Buffered(1) on pallas_call specs.
        out = build(False)(*args)

    return out[:batch, :classes].astype(jnp.float32)


# ---------------------------------------------------------------------------
# Reference (same bf16-matmul / f32-accumulate / bf16-store path, pure JAX)
# ---------------------------------------------------------------------------
def _reference_forward(x, packed_params, classes):
    if x.ndim == 4:
        b, c, h, w = x.shape
        x = x.reshape(b, h * w)
    feat = x.shape[1]
    in0 = packed_params[0][0].shape[0]
    h_ = jnp.pad(x.astype(jnp.float32),
                 ((0, 0), (0, in0 - feat))).astype(jnp.bfloat16)
    for wt, bias in packed_params:
        acc = jnp.dot(h_, wt, preferred_element_type=jnp.float32) + bias
        acc = jnp.maximum(acc, 0.0)
        h_ = acc.astype(jnp.bfloat16)
    return h_[:, :classes].astype(jnp.float32)


if __name__ == "__main__":
    key = jax.random.PRNGKey(0)
    key, kx = jax.random.split(key)

    batch, chan, H, W = 2, 1, 16, 16        # NCHW; chan must be 1 per forward()
    input_size = H * W                      # 256
    classes = 10

    raw_params = init_fc_params(key, input_size, classes)
    packed = pack_params_for_kernel(raw_params, input_size, classes)

    x = jax.random.normal(kx, (batch, chan, H, W), jnp.float32)

    y = fc_forward(x, packed, classes)
    y = jax.block_until_ready(y)

    y_ref = _reference_forward(x, packed, classes)
    assert y.shape == (batch, classes)
    assert jnp.allclose(y, y_ref, atol=5e-2, rtol=5e-2), "mismatch vs reference"

    print("KERNEL_OK")
</pallas_src>

<mosaic_0001>
module attributes {stable_mosaic.version = 11 : i64} {
  func.func @_fc_fused_kernel(%arg0: i32, %arg1: memref<16x256xf32, #tpu.memory_space<vmem>>, %arg2: memref<256x1024xbf16, #tpu.memory_space<vmem>>, %arg3: memref<1x1024xf32, #tpu.memory_space<vmem>>, %arg4: memref<1024x896xbf16, #tpu.memory_space<vmem>>, %arg5: memref<1x896xf32, #tpu.memory_space<vmem>>, %arg6: memref<896x512xbf16, #tpu.memory_space<vmem>>, %arg7: memref<1x512xf32, #tpu.memory_space<vmem>>, %arg8: memref<512x128xbf16, #tpu.memory_space<vmem>>, %arg9: memref<1x128xf32, #tpu.memory_space<vmem>>, %arg10: memref<16x128xbf16, #tpu.memory_space<vmem>>) attributes {dimension_semantics = [#tpu.dimension_semantics<arbitrary>], iteration_bounds = array<i64: 1>, scalar_prefetch = 0 : i64, scratch_operands = 0 : i64, tpu.core_type = #tpu.core_type<tc>, window_params = [{transform_indices = @transform_0, window_bounds = array<i64: 16, 256>}, {pipeline_mode = #tpu.pipeline_mode<synchronous>, transform_indices = @transform_1, window_bounds = array<i64: 256, 1024>}, {pipeline_mode = #tpu.pipeline_mode<synchronous>, transform_indices = @transform_2, window_bounds = array<i64: 1, 1024>}, {pipeline_mode = #tpu.pipeline_mode<synchronous>, transform_indices = @transform_3, window_bounds = array<i64: 1024, 896>}, {pipeline_mode = #tpu.pipeline_mode<synchronous>, transform_indices = @transform_4, window_bounds = array<i64: 1, 896>}, {pipeline_mode = #tpu.pipeline_mode<synchronous>, transform_indices = @transform_5, window_bounds = array<i64: 896, 512>}, {pipeline_mode = #tpu.pipeline_mode<synchronous>, transform_indices = @transform_6, window_bounds = array<i64: 1, 512>}, {pipeline_mode = #tpu.pipeline_mode<synchronous>, transform_indices = @transform_7, window_bounds = array<i64: 512, 128>}, {pipeline_mode = #tpu.pipeline_mode<synchronous>, transform_indices = @transform_8, window_bounds = array<i64: 1, 128>}, {transform_indices = @transform_9, window_bounds = array<i64: 16, 128>}]} {
    %c0 = arith.constant 0 : index
    %c0_0 = arith.constant 0 : index
    %0 = vector.load %arg1[%c0, %c0_0] : memref<16x256xf32, #tpu.memory_space<vmem>>, vector<16x256xf32>
    %1 = arith.truncf %0 : vector<16x256xf32> to vector<16x256xbf16>
    %c0_1 = arith.constant 0 : index
    %c0_2 = arith.constant 0 : index
    %2 = vector.load %arg2[%c0_1, %c0_2] : memref<256x1024xbf16, #tpu.memory_space<vmem>>, vector<256x1024xbf16>
    %cst = arith.constant dense<0.000000e+00> : vector<16x1024xf32>
    %3 = tpu.matmul %1, %2, %cst {dimension_numbers = #tpu.dot_dimension_numbers<[1], [0], [0], [1], [0, 0, 1, 1], [], []>} : vector<16x256xbf16>, vector<256x1024xbf16>, vector<16x1024xf32> -> vector<16x1024xf32>
    %c0_3 = arith.constant 0 : index
    %c0_4 = arith.constant 0 : index
    %4 = vector.load %arg3[%c0_3, %c0_4] : memref<1x1024xf32, #tpu.memory_space<vmem>>, vector<1x1024xf32>
    %5 = vector.broadcast %4 : vector<1x1024xf32> to vector<16x1024xf32>
    %6 = arith.addf %3, %5 : vector<16x1024xf32>
    %cst_5 = arith.constant 0.000000e+00 : f32
    %7 = vector.broadcast %cst_5 : f32 to vector<16x1024xf32>
    %8 = arith.maximumf %6, %7 : vector<16x1024xf32>
    %9 = arith.truncf %8 : vector<16x1024xf32> to vector<16x1024xbf16>
    %c0_6 = arith.constant 0 : index
    %c0_7 = arith.constant 0 : index
    %10 = vector.load %arg4[%c0_6, %c0_7] : memref<1024x896xbf16, #tpu.memory_space<vmem>>, vector<1024x896xbf16>
    %cst_8 = arith.constant dense<0.000000e+00> : vector<16x896xf32>
    %11 = tpu.matmul %9, %10, %cst_8 {dimension_numbers = #tpu.dot_dimension_numbers<[1], [0], [0], [1], [0, 0, 1, 1], [], []>} : vector<16x1024xbf16>, vector<1024x896xbf16>, vector<16x896xf32> -> vector<16x896xf32>
    %c0_9 = arith.constant 0 : index
    %c0_10 = arith.constant 0 : index
    %12 = vector.load %arg5[%c0_9, %c0_10] : memref<1x896xf32, #tpu.memory_space<vmem>>, vector<1x896xf32>
    %13 = vector.broadcast %12 : vector<1x896xf32> to vector<16x896xf32>
    %14 = arith.addf %11, %13 : vector<16x896xf32>
    %cst_11 = arith.constant 0.000000e+00 : f32
    %15 = vector.broadcast %cst_11 : f32 to vector<16x896xf32>
    %16 = arith.maximumf %14, %15 : vector<16x896xf32>
    %17 = arith.truncf %16 : vector<16x896xf32> to vector<16x896xbf16>
    %c0_12 = arith.constant 0 : index
    %c0_13 = arith.constant 0 : index
    %18 = vector.load %arg6[%c0_12, %c0_13] : memref<896x512xbf16, #tpu.memory_space<vmem>>, vector<896x512xbf16>
    %cst_14 = arith.constant dense<0.000000e+00> : vector<16x512xf32>
    %19 = tpu.matmul %17, %18, %cst_14 {dimension_numbers = #tpu.dot_dimension_numbers<[1], [0], [0], [1], [0, 0, 1, 1], [], []>} : vector<16x896xbf16>, vector<896x512xbf16>, vector<16x512xf32> -> vector<16x512xf32>
    %c0_15 = arith.constant 0 : index
    %c0_16 = arith.constant 0 : index
    %20 = vector.load %arg7[%c0_15, %c0_16] : memref<1x512xf32, #tpu.memory_space<vmem>>, vector<1x512xf32>
    %21 = vector.broadcast %20 : vector<1x512xf32> to vector<16x512xf32>
    %22 = arith.addf %19, %21 : vector<16x512xf32>
    %cst_17 = arith.constant 0.000000e+00 : f32
    %23 = vector.broadcast %cst_17 : f32 to vector<16x512xf32>
    %24 = arith.maximumf %22, %23 : vector<16x512xf32>
    %25 = arith.truncf %24 : vector<16x512xf32> to vector<16x512xbf16>
    %c0_18 = arith.constant 0 : index
    %c0_19 = arith.constant 0 : index
    %26 = vector.load %arg8[%c0_18, %c0_19] : memref<512x128xbf16, #tpu.memory_space<vmem>>, vector<512x128xbf16>
    %cst_20 = arith.constant dense<0.000000e+00> : vector<16x128xf32>
    %27 = tpu.matmul %25, %26, %cst_20 {dimension_numbers = #tpu.dot_dimension_numbers<[1], [0], [0], [1], [0, 0, 1, 1], [], []>} : vector<16x512xbf16>, vector<512x128xbf16>, vector<16x128xf32> -> vector<16x128xf32>
    %c0_21 = arith.constant 0 : index
    %c0_22 = arith.constant 0 : index
    %28 = vector.load %arg9[%c0_21, %c0_22] : memref<1x128xf32, #tpu.memory_space<vmem>>, vector<1x128xf32>
    %29 = vector.broadcast %28 : vector<1x128xf32> to vector<16x128xf32>
    %30 = arith.addf %27, %29 : vector<16x128xf32>
    %cst_23 = arith.constant 0.000000e+00 : f32
    %31 = vector.broadcast %cst_23 : f32 to vector<16x128xf32>
    %32 = arith.maximumf %30, %31 : vector<16x128xf32>
    %33 = arith.truncf %32 : vector<16x128xf32> to vector<16x128xbf16>
    %c0_24 = arith.constant 0 : index
    %c0_25 = arith.constant 0 : index
    %34 = vector.load %arg10[%c0_24, %c0_25] : memref<16x128xbf16, #tpu.memory_space<vmem>>, vector<16x128xbf16>
    tpu.vector_store %arg10[%c0_24, %c0_25], %33 {strides = array<i32>} : memref<16x128xbf16, #tpu.memory_space<vmem>>, vector<16x128xbf16>,
    return
  }
  func.func @transform_0(%arg0: i32) -> (i32, i32) {
    %c0_i32 = arith.constant 0 : i32
    %c0_i32_0 = arith.constant 0 : i32
    return %arg0, %c0_i32 : i32, i32
  }
  func.func @transform_1(%arg0: i32) -> (i32, i32) {
    %c0_i32 = arith.constant 0 : i32
    %c0_i32_0 = arith.constant 0 : i32
    %c0_i32_1 = arith.constant 0 : i32
    return %c0_i32, %c0_i32_0 : i32, i32
  }
  func.func @transform_2(%arg0: i32) -> (i32, i32) {
    %c0_i32 = arith.constant 0 : i32
    %c0_i32_0 = arith.constant 0 : i32
    %c0_i32_1 = arith.constant 0 : i32
    return %c0_i32, %c0_i32_0 : i32, i32
  }
  func.func @transform_3(%arg0: i32) -> (i32, i32) {
    %c0_i32 = arith.constant 0 : i32
    %c0_i32_0 = arith.constant 0 : i32
    %c0_i32_1 = arith.constant 0 : i32
    return %c0_i32, %c0_i32_0 : i32, i32
  }
  func.func @transform_4(%arg0: i32) -> (i32, i32) {
    %c0_i32 = arith.constant 0 : i32
    %c0_i32_0 = arith.constant 0 : i32
    %c0_i32_1 = arith.constant 0 : i32
    return %c0_i32, %c0_i32_0 : i32, i32
  }
  func.func @transform_5(%arg0: i32) -> (i32, i32) {
    %c0_i32 = arith.constant 0 : i32
    %c0_i32_0 = arith.constant 0 : i32
    %c0_i32_1 = arith.constant 0 : i32
    return %c0_i32, %c0_i32_0 : i32, i32
  }
  func.func @transform_6(%arg0: i32) -> (i32, i32) {
    %c0_i32 = arith.constant 0 : i32
    %c0_i32_0 = arith.constant 0 : i32
    %c0_i32_1 = arith.constant 0 : i32
    return %c0_i32, %c0_i32_0 : i32, i32
  }
  func.func @transform_7(%arg0: i32) -> (i32, i32) {
    %c0_i32 = arith.constant 0 : i32
    %c0_i32_0 = arith.constant 0 : i32
    %c0_i32_1 = arith.constant 0 : i32
    return %c0_i32, %c0_i32_0 : i32, i32
  }
  func.func @transform_8(%arg0: i32) -> (i32, i32) {
    %c0_i32 = arith.constant 0 : i32
    %c0_i32_0 = arith.constant 0 : i32
    %c0_i32_1 = arith.constant 0 : i32
    return %c0_i32, %c0_i32_0 : i32, i32
  }
  func.func @transform_9(%arg0: i32) -> (i32, i32) {
    %c0_i32 = arith.constant 0 : i32
    %c0_i32_0 = arith.constant 0 : i32
    return %arg0, %c0_i32 : i32, i32
  }
}

module attributes {stable_mosaic.version = 11 : i64} {
  func.func @_fc_fused_kernel(%arg0: i32, %arg1: memref<16x256xf32, #tpu.memory_space<vmem>>, %arg2: memref<256x1024xbf16, #tpu.memory_space<vmem>>, %arg3: memref<1x1024xf32, #tpu.memory_space<vmem>>, %arg4: memref<1024x896xbf16, #tpu.memory_space<vmem>>, %arg5: memref<1x896xf32, #tpu.memory_space<vmem>>, %arg6: memref<896x512xbf16, #tpu.memory_space<vmem>>, %arg7: memref<1x512xf32, #tpu.memory_space<vmem>>, %arg8: memref<512x128xbf16, #tpu.memory_space<vmem>>, %arg9: memref<1x128xf32, #tpu.memory_space<vmem>>, %arg10: memref<16x128xbf16, #tpu.memory_space<vmem>>) attributes {dimension_semantics = [#tpu.dimension_semantics<arbitrary>], iteration_bounds = array<i64: 1>, scalar_prefetch = 0 : i64, scratch_operands = 0 : i64, tpu.core_type = #tpu.core_type<tc>, window_params = [{transform_indices = @transform_0, window_bounds = array<i64: 16, 256>}, {pipeline_mode = #tpu.pipeline_mode<synchronous>, transform_indices = @transform_1, window_bounds = array<i64: 256, 1024>}, {pipeline_mode = #tpu.pipeline_mode<synchronous>, transform_indices = @transform_2, window_bounds = array<i64: 1, 1024>}, {pipeline_mode = #tpu.pipeline_mode<synchronous>, transform_indices = @transform_3, window_bounds = array<i64: 1024, 896>}, {pipeline_mode = #tpu.pipeline_mode<synchronous>, transform_indices = @transform_4, window_bounds = array<i64: 1, 896>}, {pipeline_mode = #tpu.pipeline_mode<synchronous>, transform_indices = @transform_5, window_bounds = array<i64: 896, 512>}, {pipeline_mode = #tpu.pipeline_mode<synchronous>, transform_indices = @transform_6, window_bounds = array<i64: 1, 512>}, {pipeline_mode = #tpu.pipeline_mode<synchronous>, transform_indices = @transform_7, window_bounds = array<i64: 512, 128>}, {pipeline_mode = #tpu.pipeline_mode<synchronous>, transform_indices = @transform_8, window_bounds = array<i64: 1, 128>}, {transform_indices = @transform_9, window_bounds = array<i64: 16, 128>}]} {
    %c0 = arith.constant 0 : index
    %c0_0 = arith.constant 0 : index
    %0 = vector.load %arg1[%c0, %c0_0] : memref<16x256xf32, #tpu.memory_space<vmem>>, vector<16x256xf32>
    %1 = arith.truncf %0 : vector<16x256xf32> to vector<16x256xbf16>
    %c0_1 = arith.constant 0 : index
    %c0_2 = arith.constant 0 : index
    %2 = vector.load %arg2[%c0_1, %c0_2] : memref<256x1024xbf16, #tpu.memory_space<vmem>>, vector<256x1024xbf16>
    %cst = arith.constant dense<0.000000e+00> : vector<16x1024xf32>
    %3 = tpu.matmul %1, %2, %cst {dimension_numbers = #tpu.dot_dimension_numbers<[1], [0], [0], [1], [0, 0, 1, 1], [], []>} : vector<16x256xbf16>, vector<256x1024xbf16>, vector<16x1024xf32> -> vector<16x1024xf32>
    %c0_3 = arith.constant 0 : index
    %c0_4 = arith.constant 0 : index
    %4 = vector.load %arg3[%c0_3, %c0_4] : memref<1x1024xf32, #tpu.memory_space<vmem>>, vector<1x1024xf32>
    %5 = vector.broadcast %4 : vector<1x1024xf32> to vector<16x1024xf32>
    %6 = arith.addf %3, %5 : vector<16x1024xf32>
    %cst_5 = arith.constant 0.000000e+00 : f32
    %7 = vector.broadcast %cst_5 : f32 to vector<16x1024xf32>
    %8 = arith.maximumf %6, %7 : vector<16x1024xf32>
    %9 = arith.truncf %8 : vector<16x1024xf32> to vector<16x1024xbf16>
    %c0_6 = arith.constant 0 : index
    %c0_7 = arith.constant 0 : index
    %10 = vector.load %arg4[%c0_6, %c0_7] : memref<1024x896xbf16, #tpu.memory_space<vmem>>, vector<1024x896xbf16>
    %cst_8 = arith.constant dense<0.000000e+00> : vector<16x896xf32>
    %11 = tpu.matmul %9, %10, %cst_8 {dimension_numbers = #tpu.dot_dimension_numbers<[1], [0], [0], [1], [0, 0, 1, 1], [], []>} : vector<16x1024xbf16>, vector<1024x896xbf16>, vector<16x896xf32> -> vector<16x896xf32>
    %c0_9 = arith.constant 0 : index
    %c0_10 = arith.constant 0 : index
    %12 = vector.load %arg5[%c0_9, %c0_10] : memref<1x896xf32, #tpu.memory_space<vmem>>, vector<1x896xf32>
    %13 = vector.broadcast %12 : vector<1x896xf32> to vector<16x896xf32>
    %14 = arith.addf %11, %13 : vector<16x896xf32>
    %cst_11 = arith.constant 0.000000e+00 : f32
    %15 = vector.broadcast %cst_11 : f32 to vector<16x896xf32>
    %16 = arith.maximumf %14, %15 : vector<16x896xf32>
    %17 = arith.truncf %16 : vector<16x896xf32> to vector<16x896xbf16>
    %c0_12 = arith.constant 0 : index
    %c0_13 = arith.constant 0 : index
    %18 = vector.load %arg6[%c0_12, %c0_13] : memref<896x512xbf16, #tpu.memory_space<vmem>>, vector<896x512xbf16>
    %cst_14 = arith.constant dense<0.000000e+00> : vector<16x512xf32>
    %19 = tpu.matmul %17, %18, %cst_14 {dimension_numbers = #tpu.dot_dimension_numbers<[1], [0], [0], [1], [0, 0, 1, 1], [], []>} : vector<16x896xbf16>, vector<896x512xbf16>, vector<16x512xf32> -> vector<16x512xf32>
    %c0_15 = arith.constant 0 : index
    %c0_16 = arith.constant 0 : index
    %20 = vector.load %arg7[%c0_15, %c0_16] : memref<1x512xf32, #tpu.memory_space<vmem>>, vector<1x512xf32>
    %21 = vector.broadcast %20 : vector<1x512xf32> to vector<16x512xf32>
    %22 = arith.addf %19, %21 : vector<16x512xf32>
    %cst_17 = arith.constant 0.000000e+00 : f32
    %23 = vector.broadcast %cst_17 : f32 to vector<16x512xf32>
    %24 = arith.maximumf %22, %23 : vector<16x512xf32>
    %25 = arith.truncf %24 : vector<16x512xf32> to vector<16x512xbf16>
    %c0_18 = arith.constant 0 : index
    %c0_19 = arith.constant 0 : index
    %26 = vector.load %arg8[%c0_18, %c0_19] : memref<512x128xbf16, #tpu.memory_space<vmem>>, vector<512x128xbf16>
    %cst_20 = arith.constant dense<0.000000e+00> : vector<16x128xf32>
    %27 = tpu.matmul %25, %26, %cst_20 {dimension_numbers = #tpu.dot_dimension_numbers<[1], [0], [0], [1], [0, 0, 1, 1], [], []>} : vector<16x512xbf16>, vector<512x128xbf16>, vector<16x128xf32> -> vector<16x128xf32>
    %c0_21 = arith.constant 0 : index
    %c0_22 = arith.constant 0 : index
    %28 = vector.load %arg9[%c0_21, %c0_22] : memref<1x128xf32, #tpu.memory_space<vmem>>, vector<1x128xf32>
    %29 = vector.broadcast %28 : vector<1x128xf32> to vector<16x128xf32>
    %30 = arith.addf %27, %29 : vector<16x128xf32>
    %cst_23 = arith.constant 0.000000e+00 : f32
    %31 = vector.broadcast %cst_23 : f32 to vector<16x128xf32>
    %32 = arith.maximumf %30, %31 : vector<16x128xf32>
    %33 = arith.truncf %32 : vector<16x128xf32> to vector<16x128xbf16>
    %c0_24 = arith.constant 0 : index
    %c0_25 = arith.constant 0 : index
    %34 = vector.load %arg10[%c0_24, %c0_25] : memref<16x128xbf16, #tpu.memory_space<vmem>>, vector<16x128xbf16>
    tpu.vector_store %arg10[%c0_24, %c0_25], %33 {strides = array<i32>} : memref<16x128xbf16, #tpu.memory_space<vmem>>, vector<16x128xbf16>,
    return
  }
  func.func @transform_0(%arg0: i32) -> (i32, i32) {
    %c0_i32 = arith.constant 0 : i32
    %c0_i32_0 = arith.constant 0 : i32
    return %arg0, %c0_i32 : i32, i32
  }
  func.func @transform_1(%arg0: i32) -> (i32, i32) {
    %c0_i32 = arith.constant 0 : i32
    %c0_i32_0 = arith.constant 0 : i32
    %c0_i32_1 = arith.constant 0 : i32
    return %c0_i32, %c0_i32_0 : i32, i32
  }
  func.func @transform_2(%arg0: i32) -> (i32, i32) {
    %c0_i32 = arith.constant 0 : i32
    %c0_i32_0 = arith.constant 0 : i32
    %c0_i32_1 = arith.constant 0 : i32
    return %c0_i32, %c0_i32_0 : i32, i32
  }
  func.func @transform_3(%arg0: i32) -> (i32, i32) {
    %c0_i32 = arith.constant 0 : i32
    %c0_i32_0 = arith.constant 0 : i32
    %c0_i32_1 = arith.constant 0 : i32
    return %c0_i32, %c0_i32_0 : i32, i32
  }
  func.func @transform_4(%arg0: i32) -> (i32, i32) {
    %c0_i32 = arith.constant 0 : i32
    %c0_i32_0 = arith.constant 0 : i32
    %c0_i32_1 = arith.constant 0 : i32
    return %c0_i32, %c0_i32_0 : i32, i32
  }
  func.func @transform_5(%arg0: i32) -> (i32, i32) {
    %c0_i32 = arith.constant 0 : i32
    %c0_i32_0 = arith.constant 0 : i32
    %c0_i32_1 = arith.constant 0 : i32
    return %c0_i32, %c0_i32_0 : i32, i32
  }
  func.func @transform_6(%arg0: i32) -> (i32, i32) {
    %c0_i32 = arith.constant 0 : i32
    %c0_i32_0 = arith.constant 0 : i32
    %c0_i32_1 = arith.constant 0 : i32
    return %c0_i32, %c0_i32_0 : i32, i32
  }
  func.func @transform_7(%arg0: i32) -> (i32, i32) {
    %c0_i32 = arith.constant 0 : i32
    %c0_i32_0 = arith.constant 0 : i32
    %c0_i32_1 = arith.constant 0 : i32
    return %c0_i32, %c0_i32_0 : i32, i32
  }
  func.func @transform_8(%arg0: i32) -> (i32, i32) {
    %c0_i32 = arith.constant 0 : i32
    %c0_i32_0 = arith.constant 0 : i32
    %c0_i32_1 = arith.constant 0 : i32
    return %c0_i32, %c0_i32_0 : i32, i32
  }
  func.func @transform_9(%arg0: i32) -> (i32, i32) {
    %c0_i32 = arith.constant 0 : i32
    %c0_i32_0 = arith.constant 0 : i32
    return %arg0, %c0_i32 : i32, i32
  }
}

</mosaic_0001>

<llo_original>
// kernel: tpu_custom_call.1
$region0: #{tpu_custom_call.1}
  #allocation0 [shape = 'u32[]', space=smem, size = 0x4, offset = 0x4, fixed_abs, tag = 'smem constant byte address 0x4 - core index']
  #allocation1 [shape = 'u32[72,128]{1,0:T(1,128)}', space=vmem, size = 0x9000, scoped, tag = 'internal scratch']
  %s0 = inlined_call_operand.hbm [shape: f32[16,256], index: 0, kind: input, shape index: {}]
  %s1 = inlined_call_operand.hbm [shape: bf16[256,1024], index: 1, kind: input, shape index: {}]
  %s2 = inlined_call_operand.hbm [shape: f32[1,1024], index: 2, kind: input, shape index: {}]
  %s3 = inlined_call_operand.hbm [shape: bf16[1024,896], index: 3, kind: input, shape index: {}]
  %s4 = inlined_call_operand.hbm [shape: f32[1,896], index: 4, kind: input, shape index: {}]
  %s5 = inlined_call_operand.hbm [shape: bf16[896,512], index: 5, kind: input, shape index: {}]
  %s6 = inlined_call_operand.hbm [shape: f32[1,512], index: 6, kind: input, shape index: {}]
  %s7 = inlined_call_operand.hbm [shape: bf16[512,128], index: 7, kind: input, shape index: {}]
  %s8 = inlined_call_operand.hbm [shape: f32[1,128], index: 8, kind: input, shape index: {}]
  %s9 = inlined_call_operand.hbm [shape: bf16[16,128], index: 9, kind: output, shape index: {}]
  %s10 = sld [smem:[#allocation0]]
  $region82: #{tpu_custom_call.1} parent=0
    _
  %s12 = ssub.s32 1, %s10
  %s13 = scalar_select 0, %s12, %s10
  $region1: #{tpu_custom_call.1} parent=0
    #allocation2 [shape = 'u8[16384]{0}', space=vmem, size = 0x4000, scoped, tag = 'input window, operand 0, single buffered']
    #allocation3 [shape = 's32[1]{0}', space=sflag, size = 0x4, scoped, tag = 'scoped memory for tpu_custom_call.1']
    #allocation4 [shape = 's32[1]{0}', space=sflag, size = 0x4, scoped, tag = 'scoped memory for tpu_custom_call.1']
    #allocation5 [shape = 'u8[524288]{0}', space=vmem, size = 0x80000, scoped, tag = 'input window, operand 1, single buffered']
    #allocation6 [shape = 's32[1]{0}', space=sflag, size = 0x4, scoped, tag = 'scoped memory for tpu_custom_call.1']
    #allocation7 [shape = 'u8[4096]{0}', space=vmem, size = 0x1000, scoped, tag = 'input window, operand 2, single buffered']
    #allocation8 [shape = 'u8[1835008]{0}', space=vmem, size = 0x1c0000, scoped, tag = 'input window, operand 3, single buffered']
    #allocation9 [shape = 's32[1]{0}', space=sflag, size = 0x4, scoped, tag = 'scoped memory for tpu_custom_call.1']
    #allocation10 [shape = 'u8[3584]{0}', space=vmem, size = 0x1000, scoped, tag = 'input window, operand 4, single buffered']
    #allocation11 [shape = 'u8[917504]{0}', space=vmem, size = 0xe0000, scoped, tag = 'input window, operand 5, single buffered']
    #allocation12 [shape = 's32[1]{0}', space=sflag, size = 0x4, scoped, tag = 'scoped memory for tpu_custom_call.1']
    #allocation13 [shape = 'u8[2048]{0}', space=vmem, size = 0x800, scoped, tag = 'input window, operand 6, single buffered']
    #allocation14 [shape = 'u8[131072]{0}', space=vmem, size = 0x20000, scoped, tag = 'input window, operand 7, single buffered']
    #allocation15 [shape = 's32[1]{0}', space=sflag, size = 0x4, scoped, tag = 'scoped memory for tpu_custom_call.1']
    #allocation16 [shape = 'u8[512]{0}', space=vmem, size = 0x400, scoped, tag = 'input window, operand 8, single buffered']
    #allocation17 [shape = 'u8[4096]{0}', space=vmem, size = 0x1000, scoped, tag = 'output window, operand 0, single buffered']
    %14 = vsyncpa [#allocation3], 0
    %15 = vsyncpa [#allocation6], 0
    %16 = vsyncpa [#allocation9], 0
    %17 = vsyncpa [#allocation12], 0
    %18 = vsyncpa [#allocation15], 0
    %19 = vsyncpa [#allocation4], 0
    // Predicated region
    $region2: #{tpu_custom_call.1} parent=1 // pred_check
      _
    $region3: #{tpu_custom_call.1} parent=1 // pred_check_branch
      %21 = sbr.rel (0) target = $region5
    $region4: #{tpu_custom_call.1} parent=1 // pred_region
      %23 = vsyncadd [#allocation3], 0
      %s24 = sshll.u32 %s0, 4
      %s25 = int_to_ptr.hbm [resolvable:$true] %s24
      %s26 = sshll.u32 [#allocation2], 4
      %s27 = int_to_ptr.vmem [resolvable:$true] %s26
      %32 = dma.hbm_to_vmem [thread:$0]  %s25, 512, %s27, [#allocation3], 256, 256, 16
    $region5: #{tpu_custom_call.1} parent=1 // pred_fallthru
      _
    // Predicated region
    $region6: #{tpu_custom_call.1} parent=1 // pred_check
      _
    $region7: #{tpu_custom_call.1} parent=1 // pred_check_branch
      %34 = sbr.rel (0) target = $region9
    $region8: #{tpu_custom_call.1} parent=1 // pred_region
      %36 = vsyncadd [#allocation6], 0
      %s37 = sshll.u32 %s1, 4
      %s38 = int_to_ptr.hbm [resolvable:$true] %s37
      %s39 = sshll.u32 [#allocation5], 4
      %s40 = int_to_ptr.vmem [resolvable:$true] %s39
      %45 = dma.hbm_to_vmem [thread:$0]  %s38, 16384, %s40, [#allocation6], 512, 512, 32
    $region9: #{tpu_custom_call.1} parent=1 // pred_fallthru
      _
    // Predicated region
    $region10: #{tpu_custom_call.1} parent=1 // pred_check
      _
    $region11: #{tpu_custom_call.1} parent=1 // pred_check_branch
      %47 = sbr.rel (0) target = $region13
    $region12: #{tpu_custom_call.1} parent=1 // pred_region
      %49 = vsyncadd [#allocation6], 0
      %s51 = sshll.u32 %s2, 4
      %s52 = int_to_ptr.hbm [resolvable:$true] %s51
      %s53 = sshll.u32 [#allocation7], 4
      %s54 = int_to_ptr.vmem [resolvable:$true] %s53
      %56 = dma.hbm_to_vmem [thread:$0]  %s52, 128, %s54, [#allocation6]
    $region13: #{tpu_custom_call.1} parent=1 // pred_fallthru
      _
    // Predicated region
    $region14: #{tpu_custom_call.1} parent=1 // pred_check
      _
    $region15: #{tpu_custom_call.1} parent=1 // pred_check_branch
      %58 = sbr.rel (0) target = $region17
    $region16: #{tpu_custom_call.1} parent=1 // pred_region
      %60 = vsyncadd [#allocation9], 0
      %s61 = sshll.u32 %s3, 4
      %s62 = int_to_ptr.hbm [resolvable:$true] %s61
      %s63 = sshll.u32 [#allocation8], 4
      %s64 = int_to_ptr.vmem [resolvable:$true] %s63
      %69 = dma.hbm_to_vmem [thread:$0]  %s62, 57344, %s64, [#allocation9], 448, 448, 28
    $region17: #{tpu_custom_call.1} parent=1 // pred_fallthru
      _
    // Predicated region
    $region18: #{tpu_custom_call.1} parent=1 // pred_check
      _
    $region19: #{tpu_custom_call.1} parent=1 // pred_check_branch
      %71 = sbr.rel (0) target = $region21
    $region20: #{tpu_custom_call.1} parent=1 // pred_region
      %73 = vsyncadd [#allocation9], 0
      %s75 = sshll.u32 %s4, 4
      %s76 = int_to_ptr.hbm [resolvable:$true] %s75
      %s77 = sshll.u32 [#allocation10], 4
      %s78 = int_to_ptr.vmem [resolvable:$true] %s77
      %80 = dma.hbm_to_vmem [thread:$0]  %s76, 112, %s78, [#allocation9]
    $region21: #{tpu_custom_call.1} parent=1 // pred_fallthru
      _
    // Predicated region
    $region22: #{tpu_custom_call.1} parent=1 // pred_check
      _
    $region23: #{tpu_custom_call.1} parent=1 // pred_check_branch
      %82 = sbr.rel (0) target = $region25
    $region24: #{tpu_custom_call.1} parent=1 // pred_region
      %84 = vsyncadd [#allocation12], 0
      %s85 = sshll.u32 %s5, 4
      %s86 = int_to_ptr.hbm [resolvable:$true] %s85
      %s87 = sshll.u32 [#allocation11], 4
      %s88 = int_to_ptr.vmem [resolvable:$true] %s87
      %93 = dma.hbm_to_vmem [thread:$0]  %s86, 28672, %s88, [#allocation12], 256, 256, 16
    $region25: #{tpu_custom_call.1} parent=1 // pred_fallthru
      _
    // Predicated region
    $region26: #{tpu_custom_call.1} parent=1 // pred_check
      _
    $region27: #{tpu_custom_call.1} parent=1 // pred_check_branch
      %95 = sbr.rel (0) target = $region29
    $region28: #{tpu_custom_call.1} parent=1 // pred_region
      %97 = vsyncadd [#allocation12], 0
      %s99 = sshll.u32 %s6, 4
      %s100 = int_to_ptr.hbm [resolvable:$true] %s99
      %s101 = sshll.u32 [#allocation13], 4
      %s102 = int_to_ptr.vmem [resolvable:$true] %s101
      %104 = dma.hbm_to_vmem [thread:$0]  %s100, 64, %s102, [#allocation12]
    $region29: #{tpu_custom_call.1} parent=1 // pred_fallthru
      _
    // Predicated region
    $region30: #{tpu_custom_call.1} parent=1 // pred_check
      _
    $region31: #{tpu_custom_call.1} parent=1 // pred_check_branch
      %106 = sbr.rel (0) target = $region33
    $region32: #{tpu_custom_call.1} parent=1 // pred_region
      %108 = vsyncadd [#allocation15], 0
      %s109 = sshll.u32 %s7, 4
      %s110 = int_to_ptr.hbm [resolvable:$true] %s109
      %s111 = sshll.u32 [#allocation14], 4
      %s112 = int_to_ptr.vmem [resolvable:$true] %s111
      %117 = dma.hbm_to_vmem [thread:$0]  %s110, 4096, %s112, [#allocation15], 64, 64, 4
    $region33: #{tpu_custom_call.1} parent=1 // pred_fallthru
      _
    // Predicated region
    $region34: #{tpu_custom_call.1} parent=1 // pred_check
      _
    $region35: #{tpu_custom_call.1} parent=1 // pred_check_branch
      %119 = sbr.rel (0) target = $region37
    $region36: #{tpu_custom_call.1} parent=1 // pred_region
      %121 = vsyncadd [#allocation15], 0
      %s123 = sshll.u32 %s8, 4
      %s124 = int_to_ptr.hbm [resolvable:$true] %s123
      %s125 = sshll.u32 [#allocation16], 4
      %s126 = int_to_ptr.vmem [resolvable:$true] %s125
      %128 = dma.hbm_to_vmem [thread:$0]  %s124, 16, %s126, [#allocation15]
    $region37: #{tpu_custom_call.1} parent=1 // pred_fallthru
      _
    // Predicated region
    $region38: #{tpu_custom_call.1} parent=1 // pred_check
      _
    $region39: #{tpu_custom_call.1} parent=1 // pred_check_branch
      %130 = sbr.rel (0) target = $region41
    $region40: #{tpu_custom_call.1} parent=1 // pred_region
      %132 = dma.done [#allocation3], 512
    $region41: #{tpu_custom_call.1} parent=1 // pred_fallthru
      _
    // Predicated region
    $region42: #{tpu_custom_call.1} parent=1 // pred_check
      _
    $region43: #{tpu_custom_call.1} parent=1 // pred_check_branch
      %134 = sbr.rel (0) target = $region45
    $region44: #{tpu_custom_call.1} parent=1 // pred_region
      %136 = dma.done [#allocation6], 16384
    $region45: #{tpu_custom_call.1} parent=1 // pred_fallthru
      _
    // Predicated region
    $region46: #{tpu_custom_call.1} parent=1 // pred_check
      _
    $region47: #{tpu_custom_call.1} parent=1 // pred_check_branch
      %138 = sbr.rel (0) target = $region49
    $region48: #{tpu_custom_call.1} parent=1 // pred_region
      %140 = dma.done [#allocation6], 128
    $region49: #{tpu_custom_call.1} parent=1 // pred_fallthru
      _
    // Predicated region
    $region50: #{tpu_custom_call.1} parent=1 // pred_check
      _
    $region51: #{tpu_custom_call.1} parent=1 // pred_check_branch
      %142 = sbr.rel (0) target = $region53
    $region52: #{tpu_custom_call.1} parent=1 // pred_region
      %144 = dma.done [#allocation9], 57344
    $region53: #{tpu_custom_call.1} parent=1 // pred_fallthru
      _
    // Predicated region
    $region54: #{tpu_custom_call.1} parent=1 // pred_check
      _
    $region55: #{tpu_custom_call.1} parent=1 // pred_check_branch
      %146 = sbr.rel (0) target = $region57
    $region56: #{tpu_custom_call.1} parent=1 // pred_region
      %148 = dma.done [#allocation9], 112
    $region57: #{tpu_custom_call.1} parent=1 // pred_fallthru
      _
    // Predicated region
    $region58: #{tpu_custom_call.1} parent=1 // pred_check
      _
    $region59: #{tpu_custom_call.1} parent=1 // pred_check_branch
      %150 = sbr.rel (0) target = $region61
    $region60: #{tpu_custom_call.1} parent=1 // pred_region
      %152 = dma.done [#allocation12], 28672
    $region61: #{tpu_custom_call.1} parent=1 // pred_fallthru
      _
    // Predicated region
    $region62: #{tpu_custom_call.1} parent=1 // pred_check
      _
    $region63: #{tpu_custom_call.1} parent=1 // pred_check_branch
      %154 = sbr.rel (0) target = $region65
    $region64: #{tpu_custom_call.1} parent=1 // pred_region
      %156 = dma.done [#allocation12], 64
    $region65: #{tpu_custom_call.1} parent=1 // pred_fallthru
      _
    // Predicated region
    $region66: #{tpu_custom_call.1} parent=1 // pred_check
      _
    $region67: #{tpu_custom_call.1} parent=1 // pred_check_branch
      %158 = sbr.rel (0) target = $region69
    $region68: #{tpu_custom_call.1} parent=1 // pred_region
      %160 = dma.done [#allocation15], 4096
    $region69: #{tpu_custom_call.1} parent=1 // pred_fallthru
      _
    // Predicated region
    $region70: #{tpu_custom_call.1} parent=1 // pred_check
      _
    $region71: #{tpu_custom_call.1} parent=1 // pred_check_branch
      %162 = sbr.rel (0) target = $region73
    $region72: #{tpu_custom_call.1} parent=1 // pred_region
      %164 = dma.done [#allocation15], 16
    $region73: #{tpu_custom_call.1} parent=1 // pred_fallthru
      _
    %v165 = vld [vmem:[#allocation2] sm:$0xff]
    %v166 = vld [vmem:[#allocation2 + $0x8] sm:$0xff]
    %v167 = vld [vmem:[#allocation2 + $0x10] sm:$0xff]
    %v168 = vld [vmem:[#allocation2 + $0x18] sm:$0xff]
    %v169 = vpack.c.bf16 %v167, %v165
    %v170 = vpack.c.bf16 %v168, %v166
    %v171 = vld [vmem:[#allocation5] sm:$0xff]
    %v172 = vld [vmem:[#allocation5 + $0x8] sm:$0xff]
    %v173 = vld [vmem:[#allocation5 + $0x10] sm:$0xff]
    %v174 = vld [vmem:[#allocation5 + $0x18] sm:$0xff]
    %v175 = vld [vmem:[#allocation5 + $0x20] sm:$0xff]
    %v176 = vld [vmem:[#allocation5 + $0x28] sm:$0xff]
    %v177 = vld [vmem:[#allocation5 + $0x30] sm:$0xff]
    %v178 = vld [vmem:[#allocation5 + $0x38] sm:$0xff]
    %v179 = vld [vmem:[#allocation5 + $0x40] sm:$0xff]
    %v180 = vld [vmem:[#allocation5 + $0x48] sm:$0xff]
    %v181 = vld [vmem:[#allocation5 + $0x50] sm:$0xff]
    %v182 = vld [vmem:[#allocation5 + $0x58] sm:$0xff]
    %v183 = vld [vmem:[#allocation5 + $0x60] sm:$0xff]
    %v184 = vld [vmem:[#allocation5 + $0x68] sm:$0xff]
    %v185 = vld [vmem:[#allocation5 + $0x70] sm:$0xff]
    %v186 = vld [vmem:[#allocation5 + $0x78] sm:$0xff]
    %v187 = vld [vmem:[#allocation5 + $0x80] sm:$0xff]
    %v188 = vld [vmem:[#allocation5 + $0x88] sm:$0xff]
    %v189 = vld [vmem:[#allocation5 + $0x90] sm:$0xff]
    %v190 = vld [vmem:[#allocation5 + $0x98] sm:$0xff]
    %v191 = vld [vmem:[#allocation5 + $0xa0] sm:$0xff]
    %v192 = vld [vmem:[#allocation5 + $0xa8] sm:$0xff]
    %v193 = vld [vmem:[#allocation5 + $0xb0] sm:$0xff]
    %v194 = vld [vmem:[#allocation5 + $0xb8] sm:$0xff]
    %v195 = vld [vmem:[#allocation5 + $0xc0] sm:$0xff]
    %v196 = vld [vmem:[#allocation5 + $0xc8] sm:$0xff]
    %v197 = vld [vmem:[#allocation5 + $0xd0] sm:$0xff]
    %v198 = vld [vmem:[#allocation5 + $0xd8] sm:$0xff]
    %v199 = vld [vmem:[#allocation5 + $0xe0] sm:$0xff]
    %v200 = vld [vmem:[#allocation5 + $0xe8] sm:$0xff]
    %v201 = vld [vmem:[#allocation5 + $0xf0] sm:$0xff]
    %v202 = vld [vmem:[#allocation5 + $0xf8] sm:$0xff]
    %v203 = vld [vmem:[#allocation5 + $0x100] sm:$0xff]
    %v204 = vld [vmem:[#allocation5 + $0x108] sm:$0xff]
    %v205 = vld [vmem:[#allocation5 + $0x110] sm:$0xff]
    %v206 = vld [vmem:[#allocation5 + $0x118] sm:$0xff]
    %v207 = vld [vmem:[#allocation5 + $0x120] sm:$0xff]
    %v208 = vld [vmem:[#allocation5 + $0x128] sm:$0xff]
    %v209 = vld [vmem:[#allocation5 + $0x130] sm:$0xff]
    %v210 = vld [vmem:[#allocation5 + $0x138] sm:$0xff]
    %v211 = vld [vmem:[#allocation5 + $0x140] sm:$0xff]
    %v212 = vld [vmem:[#allocation5 + $0x148] sm:$0xff]
    %v213 = vld [vmem:[#allocation5 + $0x150] sm:$0xff]
    %v214 = vld [vmem:[#allocation5 + $0x158] sm:$0xff]
    %v215 = vld [vmem:[#allocation5 + $0x160] sm:$0xff]
    %v216 = vld [vmem:[#allocation5 + $0x168] sm:$0xff]
    %v217 = vld [vmem:[#allocation5 + $0x170] sm:$0xff]
    %v218 = vld [vmem:[#allocation5 + $0x178] sm:$0xff]
    %v219 = vld [vmem:[#allocation5 + $0x180] sm:$0xff]
    %v220 = vld [vmem:[#allocation5 + $0x188] sm:$0xff]
    %v221 = vld [vmem:[#allocation5 + $0x190] sm:$0xff]
    %v222 = vld [vmem:[#allocation5 + $0x198] sm:$0xff]
    %v223 = vld [vmem:[#allocation5 + $0x1a0] sm:$0xff]
    %v224 = vld [vmem:[#allocation5 + $0x1a8] sm:$0xff]
    %v225 = vld [vmem:[#allocation5 + $0x1b0] sm:$0xff]
    %v226 = vld [vmem:[#allocation5 + $0x1b8] sm:$0xff]
    %v227 = vld [vmem:[#allocation5 + $0x1c0] sm:$0xff]
    %v228 = vld [vmem:[#allocation5 + $0x1c8] sm:$0xff]
    %v229 = vld [vmem:[#allocation5 + $0x1d0] sm:$0xff]
    %v230 = vld [vmem:[#allocation5 + $0x1d8] sm:$0xff]
    %v231 = vld [vmem:[#allocation5 + $0x1e0] sm:$0xff]
    %v232 = vld [vmem:[#allocation5 + $0x1e8] sm:$0xff]
    %v233 = vld [vmem:[#allocation5 + $0x1f0] sm:$0xff]
    %v234 = vld [vmem:[#allocation5 + $0x1f8] sm:$0xff]
    %v235 = vld [vmem:[#allocation5 + $0x200] sm:$0xff]
    %v236 = vld [vmem:[#allocation5 + $0x208] sm:$0xff]
    %v237 = vld [vmem:[#allocation5 + $0x210] sm:$0xff]
    %v238 = vld [vmem:[#allocation5 + $0x218] sm:$0xff]
    %v239 = vld [vmem:[#allocation5 + $0x220] sm:$0xff]
    %v240 = vld [vmem:[#allocation5 + $0x228] sm:$0xff]
    %v241 = vld [vmem:[#allocation5 + $0x230] sm:$0xff]
    %v242 = vld [vmem:[#allocation5 + $0x238] sm:$0xff]
    %v243 = vld [vmem:[#allocation5 + $0x240] sm:$0xff]
    %v244 = vld [vmem:[#allocation5 + $0x248] sm:$0xff]
    %v245 = vld [vmem:[#allocation5 + $0x250] sm:$0xff]
    %v246 = vld [vmem:[#allocation5 + $0x258] sm:$0xff]
    %v247 = vld [vmem:[#allocation5 + $0x260] sm:$0xff]
    %v248 = vld [vmem:[#allocation5 + $0x268] sm:$0xff]
    %v249 = vld [vmem:[#allocation5 + $0x270] sm:$0xff]
    %v250 = vld [vmem:[#allocation5 + $0x278] sm:$0xff]
    %v251 = vld [vmem:[#allocation5 + $0x280] sm:$0xff]
    %v252 = vld [vmem:[#allocation5 + $0x288] sm:$0xff]
    %v253 = vld [vmem:[#allocation5 + $0x290] sm:$0xff]
    %v254 = vld [vmem:[#allocation5 + $0x298] sm:$0xff]
    %v255 = vld [vmem:[#allocation5 + $0x2a0] sm:$0xff]
    %v256 = vld [vmem:[#allocation5 + $0x2a8] sm:$0xff]
    %v257 = vld [vmem:[#allocation5 + $0x2b0] sm:$0xff]
    %v258 = vld [vmem:[#allocation5 + $0x2b8] sm:$0xff]
    %v259 = vld [vmem:[#allocation5 + $0x2c0] sm:$0xff]
    %v260 = vld [vmem:[#allocation5 + $0x2c8] sm:$0xff]
    %v261 = vld [vmem:[#allocation5 + $0x2d0] sm:$0xff]
    %v262 = vld [vmem:[#allocation5 + $0x2d8] sm:$0xff]
    %v263 = vld [vmem:[#allocation5 + $0x2e0] sm:$0xff]
    %v264 = vld [vmem:[#allocation5 + $0x2e8] sm:$0xff]
    %v265 = vld [vmem:[#allocation5 + $0x2f0] sm:$0xff]
    %v266 = vld [vmem:[#allocation5 + $0x2f8] sm:$0xff]
    %v267 = vld [vmem:[#allocation5 + $0x300] sm:$0xff]
    %v268 = vld [vmem:[#allocation5 + $0x308] sm:$0xff]
    %v269 = vld [vmem:[#allocation5 + $0x310] sm:$0xff]
    %v270 = vld [vmem:[#allocation5 + $0x318] sm:$0xff]
    %v271 = vld [vmem:[#allocation5 + $0x320] sm:$0xff]
    %v272 = vld [vmem:[#allocation5 + $0x328] sm:$0xff]
    %v273 = vld [vmem:[#allocation5 + $0x330] sm:$0xff]
    %v274 = vld [vmem:[#allocation5 + $0x338] sm:$0xff]
    %v275 = vld [vmem:[#allocation5 + $0x340] sm:$0xff]
    %v276 = vld [vmem:[#allocation5 + $0x348] sm:$0xff]
    %v277 = vld [vmem:[#allocation5 + $0x350] sm:$0xff]
    %v278 = vld [vmem:[#allocation5 + $0x358] sm:$0xff]
    %v279 = vld [vmem:[#allocation5 + $0x360] sm:$0xff]
    %v280 = vld [vmem:[#allocation5 + $0x368] sm:$0xff]
    %v281 = vld [vmem:[#allocation5 + $0x370] sm:$0xff]
    %v282 = vld [vmem:[#allocation5 + $0x378] sm:$0xff]
    %v283 = vld [vmem:[#allocation5 + $0x380] sm:$0xff]
    %v284 = vld [vmem:[#allocation5 + $0x388] sm:$0xff]
    %v285 = vld [vmem:[#allocation5 + $0x390] sm:$0xff]
    %v286 = vld [vmem:[#allocation5 + $0x398] sm:$0xff]
    %v287 = vld [vmem:[#allocation5 + $0x3a0] sm:$0xff]
    %v288 = vld [vmem:[#allocation5 + $0x3a8] sm:$0xff]
    %v289 = vld [vmem:[#allocation5 + $0x3b0] sm:$0xff]
    %v290 = vld [vmem:[#allocation5 + $0x3b8] sm:$0xff]
    %v291 = vld [vmem:[#allocation5 + $0x3c0] sm:$0xff]
    %v292 = vld [vmem:[#allocation5 + $0x3c8] sm:$0xff]
    %v293 = vld [vmem:[#allocation5 + $0x3d0] sm:$0xff]
    %v294 = vld [vmem:[#allocation5 + $0x3d8] sm:$0xff]
    %v295 = vld [vmem:[#allocation5 + $0x3e0] sm:$0xff]
    %v296 = vld [vmem:[#allocation5 + $0x3e8] sm:$0xff]
    %v297 = vld [vmem:[#allocation5 + $0x3f0] sm:$0xff]
    %v298 = vld [vmem:[#allocation5 + $0x3f8] sm:$0xff]
    %v299 = vld [vmem:[#allocation7] sm:$0xff]
    %v301 = vperm.slane %v299, 0
    %v302 = vperm.slane %v299, 1
    %v303 = vperm.slane %v299, 2
    %v304 = vperm.slane %v299, 3
    %v305 = vperm.slane %v299, 4
    %v306 = vperm.slane %v299, 5
    %v307 = vperm.slane %v299, 6
    %v308 = vperm.slane %v299, 7
    %v445 = vunpack.c.l.b16 %v171
    %v446 = vunpack.c.h.b16 %v171
    %v447 = vunpack.c.l.b16 %v172
    %v448 = vunpack.c.h.b16 %v172
    %v449 = vunpack.c.l.b16 %v173
    %v450 = vunpack.c.h.b16 %v173
    %v451 = vunpack.c.l.b16 %v174
    %v452 = vunpack.c.h.b16 %v174
    %v453 = vunpack.c.l.b16 %v175
    %v454 = vunpack.c.h.b16 %v175
    %v455 = vunpack.c.l.b16 %v176
    %v456 = vunpack.c.h.b16 %v176
    %v457 = vunpack.c.l.b16 %v177
    %v458 = vunpack.c.h.b16 %v177
    %v459 = vunpack.c.l.b16 %v178
    %v460 = vunpack.c.h.b16 %v178
    %v461 = vunpack.c.l.b16 %v179
    %v462 = vunpack.c.h.b16 %v179
    %v463 = vunpack.c.l.b16 %v180
    %v464 = vunpack.c.h.b16 %v180
    %v465 = vunpack.c.l.b16 %v181
    %v466 = vunpack.c.h.b16 %v181
    %v467 = vunpack.c.l.b16 %v182
    %v468 = vunpack.c.h.b16 %v182
    %v469 = vunpack.c.l.b16 %v183
    %v470 = vunpack.c.h.b16 %v183
    %v471 = vunpack.c.l.b16 %v184
    %v472 = vunpack.c.h.b16 %v184
    %v473 = vunpack.c.l.b16 %v185
    %v474 = vunpack.c.h.b16 %v185
    %v475 = vunpack.c.l.b16 %v186
    %v476 = vunpack.c.h.b16 %v186
    %v477 = vunpack.c.l.b16 %v187
    %v478 = vunpack.c.h.b16 %v187
    %v479 = vunpack.c.l.b16 %v188
    %v480 = vunpack.c.h.b16 %v188
    %v481 = vunpack.c.l.b16 %v189
    %v482 = vunpack.c.h.b16 %v189
    %v483 = vunpack.c.l.b16 %v190
    %v484 = vunpack.c.h.b16 %v190
    %v485 = vunpack.c.l.b16 %v191
    %v486 = vunpack.c.h.b16 %v191
    %v487 = vunpack.c.l.b16 %v192
    %v488 = vunpack.c.h.b16 %v192
    %v489 = vunpack.c.l.b16 %v193
    %v490 = vunpack.c.h.b16 %v193
    %v491 = vunpack.c.l.b16 %v194
    %v492 = vunpack.c.h.b16 %v194
    %v493 = vunpack.c.l.b16 %v195
    %v494 = vunpack.c.h.b16 %v195
    %v495 = vunpack.c.l.b16 %v196
    %v496 = vunpack.c.h.b16 %v196
    %v497 = vunpack.c.l.b16 %v197
    %v498 = vunpack.c.h.b16 %v197
    %v499 = vunpack.c.l.b16 %v198
    %v500 = vunpack.c.h.b16 %v198
    %v501 = vunpack.c.l.b16 %v199
    %v502 = vunpack.c.h.b16 %v199
    %v503 = vunpack.c.l.b16 %v200
    %v504 = vunpack.c.h.b16 %v200
    %v505 = vunpack.c.l.b16 %v201
    %v506 = vunpack.c.h.b16 %v201
    %v507 = vunpack.c.l.b16 %v202
    %v508 = vunpack.c.h.b16 %v202
    %v509 = vunpack.c.l.b16 %v203
    %v510 = vunpack.c.h.b16 %v203
    %v511 = vunpack.c.l.b16 %v204
    %v512 = vunpack.c.h.b16 %v204
    %v513 = vunpack.c.l.b16 %v205
    %v514 = vunpack.c.h.b16 %v205
    %v515 = vunpack.c.l.b16 %v206
    %v516 = vunpack.c.h.b16 %v206
    %v517 = vunpack.c.l.b16 %v207
    %v518 = vunpack.c.h.b16 %v207
    %v519 = vunpack.c.l.b16 %v208
    %v520 = vunpack.c.h.b16 %v208
    %v521 = vunpack.c.l.b16 %v209
    %v522 = vunpack.c.h.b16 %v209
    %v523 = vunpack.c.l.b16 %v210
    %v524 = vunpack.c.h.b16 %v210
    %v525 = vunpack.c.l.b16 %v211
    %v526 = vunpack.c.h.b16 %v211
    %v527 = vunpack.c.l.b16 %v212
    %v528 = vunpack.c.h.b16 %v212
    %v529 = vunpack.c.l.b16 %v213
    %v530 = vunpack.c.h.b16 %v213
    %v531 = vunpack.c.l.b16 %v214
    %v532 = vunpack.c.h.b16 %v214
    %v533 = vunpack.c.l.b16 %v215
    %v534 = vunpack.c.h.b16 %v215
    %v535 = vunpack.c.l.b16 %v216
    %v536 = vunpack.c.h.b16 %v216
    %v537 = vunpack.c.l.b16 %v217
    %v538 = vunpack.c.h.b16 %v217
    %v539 = vunpack.c.l.b16 %v218
    %v540 = vunpack.c.h.b16 %v218
    %v541 = vunpack.c.l.b16 %v219
    %v542 = vunpack.c.h.b16 %v219
    %v543 = vunpack.c.l.b16 %v220
    %v544 = vunpack.c.h.b16 %v220
    %v545 = vunpack.c.l.b16 %v221
    %v546 = vunpack.c.h.b16 %v221
    %v547 = vunpack.c.l.b16 %v222
    %v548 = vunpack.c.h.b16 %v222
    %v549 = vunpack.c.l.b16 %v223
    %v550 = vunpack.c.h.b16 %v223
    %v551 = vunpack.c.l.b16 %v224
    %v552 = vunpack.c.h.b16 %v224
    %v553 = vunpack.c.l.b16 %v225
    %v554 = vunpack.c.h.b16 %v225
    %v555 = vunpack.c.l.b16 %v226
    %v556 = vunpack.c.h.b16 %v226
    %v557 = vunpack.c.l.b16 %v227
    %v558 = vunpack.c.h.b16 %v227
    %v559 = vunpack.c.l.b16 %v228
    %v560 = vunpack.c.h.b16 %v228
    %v561 = vunpack.c.l.b16 %v229
    %v562 = vunpack.c.h.b16 %v229
    %v563 = vunpack.c.l.b16 %v230
    %v564 = vunpack.c.h.b16 %v230
    %v565 = vunpack.c.l.b16 %v231
    %v566 = vunpack.c.h.b16 %v231
    %v567 = vunpack.c.l.b16 %v232
    %v568 = vunpack.c.h.b16 %v232
    %v569 = vunpack.c.l.b16 %v233
    %v570 = vunpack.c.h.b16 %v233
    %v571 = vunpack.c.l.b16 %v234
    %v572 = vunpack.c.h.b16 %v234
    %v573 = vunpack.c.l.b16 %v235
    %v574 = vunpack.c.h.b16 %v235
    %v575 = vunpack.c.l.b16 %v236
    %v576 = vunpack.c.h.b16 %v236
    %v577 = vunpack.c.l.b16 %v237
    %v578 = vunpack.c.h.b16 %v237
    %v579 = vunpack.c.l.b16 %v238
    %v580 = vunpack.c.h.b16 %v238
    %v581 = vunpack.c.l.b16 %v239
    %v582 = vunpack.c.h.b16 %v239
    %v583 = vunpack.c.l.b16 %v240
    %v584 = vunpack.c.h.b16 %v240
    %v585 = vunpack.c.l.b16 %v241
    %v586 = vunpack.c.h.b16 %v241
    %v587 = vunpack.c.l.b16 %v242
    %v588 = vunpack.c.h.b16 %v242
    %v589 = vunpack.c.l.b16 %v243
    %v590 = vunpack.c.h.b16 %v243
    %v591 = vunpack.c.l.b16 %v244
    %v592 = vunpack.c.h.b16 %v244
    %v593 = vunpack.c.l.b16 %v245
    %v594 = vunpack.c.h.b16 %v245
    %v595 = vunpack.c.l.b16 %v246
    %v596 = vunpack.c.h.b16 %v246
    %v597 = vunpack.c.l.b16 %v247
    %v598 = vunpack.c.h.b16 %v247
    %v599 = vunpack.c.l.b16 %v248
    %v600 = vunpack.c.h.b16 %v248
    %v601 = vunpack.c.l.b16 %v249
    %v602 = vunpack.c.h.b16 %v249
    %v603 = vunpack.c.l.b16 %v250
    %v604 = vunpack.c.h.b16 %v250
    %v605 = vunpack.c.l.b16 %v251
    %v606 = vunpack.c.h.b16 %v251
    %v607 = vunpack.c.l.b16 %v252
    %v608 = vunpack.c.h.b16 %v252
    %v609 = vunpack.c.l.b16 %v253
    %v610 = vunpack.c.h.b16 %v253
    %v611 = vunpack.c.l.b16 %v254
    %v612 = vunpack.c.h.b16 %v254
    %v613 = vunpack.c.l.b16 %v255
    %v614 = vunpack.c.h.b16 %v255
    %v615 = vunpack.c.l.b16 %v256
    %v616 = vunpack.c.h.b16 %v256
    %v617 = vunpack.c.l.b16 %v257
    %v618 = vunpack.c.h.b16 %v257
    %v619 = vunpack.c.l.b16 %v258
    %v620 = vunpack.c.h.b16 %v258
    %v621 = vunpack.c.l.b16 %v259
    %v622 = vunpack.c.h.b16 %v259
    %v623 = vunpack.c.l.b16 %v260
    %v624 = vunpack.c.h.b16 %v260
    %v625 = vunpack.c.l.b16 %v261
    %v626 = vunpack.c.h.b16 %v261
    %v627 = vunpack.c.l.b16 %v262
    %v628 = vunpack.c.h.b16 %v262
    %v629 = vunpack.c.l.b16 %v263
    %v630 = vunpack.c.h.b16 %v263
    %v631 = vunpack.c.l.b16 %v264
    %v632 = vunpack.c.h.b16 %v264
    %v633 = vunpack.c.l.b16 %v265
    %v634 = vunpack.c.h.b16 %v265
    %v635 = vunpack.c.l.b16 %v266
    %v636 = vunpack.c.h.b16 %v266
    %v637 = vunpack.c.l.b16 %v267
    %v638 = vunpack.c.h.b16 %v267
    %v639 = vunpack.c.l.b16 %v268
    %v640 = vunpack.c.h.b16 %v268
    %v641 = vunpack.c.l.b16 %v269
    %v642 = vunpack.c.h.b16 %v269
    %v643 = vunpack.c.l.b16 %v270
    %v644 = vunpack.c.h.b16 %v270
    %v645 = vunpack.c.l.b16 %v271
    %v646 = vunpack.c.h.b16 %v271
    %v647 = vunpack.c.l.b16 %v272
    %v648 = vunpack.c.h.b16 %v272
    %v649 = vunpack.c.l.b16 %v273
    %v650 = vunpack.c.h.b16 %v273
    %v651 = vunpack.c.l.b16 %v274
    %v652 = vunpack.c.h.b16 %v274
    %v653 = vunpack.c.l.b16 %v275
    %v654 = vunpack.c.h.b16 %v275
    %v655 = vunpack.c.l.b16 %v276
    %v656 = vunpack.c.h.b16 %v276
    %v657 = vunpack.c.l.b16 %v277
    %v658 = vunpack.c.h.b16 %v277
    %v659 = vunpack.c.l.b16 %v278
    %v660 = vunpack.c.h.b16 %v278
    %v661 = vunpack.c.l.b16 %v279
    %v662 = vunpack.c.h.b16 %v279
    %v663 = vunpack.c.l.b16 %v280
    %v664 = vunpack.c.h.b16 %v280
    %v665 = vunpack.c.l.b16 %v281
    %v666 = vunpack.c.h.b16 %v281
    %v667 = vunpack.c.l.b16 %v282
    %v668 = vunpack.c.h.b16 %v282
    %v669 = vunpack.c.l.b16 %v283
    %v670 = vunpack.c.h.b16 %v283
    %v671 = vunpack.c.l.b16 %v284
    %v672 = vunpack.c.h.b16 %v284
    %v673 = vunpack.c.l.b16 %v285
    %v674 = vunpack.c.h.b16 %v285
    %v675 = vunpack.c.l.b16 %v286
    %v676 = vunpack.c.h.b16 %v286
    %v677 = vunpack.c.l.b16 %v287
    %v678 = vunpack.c.h.b16 %v287
    %v679 = vunpack.c.l.b16 %v288
    %v680 = vunpack.c.h.b16 %v288
    %v681 = vunpack.c.l.b16 %v289
    %v682 = vunpack.c.h.b16 %v289
    %v683 = vunpack.c.l.b16 %v290
    %v684 = vunpack.c.h.b16 %v290
    %v685 = vunpack.c.l.b16 %v291
    %v686 = vunpack.c.h.b16 %v291
    %v687 = vunpack.c.l.b16 %v292
    %v688 = vunpack.c.h.b16 %v292
    %v689 = vunpack.c.l.b16 %v293
    %v690 = vunpack.c.h.b16 %v293
    %v691 = vunpack.c.l.b16 %v294
    %v692 = vunpack.c.h.b16 %v294
    %v693 = vunpack.c.l.b16 %v295
    %v694 = vunpack.c.h.b16 %v295
    %v695 = vunpack.c.l.b16 %v296
    %v696 = vunpack.c.h.b16 %v296
    %v697 = vunpack.c.l.b16 %v297
    %v698 = vunpack.c.h.b16 %v297
    %v699 = vunpack.c.l.b16 %v298
    %v700 = vunpack.c.h.b16 %v298
    %v701 = vpack.c.b16 %v453, %v445
    %v702 = vpack.c.b16 %v454, %v446
    %v703 = vpack.c.b16 %v455, %v447
    %v704 = vpack.c.b16 %v456, %v448
    %v705 = vpack.c.b16 %v457, %v449
    %v706 = vpack.c.b16 %v458, %v450
    %v707 = vpack.c.b16 %v459, %v451
    %v708 = vpack.c.b16 %v460, %v452
    %v709 = vpack.c.b16 %v469, %v461
    %v710 = vpack.c.b16 %v470, %v462
    %v711 = vpack.c.b16 %v471, %v463
    %v712 = vpack.c.b16 %v472, %v464
    %v713 = vpack.c.b16 %v473, %v465
    %v714 = vpack.c.b16 %v474, %v466
    %v715 = vpack.c.b16 %v475, %v467
    %v716 = vpack.c.b16 %v476, %v468
    %v717 = vpack.c.b16 %v485, %v477
    %v718 = vpack.c.b16 %v486, %v478
    %v719 = vpack.c.b16 %v487, %v479
    %v720 = vpack.c.b16 %v488, %v480
    %v721 = vpack.c.b16 %v489, %v481
    %v722 = vpack.c.b16 %v490, %v482
    %v723 = vpack.c.b16 %v491, %v483
    %v724 = vpack.c.b16 %v492, %v484
    %v725 = vpack.c.b16 %v501, %v493
    %v726 = vpack.c.b16 %v502, %v494
    %v727 = vpack.c.b16 %v503, %v495
    %v728 = vpack.c.b16 %v504, %v496
    %v729 = vpack.c.b16 %v505, %v497
    %v730 = vpack.c.b16 %v506, %v498
    %v731 = vpack.c.b16 %v507, %v499
    %v732 = vpack.c.b16 %v508, %v500
    %v733 = vpack.c.b16 %v517, %v509
    %v734 = vpack.c.b16 %v518, %v510
    %v735 = vpack.c.b16 %v519, %v511
    %v736 = vpack.c.b16 %v520, %v512
    %v737 = vpack.c.b16 %v521, %v513
    %v738 = vpack.c.b16 %v522, %v514
    %v739 = vpack.c.b16 %v523, %v515
    %v740 = vpack.c.b16 %v524, %v516
    %v741 = vpack.c.b16 %v533, %v525
    %v742 = vpack.c.b16 %v534, %v526
    %v743 = vpack.c.b16 %v535, %v527
    %v744 = vpack.c.b16 %v536, %v528
    %v745 = vpack.c.b16 %v537, %v529
    %v746 = vpack.c.b16 %v538, %v530
    %v747 = vpack.c.b16 %v539, %v531
    %v748 = vpack.c.b16 %v540, %v532
    %v749 = vpack.c.b16 %v549, %v541
    %v750 = vpack.c.b16 %v550, %v542
    %v751 = vpack.c.b16 %v551, %v543
    %v752 = vpack.c.b16 %v552, %v544
    %v753 = vpack.c.b16 %v553, %v545
    %v754 = vpack.c.b16 %v554, %v546
    %v755 = vpack.c.b16 %v555, %v547
    %v756 = vpack.c.b16 %v556, %v548
    %v757 = vpack.c.b16 %v565, %v557
    %v758 = vpack.c.b16 %v566, %v558
    %v759 = vpack.c.b16 %v567, %v559
    %v760 = vpack.c.b16 %v568, %v560
    %v761 = vpack.c.b16 %v569, %v561
    %v762 = vpack.c.b16 %v570, %v562
    %v763 = vpack.c.b16 %v571, %v563
    %v764 = vpack.c.b16 %v572, %v564
    %v765 = vpack.c.b16 %v581, %v573
    %v766 = vpack.c.b16 %v582, %v574
    %v767 = vpack.c.b16 %v583, %v575
    %v768 = vpack.c.b16 %v584, %v576
    %v769 = vpack.c.b16 %v585, %v577
    %v770 = vpack.c.b16 %v586, %v578
    %v771 = vpack.c.b16 %v587, %v579
    %v772 = vpack.c.b16 %v588, %v580
    %v773 = vpack.c.b16 %v597, %v589
    %v774 = vpack.c.b16 %v598, %v590
    %v775 = vpack.c.b16 %v599, %v591
    %v776 = vpack.c.b16 %v600, %v592
    %v777 = vpack.c.b16 %v601, %v593
    %v778 = vpack.c.b16 %v602, %v594
    %v779 = vpack.c.b16 %v603, %v595
    %v780 = vpack.c.b16 %v604, %v596
    %v781 = vpack.c.b16 %v613, %v605
    %v782 = vpack.c.b16 %v614, %v606
    %v783 = vpack.c.b16 %v615, %v607
    %v784 = vpack.c.b16 %v616, %v608
    %v785 = vpack.c.b16 %v617, %v609
    %v786 = vpack.c.b16 %v618, %v610
    %v787 = vpack.c.b16 %v619, %v611
    %v788 = vpack.c.b16 %v620, %v612
    %v789 = vpack.c.b16 %v629, %v621
    %v790 = vpack.c.b16 %v630, %v622
    %v791 = vpack.c.b16 %v631, %v623
    %v792 = vpack.c.b16 %v632, %v624
    %v793 = vpack.c.b16 %v633, %v625
    %v794 = vpack.c.b16 %v634, %v626
    %v795 = vpack.c.b16 %v635, %v627
    %v796 = vpack.c.b16 %v636, %v628
    %v797 = vpack.c.b16 %v645, %v637
    %v798 = vpack.c.b16 %v646, %v638
    %v799 = vpack.c.b16 %v647, %v639
    %v800 = vpack.c.b16 %v648, %v640
    %v801 = vpack.c.b16 %v649, %v641
    %v802 = vpack.c.b16 %v650, %v642
    %v803 = vpack.c.b16 %v651, %v643
    %v804 = vpack.c.b16 %v652, %v644
    %v805 = vpack.c.b16 %v661, %v653
    %v806 = vpack.c.b16 %v662, %v654
    %v807 = vpack.c.b16 %v663, %v655
    %v808 = vpack.c.b16 %v664, %v656
    %v809 = vpack.c.b16 %v665, %v657
    %v810 = vpack.c.b16 %v666, %v658
    %v811 = vpack.c.b16 %v667, %v659
    %v812 = vpack.c.b16 %v668, %v660
    %v813 = vpack.c.b16 %v677, %v669
    %v814 = vpack.c.b16 %v678, %v670
    %v815 = vpack.c.b16 %v679, %v671
    %v816 = vpack.c.b16 %v680, %v672
    %v817 = vpack.c.b16 %v681, %v673
    %v818 = vpack.c.b16 %v682, %v674
    %v819 = vpack.c.b16 %v683, %v675
    %v820 = vpack.c.b16 %v684, %v676
    %v821 = vpack.c.b16 %v693, %v685
    %v822 = vpack.c.b16 %v694, %v686
    %v823 = vpack.c.b16 %v695, %v687
    %v824 = vpack.c.b16 %v696, %v688
    %v825 = vpack.c.b16 %v697, %v689
    %v826 = vpack.c.b16 %v698, %v690
    %v827 = vpack.c.b16 %v699, %v691
    %v828 = vpack.c.b16 %v700, %v692
    %957 = vmatpush.bf16.msra.mxu0 %v757
    %958 = vmatpush.bf16.msra.mxu0 %v749
    %959 = vmatpush.bf16.msra.mxu0 %v741
    %960 = vmatpush.bf16.msra.mxu0 %v733
    %961 = vmatpush.bf16.msra.mxu0 %v725
    %962 = vmatpush.bf16.msra.mxu0 %v717
    %963 = vmatpush.bf16.msra.mxu0 %v709
    %964 = vmatpush.bf16.msra.mxu0 %v701
    %965 = vmatmul.bf16.gmra.mxu0 %v169
    %v966 = vpop.f32.mrf.mxu0
    %v967 = vadd.f32 %v301, %v966
    %v968 = vpop.f32.mrf.mxu0
    %v969 = vadd.f32 %v301, %v968
    %970 = vdwg.mxu0
    %971 = vmatpush.bf16.msra.mxu0 %v821
    %972 = vmatpush.bf16.msra.mxu0 %v813
    %973 = vmatpush.bf16.msra.mxu0 %v805
    %974 = vmatpush.bf16.msra.mxu0 %v797
    %975 = vmatpush.bf16.msra.mxu0 %v789
    %976 = vmatpush.bf16.msra.mxu0 %v781
    %977 = vmatpush.bf16.msra.mxu0 %v773
    %978 = vmatpush.bf16.msra.mxu0 %v765
    %979 = vmatmul.bf16.gmra.mxu0 %v170
    %v980 = vpop.f32.mrf.mxu0
    %v981 = vadd.f32 %v967, %v980
    %v982 = vpop.f32.mrf.mxu0
    %v983 = vadd.f32 %v969, %v982
    %984 = vdwg.mxu0
    %985 = vmatpush.bf16.msra.mxu0 %v758
    %986 = vmatpush.bf16.msra.mxu0 %v750
    %987 = vmatpush.bf16.msra.mxu0 %v742
    %988 = vmatpush.bf16.msra.mxu0 %v734
    %989 = vmatpush.bf16.msra.mxu0 %v726
    %990 = vmatpush.bf16.msra.mxu0 %v718
    %991 = vmatpush.bf16.msra.mxu0 %v710
    %992 = vmatpush.bf16.msra.mxu0 %v702
    %993 = vmatmul.bf16.gmra.mxu0 %v169
    %v994 = vpop.f32.mrf.mxu0
    %v995 = vadd.f32 %v302, %v994
    %v996 = vpop.f32.mrf.mxu0
    %v997 = vadd.f32 %v302, %v996
    %998 = vdwg.mxu0
    %999 = vmatpush.bf16.msra.mxu0 %v822
    %1000 = vmatpush.bf16.msra.mxu0 %v814
    %1001 = vmatpush.bf16.msra.mxu0 %v806
    %1002 = vmatpush.bf16.msra.mxu0 %v798
    %1003 = vmatpush.bf16.msra.mxu0 %v790
    %1004 = vmatpush.bf16.msra.mxu0 %v782
    %1005 = vmatpush.bf16.msra.mxu0 %v774
    %1006 = vmatpush.bf16.msra.mxu0 %v766
    %1007 = vmatmul.bf16.gmra.mxu0 %v170
    %v1008 = vpop.f32.mrf.mxu0
    %v1009 = vadd.f32 %v995, %v1008
    %v1010 = vpop.f32.mrf.mxu0
    %v1011 = vadd.f32 %v997, %v1010
    %1012 = vdwg.mxu0
    %1013 = vmatpush.bf16.msra.mxu0 %v759
    %1014 = vmatpush.bf16.msra.mxu0 %v751
    %1015 = vmatpush.bf16.msra.mxu0 %v743
    %1016 = vmatpush.bf16.msra.mxu0 %v735
    %1017 = vmatpush.bf16.msra.mxu0 %v727
    %1018 = vmatpush.bf16.msra.mxu0 %v719
    %1019 = vmatpush.bf16.msra.mxu0 %v711
    %1020 = vmatpush.bf16.msra.mxu0 %v703
    %1021 = vmatmul.bf16.gmra.mxu0 %v169
    %v1022 = vpop.f32.mrf.mxu0
    %v1023 = vadd.f32 %v303, %v1022
    %v1024 = vpop.f32.mrf.mxu0
    %v1025 = vadd.f32 %v303, %v1024
    %1026 = vdwg.mxu0
    %1027 = vmatpush.bf16.msra.mxu0 %v823
    %1028 = vmatpush.bf16.msra.mxu0 %v815
    %1029 = vmatpush.bf16.msra.mxu0 %v807
    %1030 = vmatpush.bf16.msra.mxu0 %v799
    %1031 = vmatpush.bf16.msra.mxu0 %v791
    %1032 = vmatpush.bf16.msra.mxu0 %v783
    %1033 = vmatpush.bf16.msra.mxu0 %v775
    %1034 = vmatpush.bf16.msra.mxu0 %v767
    %1035 = vmatmul.bf16.gmra.mxu0 %v170
    %v1036 = vpop.f32.mrf.mxu0
    %v1037 = vadd.f32 %v1023, %v1036
    %v1038 = vpop.f32.mrf.mxu0
    %v1039 = vadd.f32 %v1025, %v1038
    %1040 = vdwg.mxu0
    %1041 = vmatpush.bf16.msra.mxu0 %v760
    %1042 = vmatpush.bf16.msra.mxu0 %v752
    %1043 = vmatpush.bf16.msra.mxu0 %v744
    %1044 = vmatpush.bf16.msra.mxu0 %v736
    %1045 = vmatpush.bf16.msra.mxu0 %v728
    %1046 = vmatpush.bf16.msra.mxu0 %v720
    %1047 = vmatpush.bf16.msra.mxu0 %v712
    %1048 = vmatpush.bf16.msra.mxu0 %v704
    %1049 = vmatmul.bf16.gmra.mxu0 %v169
    %v1050 = vpop.f32.mrf.mxu0
    %v1051 = vadd.f32 %v304, %v1050
    %v1052 = vpop.f32.mrf.mxu0
    %v1053 = vadd.f32 %v304, %v1052
    %1054 = vdwg.mxu0
    %1055 = vmatpush.bf16.msra.mxu0 %v824
    %1056 = vmatpush.bf16.msra.mxu0 %v816
    %1057 = vmatpush.bf16.msra.mxu0 %v808
    %1058 = vmatpush.bf16.msra.mxu0 %v800
    %1059 = vmatpush.bf16.msra.mxu0 %v792
    %1060 = vmatpush.bf16.msra.mxu0 %v784
    %1061 = vmatpush.bf16.msra.mxu0 %v776
    %1062 = vmatpush.bf16.msra.mxu0 %v768
    %1063 = vmatmul.bf16.gmra.mxu0 %v170
    %v1064 = vpop.f32.mrf.mxu0
    %v1065 = vadd.f32 %v1051, %v1064
    %v1066 = vpop.f32.mrf.mxu0
    %v1067 = vadd.f32 %v1053, %v1066
    %1068 = vdwg.mxu0
    %1069 = vmatpush.bf16.msra.mxu0 %v761
    %1070 = vmatpush.bf16.msra.mxu0 %v753
    %1071 = vmatpush.bf16.msra.mxu0 %v745
    %1072 = vmatpush.bf16.msra.mxu0 %v737
    %1073 = vmatpush.bf16.msra.mxu0 %v729
    %1074 = vmatpush.bf16.msra.mxu0 %v721
    %1075 = vmatpush.bf16.msra.mxu0 %v713
    %1076 = vmatpush.bf16.msra.mxu0 %v705
    %1077 = vmatmul.bf16.gmra.mxu0 %v169
    %v1078 = vpop.f32.mrf.mxu0
    %v1079 = vadd.f32 %v305, %v1078
    %v1080 = vpop.f32.mrf.mxu0
    %v1081 = vadd.f32 %v305, %v1080
    %1082 = vdwg.mxu0
    %1083 = vmatpush.bf16.msra.mxu0 %v825
    %1084 = vmatpush.bf16.msra.mxu0 %v817
    %1085 = vmatpush.bf16.msra.mxu0 %v809
    %1086 = vmatpush.bf16.msra.mxu0 %v801
    %1087 = vmatpush.bf16.msra.mxu0 %v793
    %1088 = vmatpush.bf16.msra.mxu0 %v785
    %1089 = vmatpush.bf16.msra.mxu0 %v777
    %1090 = vmatpush.bf16.msra.mxu0 %v769
    %1091 = vmatmul.bf16.gmra.mxu0 %v170
    %v1092 = vpop.f32.mrf.mxu0
    %v1093 = vadd.f32 %v1079, %v1092
    %v1094 = vpop.f32.mrf.mxu0
    %v1095 = vadd.f32 %v1081, %v1094
    %1096 = vdwg.mxu0
    %1097 = vmatpush.bf16.msra.mxu0 %v762
    %1098 = vmatpush.bf16.msra.mxu0 %v754
    %1099 = vmatpush.bf16.msra.mxu0 %v746
    %1100 = vmatpush.bf16.msra.mxu0 %v738
    %1101 = vmatpush.bf16.msra.mxu0 %v730
    %1102 = vmatpush.bf16.msra.mxu0 %v722
    %1103 = vmatpush.bf16.msra.mxu0 %v714
    %1104 = vmatpush.bf16.msra.mxu0 %v706
    %1105 = vmatmul.bf16.gmra.mxu0 %v169
    %v1106 = vpop.f32.mrf.mxu0
    %v1107 = vadd.f32 %v306, %v1106
    %v1108 = vpop.f32.mrf.mxu0
    %v1109 = vadd.f32 %v306, %v1108
    %1110 = vdwg.mxu0
    %1111 = vmatpush.bf16.msra.mxu0 %v826
    %1112 = vmatpush.bf16.msra.mxu0 %v818
    %1113 = vmatpush.bf16.msra.mxu0 %v810
    %1114 = vmatpush.bf16.msra.mxu0 %v802
    %1115 = vmatpush.bf16.msra.mxu0 %v794
    %1116 = vmatpush.bf16.msra.mxu0 %v786
    %1117 = vmatpush.bf16.msra.mxu0 %v778
    %1118 = vmatpush.bf16.msra.mxu0 %v770
    %1119 = vmatmul.bf16.gmra.mxu0 %v170
    %v1120 = vpop.f32.mrf.mxu0
    %v1121 = vadd.f32 %v1107, %v1120
    %v1122 = vpop.f32.mrf.mxu0
    %v1123 = vadd.f32 %v1109, %v1122
    %1124 = vdwg.mxu0
    %1125 = vmatpush.bf16.msra.mxu0 %v763
    %1126 = vmatpush.bf16.msra.mxu0 %v755
    %1127 = vmatpush.bf16.msra.mxu0 %v747
    %1128 = vmatpush.bf16.msra.mxu0 %v739
    %1129 = vmatpush.bf16.msra.mxu0 %v731
    %1130 = vmatpush.bf16.msra.mxu0 %v723
    %1131 = vmatpush.bf16.msra.mxu0 %v715
    %1132 = vmatpush.bf16.msra.mxu0 %v707
    %1133 = vmatmul.bf16.gmra.mxu0 %v169
    %v1134 = vpop.f32.mrf.mxu0
    %v1135 = vadd.f32 %v307, %v1134
    %v1136 = vpop.f32.mrf.mxu0
    %v1137 = vadd.f32 %v307, %v1136
    %1138 = vdwg.mxu0
    %1139 = vmatpush.bf16.msra.mxu0 %v827
    %1140 = vmatpush.bf16.msra.mxu0 %v819
    %1141 = vmatpush.bf16.msra.mxu0 %v811
    %1142 = vmatpush.bf16.msra.mxu0 %v803
    %1143 = vmatpush.bf16.msra.mxu0 %v795
    %1144 = vmatpush.bf16.msra.mxu0 %v787
    %1145 = vmatpush.bf16.msra.mxu0 %v779
    %1146 = vmatpush.bf16.msra.mxu0 %v771
    %1147 = vmatmul.bf16.gmra.mxu0 %v170
    %v1148 = vpop.f32.mrf.mxu0
    %v1149 = vadd.f32 %v1135, %v1148
    %v1150 = vpop.f32.mrf.mxu0
    %v1151 = vadd.f32 %v1137, %v1150
    %1152 = vdwg.mxu0
    %1153 = vmatpush.bf16.msra.mxu0 %v764
    %1154 = vmatpush.bf16.msra.mxu0 %v756
    %1155 = vmatpush.bf16.msra.mxu0 %v748
    %1156 = vmatpush.bf16.msra.mxu0 %v740
    %1157 = vmatpush.bf16.msra.mxu0 %v732
    %1158 = vmatpush.bf16.msra.mxu0 %v724
    %1159 = vmatpush.bf16.msra.mxu0 %v716
    %1160 = vmatpush.bf16.msra.mxu0 %v708
    %1161 = vmatmul.bf16.gmra.mxu0 %v169
    %v1162 = vpop.f32.mrf.mxu0
    %v1163 = vadd.f32 %v308, %v1162
    %v1164 = vpop.f32.mrf.mxu0
    %v1165 = vadd.f32 %v308, %v1164
    %1166 = vdwg.mxu0
    %1167 = vmatpush.bf16.msra.mxu0 %v828
    %1168 = vmatpush.bf16.msra.mxu0 %v820
    %1169 = vmatpush.bf16.msra.mxu0 %v812
    %1170 = vmatpush.bf16.msra.mxu0 %v804
    %1171 = vmatpush.bf16.msra.mxu0 %v796
    %1172 = vmatpush.bf16.msra.mxu0 %v788
    %1173 = vmatpush.bf16.msra.mxu0 %v780
    %1174 = vmatpush.bf16.msra.mxu0 %v772
    %1175 = vmatmul.bf16.gmra.mxu0 %v170
    %v1176 = vpop.f32.mrf.mxu0
    %v1177 = vadd.f32 %v1163, %v1176
    %v1178 = vpop.f32.mrf.mxu0
    %v1179 = vadd.f32 %v1165, %v1178
    %1180 = vdwg.mxu0
    %v1181 = vmax.f32 %v981, 0.0
    %v1182 = vmax.f32 %v1009, 0.0
    %v1183 = vmax.f32 %v1037, 0.0
    %v1184 = vmax.f32 %v1065, 0.0
    %v1185 = vmax.f32 %v1093, 0.0
    %v1186 = vmax.f32 %v1121, 0.0
    %v1187 = vmax.f32 %v1149, 0.0
    %v1188 = vmax.f32 %v1177, 0.0
    %v1189 = vmax.f32 %v983, 0.0
    %v1190 = vmax.f32 %v1011, 0.0
    %v1191 = vmax.f32 %v1039, 0.0
    %v1192 = vmax.f32 %v1067, 0.0
    %v1193 = vmax.f32 %v1095, 0.0
    %v1194 = vmax.f32 %v1123, 0.0
    %v1195 = vmax.f32 %v1151, 0.0
    %v1196 = vmax.f32 %v1179, 0.0
    %v1197 = vpack.c.bf16 %v1189, %v1181
    %v1198 = vpack.c.bf16 %v1190, %v1182
    %v1199 = vpack.c.bf16 %v1191, %v1183
    %v1200 = vpack.c.bf16 %v1192, %v1184
    %v1201 = vpack.c.bf16 %v1193, %v1185
    %v1202 = vpack.c.bf16 %v1194, %v1186
    %v1203 = vpack.c.bf16 %v1195, %v1187
    %v1204 = vpack.c.bf16 %v1196, %v1188
    %v1205 = vld [vmem:[#allocation8] sm:$0xff]
    %v1206 = vld [vmem:[#allocation8 + $0x8] sm:$0xff]
    %v1207 = vld [vmem:[#allocation8 + $0x10] sm:$0xff]
    %v1208 = vld [vmem:[#allocation8 + $0x18] sm:$0xf]
    %v1209 = vld [vmem:[#allocation8 + $0x1c] sm:$0xff]
    %v1210 = vld [vmem:[#allocation8 + $0x24] sm:$0xff]
    %v1211 = vld [vmem:[#allocation8 + $0x2c] sm:$0xff]
    %v1212 = vld [vmem:[#allocation8 + $0x34] sm:$0xf]
    %v1213 = vld [vmem:[#allocation8 + $0x38] sm:$0xff]
    %v1214 = vld [vmem:[#allocation8 + $0x40] sm:$0xff]
    %v1215 = vld [vmem:[#allocation8 + $0x48] sm:$0xff]
    %v1216 = vld [vmem:[#allocation8 + $0x50] sm:$0xf]
    %v1217 = vld [vmem:[#allocation8 + $0x54] sm:$0xff]
    %v1218 = vld [vmem:[#allocation8 + $0x5c] sm:$0xff]
    %v1219 = vld [vmem:[#allocation8 + $0x64] sm:$0xff]
    %v1220 = vld [vmem:[#allocation8 + $0x6c] sm:$0xf]
    %v1221 = vld [vmem:[#allocation8 + $0x70] sm:$0xff]
    %v1222 = vld [vmem:[#allocation8 + $0x78] sm:$0xff]
    %v1223 = vld [vmem:[#allocation8 + $0x80] sm:$0xff]
    %v1224 = vld [vmem:[#allocation8 + $0x88] sm:$0xf]
    %v1225 = vld [vmem:[#allocation8 + $0x8c] sm:$0xff]
    %v1226 = vld [vmem:[#allocation8 + $0x94] sm:$0xff]
    %v1227 = vld [vmem:[#allocation8 + $0x9c] sm:$0xff]
    %v1228 = vld [vmem:[#allocation8 + $0xa4] sm:$0xf]
    %v1229 = vld [vmem:[#allocation8 + $0xa8] sm:$0xff]
    %v1230 = vld [vmem:[#allocation8 + $0xb0] sm:$0xff]
    %v1231 = vld [vmem:[#allocation8 + $0xb8] sm:$0xff]
    %v1232 = vld [vmem:[#allocation8 + $0xc0] sm:$0xf]
    %v1233 = vld [vmem:[#allocation8 + $0xc4] sm:$0xff]
    %v1234 = vld [vmem:[#allocation8 + $0xcc] sm:$0xff]
    %v1235 = vld [vmem:[#allocation8 + $0xd4] sm:$0xff]
    %v1236 = vld [vmem:[#allocation8 + $0xdc] sm:$0xf]
    %v1237 = vld [vmem:[#allocation8 + $0xe0] sm:$0xff]
    %v1238 = vld [vmem:[#allocation8 + $0xe8] sm:$0xff]
    %v1239 = vld [vmem:[#allocation8 + $0xf0] sm:$0xff]
    %v1240 = vld [vmem:[#allocation8 + $0xf8] sm:$0xf]
    %v1241 = vld [vmem:[#allocation8 + $0xfc] sm:$0xff]
    %v1242 = vld [vmem:[#allocation8 + $0x104] sm:$0xff]
    %v1243 = vld [vmem:[#allocation8 + $0x10c] sm:$0xff]
    %v1244 = vld [vmem:[#allocation8 + $0x114] sm:$0xf]
    %v1245 = vld [vmem:[#allocation8 + $0x118] sm:$0xff]
    %v1246 = vld [vmem:[#allocation8 + $0x120] sm:$0xff]
    %v1247 = vld [vmem:[#allocation8 + $0x128] sm:$0xff]
    %v1248 = vld [vmem:[#allocation8 + $0x130] sm:$0xf]
    %v1249 = vld [vmem:[#allocation8 + $0x134] sm:$0xff]
    %v1250 = vld [vmem:[#allocation8 + $0x13c] sm:$0xff]
    %v1251 = vld [vmem:[#allocation8 + $0x144] sm:$0xff]
    %v1252 = vld [vmem:[#allocation8 + $0x14c] sm:$0xf]
    %v1253 = vld [vmem:[#allocation8 + $0x150] sm:$0xff]
    %v1254 = vld [vmem:[#allocation8 + $0x158] sm:$0xff]
    %v1255 = vld [vmem:[#allocation8 + $0x160] sm:$0xff]
    %v1256 = vld [vmem:[#allocation8 + $0x168] sm:$0xf]
    %v1257 = vld [vmem:[#allocation8 + $0x16c] sm:$0xff]
    %v1258 = vld [vmem:[#allocation8 + $0x174] sm:$0xff]
    %v1259 = vld [vmem:[#allocation8 + $0x17c] sm:$0xff]
    %v1260 = vld [vmem:[#allocation8 + $0x184] sm:$0xf]
    %v1261 = vld [vmem:[#allocation8 + $0x188] sm:$0xff]
    %v1262 = vld [vmem:[#allocation8 + $0x190] sm:$0xff]
    %v1263 = vld [vmem:[#allocation8 + $0x198] sm:$0xff]
    %v1264 = vld [vmem:[#allocation8 + $0x1a0] sm:$0xf]
    %v1265 = vld [vmem:[#allocation8 + $0x1a4] sm:$0xff]
    %v1266 = vld [vmem:[#allocation8 + $0x1ac] sm:$0xff]
    %v1267 = vld [vmem:[#allocation8 + $0x1b4] sm:$0xff]
    %v1268 = vld [vmem:[#allocation8 + $0x1bc] sm:$0xf]
    %v1269 = vld [vmem:[#allocation8 + $0x1c0] sm:$0xff]
    %v1270 = vld [vmem:[#allocation8 + $0x1c8] sm:$0xff]
    %v1271 = vld [vmem:[#allocation8 + $0x1d0] sm:$0xff]
    %v1272 = vld [vmem:[#allocation8 + $0x1d8] sm:$0xf]
    %v1273 = vld [vmem:[#allocation8 + $0x1dc] sm:$0xff]
    %v1274 = vld [vmem:[#allocation8 + $0x1e4] sm:$0xff]
    %v1275 = vld [vmem:[#allocation8 + $0x1ec] sm:$0xff]
    %v1276 = vld [vmem:[#allocation8 + $0x1f4] sm:$0xf]
    %v1277 = vld [vmem:[#allocation8 + $0x1f8] sm:$0xff]
    %v1278 = vld [vmem:[#allocation8 + $0x200] sm:$0xff]
    %v1279 = vld [vmem:[#allocation8 + $0x208] sm:$0xff]
    %v1280 = vld [vmem:[#allocation8 + $0x210] sm:$0xf]
    %v1281 = vld [vmem:[#allocation8 + $0x214] sm:$0xff]
    %v1282 = vld [vmem:[#allocation8 + $0x21c] sm:$0xff]
    %v1283 = vld [vmem:[#allocation8 + $0x224] sm:$0xff]
    %v1284 = vld [vmem:[#allocation8 + $0x22c] sm:$0xf]
    %v1285 = vld [vmem:[#allocation8 + $0x230] sm:$0xff]
    %v1286 = vld [vmem:[#allocation8 + $0x238] sm:$0xff]
    %v1287 = vld [vmem:[#allocation8 + $0x240] sm:$0xff]
    %v1288 = vld [vmem:[#allocation8 + $0x248] sm:$0xf]
    %v1289 = vld [vmem:[#allocation8 + $0x24c] sm:$0xff]
    %v1290 = vld [vmem:[#allocation8 + $0x254] sm:$0xff]
    %v1291 = vld [vmem:[#allocation8 + $0x25c] sm:$0xff]
    %v1292 = vld [vmem:[#allocation8 + $0x264] sm:$0xf]
    %v1293 = vld [vmem:[#allocation8 + $0x268] sm:$0xff]
    %v1294 = vld [vmem:[#allocation8 + $0x270] sm:$0xff]
    %v1295 = vld [vmem:[#allocation8 + $0x278] sm:$0xff]
    %v1296 = vld [vmem:[#allocation8 + $0x280] sm:$0xf]
    %v1297 = vld [vmem:[#allocation8 + $0x284] sm:$0xff]
    %v1298 = vld [vmem:[#allocation8 + $0x28c] sm:$0xff]
    %v1299 = vld [vmem:[#allocation8 + $0x294] sm:$0xff]
    %v1300 = vld [vmem:[#allocation8 + $0x29c] sm:$0xf]
    %v1301 = vld [vmem:[#allocation8 + $0x2a0] sm:$0xff]
    %v1302 = vld [vmem:[#allocation8 + $0x2a8] sm:$0xff]
    %v1303 = vld [vmem:[#allocation8 + $0x2b0] sm:$0xff]
    %v1304 = vld [vmem:[#allocation8 + $0x2b8] sm:$0xf]
    %v1305 = vld [vmem:[#allocation8 + $0x2bc] sm:$0xff]
    %v1306 = vld [vmem:[#allocation8 + $0x2c4] sm:$0xff]
    %v1307 = vld [vmem:[#allocation8 + $0x2cc] sm:$0xff]
    %v1308 = vld [vmem:[#allocation8 + $0x2d4] sm:$0xf]
    %v1309 = vld [vmem:[#allocation8 + $0x2d8] sm:$0xff]
    %v1310 = vld [vmem:[#allocation8 + $0x2e0] sm:$0xff]
    %v1311 = vld [vmem:[#allocation8 + $0x2e8] sm:$0xff]
    %v1312 = vld [vmem:[#allocation8 + $0x2f0] sm:$0xf]
    %v1313 = vld [vmem:[#allocation8 + $0x2f4] sm:$0xff]
    %v1314 = vld [vmem:[#allocation8 + $0x2fc] sm:$0xff]
    %v1315 = vld [vmem:[#allocation8 + $0x304] sm:$0xff]
    %v1316 = vld [vmem:[#allocation8 + $0x30c] sm:$0xf]
    %v1317 = vld [vmem:[#allocation8 + $0x310] sm:$0xff]
    %v1318 = vld [vmem:[#allocation8 + $0x318] sm:$0xff]
    %v1319 = vld [vmem:[#allocation8 + $0x320] sm:$0xff]
    %v1320 = vld [vmem:[#allocation8 + $0x328] sm:$0xf]
    %v1321 = vld [vmem:[#allocation8 + $0x32c] sm:$0xff]
    %v1322 = vld [vmem:[#allocation8 + $0x334] sm:$0xff]
    %v1323 = vld [vmem:[#allocation8 + $0x33c] sm:$0xff]
    %v1324 = vld [vmem:[#allocation8 + $0x344] sm:$0xf]
    %v1325 = vld [vmem:[#allocation8 + $0x348] sm:$0xff]
    %v1326 = vld [vmem:[#allocation8 + $0x350] sm:$0xff]
    %v1327 = vld [vmem:[#allocation8 + $0x358] sm:$0xff]
    %v1328 = vld [vmem:[#allocation8 + $0x360] sm:$0xf]
    %v1329 = vld [vmem:[#allocation8 + $0x364] sm:$0xff]
    %v1330 = vld [vmem:[#allocation8 + $0x36c] sm:$0xff]
    %v1331 = vld [vmem:[#allocation8 + $0x374] sm:$0xff]
    %v1332 = vld [vmem:[#allocation8 + $0x37c] sm:$0xf]
    %v1333 = vld [vmem:[#allocation8 + $0x380] sm:$0xff]
    %v1334 = vld [vmem:[#allocation8 + $0x388] sm:$0xff]
    %v1335 = vld [vmem:[#allocation8 + $0x390] sm:$0xff]
    %v1336 = vld [vmem:[#allocation8 + $0x398] sm:$0xf]
    %v1337 = vld [vmem:[#allocation8 + $0x39c] sm:$0xff]
    %v1338 = vld [vmem:[#allocation8 + $0x3a4] sm:$0xff]
    %v1339 = vld [vmem:[#allocation8 + $0x3ac] sm:$0xff]
    %v1340 = vld [vmem:[#allocation8 + $0x3b4] sm:$0xf]
    %v1341 = vld [vmem:[#allocation8 + $0x3b8] sm:$0xff]
    %v1342 = vld [vmem:[#allocation8 + $0x3c0] sm:$0xff]
    %v1343 = vld [vmem:[#allocation8 + $0x3c8] sm:$0xff]
    %v1344 = vld [vmem:[#allocation8 + $0x3d0] sm:$0xf]
    %v1345 = vld [vmem:[#allocation8 + $0x3d4] sm:$0xff]
    %v1346 = vld [vmem:[#allocation8 + $0x3dc] sm:$0xff]
    %v1347 = vld [vmem:[#allocation8 + $0x3e4] sm:$0xff]
    %v1348 = vld [vmem:[#allocation8 + $0x3ec] sm:$0xf]
    %v1349 = vld [vmem:[#allocation8 + $0x3f0] sm:$0xff]
    %v1350 = vld [vmem:[#allocation8 + $0x3f8] sm:$0xff]
    %v1351 = vld [vmem:[#allocation8 + $0x400] sm:$0xff]
    %v1352 = vld [vmem:[#allocation8 + $0x408] sm:$0xf]
    %v1353 = vld [vmem:[#allocation8 + $0x40c] sm:$0xff]
    %v1354 = vld [vmem:[#allocation8 + $0x414] sm:$0xff]
    %v1355 = vld [vmem:[#allocation8 + $0x41c] sm:$0xff]
    %v1356 = vld [vmem:[#allocation8 + $0x424] sm:$0xf]
    %v1357 = vld [vmem:[#allocation8 + $0x428] sm:$0xff]
    %v1358 = vld [vmem:[#allocation8 + $0x430] sm:$0xff]
    %v1359 = vld [vmem:[#allocation8 + $0x438] sm:$0xff]
    %v1360 = vld [vmem:[#allocation8 + $0x440] sm:$0xf]
    %v1361 = vld [vmem:[#allocation8 + $0x444] sm:$0xff]
    %v1362 = vld [vmem:[#allocation8 + $0x44c] sm:$0xff]
    %v1363 = vld [vmem:[#allocation8 + $0x454] sm:$0xff]
    %v1364 = vld [vmem:[#allocation8 + $0x45c] sm:$0xf]
    %v1365 = vld [vmem:[#allocation8 + $0x460] sm:$0xff]
    %v1366 = vld [vmem:[#allocation8 + $0x468] sm:$0xff]
    %v1367 = vld [vmem:[#allocation8 + $0x470] sm:$0xff]
    %v1368 = vld [vmem:[#allocation8 + $0x478] sm:$0xf]
    %v1369 = vld [vmem:[#allocation8 + $0x47c] sm:$0xff]
    %v1370 = vld [vmem:[#allocation8 + $0x484] sm:$0xff]
    %v1371 = vld [vmem:[#allocation8 + $0x48c] sm:$0xff]
    %v1372 = vld [vmem:[#allocation8 + $0x494] sm:$0xf]
    %v1373 = vld [vmem:[#allocation8 + $0x498] sm:$0xff]
    %v1374 = vld [vmem:[#allocation8 + $0x4a0] sm:$0xff]
    %v1375 = vld [vmem:[#allocation8 + $0x4a8] sm:$0xff]
    %v1376 = vld [vmem:[#allocation8 + $0x4b0] sm:$0xf]
    %v1377 = vld [vmem:[#allocation8 + $0x4b4] sm:$0xff]
    %v1378 = vld [vmem:[#allocation8 + $0x4bc] sm:$0xff]
    %v1379 = vld [vmem:[#allocation8 + $0x4c4] sm:$0xff]
    %v1380 = vld [vmem:[#allocation8 + $0x4cc] sm:$0xf]
    %v1381 = vld [vmem:[#allocation8 + $0x4d0] sm:$0xff]
    %v1382 = vld [vmem:[#allocation8 + $0x4d8] sm:$0xff]
    %v1383 = vld [vmem:[#allocation8 + $0x4e0] sm:$0xff]
    %v1384 = vld [vmem:[#allocation8 + $0x4e8] sm:$0xf]
    %v1385 = vld [vmem:[#allocation8 + $0x4ec] sm:$0xff]
    %v1386 = vld [vmem:[#allocation8 + $0x4f4] sm:$0xff]
    %v1387 = vld [vmem:[#allocation8 + $0x4fc] sm:$0xff]
    %v1388 = vld [vmem:[#allocation8 + $0x504] sm:$0xf]
    %v1389 = vld [vmem:[#allocation8 + $0x508] sm:$0xff]
    %v1390 = vld [vmem:[#allocation8 + $0x510] sm:$0xff]
    %v1391 = vld [vmem:[#allocation8 + $0x518] sm:$0xff]
    %v1392 = vld [vmem:[#allocation8 + $0x520] sm:$0xf]
    %v1393 = vld [vmem:[#allocation8 + $0x524] sm:$0xff]
    %v1394 = vld [vmem:[#allocation8 + $0x52c] sm:$0xff]
    %v1395 = vld [vmem:[#allocation8 + $0x534] sm:$0xff]
    %v1396 = vld [vmem:[#allocation8 + $0x53c] sm:$0xf]
    %v1397 = vld [vmem:[#allocation8 + $0x540] sm:$0xff]
    %v1398 = vld [vmem:[#allocation8 + $0x548] sm:$0xff]
    %v1399 = vld [vmem:[#allocation8 + $0x550] sm:$0xff]
    %v1400 = vld [vmem:[#allocation8 + $0x558] sm:$0xf]
    %v1401 = vld [vmem:[#allocation8 + $0x55c] sm:$0xff]
    %v1402 = vld [vmem:[#allocation8 + $0x564] sm:$0xff]
    %v1403 = vld [vmem:[#allocation8 + $0x56c] sm:$0xff]
    %v1404 = vld [vmem:[#allocation8 + $0x574] sm:$0xf]
    %v1405 = vld [vmem:[#allocation8 + $0x578] sm:$0xff]
    %v1406 = vld [vmem:[#allocation8 + $0x580] sm:$0xff]
    %v1407 = vld [vmem:[#allocation8 + $0x588] sm:$0xff]
    %v1408 = vld [vmem:[#allocation8 + $0x590] sm:$0xf]
    %v1409 = vld [vmem:[#allocation8 + $0x594] sm:$0xff]
    %v1410 = vld [vmem:[#allocation8 + $0x59c] sm:$0xff]
    %v1411 = vld [vmem:[#allocation8 + $0x5a4] sm:$0xff]
    %v1412 = vld [vmem:[#allocation8 + $0x5ac] sm:$0xf]
    %v1413 = vld [vmem:[#allocation8 + $0x5b0] sm:$0xff]
    %v1414 = vld [vmem:[#allocation8 + $0x5b8] sm:$0xff]
    %v1415 = vld [vmem:[#allocation8 + $0x5c0] sm:$0xff]
    %v1416 = vld [vmem:[#allocation8 + $0x5c8] sm:$0xf]
    %v1417 = vld [vmem:[#allocation8 + $0x5cc] sm:$0xff]
    %v1418 = vld [vmem:[#allocation8 + $0x5d4] sm:$0xff]
    %v1419 = vld [vmem:[#allocation8 + $0x5dc] sm:$0xff]
    %v1420 = vld [vmem:[#allocation8 + $0x5e4] sm:$0xf]
    %v1421 = vld [vmem:[#allocation8 + $0x5e8] sm:$0xff]
    %v1422 = vld [vmem:[#allocation8 + $0x5f0] sm:$0xff]
    %v1423 = vld [vmem:[#allocation8 + $0x5f8] sm:$0xff]
    %v1424 = vld [vmem:[#allocation8 + $0x600] sm:$0xf]
    %v1425 = vld [vmem:[#allocation8 + $0x604] sm:$0xff]
    %v1426 = vld [vmem:[#allocation8 + $0x60c] sm:$0xff]
    %v1427 = vld [vmem:[#allocation8 + $0x614] sm:$0xff]
    %v1428 = vld [vmem:[#allocation8 + $0x61c] sm:$0xf]
    %v1429 = vld [vmem:[#allocation8 + $0x620] sm:$0xff]
    %v1430 = vld [vmem:[#allocation8 + $0x628] sm:$0xff]
    %v1431 = vld [vmem:[#allocation8 + $0x630] sm:$0xff]
    %v1432 = vld [vmem:[#allocation8 + $0x638] sm:$0xf]
    %v1433 = vld [vmem:[#allocation8 + $0x63c] sm:$0xff]
    %v1434 = vld [vmem:[#allocation8 + $0x644] sm:$0xff]
    %v1435 = vld [vmem:[#allocation8 + $0x64c] sm:$0xff]
    %v1436 = vld [vmem:[#allocation8 + $0x654] sm:$0xf]
    %v1437 = vld [vmem:[#allocation8 + $0x658] sm:$0xff]
    %v1438 = vld [vmem:[#allocation8 + $0x660] sm:$0xff]
    %v1439 = vld [vmem:[#allocation8 + $0x668] sm:$0xff]
    %v1440 = vld [vmem:[#allocation8 + $0x670] sm:$0xf]
    %v1441 = vld [vmem:[#allocation8 + $0x674] sm:$0xff]
    %v1442 = vld [vmem:[#allocation8 + $0x67c] sm:$0xff]
    %v1443 = vld [vmem:[#allocation8 + $0x684] sm:$0xff]
    %v1444 = vld [vmem:[#allocation8 + $0x68c] sm:$0xf]
    %v1445 = vld [vmem:[#allocation8 + $0x690] sm:$0xff]
    %v1446 = vld [vmem:[#allocation8 + $0x698] sm:$0xff]
    %v1447 = vld [vmem:[#allocation8 + $0x6a0] sm:$0xff]
    %v1448 = vld [vmem:[#allocation8 + $0x6a8] sm:$0xf]
    %v1449 = vld [vmem:[#allocation8 + $0x6ac] sm:$0xff]
    %v1450 = vld [vmem:[#allocation8 + $0x6b4] sm:$0xff]
    %v1451 = vld [vmem:[#allocation8 + $0x6bc] sm:$0xff]
    %v1452 = vld [vmem:[#allocation8 + $0x6c4] sm:$0xf]
    %v1453 = vld [vmem:[#allocation8 + $0x6c8] sm:$0xff]
    %v1454 = vld [vmem:[#allocation8 + $0x6d0] sm:$0xff]
    %v1455 = vld [vmem:[#allocation8 + $0x6d8] sm:$0xff]
    %v1456 = vld [vmem:[#allocation8 + $0x6e0] sm:$0xf]
    %v1457 = vld [vmem:[#allocation8 + $0x6e4] sm:$0xff]
    %v1458 = vld [vmem:[#allocation8 + $0x6ec] sm:$0xff]
    %v1459 = vld [vmem:[#allocation8 + $0x6f4] sm:$0xff]
    %v1460 = vld [vmem:[#allocation8 + $0x6fc] sm:$0xf]
    %v1461 = vld [vmem:[#allocation8 + $0x700] sm:$0xff]
    %v1462 = vld [vmem:[#allocation8 + $0x708] sm:$0xff]
    %v1463 = vld [vmem:[#allocation8 + $0x710] sm:$0xff]
    %v1464 = vld [vmem:[#allocation8 + $0x718] sm:$0xf]
    %v1465 = vld [vmem:[#allocation8 + $0x71c] sm:$0xff]
    %v1466 = vld [vmem:[#allocation8 + $0x724] sm:$0xff]
    %v1467 = vld [vmem:[#allocation8 + $0x72c] sm:$0xff]
    %v1468 = vld [vmem:[#allocation8 + $0x734] sm:$0xf]
    %v1469 = vld [vmem:[#allocation8 + $0x738] sm:$0xff]
    %v1470 = vld [vmem:[#allocation8 + $0x740] sm:$0xff]
    %v1471 = vld [vmem:[#allocation8 + $0x748] sm:$0xff]
    %v1472 = vld [vmem:[#allocation8 + $0x750] sm:$0xf]
    %v1473 = vld [vmem:[#allocation8 + $0x754] sm:$0xff]
    %v1474 = vld [vmem:[#allocation8 + $0x75c] sm:$0xff]
    %v1475 = vld [vmem:[#allocation8 + $0x764] sm:$0xff]
    %v1476 = vld [vmem:[#allocation8 + $0x76c] sm:$0xf]
    %v1477 = vld [vmem:[#allocation8 + $0x770] sm:$0xff]
    %v1478 = vld [vmem:[#allocation8 + $0x778] sm:$0xff]
    %v1479 = vld [vmem:[#allocation8 + $0x780] sm:$0xff]
    %v1480 = vld [vmem:[#allocation8 + $0x788] sm:$0xf]
    %v1481 = vld [vmem:[#allocation8 + $0x78c] sm:$0xff]
    %v1482 = vld [vmem:[#allocation8 + $0x794] sm:$0xff]
    %v1483 = vld [vmem:[#allocation8 + $0x79c] sm:$0xff]
    %v1484 = vld [vmem:[#allocation8 + $0x7a4] sm:$0xf]
    %v1485 = vld [vmem:[#allocation8 + $0x7a8] sm:$0xff]
    %v1486 = vld [vmem:[#allocation8 + $0x7b0] sm:$0xff]
    %v1487 = vld [vmem:[#allocation8 + $0x7b8] sm:$0xff]
    %v1488 = vld [vmem:[#allocation8 + $0x7c0] sm:$0xf]
    %v1489 = vld [vmem:[#allocation8 + $0x7c4] sm:$0xff]
    %v1490 = vld [vmem:[#allocation8 + $0x7cc] sm:$0xff]
    %v1491 = vld [vmem:[#allocation8 + $0x7d4] sm:$0xff]
    %v1492 = vld [vmem:[#allocation8 + $0x7dc] sm:$0xf]
    %v1493 = vld [vmem:[#allocation8 + $0x7e0] sm:$0xff]
    %v1494 = vld [vmem:[#allocation8 + $0x7e8] sm:$0xff]
    %v1495 = vld [vmem:[#allocation8 + $0x7f0] sm:$0xff]
    %v1496 = vld [vmem:[#allocation8 + $0x7f8] sm:$0xf]
    %v1497 = vld [vmem:[#allocation8 + $0x7fc] sm:$0xff]
    %v1498 = vld [vmem:[#allocation8 + $0x804] sm:$0xff]
    %v1499 = vld [vmem:[#allocation8 + $0x80c] sm:$0xff]
    %v1500 = vld [vmem:[#allocation8 + $0x814] sm:$0xf]
    %v1501 = vld [vmem:[#allocation8 + $0x818] sm:$0xff]
    %v1502 = vld [vmem:[#allocation8 + $0x820] sm:$0xff]
    %v1503 = vld [vmem:[#allocation8 + $0x828] sm:$0xff]
    %v1504 = vld [vmem:[#allocation8 + $0x830] sm:$0xf]
    %v1505 = vld [vmem:[#allocation8 + $0x834] sm:$0xff]
    %v1506 = vld [vmem:[#allocation8 + $0x83c] sm:$0xff]
    %v1507 = vld [vmem:[#allocation8 + $0x844] sm:$0xff]
    %v1508 = vld [vmem:[#allocation8 + $0x84c] sm:$0xf]
    %v1509 = vld [vmem:[#allocation8 + $0x850] sm:$0xff]
    %v1510 = vld [vmem:[#allocation8 + $0x858] sm:$0xff]
    %v1511 = vld [vmem:[#allocation8 + $0x860] sm:$0xff]
    %v1512 = vld [vmem:[#allocation8 + $0x868] sm:$0xf]
    %v1513 = vld [vmem:[#allocation8 + $0x86c] sm:$0xff]
    %v1514 = vld [vmem:[#allocation8 + $0x874] sm:$0xff]
    %v1515 = vld [vmem:[#allocation8 + $0x87c] sm:$0xff]
    %v1516 = vld [vmem:[#allocation8 + $0x884] sm:$0xf]
    %v1517 = vld [vmem:[#allocation8 + $0x888] sm:$0xff]
    %v1518 = vld [vmem:[#allocation8 + $0x890] sm:$0xff]
    %v1519 = vld [vmem:[#allocation8 + $0x898] sm:$0xff]
    %v1520 = vld [vmem:[#allocation8 + $0x8a0] sm:$0xf]
    %v1521 = vld [vmem:[#allocation8 + $0x8a4] sm:$0xff]
    %v1522 = vld [vmem:[#allocation8 + $0x8ac] sm:$0xff]
    %v1523 = vld [vmem:[#allocation8 + $0x8b4] sm:$0xff]
    %v1524 = vld [vmem:[#allocation8 + $0x8bc] sm:$0xf]
    %v1525 = vld [vmem:[#allocation8 + $0x8c0] sm:$0xff]
    %v1526 = vld [vmem:[#allocation8 + $0x8c8] sm:$0xff]
    %v1527 = vld [vmem:[#allocation8 + $0x8d0] sm:$0xff]
    %v1528 = vld [vmem:[#allocation8 + $0x8d8] sm:$0xf]
    %v1529 = vld [vmem:[#allocation8 + $0x8dc] sm:$0xff]
    %v1530 = vld [vmem:[#allocation8 + $0x8e4] sm:$0xff]
    %v1531 = vld [vmem:[#allocation8 + $0x8ec] sm:$0xff]
    %v1532 = vld [vmem:[#allocation8 + $0x8f4] sm:$0xf]
    %v1533 = vld [vmem:[#allocation8 + $0x8f8] sm:$0xff]
    %v1534 = vld [vmem:[#allocation8 + $0x900] sm:$0xff]
    %v1535 = vld [vmem:[#allocation8 + $0x908] sm:$0xff]
    %v1536 = vld [vmem:[#allocation8 + $0x910] sm:$0xf]
    %v1537 = vld [vmem:[#allocation8 + $0x914] sm:$0xff]
    %v1538 = vld [vmem:[#allocation8 + $0x91c] sm:$0xff]
    %v1539 = vld [vmem:[#allocation8 + $0x924] sm:$0xff]
    %v1540 = vld [vmem:[#allocation8 + $0x92c] sm:$0xf]
    %v1541 = vld [vmem:[#allocation8 + $0x930] sm:$0xff]
    %v1542 = vld [vmem:[#allocation8 + $0x938] sm:$0xff]
    %v1543 = vld [vmem:[#allocation8 + $0x940] sm:$0xff]
    %v1544 = vld [vmem:[#allocation8 + $0x948] sm:$0xf]
    %v1545 = vld [vmem:[#allocation8 + $0x94c] sm:$0xff]
    %v1546 = vld [vmem:[#allocation8 + $0x954] sm:$0xff]
    %v1547 = vld [vmem:[#allocation8 + $0x95c] sm:$0xff]
    %v1548 = vld [vmem:[#allocation8 + $0x964] sm:$0xf]
    %v1549 = vld [vmem:[#allocation8 + $0x968] sm:$0xff]
    %v1550 = vld [vmem:[#allocation8 + $0x970] sm:$0xff]
    %v1551 = vld [vmem:[#allocation8 + $0x978] sm:$0xff]
    %v1552 = vld [vmem:[#allocation8 + $0x980] sm:$0xf]
    %v1553 = vld [vmem:[#allocation8 + $0x984] sm:$0xff]
    %v1554 = vld [vmem:[#allocation8 + $0x98c] sm:$0xff]
    %v1555 = vld [vmem:[#allocation8 + $0x994] sm:$0xff]
    %v1556 = vld [vmem:[#allocation8 + $0x99c] sm:$0xf]
    %v1557 = vld [vmem:[#allocation8 + $0x9a0] sm:$0xff]
    %v1558 = vld [vmem:[#allocation8 + $0x9a8] sm:$0xff]
    %v1559 = vld [vmem:[#allocation8 + $0x9b0] sm:$0xff]
    %v1560 = vld [vmem:[#allocation8 + $0x9b8] sm:$0xf]
    %v1561 = vld [vmem:[#allocation8 + $0x9bc] sm:$0xff]
    %v1562 = vld [vmem:[#allocation8 + $0x9c4] sm:$0xff]
    %v1563 = vld [vmem:[#allocation8 + $0x9cc] sm:$0xff]
    %v1564 = vld [vmem:[#allocation8 + $0x9d4] sm:$0xf]
    %v1565 = vld [vmem:[#allocation8 + $0x9d8] sm:$0xff]
    %v1566 = vld [vmem:[#allocation8 + $0x9e0] sm:$0xff]
    %v1567 = vld [vmem:[#allocation8 + $0x9e8] sm:$0xff]
    %v1568 = vld [vmem:[#allocation8 + $0x9f0] sm:$0xf]
    %v1569 = vld [vmem:[#allocation8 + $0x9f4] sm:$0xff]
    %v1570 = vld [vmem:[#allocation8 + $0x9fc] sm:$0xff]
    %v1571 = vld [vmem:[#allocation8 + $0xa04] sm:$0xff]
    %v1572 = vld [vmem:[#allocation8 + $0xa0c] sm:$0xf]
    %v1573 = vld [vmem:[#allocation8 + $0xa10] sm:$0xff]
    %v1574 = vld [vmem:[#allocation8 + $0xa18] sm:$0xff]
    %v1575 = vld [vmem:[#allocation8 + $0xa20] sm:$0xff]
    %v1576 = vld [vmem:[#allocation8 + $0xa28] sm:$0xf]
    %v1577 = vld [vmem:[#allocation8 + $0xa2c] sm:$0xff]
    %v1578 = vld [vmem:[#allocation8 + $0xa34] sm:$0xff]
    %v1579 = vld [vmem:[#allocation8 + $0xa3c] sm:$0xff]
    %v1580 = vld [vmem:[#allocation8 + $0xa44] sm:$0xf]
    %v1581 = vld [vmem:[#allocation8 + $0xa48] sm:$0xff]
    %v1582 = vld [vmem:[#allocation8 + $0xa50] sm:$0xff]
    %v1583 = vld [vmem:[#allocation8 + $0xa58] sm:$0xff]
    %v1584 = vld [vmem:[#allocation8 + $0xa60] sm:$0xf]
    %v1585 = vld [vmem:[#allocation8 + $0xa64] sm:$0xff]
    %v1586 = vld [vmem:[#allocation8 + $0xa6c] sm:$0xff]
    %v1587 = vld [vmem:[#allocation8 + $0xa74] sm:$0xff]
    %v1588 = vld [vmem:[#allocation8 + $0xa7c] sm:$0xf]
    %v1589 = vld [vmem:[#allocation8 + $0xa80] sm:$0xff]
    %v1590 = vld [vmem:[#allocation8 + $0xa88] sm:$0xff]
    %v1591 = vld [vmem:[#allocation8 + $0xa90] sm:$0xff]
    %v1592 = vld [vmem:[#allocation8 + $0xa98] sm:$0xf]
    %v1593 = vld [vmem:[#allocation8 + $0xa9c] sm:$0xff]
    %v1594 = vld [vmem:[#allocation8 + $0xaa4] sm:$0xff]
    %v1595 = vld [vmem:[#allocation8 + $0xaac] sm:$0xff]
    %v1596 = vld [vmem:[#allocation8 + $0xab4] sm:$0xf]
    %v1597 = vld [vmem:[#allocation8 + $0xab8] sm:$0xff]
    %v1598 = vld [vmem:[#allocation8 + $0xac0] sm:$0xff]
    %v1599 = vld [vmem:[#allocation8 + $0xac8] sm:$0xff]
    %v1600 = vld [vmem:[#allocation8 + $0xad0] sm:$0xf]
    %v1601 = vld [vmem:[#allocation8 + $0xad4] sm:$0xff]
    %v1602 = vld [vmem:[#allocation8 + $0xadc] sm:$0xff]
    %v1603 = vld [vmem:[#allocation8 + $0xae4] sm:$0xff]
    %v1604 = vld [vmem:[#allocation8 + $0xaec] sm:$0xf]
    %v1605 = vld [vmem:[#allocation8 + $0xaf0] sm:$0xff]
    %v1606 = vld [vmem:[#allocation8 + $0xaf8] sm:$0xff]
    %v1607 = vld [vmem:[#allocation8 + $0xb00] sm:$0xff]
    %v1608 = vld [vmem:[#allocation8 + $0xb08] sm:$0xf]
    %v1609 = vld [vmem:[#allocation8 + $0xb0c] sm:$0xff]
    %v1610 = vld [vmem:[#allocation8 + $0xb14] sm:$0xff]
    %v1611 = vld [vmem:[#allocation8 + $0xb1c] sm:$0xff]
    %v1612 = vld [vmem:[#allocation8 + $0xb24] sm:$0xf]
    %v1613 = vld [vmem:[#allocation8 + $0xb28] sm:$0xff]
    %v1614 = vld [vmem:[#allocation8 + $0xb30] sm:$0xff]
    %v1615 = vld [vmem:[#allocation8 + $0xb38] sm:$0xff]
    %v1616 = vld [vmem:[#allocation8 + $0xb40] sm:$0xf]
    %v1617 = vld [vmem:[#allocation8 + $0xb44] sm:$0xff]
    %v1618 = vld [vmem:[#allocation8 + $0xb4c] sm:$0xff]
    %v1619 = vld [vmem:[#allocation8 + $0xb54] sm:$0xff]
    %v1620 = vld [vmem:[#allocation8 + $0xb5c] sm:$0xf]
    %v1621 = vld [vmem:[#allocation8 + $0xb60] sm:$0xff]
    %v1622 = vld [vmem:[#allocation8 + $0xb68] sm:$0xff]
    %v1623 = vld [vmem:[#allocation8 + $0xb70] sm:$0xff]
    %v1624 = vld [vmem:[#allocation8 + $0xb78] sm:$0xf]
    %v1625 = vld [vmem:[#allocation8 + $0xb7c] sm:$0xff]
    %v1626 = vld [vmem:[#allocation8 + $0xb84] sm:$0xff]
    %v1627 = vld [vmem:[#allocation8 + $0xb8c] sm:$0xff]
    %v1628 = vld [vmem:[#allocation8 + $0xb94] sm:$0xf]
    %v1629 = vld [vmem:[#allocation8 + $0xb98] sm:$0xff]
    %v1630 = vld [vmem:[#allocation8 + $0xba0] sm:$0xff]
    %v1631 = vld [vmem:[#allocation8 + $0xba8] sm:$0xff]
    %v1632 = vld [vmem:[#allocation8 + $0xbb0] sm:$0xf]
    %v1633 = vld [vmem:[#allocation8 + $0xbb4] sm:$0xff]
    %v1634 = vld [vmem:[#allocation8 + $0xbbc] sm:$0xff]
    %v1635 = vld [vmem:[#allocation8 + $0xbc4] sm:$0xff]
    %v1636 = vld [vmem:[#allocation8 + $0xbcc] sm:$0xf]
    %v1637 = vld [vmem:[#allocation8 + $0xbd0] sm:$0xff]
    %v1638 = vld [vmem:[#allocation8 + $0xbd8] sm:$0xff]
    %v1639 = vld [vmem:[#allocation8 + $0xbe0] sm:$0xff]
    %v1640 = vld [vmem:[#allocation8 + $0xbe8] sm:$0xf]
    %v1641 = vld [vmem:[#allocation8 + $0xbec] sm:$0xff]
    %v1642 = vld [vmem:[#allocation8 + $0xbf4] sm:$0xff]
    %v1643 = vld [vmem:[#allocation8 + $0xbfc] sm:$0xff]
    %v1644 = vld [vmem:[#allocation8 + $0xc04] sm:$0xf]
    %v1645 = vld [vmem:[#allocation8 + $0xc08] sm:$0xff]
    %v1646 = vld [vmem:[#allocation8 + $0xc10] sm:$0xff]
    %v1647 = vld [vmem:[#allocation8 + $0xc18] sm:$0xff]
    %v1648 = vld [vmem:[#allocation8 + $0xc20] sm:$0xf]
    %v1649 = vld [vmem:[#allocation8 + $0xc24] sm:$0xff]
    %v1650 = vld [vmem:[#allocation8 + $0xc2c] sm:$0xff]
    %v1651 = vld [vmem:[#allocation8 + $0xc34] sm:$0xff]
    %v1652 = vld [vmem:[#allocation8 + $0xc3c] sm:$0xf]
    %v1653 = vld [vmem:[#allocation8 + $0xc40] sm:$0xff]
    %v1654 = vld [vmem:[#allocation8 + $0xc48] sm:$0xff]
    %v1655 = vld [vmem:[#allocation8 + $0xc50] sm:$0xff]
    %v1656 = vld [vmem:[#allocation8 + $0xc58] sm:$0xf]
    %v1657 = vld [vmem:[#allocation8 + $0xc5c] sm:$0xff]
    %v1658 = vld [vmem:[#allocation8 + $0xc64] sm:$0xff]
    %v1659 = vld [vmem:[#allocation8 + $0xc6c] sm:$0xff]
    %v1660 = vld [vmem:[#allocation8 + $0xc74] sm:$0xf]
    %v1661 = vld [vmem:[#allocation8 + $0xc78] sm:$0xff]
    %v1662 = vld [vmem:[#allocation8 + $0xc80] sm:$0xff]
    %v1663 = vld [vmem:[#allocation8 + $0xc88] sm:$0xff]
    %v1664 = vld [vmem:[#allocation8 + $0xc90] sm:$0xf]
    %v1665 = vld [vmem:[#allocation8 + $0xc94] sm:$0xff]
    %v1666 = vld [vmem:[#allocation8 + $0xc9c] sm:$0xff]
    %v1667 = vld [vmem:[#allocation8 + $0xca4] sm:$0xff]
    %v1668 = vld [vmem:[#allocation8 + $0xcac] sm:$0xf]
    %v1669 = vld [vmem:[#allocation8 + $0xcb0] sm:$0xff]
    %v1670 = vld [vmem:[#allocation8 + $0xcb8] sm:$0xff]
    %v1671 = vld [vmem:[#allocation8 + $0xcc0] sm:$0xff]
    %v1672 = vld [vmem:[#allocation8 + $0xcc8] sm:$0xf]
    %v1673 = vld [vmem:[#allocation8 + $0xccc] sm:$0xff]
    %v1674 = vld [vmem:[#allocation8 + $0xcd4] sm:$0xff]
    %v1675 = vld [vmem:[#allocation8 + $0xcdc] sm:$0xff]
    %v1676 = vld [vmem:[#allocation8 + $0xce4] sm:$0xf]
    %v1677 = vld [vmem:[#allocation8 + $0xce8] sm:$0xff]
    %v1678 = vld [vmem:[#allocation8 + $0xcf0] sm:$0xff]
    %v1679 = vld [vmem:[#allocation8 + $0xcf8] sm:$0xff]
    %v1680 = vld [vmem:[#allocation8 + $0xd00] sm:$0xf]
    %v1681 = vld [vmem:[#allocation8 + $0xd04] sm:$0xff]
    %v1682 = vld [vmem:[#allocation8 + $0xd0c] sm:$0xff]
    %v1683 = vld [vmem:[#allocation8 + $0xd14] sm:$0xff]
    %v1684 = vld [vmem:[#allocation8 + $0xd1c] sm:$0xf]
    %v1685 = vld [vmem:[#allocation8 + $0xd20] sm:$0xff]
    %v1686 = vld [vmem:[#allocation8 + $0xd28] sm:$0xff]
    %v1687 = vld [vmem:[#allocation8 + $0xd30] sm:$0xff]
    %v1688 = vld [vmem:[#allocation8 + $0xd38] sm:$0xf]
    %v1689 = vld [vmem:[#allocation8 + $0xd3c] sm:$0xff]
    %v1690 = vld [vmem:[#allocation8 + $0xd44] sm:$0xff]
    %v1691 = vld [vmem:[#allocation8 + $0xd4c] sm:$0xff]
    %v1692 = vld [vmem:[#allocation8 + $0xd54] sm:$0xf]
    %v1693 = vld [vmem:[#allocation8 + $0xd58] sm:$0xff]
    %v1694 = vld [vmem:[#allocation8 + $0xd60] sm:$0xff]
    %v1695 = vld [vmem:[#allocation8 + $0xd68] sm:$0xff]
    %v1696 = vld [vmem:[#allocation8 + $0xd70] sm:$0xf]
    %v1697 = vld [vmem:[#allocation8 + $0xd74] sm:$0xff]
    %v1698 = vld [vmem:[#allocation8 + $0xd7c] sm:$0xff]
    %v1699 = vld [vmem:[#allocation8 + $0xd84] sm:$0xff]
    %v1700 = vld [vmem:[#allocation8 + $0xd8c] sm:$0xf]
    %v1701 = vld [vmem:[#allocation8 + $0xd90] sm:$0xff]
    %v1702 = vld [vmem:[#allocation8 + $0xd98] sm:$0xff]
    %v1703 = vld [vmem:[#allocation8 + $0xda0] sm:$0xff]
    %v1704 = vld [vmem:[#allocation8 + $0xda8] sm:$0xf]
    %v1705 = vld [vmem:[#allocation8 + $0xdac] sm:$0xff]
    %v1706 = vld [vmem:[#allocation8 + $0xdb4] sm:$0xff]
    %v1707 = vld [vmem:[#allocation8 + $0xdbc] sm:$0xff]
    %v1708 = vld [vmem:[#allocation8 + $0xdc4] sm:$0xf]
    %v1709 = vld [vmem:[#allocation8 + $0xdc8] sm:$0xff]
    %v1710 = vld [vmem:[#allocation8 + $0xdd0] sm:$0xff]
    %v1711 = vld [vmem:[#allocation8 + $0xdd8] sm:$0xff]
    %v1712 = vld [vmem:[#allocation8 + $0xde0] sm:$0xf]
    %v1713 = vld [vmem:[#allocation8 + $0xde4] sm:$0xff]
    %v1714 = vld [vmem:[#allocation8 + $0xdec] sm:$0xff]
    %v1715 = vld [vmem:[#allocation8 + $0xdf4] sm:$0xff]
    %v1716 = vld [vmem:[#allocation8 + $0xdfc] sm:$0xf]
    %v1717 = vld [vmem:[#allocation10] sm:$0xff]
    %v1719 = vperm.slane %v1717, 0
    %v1720 = vperm.slane %v1717, 1
    %v1721 = vperm.slane %v1717, 2
    %v1722 = vperm.slane %v1717, 3
    %v1723 = vperm.slane %v1717, 4
    %v1724 = vperm.slane %v1717, 5
    %v1725 = vperm.slane %v1717, 6
    %v2245 = vunpack.c.l.b16 %v1205
    %v2246 = vunpack.c.h.b16 %v1205
    %v2247 = vunpack.c.l.b16 %v1206
    %v2248 = vunpack.c.h.b16 %v1206
    %v2249 = vunpack.c.l.b16 %v1207
    %v2250 = vunpack.c.h.b16 %v1207
    %v2251 = vunpack.c.l.b16 %v1208
    %v2252 = vunpack.c.l.b16 %v1209
    %v2253 = vunpack.c.h.b16 %v1209
    %v2254 = vunpack.c.l.b16 %v1210
    %v2255 = vunpack.c.h.b16 %v1210
    %v2256 = vunpack.c.l.b16 %v1211
    %v2257 = vunpack.c.h.b16 %v1211
    %v2258 = vunpack.c.l.b16 %v1212
    %v2259 = vunpack.c.l.b16 %v1213
    %v2260 = vunpack.c.h.b16 %v1213
    %v2261 = vunpack.c.l.b16 %v1214
    %v2262 = vunpack.c.h.b16 %v1214
    %v2263 = vunpack.c.l.b16 %v1215
    %v2264 = vunpack.c.h.b16 %v1215
    %v2265 = vunpack.c.l.b16 %v1216
    %v2266 = vunpack.c.l.b16 %v1217
    %v2267 = vunpack.c.h.b16 %v1217
    %v2268 = vunpack.c.l.b16 %v1218
    %v2269 = vunpack.c.h.b16 %v1218
    %v2270 = vunpack.c.l.b16 %v1219
    %v2271 = vunpack.c.h.b16 %v1219
    %v2272 = vunpack.c.l.b16 %v1220
    %v2273 = vunpack.c.l.b16 %v1221
    %v2274 = vunpack.c.h.b16 %v1221
    %v2275 = vunpack.c.l.b16 %v1222
    %v2276 = vunpack.c.h.b16 %v1222
    %v2277 = vunpack.c.l.b16 %v1223
    %v2278 = vunpack.c.h.b16 %v1223
    %v2279 = vunpack.c.l.b16 %v1224
    %v2280 = vunpack.c.l.b16 %v1225
    %v2281 = vunpack.c.h.b16 %v1225
    %v2282 = vunpack.c.l.b16 %v1226
    %v2283 = vunpack.c.h.b16 %v1226
    %v2284 = vunpack.c.l.b16 %v1227
    %v2285 = vunpack.c.h.b16 %v1227
    %v2286 = vunpack.c.l.b16 %v1228
    %v2287 = vunpack.c.l.b16 %v1229
    %v2288 = vunpack.c.h.b16 %v1229
    %v2289 = vunpack.c.l.b16 %v1230
    %v2290 = vunpack.c.h.b16 %v1230
    %v2291 = vunpack.c.l.b16 %v1231
    %v2292 = vunpack.c.h.b16 %v1231
    %v2293 = vunpack.c.l.b16 %v1232
    %v2294 = vunpack.c.l.b16 %v1233
    %v2295 = vunpack.c.h.b16 %v1233
    %v2296 = vunpack.c.l.b16 %v1234
    %v2297 = vunpack.c.h.b16 %v1234
    %v2298 = vunpack.c.l.b16 %v1235
    %v2299 = vunpack.c.h.b16 %v1235
    %v2300 = vunpack.c.l.b16 %v1236
    %v2301 = vunpack.c.l.b16 %v1237
    %v2302 = vunpack.c.h.b16 %v1237
    %v2303 = vunpack.c.l.b16 %v1238
    %v2304 = vunpack.c.h.b16 %v1238
    %v2305 = vunpack.c.l.b16 %v1239
    %v2306 = vunpack.c.h.b16 %v1239
    %v2307 = vunpack.c.l.b16 %v1240
    %v2308 = vunpack.c.l.b16 %v1241
    %v2309 = vunpack.c.h.b16 %v1241
    %v2310 = vunpack.c.l.b16 %v1242
    %v2311 = vunpack.c.h.b16 %v1242
    %v2312 = vunpack.c.l.b16 %v1243
    %v2313 = vunpack.c.h.b16 %v1243
    %v2314 = vunpack.c.l.b16 %v1244
    %v2315 = vunpack.c.l.b16 %v1245
    %v2316 = vunpack.c.h.b16 %v1245
    %v2317 = vunpack.c.l.b16 %v1246
    %v2318 = vunpack.c.h.b16 %v1246
    %v2319 = vunpack.c.l.b16 %v1247
    %v2320 = vunpack.c.h.b16 %v1247
    %v2321 = vunpack.c.l.b16 %v1248
    %v2322 = vunpack.c.l.b16 %v1249
    %v2323 = vunpack.c.h.b16 %v1249
    %v2324 = vunpack.c.l.b16 %v1250
    %v2325 = vunpack.c.h.b16 %v1250
    %v2326 = vunpack.c.l.b16 %v1251
    %v2327 = vunpack.c.h.b16 %v1251
    %v2328 = vunpack.c.l.b16 %v1252
    %v2329 = vunpack.c.l.b16 %v1253
    %v2330 = vunpack.c.h.b16 %v1253
    %v2331 = vunpack.c.l.b16 %v1254
    %v2332 = vunpack.c.h.b16 %v1254
    %v2333 = vunpack.c.l.b16 %v1255
    %v2334 = vunpack.c.h.b16 %v1255
    %v2335 = vunpack.c.l.b16 %v1256
    %v2336 = vunpack.c.l.b16 %v1257
    %v2337 = vunpack.c.h.b16 %v1257
    %v2338 = vunpack.c.l.b16 %v1258
    %v2339 = vunpack.c.h.b16 %v1258
    %v2340 = vunpack.c.l.b16 %v1259
    %v2341 = vunpack.c.h.b16 %v1259
    %v2342 = vunpack.c.l.b16 %v1260
    %v2343 = vunpack.c.l.b16 %v1261
    %v2344 = vunpack.c.h.b16 %v1261
    %v2345 = vunpack.c.l.b16 %v1262
    %v2346 = vunpack.c.h.b16 %v1262
    %v2347 = vunpack.c.l.b16 %v1263
    %v2348 = vunpack.c.h.b16 %v1263
    %v2349 = vunpack.c.l.b16 %v1264
    %v2350 = vunpack.c.l.b16 %v1265
    %v2351 = vunpack.c.h.b16 %v1265
    %v2352 = vunpack.c.l.b16 %v1266
    %v2353 = vunpack.c.h.b16 %v1266
    %v2354 = vunpack.c.l.b16 %v1267
    %v2355 = vunpack.c.h.b16 %v1267
    %v2356 = vunpack.c.l.b16 %v1268
    %v2357 = vunpack.c.l.b16 %v1269
    %v2358 = vunpack.c.h.b16 %v1269
    %v2359 = vunpack.c.l.b16 %v1270
    %v2360 = vunpack.c.h.b16 %v1270
    %v2361 = vunpack.c.l.b16 %v1271
    %v2362 = vunpack.c.h.b16 %v1271
    %v2363 = vunpack.c.l.b16 %v1272
    %v2364 = vunpack.c.l.b16 %v1273
    %v2365 = vunpack.c.h.b16 %v1273
    %v2366 = vunpack.c.l.b16 %v1274
    %v2367 = vunpack.c.h.b16 %v1274
    %v2368 = vunpack.c.l.b16 %v1275
    %v2369 = vunpack.c.h.b16 %v1275
    %v2370 = vunpack.c.l.b16 %v1276
    %v2371 = vunpack.c.l.b16 %v1277
    %v2372 = vunpack.c.h.b16 %v1277
    %v2373 = vunpack.c.l.b16 %v1278
    %v2374 = vunpack.c.h.b16 %v1278
    %v2375 = vunpack.c.l.b16 %v1279
    %v2376 = vunpack.c.h.b16 %v1279
    %v2377 = vunpack.c.l.b16 %v1280
    %v2378 = vunpack.c.l.b16 %v1281
    %v2379 = vunpack.c.h.b16 %v1281
    %v2380 = vunpack.c.l.b16 %v1282
    %v2381 = vunpack.c.h.b16 %v1282
    %v2382 = vunpack.c.l.b16 %v1283
    %v2383 = vunpack.c.h.b16 %v1283
    %v2384 = vunpack.c.l.b16 %v1284
    %v2385 = vunpack.c.l.b16 %v1285
    %v2386 = vunpack.c.h.b16 %v1285
    %v2387 = vunpack.c.l.b16 %v1286
    %v2388 = vunpack.c.h.b16 %v1286
    %v2389 = vunpack.c.l.b16 %v1287
    %v2390 = vunpack.c.h.b16 %v1287
    %v2391 = vunpack.c.l.b16 %v1288
    %v2392 = vunpack.c.l.b16 %v1289
    %v2393 = vunpack.c.h.b16 %v1289
    %v2394 = vunpack.c.l.b16 %v1290
    %v2395 = vunpack.c.h.b16 %v1290
    %v2396 = vunpack.c.l.b16 %v1291
    %v2397 = vunpack.c.h.b16 %v1291
    %v2398 = vunpack.c.l.b16 %v1292
    %v2399 = vunpack.c.l.b16 %v1293
    %v2400 = vunpack.c.h.b16 %v1293
    %v2401 = vunpack.c.l.b16 %v1294
    %v2402 = vunpack.c.h.b16 %v1294
    %v2403 = vunpack.c.l.b16 %v1295
    %v2404 = vunpack.c.h.b16 %v1295
    %v2405 = vunpack.c.l.b16 %v1296
    %v2406 = vunpack.c.l.b16 %v1297
    %v2407 = vunpack.c.h.b16 %v1297
    %v2408 = vunpack.c.l.b16 %v1298
    %v2409 = vunpack.c.h.b16 %v1298
    %v2410 = vunpack.c.l.b16 %v1299
    %v2411 = vunpack.c.h.b16 %v1299
    %v2412 = vunpack.c.l.b16 %v1300
    %v2413 = vunpack.c.l.b16 %v1301
    %v2414 = vunpack.c.h.b16 %v1301
    %v2415 = vunpack.c.l.b16 %v1302
    %v2416 = vunpack.c.h.b16 %v1302
    %v2417 = vunpack.c.l.b16 %v1303
    %v2418 = vunpack.c.h.b16 %v1303
    %v2419 = vunpack.c.l.b16 %v1304
    %v2420 = vunpack.c.l.b16 %v1305
    %v2421 = vunpack.c.h.b16 %v1305
    %v2422 = vunpack.c.l.b16 %v1306
    %v2423 = vunpack.c.h.b16 %v1306
    %v2424 = vunpack.c.l.b16 %v1307
    %v2425 = vunpack.c.h.b16 %v1307
    %v2426 = vunpack.c.l.b16 %v1308
    %v2427 = vunpack.c.l.b16 %v1309
    %v2428 = vunpack.c.h.b16 %v1309
    %v2429 = vunpack.c.l.b16 %v1310
    %v2430 = vunpack.c.h.b16 %v1310
    %v2431 = vunpack.c.l.b16 %v1311
    %v2432 = vunpack.c.h.b16 %v1311
    %v2433 = vunpack.c.l.b16 %v1312
    %v2434 = vunpack.c.l.b16 %v1313
    %v2435 = vunpack.c.h.b16 %v1313
    %v2436 = vunpack.c.l.b16 %v1314
    %v2437 = vunpack.c.h.b16 %v1314
    %v2438 = vunpack.c.l.b16 %v1315
    %v2439 = vunpack.c.h.b16 %v1315
    %v2440 = vunpack.c.l.b16 %v1316
    %v2441 = vunpack.c.l.b16 %v1317
    %v2442 = vunpack.c.h.b16 %v1317
    %v2443 = vunpack.c.l.b16 %v1318
    %v2444 = vunpack.c.h.b16 %v1318
    %v2445 = vunpack.c.l.b16 %v1319
    %v2446 = vunpack.c.h.b16 %v1319
    %v2447 = vunpack.c.l.b16 %v1320
    %v2448 = vunpack.c.l.b16 %v1321
    %v2449 = vunpack.c.h.b16 %v1321
    %v2450 = vunpack.c.l.b16 %v1322
    %v2451 = vunpack.c.h.b16 %v1322
    %v2452 = vunpack.c.l.b16 %v1323
    %v2453 = vunpack.c.h.b16 %v1323
    %v2454 = vunpack.c.l.b16 %v1324
    %v2455 = vunpack.c.l.b16 %v1325
    %v2456 = vunpack.c.h.b16 %v1325
    %v2457 = vunpack.c.l.b16 %v1326
    %v2458 = vunpack.c.h.b16 %v1326
    %v2459 = vunpack.c.l.b16 %v1327
    %v2460 = vunpack.c.h.b16 %v1327
    %v2461 = vunpack.c.l.b16 %v1328
    %v2462 = vunpack.c.l.b16 %v1329
    %v2463 = vunpack.c.h.b16 %v1329
    %v2464 = vunpack.c.l.b16 %v1330
    %v2465 = vunpack.c.h.b16 %v1330
    %v2466 = vunpack.c.l.b16 %v1331
    %v2467 = vunpack.c.h.b16 %v1331
    %v2468 = vunpack.c.l.b16 %v1332
    %v2469 = vunpack.c.l.b16 %v1333
    %v2470 = vunpack.c.h.b16 %v1333
    %v2471 = vunpack.c.l.b16 %v1334
    %v2472 = vunpack.c.h.b16 %v1334
    %v2473 = vunpack.c.l.b16 %v1335
    %v2474 = vunpack.c.h.b16 %v1335
    %v2475 = vunpack.c.l.b16 %v1336
    %v2476 = vunpack.c.l.b16 %v1337
    %v2477 = vunpack.c.h.b16 %v1337
    %v2478 = vunpack.c.l.b16 %v1338
    %v2479 = vunpack.c.h.b16 %v1338
    %v2480 = vunpack.c.l.b16 %v1339
    %v2481 = vunpack.c.h.b16 %v1339
    %v2482 = vunpack.c.l.b16 %v1340
    %v2483 = vunpack.c.l.b16 %v1341
    %v2484 = vunpack.c.h.b16 %v1341
    %v2485 = vunpack.c.l.b16 %v1342
    %v2486 = vunpack.c.h.b16 %v1342
    %v2487 = vunpack.c.l.b16 %v1343
    %v2488 = vunpack.c.h.b16 %v1343
    %v2489 = vunpack.c.l.b16 %v1344
    %v2490 = vunpack.c.l.b16 %v1345
    %v2491 = vunpack.c.h.b16 %v1345
    %v2492 = vunpack.c.l.b16 %v1346
    %v2493 = vunpack.c.h.b16 %v1346
    %v2494 = vunpack.c.l.b16 %v1347
    %v2495 = vunpack.c.h.b16 %v1347
    %v2496 = vunpack.c.l.b16 %v1348
    %v2497 = vunpack.c.l.b16 %v1349
    %v2498 = vunpack.c.h.b16 %v1349
    %v2499 = vunpack.c.l.b16 %v1350
    %v2500 = vunpack.c.h.b16 %v1350
    %v2501 = vunpack.c.l.b16 %v1351
    %v2502 = vunpack.c.h.b16 %v1351
    %v2503 = vunpack.c.l.b16 %v1352
    %v2504 = vunpack.c.l.b16 %v1353
    %v2505 = vunpack.c.h.b16 %v1353
    %v2506 = vunpack.c.l.b16 %v1354
    %v2507 = vunpack.c.h.b16 %v1354
    %v2508 = vunpack.c.l.b16 %v1355
    %v2509 = vunpack.c.h.b16 %v1355
    %v2510 = vunpack.c.l.b16 %v1356
    %v2511 = vunpack.c.l.b16 %v1357
    %v2512 = vunpack.c.h.b16 %v1357
    %v2513 = vunpack.c.l.b16 %v1358
    %v2514 = vunpack.c.h.b16 %v1358
    %v2515 = vunpack.c.l.b16 %v1359
    %v2516 = vunpack.c.h.b16 %v1359
    %v2517 = vunpack.c.l.b16 %v1360
    %v2518 = vunpack.c.l.b16 %v1361
    %v2519 = vunpack.c.h.b16 %v1361
    %v2520 = vunpack.c.l.b16 %v1362
    %v2521 = vunpack.c.h.b16 %v1362
    %v2522 = vunpack.c.l.b16 %v1363
    %v2523 = vunpack.c.h.b16 %v1363
    %v2524 = vunpack.c.l.b16 %v1364
    %v2525 = vunpack.c.l.b16 %v1365
    %v2526 = vunpack.c.h.b16 %v1365
    %v2527 = vunpack.c.l.b16 %v1366
    %v2528 = vunpack.c.h.b16 %v1366
    %v2529 = vunpack.c.l.b16 %v1367
    %v2530 = vunpack.c.h.b16 %v1367
    %v2531 = vunpack.c.l.b16 %v1368
    %v2532 = vunpack.c.l.b16 %v1369
    %v2533 = vunpack.c.h.b16 %v1369
    %v2534 = vunpack.c.l.b16 %v1370
    %v2535 = vunpack.c.h.b16 %v1370
    %v2536 = vunpack.c.l.b16 %v1371
    %v2537 = vunpack.c.h.b16 %v1371
    %v2538 = vunpack.c.l.b16 %v1372
    %v2539 = vunpack.c.l.b16 %v1373
    %v2540 = vunpack.c.h.b16 %v1373
    %v2541 = vunpack.c.l.b16 %v1374
    %v2542 = vunpack.c.h.b16 %v1374
    %v2543 = vunpack.c.l.b16 %v1375
    %v2544 = vunpack.c.h.b16 %v1375
    %v2545 = vunpack.c.l.b16 %v1376
    %v2546 = vunpack.c.l.b16 %v1377
    %v2547 = vunpack.c.h.b16 %v1377
    %v2548 = vunpack.c.l.b16 %v1378
    %v2549 = vunpack.c.h.b16 %v1378
    %v2550 = vunpack.c.l.b16 %v1379
    %v2551 = vunpack.c.h.b16 %v1379
    %v2552 = vunpack.c.l.b16 %v1380
    %v2553 = vunpack.c.l.b16 %v1381
    %v2554 = vunpack.c.h.b16 %v1381
    %v2555 = vunpack.c.l.b16 %v1382
    %v2556 = vunpack.c.h.b16 %v1382
    %v2557 = vunpack.c.l.b16 %v1383
    %v2558 = vunpack.c.h.b16 %v1383
    %v2559 = vunpack.c.l.b16 %v1384
    %v2560 = vunpack.c.l.b16 %v1385
    %v2561 = vunpack.c.h.b16 %v1385
    %v2562 = vunpack.c.l.b16 %v1386
    %v2563 = vunpack.c.h.b16 %v1386
    %v2564 = vunpack.c.l.b16 %v1387
    %v2565 = vunpack.c.h.b16 %v1387
    %v2566 = vunpack.c.l.b16 %v1388
    %v2567 = vunpack.c.l.b16 %v1389
    %v2568 = vunpack.c.h.b16 %v1389
    %v2569 = vunpack.c.l.b16 %v1390
    %v2570 = vunpack.c.h.b16 %v1390
    %v2571 = vunpack.c.l.b16 %v1391
    %v2572 = vunpack.c.h.b16 %v1391
    %v2573 = vunpack.c.l.b16 %v1392
    %v2574 = vunpack.c.l.b16 %v1393
    %v2575 = vunpack.c.h.b16 %v1393
    %v2576 = vunpack.c.l.b16 %v1394
    %v2577 = vunpack.c.h.b16 %v1394
    %v2578 = vunpack.c.l.b16 %v1395
    %v2579 = vunpack.c.h.b16 %v1395
    %v2580 = vunpack.c.l.b16 %v1396
    %v2581 = vunpack.c.l.b16 %v1397
    %v2582 = vunpack.c.h.b16 %v1397
    %v2583 = vunpack.c.l.b16 %v1398
    %v2584 = vunpack.c.h.b16 %v1398
    %v2585 = vunpack.c.l.b16 %v1399
    %v2586 = vunpack.c.h.b16 %v1399
    %v2587 = vunpack.c.l.b16 %v1400
    %v2588 = vunpack.c.l.b16 %v1401
    %v2589 = vunpack.c.h.b16 %v1401
    %v2590 = vunpack.c.l.b16 %v1402
    %v2591 = vunpack.c.h.b16 %v1402
    %v2592 = vunpack.c.l.b16 %v1403
    %v2593 = vunpack.c.h.b16 %v1403
    %v2594 = vunpack.c.l.b16 %v1404
    %v2595 = vunpack.c.l.b16 %v1405
    %v2596 = vunpack.c.h.b16 %v1405
    %v2597 = vunpack.c.l.b16 %v1406
    %v2598 = vunpack.c.h.b16 %v1406
    %v2599 = vunpack.c.l.b16 %v1407
    %v2600 = vunpack.c.h.b16 %v1407
    %v2601 = vunpack.c.l.b16 %v1408
    %v2602 = vunpack.c.l.b16 %v1409
    %v2603 = vunpack.c.h.b16 %v1409
    %v2604 = vunpack.c.l.b16 %v1410
    %v2605 = vunpack.c.h.b16 %v1410
    %v2606 = vunpack.c.l.b16 %v1411
    %v2607 = vunpack.c.h.b16 %v1411
    %v2608 = vunpack.c.l.b16 %v1412
    %v2609 = vunpack.c.l.b16 %v1413
    %v2610 = vunpack.c.h.b16 %v1413
    %v2611 = vunpack.c.l.b16 %v1414
    %v2612 = vunpack.c.h.b16 %v1414
    %v2613 = vunpack.c.l.b16 %v1415
    %v2614 = vunpack.c.h.b16 %v1415
    %v2615 = vunpack.c.l.b16 %v1416
    %v2616 = vunpack.c.l.b16 %v1417
    %v2617 = vunpack.c.h.b16 %v1417
    %v2618 = vunpack.c.l.b16 %v1418
    %v2619 = vunpack.c.h.b16 %v1418
    %v2620 = vunpack.c.l.b16 %v1419
    %v2621 = vunpack.c.h.b16 %v1419
    %v2622 = vunpack.c.l.b16 %v1420
    %v2623 = vunpack.c.l.b16 %v1421
    %v2624 = vunpack.c.h.b16 %v1421
    %v2625 = vunpack.c.l.b16 %v1422
    %v2626 = vunpack.c.h.b16 %v1422
    %v2627 = vunpack.c.l.b16 %v1423
    %v2628 = vunpack.c.h.b16 %v1423
    %v2629 = vunpack.c.l.b16 %v1424
    %v2630 = vunpack.c.l.b16 %v1425
    %v2631 = vunpack.c.h.b16 %v1425
    %v2632 = vunpack.c.l.b16 %v1426
    %v2633 = vunpack.c.h.b16 %v1426
    %v2634 = vunpack.c.l.b16 %v1427
    %v2635 = vunpack.c.h.b16 %v1427
    %v2636 = vunpack.c.l.b16 %v1428
    %v2637 = vunpack.c.l.b16 %v1429
    %v2638 = vunpack.c.h.b16 %v1429
    %v2639 = vunpack.c.l.b16 %v1430
    %v2640 = vunpack.c.h.b16 %v1430
    %v2641 = vunpack.c.l.b16 %v1431
    %v2642 = vunpack.c.h.b16 %v1431
    %v2643 = vunpack.c.l.b16 %v1432
    %v2644 = vunpack.c.l.b16 %v1433
    %v2645 = vunpack.c.h.b16 %v1433
    %v2646 = vunpack.c.l.b16 %v1434
    %v2647 = vunpack.c.h.b16 %v1434
    %v2648 = vunpack.c.l.b16 %v1435
    %v2649 = vunpack.c.h.b16 %v1435
    %v2650 = vunpack.c.l.b16 %v1436
    %v2651 = vunpack.c.l.b16 %v1437
    %v2652 = vunpack.c.h.b16 %v1437
    %v2653 = vunpack.c.l.b16 %v1438
    %v2654 = vunpack.c.h.b16 %v1438
    %v2655 = vunpack.c.l.b16 %v1439
    %v2656 = vunpack.c.h.b16 %v1439
    %v2657 = vunpack.c.l.b16 %v1440
    %v2658 = vunpack.c.l.b16 %v1441
    %v2659 = vunpack.c.h.b16 %v1441
    %v2660 = vunpack.c.l.b16 %v1442
    %v2661 = vunpack.c.h.b16 %v1442
    %v2662 = vunpack.c.l.b16 %v1443
    %v2663 = vunpack.c.h.b16 %v1443
    %v2664 = vunpack.c.l.b16 %v1444
    %v2665 = vunpack.c.l.b16 %v1445
    %v2666 = vunpack.c.h.b16 %v1445
    %v2667 = vunpack.c.l.b16 %v1446
    %v2668 = vunpack.c.h.b16 %v1446
    %v2669 = vunpack.c.l.b16 %v1447
    %v2670 = vunpack.c.h.b16 %v1447
    %v2671 = vunpack.c.l.b16 %v1448
    %v2672 = vunpack.c.l.b16 %v1449
    %v2673 = vunpack.c.h.b16 %v1449
    %v2674 = vunpack.c.l.b16 %v1450
    %v2675 = vunpack.c.h.b16 %v1450
    %v2676 = vunpack.c.l.b16 %v1451
    %v2677 = vunpack.c.h.b16 %v1451
    %v2678 = vunpack.c.l.b16 %v1452
    %v2679 = vunpack.c.l.b16 %v1453
    %v2680 = vunpack.c.h.b16 %v1453
    %v2681 = vunpack.c.l.b16 %v1454
    %v2682 = vunpack.c.h.b16 %v1454
    %v2683 = vunpack.c.l.b16 %v1455
    %v2684 = vunpack.c.h.b16 %v1455
    %v2685 = vunpack.c.l.b16 %v1456
    %v2686 = vunpack.c.l.b16 %v1457
    %v2687 = vunpack.c.h.b16 %v1457
    %v2688 = vunpack.c.l.b16 %v1458
    %v2689 = vunpack.c.h.b16 %v1458
    %v2690 = vunpack.c.l.b16 %v1459
    %v2691 = vunpack.c.h.b16 %v1459
    %v2692 = vunpack.c.l.b16 %v1460
    %v2693 = vunpack.c.l.b16 %v1461
    %v2694 = vunpack.c.h.b16 %v1461
    %v2695 = vunpack.c.l.b16 %v1462
    %v2696 = vunpack.c.h.b16 %v1462
    %v2697 = vunpack.c.l.b16 %v1463
    %v2698 = vunpack.c.h.b16 %v1463
    %v2699 = vunpack.c.l.b16 %v1464
    %v2700 = vunpack.c.l.b16 %v1465
    %v2701 = vunpack.c.h.b16 %v1465
    %v2702 = vunpack.c.l.b16 %v1466
    %v2703 = vunpack.c.h.b16 %v1466
    %v2704 = vunpack.c.l.b16 %v1467
    %v2705 = vunpack.c.h.b16 %v1467
    %v2706 = vunpack.c.l.b16 %v1468
    %v2707 = vunpack.c.l.b16 %v1469
    %v2708 = vunpack.c.h.b16 %v1469
    %v2709 = vunpack.c.l.b16 %v1470
    %v2710 = vunpack.c.h.b16 %v1470
    %v2711 = vunpack.c.l.b16 %v1471
    %v2712 = vunpack.c.h.b16 %v1471
    %v2713 = vunpack.c.l.b16 %v1472
    %v2714 = vunpack.c.l.b16 %v1473
    %v2715 = vunpack.c.h.b16 %v1473
    %v2716 = vunpack.c.l.b16 %v1474
    %v2717 = vunpack.c.h.b16 %v1474
    %v2718 = vunpack.c.l.b16 %v1475
    %v2719 = vunpack.c.h.b16 %v1475
    %v2720 = vunpack.c.l.b16 %v1476
    %v2721 = vunpack.c.l.b16 %v1477
    %v2722 = vunpack.c.h.b16 %v1477
    %v2723 = vunpack.c.l.b16 %v1478
    %v2724 = vunpack.c.h.b16 %v1478
    %v2725 = vunpack.c.l.b16 %v1479
    %v2726 = vunpack.c.h.b16 %v1479
    %v2727 = vunpack.c.l.b16 %v1480
    %v2728 = vunpack.c.l.b16 %v1481
    %v2729 = vunpack.c.h.b16 %v1481
    %v2730 = vunpack.c.l.b16 %v1482
    %v2731 = vunpack.c.h.b16 %v1482
    %v2732 = vunpack.c.l.b16 %v1483
    %v2733 = vunpack.c.h.b16 %v1483
    %v2734 = vunpack.c.l.b16 %v1484
    %v2735 = vunpack.c.l.b16 %v1485
    %v2736 = vunpack.c.h.b16 %v1485
    %v2737 = vunpack.c.l.b16 %v1486
    %v2738 = vunpack.c.h.b16 %v1486
    %v2739 = vunpack.c.l.b16 %v1487
    %v2740 = vunpack.c.h.b16 %v1487
    %v2741 = vunpack.c.l.b16 %v1488
    %v2742 = vunpack.c.l.b16 %v1489
    %v2743 = vunpack.c.h.b16 %v1489
    %v2744 = vunpack.c.l.b16 %v1490
    %v2745 = vunpack.c.h.b16 %v1490
    %v2746 = vunpack.c.l.b16 %v1491
    %v2747 = vunpack.c.h.b16 %v1491
    %v2748 = vunpack.c.l.b16 %v1492
    %v2749 = vunpack.c.l.b16 %v1493
    %v2750 = vunpack.c.h.b16 %v1493
    %v2751 = vunpack.c.l.b16 %v1494
    %v2752 = vunpack.c.h.b16 %v1494
    %v2753 = vunpack.c.l.b16 %v1495
    %v2754 = vunpack.c.h.b16 %v1495
    %v2755 = vunpack.c.l.b16 %v1496
    %v2756 = vunpack.c.l.b16 %v1497
    %v2757 = vunpack.c.h.b16 %v1497
    %v2758 = vunpack.c.l.b16 %v1498
    %v2759 = vunpack.c.h.b16 %v1498
    %v2760 = vunpack.c.l.b16 %v1499
    %v2761 = vunpack.c.h.b16 %v1499
    %v2762 = vunpack.c.l.b16 %v1500
    %v2763 = vunpack.c.l.b16 %v1501
    %v2764 = vunpack.c.h.b16 %v1501
    %v2765 = vunpack.c.l.b16 %v1502
    %v2766 = vunpack.c.h.b16 %v1502
    %v2767 = vunpack.c.l.b16 %v1503
    %v2768 = vunpack.c.h.b16 %v1503
    %v2769 = vunpack.c.l.b16 %v1504
    %v2770 = vunpack.c.l.b16 %v1505
    %v2771 = vunpack.c.h.b16 %v1505
    %v2772 = vunpack.c.l.b16 %v1506
    %v2773 = vunpack.c.h.b16 %v1506
    %v2774 = vunpack.c.l.b16 %v1507
    %v2775 = vunpack.c.h.b16 %v1507
    %v2776 = vunpack.c.l.b16 %v1508
    %v2777 = vunpack.c.l.b16 %v1509
    %v2778 = vunpack.c.h.b16 %v1509
    %v2779 = vunpack.c.l.b16 %v1510
    %v2780 = vunpack.c.h.b16 %v1510
    %v2781 = vunpack.c.l.b16 %v1511
    %v2782 = vunpack.c.h.b16 %v1511
    %v2783 = vunpack.c.l.b16 %v1512
    %v2784 = vunpack.c.l.b16 %v1513
    %v2785 = vunpack.c.h.b16 %v1513
    %v2786 = vunpack.c.l.b16 %v1514
    %v2787 = vunpack.c.h.b16 %v1514
    %v2788 = vunpack.c.l.b16 %v1515
    %v2789 = vunpack.c.h.b16 %v1515
    %v2790 = vunpack.c.l.b16 %v1516
    %v2791 = vunpack.c.l.b16 %v1517
    %v2792 = vunpack.c.h.b16 %v1517
    %v2793 = vunpack.c.l.b16 %v1518
    %v2794 = vunpack.c.h.b16 %v1518
    %v2795 = vunpack.c.l.b16 %v1519
    %v2796 = vunpack.c.h.b16 %v1519
    %v2797 = vunpack.c.l.b16 %v1520
    %v2798 = vunpack.c.l.b16 %v1521
    %v2799 = vunpack.c.h.b16 %v1521
    %v2800 = vunpack.c.l.b16 %v1522
    %v2801 = vunpack.c.h.b16 %v1522
    %v2802 = vunpack.c.l.b16 %v1523
    %v2803 = vunpack.c.h.b16 %v1523
    %v2804 = vunpack.c.l.b16 %v1524
    %v2805 = vunpack.c.l.b16 %v1525
    %v2806 = vunpack.c.h.b16 %v1525
    %v2807 = vunpack.c.l.b16 %v1526
    %v2808 = vunpack.c.h.b16 %v1526
    %v2809 = vunpack.c.l.b16 %v1527
    %v2810 = vunpack.c.h.b16 %v1527
    %v2811 = vunpack.c.l.b16 %v1528
    %v2812 = vunpack.c.l.b16 %v1529
    %v2813 = vunpack.c.h.b16 %v1529
    %v2814 = vunpack.c.l.b16 %v1530
    %v2815 = vunpack.c.h.b16 %v1530
    %v2816 = vunpack.c.l.b16 %v1531
    %v2817 = vunpack.c.h.b16 %v1531
    %v2818 = vunpack.c.l.b16 %v1532
    %v2819 = vunpack.c.l.b16 %v1533
    %v2820 = vunpack.c.h.b16 %v1533
    %v2821 = vunpack.c.l.b16 %v1534
    %v2822 = vunpack.c.h.b16 %v1534
    %v2823 = vunpack.c.l.b16 %v1535
    %v2824 = vunpack.c.h.b16 %v1535
    %v2825 = vunpack.c.l.b16 %v1536
    %v2826 = vunpack.c.l.b16 %v1537
    %v2827 = vunpack.c.h.b16 %v1537
    %v2828 = vunpack.c.l.b16 %v1538
    %v2829 = vunpack.c.h.b16 %v1538
    %v2830 = vunpack.c.l.b16 %v1539
    %v2831 = vunpack.c.h.b16 %v1539
    %v2832 = vunpack.c.l.b16 %v1540
    %v2833 = vunpack.c.l.b16 %v1541
    %v2834 = vunpack.c.h.b16 %v1541
    %v2835 = vunpack.c.l.b16 %v1542
    %v2836 = vunpack.c.h.b16 %v1542
    %v2837 = vunpack.c.l.b16 %v1543
    %v2838 = vunpack.c.h.b16 %v1543
    %v2839 = vunpack.c.l.b16 %v1544
    %v2840 = vunpack.c.l.b16 %v1545
    %v2841 = vunpack.c.h.b16 %v1545
    %v2842 = vunpack.c.l.b16 %v1546
    %v2843 = vunpack.c.h.b16 %v1546
    %v2844 = vunpack.c.l.b16 %v1547
    %v2845 = vunpack.c.h.b16 %v1547
    %v2846 = vunpack.c.l.b16 %v1548
    %v2847 = vunpack.c.l.b16 %v1549
    %v2848 = vunpack.c.h.b16 %v1549
    %v2849 = vunpack.c.l.b16 %v1550
    %v2850 = vunpack.c.h.b16 %v1550
    %v2851 = vunpack.c.l.b16 %v1551
    %v2852 = vunpack.c.h.b16 %v1551
    %v2853 = vunpack.c.l.b16 %v1552
    %v2854 = vunpack.c.l.b16 %v1553
    %v2855 = vunpack.c.h.b16 %v1553
    %v2856 = vunpack.c.l.b16 %v1554
    %v2857 = vunpack.c.h.b16 %v1554
    %v2858 = vunpack.c.l.b16 %v1555
    %v2859 = vunpack.c.h.b16 %v1555
    %v2860 = vunpack.c.l.b16 %v1556
    %v2861 = vunpack.c.l.b16 %v1557
    %v2862 = vunpack.c.h.b16 %v1557
    %v2863 = vunpack.c.l.b16 %v1558
    %v2864 = vunpack.c.h.b16 %v1558
    %v2865 = vunpack.c.l.b16 %v1559
    %v2866 = vunpack.c.h.b16 %v1559
    %v2867 = vunpack.c.l.b16 %v1560
    %v2868 = vunpack.c.l.b16 %v1561
    %v2869 = vunpack.c.h.b16 %v1561
    %v2870 = vunpack.c.l.b16 %v1562
    %v2871 = vunpack.c.h.b16 %v1562
    %v2872 = vunpack.c.l.b16 %v1563
    %v2873 = vunpack.c.h.b16 %v1563
    %v2874 = vunpack.c.l.b16 %v1564
    %v2875 = vunpack.c.l.b16 %v1565
    %v2876 = vunpack.c.h.b16 %v1565
    %v2877 = vunpack.c.l.b16 %v1566
    %v2878 = vunpack.c.h.b16 %v1566
    %v2879 = vunpack.c.l.b16 %v1567
    %v2880 = vunpack.c.h.b16 %v1567
    %v2881 = vunpack.c.l.b16 %v1568
    %v2882 = vunpack.c.l.b16 %v1569
    %v2883 = vunpack.c.h.b16 %v1569
    %v2884 = vunpack.c.l.b16 %v1570
    %v2885 = vunpack.c.h.b16 %v1570
    %v2886 = vunpack.c.l.b16 %v1571
    %v2887 = vunpack.c.h.b16 %v1571
    %v2888 = vunpack.c.l.b16 %v1572
    %v2889 = vunpack.c.l.b16 %v1573
    %v2890 = vunpack.c.h.b16 %v1573
    %v2891 = vunpack.c.l.b16 %v1574
    %v2892 = vunpack.c.h.b16 %v1574
    %v2893 = vunpack.c.l.b16 %v1575
    %v2894 = vunpack.c.h.b16 %v1575
    %v2895 = vunpack.c.l.b16 %v1576
    %v2896 = vunpack.c.l.b16 %v1577
    %v2897 = vunpack.c.h.b16 %v1577
    %v2898 = vunpack.c.l.b16 %v1578
    %v2899 = vunpack.c.h.b16 %v1578
    %v2900 = vunpack.c.l.b16 %v1579
    %v2901 = vunpack.c.h.b16 %v1579
    %v2902 = vunpack.c.l.b16 %v1580
    %v2903 = vunpack.c.l.b16 %v1581
    %v2904 = vunpack.c.h.b16 %v1581
    %v2905 = vunpack.c.l.b16 %v1582
    %v2906 = vunpack.c.h.b16 %v1582
    %v2907 = vunpack.c.l.b16 %v1583
    %v2908 = vunpack.c.h.b16 %v1583
    %v2909 = vunpack.c.l.b16 %v1584
    %v2910 = vunpack.c.l.b16 %v1585
    %v2911 = vunpack.c.h.b16 %v1585
    %v2912 = vunpack.c.l.b16 %v1586
    %v2913 = vunpack.c.h.b16 %v1586
    %v2914 = vunpack.c.l.b16 %v1587
    %v2915 = vunpack.c.h.b16 %v1587
    %v2916 = vunpack.c.l.b16 %v1588
    %v2917 = vunpack.c.l.b16 %v1589
    %v2918 = vunpack.c.h.b16 %v1589
    %v2919 = vunpack.c.l.b16 %v1590
    %v2920 = vunpack.c.h.b16 %v1590
    %v2921 = vunpack.c.l.b16 %v1591
    %v2922 = vunpack.c.h.b16 %v1591
    %v2923 = vunpack.c.l.b16 %v1592
    %v2924 = vunpack.c.l.b16 %v1593
    %v2925 = vunpack.c.h.b16 %v1593
    %v2926 = vunpack.c.l.b16 %v1594
    %v2927 = vunpack.c.h.b16 %v1594
    %v2928 = vunpack.c.l.b16 %v1595
    %v2929 = vunpack.c.h.b16 %v1595
    %v2930 = vunpack.c.l.b16 %v1596
    %v2931 = vunpack.c.l.b16 %v1597
    %v2932 = vunpack.c.h.b16 %v1597
    %v2933 = vunpack.c.l.b16 %v1598
    %v2934 = vunpack.c.h.b16 %v1598
    %v2935 = vunpack.c.l.b16 %v1599
    %v2936 = vunpack.c.h.b16 %v1599
    %v2937 = vunpack.c.l.b16 %v1600
    %v2938 = vunpack.c.l.b16 %v1601
    %v2939 = vunpack.c.h.b16 %v1601
    %v2940 = vunpack.c.l.b16 %v1602
    %v2941 = vunpack.c.h.b16 %v1602
    %v2942 = vunpack.c.l.b16 %v1603
    %v2943 = vunpack.c.h.b16 %v1603
    %v2944 = vunpack.c.l.b16 %v1604
    %v2945 = vunpack.c.l.b16 %v1605
    %v2946 = vunpack.c.h.b16 %v1605
    %v2947 = vunpack.c.l.b16 %v1606
    %v2948 = vunpack.c.h.b16 %v1606
    %v2949 = vunpack.c.l.b16 %v1607
    %v2950 = vunpack.c.h.b16 %v1607
    %v2951 = vunpack.c.l.b16 %v1608
    %v2952 = vunpack.c.l.b16 %v1609
    %v2953 = vunpack.c.h.b16 %v1609
    %v2954 = vunpack.c.l.b16 %v1610
    %v2955 = vunpack.c.h.b16 %v1610
    %v2956 = vunpack.c.l.b16 %v1611
    %v2957 = vunpack.c.h.b16 %v1611
    %v2958 = vunpack.c.l.b16 %v1612
    %v2959 = vunpack.c.l.b16 %v1613
    %v2960 = vunpack.c.h.b16 %v1613
    %v2961 = vunpack.c.l.b16 %v1614
    %v2962 = vunpack.c.h.b16 %v1614
    %v2963 = vunpack.c.l.b16 %v1615
    %v2964 = vunpack.c.h.b16 %v1615
    %v2965 = vunpack.c.l.b16 %v1616
    %v2966 = vunpack.c.l.b16 %v1617
    %v2967 = vunpack.c.h.b16 %v1617
    %v2968 = vunpack.c.l.b16 %v1618
    %v2969 = vunpack.c.h.b16 %v1618
    %v2970 = vunpack.c.l.b16 %v1619
    %v2971 = vunpack.c.h.b16 %v1619
    %v2972 = vunpack.c.l.b16 %v1620
    %v2973 = vunpack.c.l.b16 %v1621
    %v2974 = vunpack.c.h.b16 %v1621
    %v2975 = vunpack.c.l.b16 %v1622
    %v2976 = vunpack.c.h.b16 %v1622
    %v2977 = vunpack.c.l.b16 %v1623
    %v2978 = vunpack.c.h.b16 %v1623
    %v2979 = vunpack.c.l.b16 %v1624
    %v2980 = vunpack.c.l.b16 %v1625
    %v2981 = vunpack.c.h.b16 %v1625
    %v2982 = vunpack.c.l.b16 %v1626
    %v2983 = vunpack.c.h.b16 %v1626
    %v2984 = vunpack.c.l.b16 %v1627
    %v2985 = vunpack.c.h.b16 %v1627
    %v2986 = vunpack.c.l.b16 %v1628
    %v2987 = vunpack.c.l.b16 %v1629
    %v2988 = vunpack.c.h.b16 %v1629
    %v2989 = vunpack.c.l.b16 %v1630
    %v2990 = vunpack.c.h.b16 %v1630
    %v2991 = vunpack.c.l.b16 %v1631
    %v2992 = vunpack.c.h.b16 %v1631
    %v2993 = vunpack.c.l.b16 %v1632
    %v2994 = vunpack.c.l.b16 %v1633
    %v2995 = vunpack.c.h.b16 %v1633
    %v2996 = vunpack.c.l.b16 %v1634
    %v2997 = vunpack.c.h.b16 %v1634
    %v2998 = vunpack.c.l.b16 %v1635
    %v2999 = vunpack.c.h.b16 %v1635
    %v3000 = vunpack.c.l.b16 %v1636
    %v3001 = vunpack.c.l.b16 %v1637
    %v3002 = vunpack.c.h.b16 %v1637
    %v3003 = vunpack.c.l.b16 %v1638
    %v3004 = vunpack.c.h.b16 %v1638
    %v3005 = vunpack.c.l.b16 %v1639
    %v3006 = vunpack.c.h.b16 %v1639
    %v3007 = vunpack.c.l.b16 %v1640
    %v3008 = vunpack.c.l.b16 %v1641
    %v3009 = vunpack.c.h.b16 %v1641
    %v3010 = vunpack.c.l.b16 %v1642
    %v3011 = vunpack.c.h.b16 %v1642
    %v3012 = vunpack.c.l.b16 %v1643
    %v3013 = vunpack.c.h.b16 %v1643
    %v3014 = vunpack.c.l.b16 %v1644
    %v3015 = vunpack.c.l.b16 %v1645
    %v3016 = vunpack.c.h.b16 %v1645
    %v3017 = vunpack.c.l.b16 %v1646
    %v3018 = vunpack.c.h.b16 %v1646
    %v3019 = vunpack.c.l.b16 %v1647
    %v3020 = vunpack.c.h.b16 %v1647
    %v3021 = vunpack.c.l.b16 %v1648
    %v3022 = vunpack.c.l.b16 %v1649
    %v3023 = vunpack.c.h.b16 %v1649
    %v3024 = vunpack.c.l.b16 %v1650
    %v3025 = vunpack.c.h.b16 %v1650
    %v3026 = vunpack.c.l.b16 %v1651
    %v3027 = vunpack.c.h.b16 %v1651
    %v3028 = vunpack.c.l.b16 %v1652
    %v3029 = vunpack.c.l.b16 %v1653
    %v3030 = vunpack.c.h.b16 %v1653
    %v3031 = vunpack.c.l.b16 %v1654
    %v3032 = vunpack.c.h.b16 %v1654
    %v3033 = vunpack.c.l.b16 %v1655
    %v3034 = vunpack.c.h.b16 %v1655
    %v3035 = vunpack.c.l.b16 %v1656
    %v3036 = vunpack.c.l.b16 %v1657
    %v3037 = vunpack.c.h.b16 %v1657
    %v3038 = vunpack.c.l.b16 %v1658
    %v3039 = vunpack.c.h.b16 %v1658
    %v3040 = vunpack.c.l.b16 %v1659
    %v3041 = vunpack.c.h.b16 %v1659
    %v3042 = vunpack.c.l.b16 %v1660
    %v3043 = vunpack.c.l.b16 %v1661
    %v3044 = vunpack.c.h.b16 %v1661
    %v3045 = vunpack.c.l.b16 %v1662
    %v3046 = vunpack.c.h.b16 %v1662
    %v3047 = vunpack.c.l.b16 %v1663
    %v3048 = vunpack.c.h.b16 %v1663
    %v3049 = vunpack.c.l.b16 %v1664
    %v3050 = vunpack.c.l.b16 %v1665
    %v3051 = vunpack.c.h.b16 %v1665
    %v3052 = vunpack.c.l.b16 %v1666
    %v3053 = vunpack.c.h.b16 %v1666
    %v3054 = vunpack.c.l.b16 %v1667
    %v3055 = vunpack.c.h.b16 %v1667
    %v3056 = vunpack.c.l.b16 %v1668
    %v3057 = vunpack.c.l.b16 %v1669
    %v3058 = vunpack.c.h.b16 %v1669
    %v3059 = vunpack.c.l.b16 %v1670
    %v3060 = vunpack.c.h.b16 %v1670
    %v3061 = vunpack.c.l.b16 %v1671
    %v3062 = vunpack.c.h.b16 %v1671
    %v3063 = vunpack.c.l.b16 %v1672
    %v3064 = vunpack.c.l.b16 %v1673
    %v3065 = vunpack.c.h.b16 %v1673
    %v3066 = vunpack.c.l.b16 %v1674
    %v3067 = vunpack.c.h.b16 %v1674
    %v3068 = vunpack.c.l.b16 %v1675
    %v3069 = vunpack.c.h.b16 %v1675
    %v3070 = vunpack.c.l.b16 %v1676
    %v3071 = vunpack.c.l.b16 %v1677
    %v3072 = vunpack.c.h.b16 %v1677
    %v3073 = vunpack.c.l.b16 %v1678
    %v3074 = vunpack.c.h.b16 %v1678
    %v3075 = vunpack.c.l.b16 %v1679
    %v3076 = vunpack.c.h.b16 %v1679
    %v3077 = vunpack.c.l.b16 %v1680
    %v3078 = vunpack.c.l.b16 %v1681
    %v3079 = vunpack.c.h.b16 %v1681
    %v3080 = vunpack.c.l.b16 %v1682
    %v3081 = vunpack.c.h.b16 %v1682
    %v3082 = vunpack.c.l.b16 %v1683
    %v3083 = vunpack.c.h.b16 %v1683
    %v3084 = vunpack.c.l.b16 %v1684
    %v3085 = vunpack.c.l.b16 %v1685
    %v3086 = vunpack.c.h.b16 %v1685
    %v3087 = vunpack.c.l.b16 %v1686
    %v3088 = vunpack.c.h.b16 %v1686
    %v3089 = vunpack.c.l.b16 %v1687
    %v3090 = vunpack.c.h.b16 %v1687
    %v3091 = vunpack.c.l.b16 %v1688
    %v3092 = vunpack.c.l.b16 %v1689
    %v3093 = vunpack.c.h.b16 %v1689
    %v3094 = vunpack.c.l.b16 %v1690
    %v3095 = vunpack.c.h.b16 %v1690
    %v3096 = vunpack.c.l.b16 %v1691
    %v3097 = vunpack.c.h.b16 %v1691
    %v3098 = vunpack.c.l.b16 %v1692
    %v3099 = vunpack.c.l.b16 %v1693
    %v3100 = vunpack.c.h.b16 %v1693
    %v3101 = vunpack.c.l.b16 %v1694
    %v3102 = vunpack.c.h.b16 %v1694
    %v3103 = vunpack.c.l.b16 %v1695
    %v3104 = vunpack.c.h.b16 %v1695
    %v3105 = vunpack.c.l.b16 %v1696
    %v3106 = vunpack.c.l.b16 %v1697
    %v3107 = vunpack.c.h.b16 %v1697
    %v3108 = vunpack.c.l.b16 %v1698
    %v3109 = vunpack.c.h.b16 %v1698
    %v3110 = vunpack.c.l.b16 %v1699
    %v3111 = vunpack.c.h.b16 %v1699
    %v3112 = vunpack.c.l.b16 %v1700
    %v3113 = vunpack.c.l.b16 %v1701
    %v3114 = vunpack.c.h.b16 %v1701
    %v3115 = vunpack.c.l.b16 %v1702
    %v3116 = vunpack.c.h.b16 %v1702
    %v3117 = vunpack.c.l.b16 %v1703
    %v3118 = vunpack.c.h.b16 %v1703
    %v3119 = vunpack.c.l.b16 %v1704
    %v3120 = vunpack.c.l.b16 %v1705
    %v3121 = vunpack.c.h.b16 %v1705
    %v3122 = vunpack.c.l.b16 %v1706
    %v3123 = vunpack.c.h.b16 %v1706
    %v3124 = vunpack.c.l.b16 %v1707
    %v3125 = vunpack.c.h.b16 %v1707
    %v3126 = vunpack.c.l.b16 %v1708
    %v3127 = vunpack.c.l.b16 %v1709
    %v3128 = vunpack.c.h.b16 %v1709
    %v3129 = vunpack.c.l.b16 %v1710
    %v3130 = vunpack.c.h.b16 %v1710
    %v3131 = vunpack.c.l.b16 %v1711
    %v3132 = vunpack.c.h.b16 %v1711
    %v3133 = vunpack.c.l.b16 %v1712
    %v3134 = vunpack.c.l.b16 %v1713
    %v3135 = vunpack.c.h.b16 %v1713
    %v3136 = vunpack.c.l.b16 %v1714
    %v3137 = vunpack.c.h.b16 %v1714
    %v3138 = vunpack.c.l.b16 %v1715
    %v3139 = vunpack.c.h.b16 %v1715
    %v3140 = vunpack.c.l.b16 %v1716
    %v3141 = vpack.c.b16 %v2252, %v2245
    %v3142 = vpack.c.b16 %v2253, %v2246
    %v3143 = vpack.c.b16 %v2254, %v2247
    %v3144 = vpack.c.b16 %v2255, %v2248
    %v3145 = vpack.c.b16 %v2256, %v2249
    %v3146 = vpack.c.b16 %v2257, %v2250
    %v3147 = vpack.c.b16 %v2258, %v2251
    %v3148 = vpack.c.b16 %v2266, %v2259
    %v3149 = vpack.c.b16 %v2267, %v2260
    %v3150 = vpack.c.b16 %v2268, %v2261
    %v3151 = vpack.c.b16 %v2269, %v2262
    %v3152 = vpack.c.b16 %v2270, %v2263
    %v3153 = vpack.c.b16 %v2271, %v2264
    %v3154 = vpack.c.b16 %v2272, %v2265
    %v3155 = vpack.c.b16 %v2280, %v2273
    %v3156 = vpack.c.b16 %v2281, %v2274
    %v3157 = vpack.c.b16 %v2282, %v2275
    %v3158 = vpack.c.b16 %v2283, %v2276
    %v3159 = vpack.c.b16 %v2284, %v2277
    %v3160 = vpack.c.b16 %v2285, %v2278
    %v3161 = vpack.c.b16 %v2286, %v2279
    %v3162 = vpack.c.b16 %v2294, %v2287
    %v3163 = vpack.c.b16 %v2295, %v2288
    %v3164 = vpack.c.b16 %v2296, %v2289
    %v3165 = vpack.c.b16 %v2297, %v2290
    %v3166 = vpack.c.b16 %v2298, %v2291
    %v3167 = vpack.c.b16 %v2299, %v2292
    %v3168 = vpack.c.b16 %v2300, %v2293
    %v3169 = vpack.c.b16 %v2308, %v2301
    %v3170 = vpack.c.b16 %v2309, %v2302
    %v3171 = vpack.c.b16 %v2310, %v2303
    %v3172 = vpack.c.b16 %v2311, %v2304
    %v3173 = vpack.c.b16 %v2312, %v2305
    %v3174 = vpack.c.b16 %v2313, %v2306
    %v3175 = vpack.c.b16 %v2314, %v2307
    %v3176 = vpack.c.b16 %v2322, %v2315
    %v3177 = vpack.c.b16 %v2323, %v2316
    %v3178 = vpack.c.b16 %v2324, %v2317
    %v3179 = vpack.c.b16 %v2325, %v2318
    %v3180 = vpack.c.b16 %v2326, %v2319
    %v3181 = vpack.c.b16 %v2327, %v2320
    %v3182 = vpack.c.b16 %v2328, %v2321
    %v3183 = vpack.c.b16 %v2336, %v2329
    %v3184 = vpack.c.b16 %v2337, %v2330
    %v3185 = vpack.c.b16 %v2338, %v2331
    %v3186 = vpack.c.b16 %v2339, %v2332
    %v3187 = vpack.c.b16 %v2340, %v2333
    %v3188 = vpack.c.b16 %v2341, %v2334
    %v3189 = vpack.c.b16 %v2342, %v2335
    %v3190 = vpack.c.b16 %v2350, %v2343
    %v3191 = vpack.c.b16 %v2351, %v2344
    %v3192 = vpack.c.b16 %v2352, %v2345
    %v3193 = vpack.c.b16 %v2353, %v2346
    %v3194 = vpack.c.b16 %v2354, %v2347
    %v3195 = vpack.c.b16 %v2355, %v2348
    %v3196 = vpack.c.b16 %v2356, %v2349
    %v3197 = vpack.c.b16 %v2364, %v2357
    %v3198 = vpack.c.b16 %v2365, %v2358
    %v3199 = vpack.c.b16 %v2366, %v2359
    %v3200 = vpack.c.b16 %v2367, %v2360
    %v3201 = vpack.c.b16 %v2368, %v2361
    %v3202 = vpack.c.b16 %v2369, %v2362
    %v3203 = vpack.c.b16 %v2370, %v2363
    %v3204 = vpack.c.b16 %v2378, %v2371
    %v3205 = vpack.c.b16 %v2379, %v2372
    %v3206 = vpack.c.b16 %v2380, %v2373
    %v3207 = vpack.c.b16 %v2381, %v2374
    %v3208 = vpack.c.b16 %v2382, %v2375
    %v3209 = vpack.c.b16 %v2383, %v2376
    %v3210 = vpack.c.b16 %v2384, %v2377
    %v3211 = vpack.c.b16 %v2392, %v2385
    %v3212 = vpack.c.b16 %v2393, %v2386
    %v3213 = vpack.c.b16 %v2394, %v2387
    %v3214 = vpack.c.b16 %v2395, %v2388
    %v3215 = vpack.c.b16 %v2396, %v2389
    %v3216 = vpack.c.b16 %v2397, %v2390
    %v3217 = vpack.c.b16 %v2398, %v2391
    %v3218 = vpack.c.b16 %v2406, %v2399
    %v3219 = vpack.c.b16 %v2407, %v2400
    %v3220 = vpack.c.b16 %v2408, %v2401
    %v3221 = vpack.c.b16 %v2409, %v2402
    %v3222 = vpack.c.b16 %v2410, %v2403
    %v3223 = vpack.c.b16 %v2411, %v2404
    %v3224 = vpack.c.b16 %v2412, %v2405
    %v3225 = vpack.c.b16 %v2420, %v2413
    %v3226 = vpack.c.b16 %v2421, %v2414
    %v3227 = vpack.c.b16 %v2422, %v2415
    %v3228 = vpack.c.b16 %v2423, %v2416
    %v3229 = vpack.c.b16 %v2424, %v2417
    %v3230 = vpack.c.b16 %v2425, %v2418
    %v3231 = vpack.c.b16 %v2426, %v2419
    %v3232 = vpack.c.b16 %v2434, %v2427
    %v3233 = vpack.c.b16 %v2435, %v2428
    %v3234 = vpack.c.b16 %v2436, %v2429
    %v3235 = vpack.c.b16 %v2437, %v2430
    %v3236 = vpack.c.b16 %v2438, %v2431
    %v3237 = vpack.c.b16 %v2439, %v2432
    %v3238 = vpack.c.b16 %v2440, %v2433
    %v3239 = vpack.c.b16 %v2448, %v2441
    %v3240 = vpack.c.b16 %v2449, %v2442
    %v3241 = vpack.c.b16 %v2450, %v2443
    %v3242 = vpack.c.b16 %v2451, %v2444
    %v3243 = vpack.c.b16 %v2452, %v2445
    %v3244 = vpack.c.b16 %v2453, %v2446
    %v3245 = vpack.c.b16 %v2454, %v2447
    %v3246 = vpack.c.b16 %v2462, %v2455
    %v3247 = vpack.c.b16 %v2463, %v2456
    %v3248 = vpack.c.b16 %v2464, %v2457
    %v3249 = vpack.c.b16 %v2465, %v2458
    %v3250 = vpack.c.b16 %v2466, %v2459
    %v3251 = vpack.c.b16 %v2467, %v2460
    %v3252 = vpack.c.b16 %v2468, %v2461
    %v3253 = vpack.c.b16 %v2476, %v2469
    %v3254 = vpack.c.b16 %v2477, %v2470
    %v3255 = vpack.c.b16 %v2478, %v2471
    %v3256 = vpack.c.b16 %v2479, %v2472
    %v3257 = vpack.c.b16 %v2480, %v2473
    %v3258 = vpack.c.b16 %v2481, %v2474
    %v3259 = vpack.c.b16 %v2482, %v2475
    %v3260 = vpack.c.b16 %v2490, %v2483
    %v3261 = vpack.c.b16 %v2491, %v2484
    %v3262 = vpack.c.b16 %v2492, %v2485
    %v3263 = vpack.c.b16 %v2493, %v2486
    %v3264 = vpack.c.b16 %v2494, %v2487
    %v3265 = vpack.c.b16 %v2495, %v2488
    %v3266 = vpack.c.b16 %v2496, %v2489
    %v3267 = vpack.c.b16 %v2504, %v2497
    %v3268 = vpack.c.b16 %v2505, %v2498
    %v3269 = vpack.c.b16 %v2506, %v2499
    %v3270 = vpack.c.b16 %v2507, %v2500
    %v3271 = vpack.c.b16 %v2508, %v2501
    %v3272 = vpack.c.b16 %v2509, %v2502
    %v3273 = vpack.c.b16 %v2510, %v2503
    %v3274 = vpack.c.b16 %v2518, %v2511
    %v3275 = vpack.c.b16 %v2519, %v2512
    %v3276 = vpack.c.b16 %v2520, %v2513
    %v3277 = vpack.c.b16 %v2521, %v2514
    %v3278 = vpack.c.b16 %v2522, %v2515
    %v3279 = vpack.c.b16 %v2523, %v2516
    %v3280 = vpack.c.b16 %v2524, %v2517
    %v3281 = vpack.c.b16 %v2532, %v2525
    %v3282 = vpack.c.b16 %v2533, %v2526
    %v3283 = vpack.c.b16 %v2534, %v2527
    %v3284 = vpack.c.b16 %v2535, %v2528
    %v3285 = vpack.c.b16 %v2536, %v2529
    %v3286 = vpack.c.b16 %v2537, %v2530
    %v3287 = vpack.c.b16 %v2538, %v2531
    %v3288 = vpack.c.b16 %v2546, %v2539
    %v3289 = vpack.c.b16 %v2547, %v2540
    %v3290 = vpack.c.b16 %v2548, %v2541
    %v3291 = vpack.c.b16 %v2549, %v2542
    %v3292 = vpack.c.b16 %v2550, %v2543
    %v3293 = vpack.c.b16 %v2551, %v2544
    %v3294 = vpack.c.b16 %v2552, %v2545
    %v3295 = vpack.c.b16 %v2560, %v2553
    %v3296 = vpack.c.b16 %v2561, %v2554
    %v3297 = vpack.c.b16 %v2562, %v2555
    %v3298 = vpack.c.b16 %v2563, %v2556
    %v3299 = vpack.c.b16 %v2564, %v2557
    %v3300 = vpack.c.b16 %v2565, %v2558
    %v3301 = vpack.c.b16 %v2566, %v2559
    %v3302 = vpack.c.b16 %v2574, %v2567
    %v3303 = vpack.c.b16 %v2575, %v2568
    %v3304 = vpack.c.b16 %v2576, %v2569
    %v3305 = vpack.c.b16 %v2577, %v2570
    %v3306 = vpack.c.b16 %v2578, %v2571
    %v3307 = vpack.c.b16 %v2579, %v2572
    %v3308 = vpack.c.b16 %v2580, %v2573
    %v3309 = vpack.c.b16 %v2588, %v2581
    %v3310 = vpack.c.b16 %v2589, %v2582
    %v3311 = vpack.c.b16 %v2590, %v2583
    %v3312 = vpack.c.b16 %v2591, %v2584
    %v3313 = vpack.c.b16 %v2592, %v2585
    %v3314 = vpack.c.b16 %v2593, %v2586
    %v3315 = vpack.c.b16 %v2594, %v2587
    %v3316 = vpack.c.b16 %v2602, %v2595
    %v3317 = vpack.c.b16 %v2603, %v2596
    %v3318 = vpack.c.b16 %v2604, %v2597
    %v3319 = vpack.c.b16 %v2605, %v2598
    %v3320 = vpack.c.b16 %v2606, %v2599
    %v3321 = vpack.c.b16 %v2607, %v2600
    %v3322 = vpack.c.b16 %v2608, %v2601
    %v3323 = vpack.c.b16 %v2616, %v2609
    %v3324 = vpack.c.b16 %v2617, %v2610
    %v3325 = vpack.c.b16 %v2618, %v2611
    %v3326 = vpack.c.b16 %v2619, %v2612
    %v3327 = vpack.c.b16 %v2620, %v2613
    %v3328 = vpack.c.b16 %v2621, %v2614
    %v3329 = vpack.c.b16 %v2622, %v2615
    %v3330 = vpack.c.b16 %v2630, %v2623
    %v3331 = vpack.c.b16 %v2631, %v2624
    %v3332 = vpack.c.b16 %v2632, %v2625
    %v3333 = vpack.c.b16 %v2633, %v2626
    %v3334 = vpack.c.b16 %v2634, %v2627
    %v3335 = vpack.c.b16 %v2635, %v2628
    %v3336 = vpack.c.b16 %v2636, %v2629
    %v3337 = vpack.c.b16 %v2644, %v2637
    %v3338 = vpack.c.b16 %v2645, %v2638
    %v3339 = vpack.c.b16 %v2646, %v2639
    %v3340 = vpack.c.b16 %v2647, %v2640
    %v3341 = vpack.c.b16 %v2648, %v2641
    %v3342 = vpack.c.b16 %v2649, %v2642
    %v3343 = vpack.c.b16 %v2650, %v2643
    %v3344 = vpack.c.b16 %v2658, %v2651
    %v3345 = vpack.c.b16 %v2659, %v2652
    %v3346 = vpack.c.b16 %v2660, %v2653
    %v3347 = vpack.c.b16 %v2661, %v2654
    %v3348 = vpack.c.b16 %v2662, %v2655
    %v3349 = vpack.c.b16 %v2663, %v2656
    %v3350 = vpack.c.b16 %v2664, %v2657
    %v3351 = vpack.c.b16 %v2672, %v2665
    %v3352 = vpack.c.b16 %v2673, %v2666
    %v3353 = vpack.c.b16 %v2674, %v2667
    %v3354 = vpack.c.b16 %v2675, %v2668
    %v3355 = vpack.c.b16 %v2676, %v2669
    %v3356 = vpack.c.b16 %v2677, %v2670
    %v3357 = vpack.c.b16 %v2678, %v2671
    %v3358 = vpack.c.b16 %v2686, %v2679
    %v3359 = vpack.c.b16 %v2687, %v2680
    %v3360 = vpack.c.b16 %v2688, %v2681
    %v3361 = vpack.c.b16 %v2689, %v2682
    %v3362 = vpack.c.b16 %v2690, %v2683
    %v3363 = vpack.c.b16 %v2691, %v2684
    %v3364 = vpack.c.b16 %v2692, %v2685
    %v3365 = vpack.c.b16 %v2700, %v2693
    %v3366 = vpack.c.b16 %v2701, %v2694
    %v3367 = vpack.c.b16 %v2702, %v2695
    %v3368 = vpack.c.b16 %v2703, %v2696
    %v3369 = vpack.c.b16 %v2704, %v2697
    %v3370 = vpack.c.b16 %v2705, %v2698
    %v3371 = vpack.c.b16 %v2706, %v2699
    %v3372 = vpack.c.b16 %v2714, %v2707
    %v3373 = vpack.c.b16 %v2715, %v2708
    %v3374 = vpack.c.b16 %v2716, %v2709
    %v3375 = vpack.c.b16 %v2717, %v2710
    %v3376 = vpack.c.b16 %v2718, %v2711
    %v3377 = vpack.c.b16 %v2719, %v2712
    %v3378 = vpack.c.b16 %v2720, %v2713
    %v3379 = vpack.c.b16 %v2728, %v2721
    %v3380 = vpack.c.b16 %v2729, %v2722
    %v3381 = vpack.c.b16 %v2730, %v2723
    %v3382 = vpack.c.b16 %v2731, %v2724
    %v3383 = vpack.c.b16 %v2732, %v2725
    %v3384 = vpack.c.b16 %v2733, %v2726
    %v3385 = vpack.c.b16 %v2734, %v2727
    %v3386 = vpack.c.b16 %v2742, %v2735
    %v3387 = vpack.c.b16 %v2743, %v2736
    %v3388 = vpack.c.b16 %v2744, %v2737
    %v3389 = vpack.c.b16 %v2745, %v2738
    %v3390 = vpack.c.b16 %v2746, %v2739
    %v3391 = vpack.c.b16 %v2747, %v2740
    %v3392 = vpack.c.b16 %v2748, %v2741
    %v3393 = vpack.c.b16 %v2756, %v2749
    %v3394 = vpack.c.b16 %v2757, %v2750
    %v3395 = vpack.c.b16 %v2758, %v2751
    %v3396 = vpack.c.b16 %v2759, %v2752
    %v3397 = vpack.c.b16 %v2760, %v2753
    %v3398 = vpack.c.b16 %v2761, %v2754
    %v3399 = vpack.c.b16 %v2762, %v2755
    %v3400 = vpack.c.b16 %v2770, %v2763
    %v3401 = vpack.c.b16 %v2771, %v2764
    %v3402 = vpack.c.b16 %v2772, %v2765
    %v3403 = vpack.c.b16 %v2773, %v2766
    %v3404 = vpack.c.b16 %v2774, %v2767
    %v3405 = vpack.c.b16 %v2775, %v2768
    %v3406 = vpack.c.b16 %v2776, %v2769
    %v3407 = vpack.c.b16 %v2784, %v2777
    %v3408 = vpack.c.b16 %v2785, %v2778
    %v3409 = vpack.c.b16 %v2786, %v2779
    %v3410 = vpack.c.b16 %v2787, %v2780
    %v3411 = vpack.c.b16 %v2788, %v2781
    %v3412 = vpack.c.b16 %v2789, %v2782
    %v3413 = vpack.c.b16 %v2790, %v2783
    %v3414 = vpack.c.b16 %v2798, %v2791
    %v3415 = vpack.c.b16 %v2799, %v2792
    %v3416 = vpack.c.b16 %v2800, %v2793
    %v3417 = vpack.c.b16 %v2801, %v2794
    %v3418 = vpack.c.b16 %v2802, %v2795
    %v3419 = vpack.c.b16 %v2803, %v2796
    %v3420 = vpack.c.b16 %v2804, %v2797
    %v3421 = vpack.c.b16 %v2812, %v2805
    %v3422 = vpack.c.b16 %v2813, %v2806
    %v3423 = vpack.c.b16 %v2814, %v2807
    %v3424 = vpack.c.b16 %v2815, %v2808
    %v3425 = vpack.c.b16 %v2816, %v2809
    %v3426 = vpack.c.b16 %v2817, %v2810
    %v3427 = vpack.c.b16 %v2818, %v2811
    %v3428 = vpack.c.b16 %v2826, %v2819
    %v3429 = vpack.c.b16 %v2827, %v2820
    %v3430 = vpack.c.b16 %v2828, %v2821
    %v3431 = vpack.c.b16 %v2829, %v2822
    %v3432 = vpack.c.b16 %v2830, %v2823
    %v3433 = vpack.c.b16 %v2831, %v2824
    %v3434 = vpack.c.b16 %v2832, %v2825
    %v3435 = vpack.c.b16 %v2840, %v2833
    %v3436 = vpack.c.b16 %v2841, %v2834
    %v3437 = vpack.c.b16 %v2842, %v2835
    %v3438 = vpack.c.b16 %v2843, %v2836
    %v3439 = vpack.c.b16 %v2844, %v2837
    %v3440 = vpack.c.b16 %v2845, %v2838
    %v3441 = vpack.c.b16 %v2846, %v2839
    %v3442 = vpack.c.b16 %v2854, %v2847
    %v3443 = vpack.c.b16 %v2855, %v2848
    %v3444 = vpack.c.b16 %v2856, %v2849
    %v3445 = vpack.c.b16 %v2857, %v2850
    %v3446 = vpack.c.b16 %v2858, %v2851
    %v3447 = vpack.c.b16 %v2859, %v2852
    %v3448 = vpack.c.b16 %v2860, %v2853
    %v3449 = vpack.c.b16 %v2868, %v2861
    %v3450 = vpack.c.b16 %v2869, %v2862
    %v3451 = vpack.c.b16 %v2870, %v2863
    %v3452 = vpack.c.b16 %v2871, %v2864
    %v3453 = vpack.c.b16 %v2872, %v2865
    %v3454 = vpack.c.b16 %v2873, %v2866
    %v3455 = vpack.c.b16 %v2874, %v2867
    %v3456 = vpack.c.b16 %v2882, %v2875
    %v3457 = vpack.c.b16 %v2883, %v2876
    %v3458 = vpack.c.b16 %v2884, %v2877
    %v3459 = vpack.c.b16 %v2885, %v2878
    %v3460 = vpack.c.b16 %v2886, %v2879
    %v3461 = vpack.c.b16 %v2887, %v2880
    %v3462 = vpack.c.b16 %v2888, %v2881
    %v3463 = vpack.c.b16 %v2896, %v2889
    %v3464 = vpack.c.b16 %v2897, %v2890
    %v3465 = vpack.c.b16 %v2898, %v2891
    %v3466 = vpack.c.b16 %v2899, %v2892
    %v3467 = vpack.c.b16 %v2900, %v2893
    %v3468 = vpack.c.b16 %v2901, %v2894
    %v3469 = vpack.c.b16 %v2902, %v2895
    %v3470 = vpack.c.b16 %v2910, %v2903
    %v3471 = vpack.c.b16 %v2911, %v2904
    %v3472 = vpack.c.b16 %v2912, %v2905
    %v3473 = vpack.c.b16 %v2913, %v2906
    %v3474 = vpack.c.b16 %v2914, %v2907
    %v3475 = vpack.c.b16 %v2915, %v2908
    %v3476 = vpack.c.b16 %v2916, %v2909
    %v3477 = vpack.c.b16 %v2924, %v2917
    %v3478 = vpack.c.b16 %v2925, %v2918
    %v3479 = vpack.c.b16 %v2926, %v2919
    %v3480 = vpack.c.b16 %v2927, %v2920
    %v3481 = vpack.c.b16 %v2928, %v2921
    %v3482 = vpack.c.b16 %v2929, %v2922
    %v3483 = vpack.c.b16 %v2930, %v2923
    %v3484 = vpack.c.b16 %v2938, %v2931
    %v3485 = vpack.c.b16 %v2939, %v2932
    %v3486 = vpack.c.b16 %v2940, %v2933
    %v3487 = vpack.c.b16 %v2941, %v2934
    %v3488 = vpack.c.b16 %v2942, %v2935
    %v3489 = vpack.c.b16 %v2943, %v2936
    %v3490 = vpack.c.b16 %v2944, %v2937
    %v3491 = vpack.c.b16 %v2952, %v2945
    %v3492 = vpack.c.b16 %v2953, %v2946
    %v3493 = vpack.c.b16 %v2954, %v2947
    %v3494 = vpack.c.b16 %v2955, %v2948
    %v3495 = vpack.c.b16 %v2956, %v2949
    %v3496 = vpack.c.b16 %v2957, %v2950
    %v3497 = vpack.c.b16 %v2958, %v2951
    %v3498 = vpack.c.b16 %v2966, %v2959
    %v3499 = vpack.c.b16 %v2967, %v2960
    %v3500 = vpack.c.b16 %v2968, %v2961
    %v3501 = vpack.c.b16 %v2969, %v2962
    %v3502 = vpack.c.b16 %v2970, %v2963
    %v3503 = vpack.c.b16 %v2971, %v2964
    %v3504 = vpack.c.b16 %v2972, %v2965
    %v3505 = vpack.c.b16 %v2980, %v2973
    %v3506 = vpack.c.b16 %v2981, %v2974
    %v3507 = vpack.c.b16 %v2982, %v2975
    %v3508 = vpack.c.b16 %v2983, %v2976
    %v3509 = vpack.c.b16 %v2984, %v2977
    %v3510 = vpack.c.b16 %v2985, %v2978
    %v3511 = vpack.c.b16 %v2986, %v2979
    %v3512 = vpack.c.b16 %v2994, %v2987
    %v3513 = vpack.c.b16 %v2995, %v2988
    %v3514 = vpack.c.b16 %v2996, %v2989
    %v3515 = vpack.c.b16 %v2997, %v2990
    %v3516 = vpack.c.b16 %v2998, %v2991
    %v3517 = vpack.c.b16 %v2999, %v2992
    %v3518 = vpack.c.b16 %v3000, %v2993
    %v3519 = vpack.c.b16 %v3008, %v3001
    %v3520 = vpack.c.b16 %v3009, %v3002
    %v3521 = vpack.c.b16 %v3010, %v3003
    %v3522 = vpack.c.b16 %v3011, %v3004
    %v3523 = vpack.c.b16 %v3012, %v3005
    %v3524 = vpack.c.b16 %v3013, %v3006
    %v3525 = vpack.c.b16 %v3014, %v3007
    %v3526 = vpack.c.b16 %v3022, %v3015
    %v3527 = vpack.c.b16 %v3023, %v3016
    %v3528 = vpack.c.b16 %v3024, %v3017
    %v3529 = vpack.c.b16 %v3025, %v3018
    %v3530 = vpack.c.b16 %v3026, %v3019
    %v3531 = vpack.c.b16 %v3027, %v3020
    %v3532 = vpack.c.b16 %v3028, %v3021
    %v3533 = vpack.c.b16 %v3036, %v3029
    %v3534 = vpack.c.b16 %v3037, %v3030
    %v3535 = vpack.c.b16 %v3038, %v3031
    %v3536 = vpack.c.b16 %v3039, %v3032
    %v3537 = vpack.c.b16 %v3040, %v3033
    %v3538 = vpack.c.b16 %v3041, %v3034
    %v3539 = vpack.c.b16 %v3042, %v3035
    %v3540 = vpack.c.b16 %v3050, %v3043
    %v3541 = vpack.c.b16 %v3051, %v3044
    %v3542 = vpack.c.b16 %v3052, %v3045
    %v3543 = vpack.c.b16 %v3053, %v3046
    %v3544 = vpack.c.b16 %v3054, %v3047
    %v3545 = vpack.c.b16 %v3055, %v3048
    %v3546 = vpack.c.b16 %v3056, %v3049
    %v3547 = vpack.c.b16 %v3064, %v3057
    %v3548 = vpack.c.b16 %v3065, %v3058
    %v3549 = vpack.c.b16 %v3066, %v3059
    %v3550 = vpack.c.b16 %v3067, %v3060
    %v3551 = vpack.c.b16 %v3068, %v3061
    %v3552 = vpack.c.b16 %v3069, %v3062
    %v3553 = vpack.c.b16 %v3070, %v3063
    %v3554 = vpack.c.b16 %v3078, %v3071
    %v3555 = vpack.c.b16 %v3079, %v3072
    %v3556 = vpack.c.b16 %v3080, %v3073
    %v3557 = vpack.c.b16 %v3081, %v3074
    %v3558 = vpack.c.b16 %v3082, %v3075
    %v3559 = vpack.c.b16 %v3083, %v3076
    %v3560 = vpack.c.b16 %v3084, %v3077
    %v3561 = vpack.c.b16 %v3092, %v3085
    %v3562 = vpack.c.b16 %v3093, %v3086
    %v3563 = vpack.c.b16 %v3094, %v3087
    %v3564 = vpack.c.b16 %v3095, %v3088
    %v3565 = vpack.c.b16 %v3096, %v3089
    %v3566 = vpack.c.b16 %v3097, %v3090
    %v3567 = vpack.c.b16 %v3098, %v3091
    %v3568 = vpack.c.b16 %v3106, %v3099
    %v3569 = vpack.c.b16 %v3107, %v3100
    %v3570 = vpack.c.b16 %v3108, %v3101
    %v3571 = vpack.c.b16 %v3109, %v3102
    %v3572 = vpack.c.b16 %v3110, %v3103
    %v3573 = vpack.c.b16 %v3111, %v3104
    %v3574 = vpack.c.b16 %v3112, %v3105
    %v3575 = vpack.c.b16 %v3120, %v3113
    %v3576 = vpack.c.b16 %v3121, %v3114
    %v3577 = vpack.c.b16 %v3122, %v3115
    %v3578 = vpack.c.b16 %v3123, %v3116
    %v3579 = vpack.c.b16 %v3124, %v3117
    %v3580 = vpack.c.b16 %v3125, %v3118
    %v3581 = vpack.c.b16 %v3126, %v3119
    %v3582 = vpack.c.b16 %v3134, %v3127
    %v3583 = vpack.c.b16 %v3135, %v3128
    %v3584 = vpack.c.b16 %v3136, %v3129
    %v3585 = vpack.c.b16 %v3137, %v3130
    %v3586 = vpack.c.b16 %v3138, %v3131
    %v3587 = vpack.c.b16 %v3139, %v3132
    %v3588 = vpack.c.b16 %v3140, %v3133
    %4037 = vmatpush.bf16.msra.mxu0 %v3190
    %4038 = vmatpush.bf16.msra.mxu0 %v3183
    %4039 = vmatpush.bf16.msra.mxu0 %v3176
    %4040 = vmatpush.bf16.msra.mxu0 %v3169
    %4041 = vmatpush.bf16.msra.mxu0 %v3162
    %4042 = vmatpush.bf16.msra.mxu0 %v3155
    %4043 = vmatpush.bf16.msra.mxu0 %v3148
    %4044 = vmatpush.bf16.msra.mxu0 %v3141
    %4045 = vmatmul.bf16.gmra.mxu0 %v1197
    %v4046 = vpop.f32.mrf.mxu0
    %v4047 = vadd.f32 %v1719, %v4046
    %v4048 = vpop.f32.mrf.mxu0
    %v4049 = vadd.f32 %v1719, %v4048
    %4050 = vdwg.mxu0
    %4051 = vmatpush.bf16.msra.mxu0 %v3246
    %4052 = vmatpush.bf16.msra.mxu0 %v3239
    %4053 = vmatpush.bf16.msra.mxu0 %v3232
    %4054 = vmatpush.bf16.msra.mxu0 %v3225
    %4055 = vmatpush.bf16.msra.mxu0 %v3218
    %4056 = vmatpush.bf16.msra.mxu0 %v3211
    %4057 = vmatpush.bf16.msra.mxu0 %v3204
    %4058 = vmatpush.bf16.msra.mxu0 %v3197
    %4059 = vmatmul.bf16.gmra.mxu0 %v1198
    %v4060 = vpop.f32.mrf.mxu0
    %v4061 = vadd.f32 %v4047, %v4060
    %v4062 = vpop.f32.mrf.mxu0
    %v4063 = vadd.f32 %v4049, %v4062
    %4064 = vdwg.mxu0
    %4065 = vmatpush.bf16.msra.mxu0 %v3302
    %4066 = vmatpush.bf16.msra.mxu0 %v3295
    %4067 = vmatpush.bf16.msra.mxu0 %v3288
    %4068 = vmatpush.bf16.msra.mxu0 %v3281
    %4069 = vmatpush.bf16.msra.mxu0 %v3274
    %4070 = vmatpush.bf16.msra.mxu0 %v3267
    %4071 = vmatpush.bf16.msra.mxu0 %v3260
    %4072 = vmatpush.bf16.msra.mxu0 %v3253
    %4073 = vmatmul.bf16.gmra.mxu0 %v1199
    %v4074 = vpop.f32.mrf.mxu0
    %v4075 = vadd.f32 %v4061, %v4074
    %v4076 = vpop.f32.mrf.mxu0
    %v4077 = vadd.f32 %v4063, %v4076
    %4078 = vdwg.mxu0
    %4079 = vmatpush.bf16.msra.mxu0 %v3358
    %4080 = vmatpush.bf16.msra.mxu0 %v3351
    %4081 = vmatpush.bf16.msra.mxu0 %v3344
    %4082 = vmatpush.bf16.msra.mxu0 %v3337
    %4083 = vmatpush.bf16.msra.mxu0 %v3330
    %4084 = vmatpush.bf16.msra.mxu0 %v3323
    %4085 = vmatpush.bf16.msra.mxu0 %v3316
    %4086 = vmatpush.bf16.msra.mxu0 %v3309
    %4087 = vmatmul.bf16.gmra.mxu0 %v1200
    %v4088 = vpop.f32.mrf.mxu0
    %v4089 = vadd.f32 %v4075, %v4088
    %v4090 = vpop.f32.mrf.mxu0
    %v4091 = vadd.f32 %v4077, %v4090
    %4092 = vdwg.mxu0
    %4093 = vmatpush.bf16.msra.mxu0 %v3414
    %4094 = vmatpush.bf16.msra.mxu0 %v3407
    %4095 = vmatpush.bf16.msra.mxu0 %v3400
    %4096 = vmatpush.bf16.msra.mxu0 %v3393
    %4097 = vmatpush.bf16.msra.mxu0 %v3386
    %4098 = vmatpush.bf16.msra.mxu0 %v3379
    %4099 = vmatpush.bf16.msra.mxu0 %v3372
    %4100 = vmatpush.bf16.msra.mxu0 %v3365
    %4101 = vmatmul.bf16.gmra.mxu0 %v1201
    %v4102 = vpop.f32.mrf.mxu0
    %v4103 = vadd.f32 %v4089, %v4102
    %v4104 = vpop.f32.mrf.mxu0
    %v4105 = vadd.f32 %v4091, %v4104
    %4106 = vdwg.mxu0
    %4107 = vmatpush.bf16.msra.mxu0 %v3470
    %4108 = vmatpush.bf16.msra.mxu0 %v3463
    %4109 = vmatpush.bf16.msra.mxu0 %v3456
    %4110 = vmatpush.bf16.msra.mxu0 %v3449
    %4111 = vmatpush.bf16.msra.mxu0 %v3442
    %4112 = vmatpush.bf16.msra.mxu0 %v3435
    %4113 = vmatpush.bf16.msra.mxu0 %v3428
    %4114 = vmatpush.bf16.msra.mxu0 %v3421
    %4115 = vmatmul.bf16.gmra.mxu0 %v1202
    %v4116 = vpop.f32.mrf.mxu0
    %v4117 = vadd.f32 %v4103, %v4116
    %v4118 = vpop.f32.mrf.mxu0
    %v4119 = vadd.f32 %v4105, %v4118
    %4120 = vdwg.mxu0
    %4121 = vmatpush.bf16.msra.mxu0 %v3526
    %4122 = vmatpush.bf16.msra.mxu0 %v3519
    %4123 = vmatpush.bf16.msra.mxu0 %v3512
    %4124 = vmatpush.bf16.msra.mxu0 %v3505
    %4125 = vmatpush.bf16.msra.mxu0 %v3498
    %4126 = vmatpush.bf16.msra.mxu0 %v3491
    %4127 = vmatpush.bf16.msra.mxu0 %v3484
    %4128 = vmatpush.bf16.msra.mxu0 %v3477
    %4129 = vmatmul.bf16.gmra.mxu0 %v1203
    %v4130 = vpop.f32.mrf.mxu0
    %v4131 = vadd.f32 %v4117, %v4130
    %v4132 = vpop.f32.mrf.mxu0
    %v4133 = vadd.f32 %v4119, %v4132
    %4134 = vdwg.mxu0
    %4135 = vmatpush.bf16.msra.mxu0 %v3582
    %4136 = vmatpush.bf16.msra.mxu0 %v3575
    %4137 = vmatpush.bf16.msra.mxu0 %v3568
    %4138 = vmatpush.bf16.msra.mxu0 %v3561
    %4139 = vmatpush.bf16.msra.mxu0 %v3554
    %4140 = vmatpush.bf16.msra.mxu0 %v3547
    %4141 = vmatpush.bf16.msra.mxu0 %v3540
    %4142 = vmatpush.bf16.msra.mxu0 %v3533
    %4143 = vmatmul.bf16.gmra.mxu0 %v1204
    %v4144 = vpop.f32.mrf.mxu0
    %v4145 = vadd.f32 %v4131, %v4144
    %v4146 = vpop.f32.mrf.mxu0
    %v4147 = vadd.f32 %v4133, %v4146
    %4148 = vdwg.mxu0
    %4149 = vmatpush.bf16.msra.mxu0 %v3191
    %4150 = vmatpush.bf16.msra.mxu0 %v3184
    %4151 = vmatpush.bf16.msra.mxu0 %v3177
    %4152 = vmatpush.bf16.msra.mxu0 %v3170
    %4153 = vmatpush.bf16.msra.mxu0 %v3163
    %4154 = vmatpush.bf16.msra.mxu0 %v3156
    %4155 = vmatpush.bf16.msra.mxu0 %v3149
    %4156 = vmatpush.bf16.msra.mxu0 %v3142
    %4157 = vmatmul.bf16.gmra.mxu0 %v1197
    %v4158 = vpop.f32.mrf.mxu0
    %v4159 = vadd.f32 %v1720, %v4158
    %v4160 = vpop.f32.mrf.mxu0
    %v4161 = vadd.f32 %v1720, %v4160
    %4162 = vdwg.mxu0
    %4163 = vmatpush.bf16.msra.mxu0 %v3247
    %4164 = vmatpush.bf16.msra.mxu0 %v3240
    %4165 = vmatpush.bf16.msra.mxu0 %v3233
    %4166 = vmatpush.bf16.msra.mxu0 %v3226
    %4167 = vmatpush.bf16.msra.mxu0 %v3219
    %4168 = vmatpush.bf16.msra.mxu0 %v3212
    %4169 = vmatpush.bf16.msra.mxu0 %v3205
    %4170 = vmatpush.bf16.msra.mxu0 %v3198
    %4171 = vmatmul.bf16.gmra.mxu0 %v1198
    %v4172 = vpop.f32.mrf.mxu0
    %v4173 = vadd.f32 %v4159, %v4172
    %v4174 = vpop.f32.mrf.mxu0
    %v4175 = vadd.f32 %v4161, %v4174
    %4176 = vdwg.mxu0
    %4177 = vmatpush.bf16.msra.mxu0 %v3303
    %4178 = vmatpush.bf16.msra.mxu0 %v3296
    %4179 = vmatpush.bf16.msra.mxu0 %v3289
    %4180 = vmatpush.bf16.msra.mxu0 %v3282
    %4181 = vmatpush.bf16.msra.mxu0 %v3275
    %4182 = vmatpush.bf16.msra.mxu0 %v3268
    %4183 = vmatpush.bf16.msra.mxu0 %v3261
    %4184 = vmatpush.bf16.msra.mxu0 %v3254
    %4185 = vmatmul.bf16.gmra.mxu0 %v1199
    %v4186 = vpop.f32.mrf.mxu0
    %v4187 = vadd.f32 %v4173, %v4186
    %v4188 = vpop.f32.mrf.mxu0
    %v4189 = vadd.f32 %v4175, %v4188
    %4190 = vdwg.mxu0
    %4191 = vmatpush.bf16.msra.mxu0 %v3359
    %4192 = vmatpush.bf16.msra.mxu0 %v3352
    %4193 = vmatpush.bf16.msra.mxu0 %v3345
    %4194 = vmatpush.bf16.msra.mxu0 %v3338
    %4195 = vmatpush.bf16.msra.mxu0 %v3331
    %4196 = vmatpush.bf16.msra.mxu0 %v3324
    %4197 = vmatpush.bf16.msra.mxu0 %v3317
    %4198 = vmatpush.bf16.msra.mxu0 %v3310
    %4199 = vmatmul.bf16.gmra.mxu0 %v1200
    %v4200 = vpop.f32.mrf.mxu0
    %v4201 = vadd.f32 %v4187, %v4200
    %v4202 = vpop.f32.mrf.mxu0
    %v4203 = vadd.f32 %v4189, %v4202
    %4204 = vdwg.mxu0
    %4205 = vmatpush.bf16.msra.mxu0 %v3415
    %4206 = vmatpush.bf16.msra.mxu0 %v3408
    %4207 = vmatpush.bf16.msra.mxu0 %v3401
    %4208 = vmatpush.bf16.msra.mxu0 %v3394
    %4209 = vmatpush.bf16.msra.mxu0 %v3387
    %4210 = vmatpush.bf16.msra.mxu0 %v3380
    %4211 = vmatpush.bf16.msra.mxu0 %v3373
    %4212 = vmatpush.bf16.msra.mxu0 %v3366
    %4213 = vmatmul.bf16.gmra.mxu0 %v1201
    %v4214 = vpop.f32.mrf.mxu0
    %v4215 = vadd.f32 %v4201, %v4214
    %v4216 = vpop.f32.mrf.mxu0
    %v4217 = vadd.f32 %v4203, %v4216
    %4218 = vdwg.mxu0
    %4219 = vmatpush.bf16.msra.mxu0 %v3471
    %4220 = vmatpush.bf16.msra.mxu0 %v3464
    %4221 = vmatpush.bf16.msra.mxu0 %v3457
    %4222 = vmatpush.bf16.msra.mxu0 %v3450
    %4223 = vmatpush.bf16.msra.mxu0 %v3443
    %4224 = vmatpush.bf16.msra.mxu0 %v3436
    %4225 = vmatpush.bf16.msra.mxu0 %v3429
    %4226 = vmatpush.bf16.msra.mxu0 %v3422
    %4227 = vmatmul.bf16.gmra.mxu0 %v1202
    %v4228 = vpop.f32.mrf.mxu0
    %v4229 = vadd.f32 %v4215, %v4228
    %v4230 = vpop.f32.mrf.mxu0
    %v4231 = vadd.f32 %v4217, %v4230
    %4232 = vdwg.mxu0
    %4233 = vmatpush.bf16.msra.mxu0 %v3527
    %4234 = vmatpush.bf16.msra.mxu0 %v3520
    %4235 = vmatpush.bf16.msra.mxu0 %v3513
    %4236 = vmatpush.bf16.msra.mxu0 %v3506
    %4237 = vmatpush.bf16.msra.mxu0 %v3499
    %4238 = vmatpush.bf16.msra.mxu0 %v3492
    %4239 = vmatpush.bf16.msra.mxu0 %v3485
    %4240 = vmatpush.bf16.msra.mxu0 %v3478
    %4241 = vmatmul.bf16.gmra.mxu0 %v1203
    %v4242 = vpop.f32.mrf.mxu0
    %v4243 = vadd.f32 %v4229, %v4242
    %v4244 = vpop.f32.mrf.mxu0
    %v4245 = vadd.f32 %v4231, %v4244
    %4246 = vdwg.mxu0
    %4247 = vmatpush.bf16.msra.mxu0 %v3583
    %4248 = vmatpush.bf16.msra.mxu0 %v3576
    %4249 = vmatpush.bf16.msra.mxu0 %v3569
    %4250 = vmatpush.bf16.msra.mxu0 %v3562
    %4251 = vmatpush.bf16.msra.mxu0 %v3555
    %4252 = vmatpush.bf16.msra.mxu0 %v3548
    %4253 = vmatpush.bf16.msra.mxu0 %v3541
    %4254 = vmatpush.bf16.msra.mxu0 %v3534
    %4255 = vmatmul.bf16.gmra.mxu0 %v1204
    %v4256 = vpop.f32.mrf.mxu0
    %v4257 = vadd.f32 %v4243, %v4256
    %v4258 = vpop.f32.mrf.mxu0
    %v4259 = vadd.f32 %v4245, %v4258
    %4260 = vdwg.mxu0
    %4261 = vmatpush.bf16.msra.mxu0 %v3192
    %4262 = vmatpush.bf16.msra.mxu0 %v3185
    %4263 = vmatpush.bf16.msra.mxu0 %v3178
    %4264 = vmatpush.bf16.msra.mxu0 %v3171
    %4265 = vmatpush.bf16.msra.mxu0 %v3164
    %4266 = vmatpush.bf16.msra.mxu0 %v3157
    %4267 = vmatpush.bf16.msra.mxu0 %v3150
    %4268 = vmatpush.bf16.msra.mxu0 %v3143
    %4269 = vmatmul.bf16.gmra.mxu0 %v1197
    %v4270 = vpop.f32.mrf.mxu0
    %v4271 = vadd.f32 %v1721, %v4270
    %v4272 = vpop.f32.mrf.mxu0
    %v4273 = vadd.f32 %v1721, %v4272
    %4274 = vdwg.mxu0
    %4275 = vmatpush.bf16.msra.mxu0 %v3248
    %4276 = vmatpush.bf16.msra.mxu0 %v3241
    %4277 = vmatpush.bf16.msra.mxu0 %v3234
    %4278 = vmatpush.bf16.msra.mxu0 %v3227
    %4279 = vmatpush.bf16.msra.mxu0 %v3220
    %4280 = vmatpush.bf16.msra.mxu0 %v3213
    %4281 = vmatpush.bf16.msra.mxu0 %v3206
    %4282 = vmatpush.bf16.msra.mxu0 %v3199
    %4283 = vmatmul.bf16.gmra.mxu0 %v1198
    %v4284 = vpop.f32.mrf.mxu0
    %v4285 = vadd.f32 %v4271, %v4284
    %v4286 = vpop.f32.mrf.mxu0
    %v4287 = vadd.f32 %v4273, %v4286
    %4288 = vdwg.mxu0
    %4289 = vmatpush.bf16.msra.mxu0 %v3304
    %4290 = vmatpush.bf16.msra.mxu0 %v3297
    %4291 = vmatpush.bf16.msra.mxu0 %v3290
    %4292 = vmatpush.bf16.msra.mxu0 %v3283
    %4293 = vmatpush.bf16.msra.mxu0 %v3276
    %4294 = vmatpush.bf16.msra.mxu0 %v3269
    %4295 = vmatpush.bf16.msra.mxu0 %v3262
    %4296 = vmatpush.bf16.msra.mxu0 %v3255
    %4297 = vmatmul.bf16.gmra.mxu0 %v1199
    %v4298 = vpop.f32.mrf.mxu0
    %v4299 = vadd.f32 %v4285, %v4298
    %v4300 = vpop.f32.mrf.mxu0
    %v4301 = vadd.f32 %v4287, %v4300
    %4302 = vdwg.mxu0
    %4303 = vmatpush.bf16.msra.mxu0 %v3360
    %4304 = vmatpush.bf16.msra.mxu0 %v3353
    %4305 = vmatpush.bf16.msra.mxu0 %v3346
    %4306 = vmatpush.bf16.msra.mxu0 %v3339
    %4307 = vmatpush.bf16.msra.mxu0 %v3332
    %4308 = vmatpush.bf16.msra.mxu0 %v3325
    %4309 = vmatpush.bf16.msra.mxu0 %v3318
    %4310 = vmatpush.bf16.msra.mxu0 %v3311
    %4311 = vmatmul.bf16.gmra.mxu0 %v1200
    %v4312 = vpop.f32.mrf.mxu0
    %v4313 = vadd.f32 %v4299, %v4312
    %v4314 = vpop.f32.mrf.mxu0
    %v4315 = vadd.f32 %v4301, %v4314
    %4316 = vdwg.mxu0
    %4317 = vmatpush.bf16.msra.mxu0 %v3416
    %4318 = vmatpush.bf16.msra.mxu0 %v3409
    %4319 = vmatpush.bf16.msra.mxu0 %v3402
    %4320 = vmatpush.bf16.msra.mxu0 %v3395
    %4321 = vmatpush.bf16.msra.mxu0 %v3388
    %4322 = vmatpush.bf16.msra.mxu0 %v3381
    %4323 = vmatpush.bf16.msra.mxu0 %v3374
    %4324 = vmatpush.bf16.msra.mxu0 %v3367
    %4325 = vmatmul.bf16.gmra.mxu0 %v1201
    %v4326 = vpop.f32.mrf.mxu0
    %v4327 = vadd.f32 %v4313, %v4326
    %v4328 = vpop.f32.mrf.mxu0
    %v4329 = vadd.f32 %v4315, %v4328
    %4330 = vdwg.mxu0
    %4331 = vmatpush.bf16.msra.mxu0 %v3472
    %4332 = vmatpush.bf16.msra.mxu0 %v3465
    %4333 = vmatpush.bf16.msra.mxu0 %v3458
    %4334 = vmatpush.bf16.msra.mxu0 %v3451
    %4335 = vmatpush.bf16.msra.mxu0 %v3444
    %4336 = vmatpush.bf16.msra.mxu0 %v3437
    %4337 = vmatpush.bf16.msra.mxu0 %v3430
    %4338 = vmatpush.bf16.msra.mxu0 %v3423
    %4339 = vmatmul.bf16.gmra.mxu0 %v1202
    %v4340 = vpop.f32.mrf.mxu0
    %v4341 = vadd.f32 %v4327, %v4340
    %v4342 = vpop.f32.mrf.mxu0
    %v4343 = vadd.f32 %v4329, %v4342
    %4344 = vdwg.mxu0
    %4345 = vmatpush.bf16.msra.mxu0 %v3528
    %4346 = vmatpush.bf16.msra.mxu0 %v3521
    %4347 = vmatpush.bf16.msra.mxu0 %v3514
    %4348 = vmatpush.bf16.msra.mxu0 %v3507
    %4349 = vmatpush.bf16.msra.mxu0 %v3500
    %4350 = vmatpush.bf16.msra.mxu0 %v3493
    %4351 = vmatpush.bf16.msra.mxu0 %v3486
    %4352 = vmatpush.bf16.msra.mxu0 %v3479
    %4353 = vmatmul.bf16.gmra.mxu0 %v1203
    %v4354 = vpop.f32.mrf.mxu0
    %v4355 = vadd.f32 %v4341, %v4354
    %v4356 = vpop.f32.mrf.mxu0
    %v4357 = vadd.f32 %v4343, %v4356
    %4358 = vdwg.mxu0
    %4359 = vmatpush.bf16.msra.mxu0 %v3584
    %4360 = vmatpush.bf16.msra.mxu0 %v3577
    %4361 = vmatpush.bf16.msra.mxu0 %v3570
    %4362 = vmatpush.bf16.msra.mxu0 %v3563
    %4363 = vmatpush.bf16.msra.mxu0 %v3556
    %4364 = vmatpush.bf16.msra.mxu0 %v3549
    %4365 = vmatpush.bf16.msra.mxu0 %v3542
    %4366 = vmatpush.bf16.msra.mxu0 %v3535
    %4367 = vmatmul.bf16.gmra.mxu0 %v1204
    %v4368 = vpop.f32.mrf.mxu0
    %v4369 = vadd.f32 %v4355, %v4368
    %v4370 = vpop.f32.mrf.mxu0
    %v4371 = vadd.f32 %v4357, %v4370
    %4372 = vdwg.mxu0
    %4373 = vmatpush.bf16.msra.mxu0 %v3193
    %4374 = vmatpush.bf16.msra.mxu0 %v3186
    %4375 = vmatpush.bf16.msra.mxu0 %v3179
    %4376 = vmatpush.bf16.msra.mxu0 %v3172
    %4377 = vmatpush.bf16.msra.mxu0 %v3165
    %4378 = vmatpush.bf16.msra.mxu0 %v3158
    %4379 = vmatpush.bf16.msra.mxu0 %v3151
    %4380 = vmatpush.bf16.msra.mxu0 %v3144
    %4381 = vmatmul.bf16.gmra.mxu0 %v1197
    %v4382 = vpop.f32.mrf.mxu0
    %v4383 = vadd.f32 %v1722, %v4382
    %v4384 = vpop.f32.mrf.mxu0
    %v4385 = vadd.f32 %v1722, %v4384
    %4386 = vdwg.mxu0
    %4387 = vmatpush.bf16.msra.mxu0 %v3249
    %4388 = vmatpush.bf16.msra.mxu0 %v3242
    %4389 = vmatpush.bf16.msra.mxu0 %v3235
    %4390 = vmatpush.bf16.msra.mxu0 %v3228
    %4391 = vmatpush.bf16.msra.mxu0 %v3221
    %4392 = vmatpush.bf16.msra.mxu0 %v3214
    %4393 = vmatpush.bf16.msra.mxu0 %v3207
    %4394 = vmatpush.bf16.msra.mxu0 %v3200
    %4395 = vmatmul.bf16.gmra.mxu0 %v1198
    %v4396 = vpop.f32.mrf.mxu0
    %v4397 = vadd.f32 %v4383, %v4396
    %v4398 = vpop.f32.mrf.mxu0
    %v4399 = vadd.f32 %v4385, %v4398
    %4400 = vdwg.mxu0
    %4401 = vmatpush.bf16.msra.mxu0 %v3305
    %4402 = vmatpush.bf16.msra.mxu0 %v3298
    %4403 = vmatpush.bf16.msra.mxu0 %v3291
    %4404 = vmatpush.bf16.msra.mxu0 %v3284
    %4405 = vmatpush.bf16.msra.mxu0 %v3277
    %4406 = vmatpush.bf16.msra.mxu0 %v3270
    %4407 = vmatpush.bf16.msra.mxu0 %v3263
    %4408 = vmatpush.bf16.msra.mxu0 %v3256
    %4409 = vmatmul.bf16.gmra.mxu0 %v1199
    %v4410 = vpop.f32.mrf.mxu0
    %v4411 = vadd.f32 %v4397, %v4410
    %v4412 = vpop.f32.mrf.mxu0
    %v4413 = vadd.f32 %v4399, %v4412
    %4414 = vdwg.mxu0
    %4415 = vmatpush.bf16.msra.mxu0 %v3361
    %4416 = vmatpush.bf16.msra.mxu0 %v3354
    %4417 = vmatpush.bf16.msra.mxu0 %v3347
    %4418 = vmatpush.bf16.msra.mxu0 %v3340
    %4419 = vmatpush.bf16.msra.mxu0 %v3333
    %4420 = vmatpush.bf16.msra.mxu0 %v3326
    %4421 = vmatpush.bf16.msra.mxu0 %v3319
    %4422 = vmatpush.bf16.msra.mxu0 %v3312
    %4423 = vmatmul.bf16.gmra.mxu0 %v1200
    %v4424 = vpop.f32.mrf.mxu0
    %v4425 = vadd.f32 %v4411, %v4424
    %v4426 = vpop.f32.mrf.mxu0
    %v4427 = vadd.f32 %v4413, %v4426
    %4428 = vdwg.mxu0
    %4429 = vmatpush.bf16.msra.mxu0 %v3417
    %4430 = vmatpush.bf16.msra.mxu0 %v3410
    %4431 = vmatpush.bf16.msra.mxu0 %v3403
    %4432 = vmatpush.bf16.msra.mxu0 %v3396
    %4433 = vmatpush.bf16.msra.mxu0 %v3389
    %4434 = vmatpush.bf16.msra.mxu0 %v3382
    %4435 = vmatpush.bf16.msra.mxu0 %v3375
    %4436 = vmatpush.bf16.msra.mxu0 %v3368
    %4437 = vmatmul.bf16.gmra.mxu0 %v1201
    %v4438 = vpop.f32.mrf.mxu0
    %v4439 = vadd.f32 %v4425, %v4438
    %v4440 = vpop.f32.mrf.mxu0
    %v4441 = vadd.f32 %v4427, %v4440
    %4442 = vdwg.mxu0
    %4443 = vmatpush.bf16.msra.mxu0 %v3473
    %4444 = vmatpush.bf16.msra.mxu0 %v3466
    %4445 = vmatpush.bf16.msra.mxu0 %v3459
    %4446 = vmatpush.bf16.msra.mxu0 %v3452
    %4447 = vmatpush.bf16.msra.mxu0 %v3445
    %4448 = vmatpush.bf16.msra.mxu0 %v3438
    %4449 = vmatpush.bf16.msra.mxu0 %v3431
    %4450 = vmatpush.bf16.msra.mxu0 %v3424
    %4451 = vmatmul.bf16.gmra.mxu0 %v1202
    %v4452 = vpop.f32.mrf.mxu0
    %v4453 = vadd.f32 %v4439, %v4452
    %v4454 = vpop.f32.mrf.mxu0
    %v4455 = vadd.f32 %v4441, %v4454
    %4456 = vdwg.mxu0
    %4457 = vmatpush.bf16.msra.mxu0 %v3529
    %4458 = vmatpush.bf16.msra.mxu0 %v3522
    %4459 = vmatpush.bf16.msra.mxu0 %v3515
    %4460 = vmatpush.bf16.msra.mxu0 %v3508
    %4461 = vmatpush.bf16.msra.mxu0 %v3501
    %4462 = vmatpush.bf16.msra.mxu0 %v3494
    %4463 = vmatpush.bf16.msra.mxu0 %v3487
    %4464 = vmatpush.bf16.msra.mxu0 %v3480
    %4465 = vmatmul.bf16.gmra.mxu0 %v1203
    %v4466 = vpop.f32.mrf.mxu0
    %v4467 = vadd.f32 %v4453, %v4466
    %v4468 = vpop.f32.mrf.mxu0
    %v4469 = vadd.f32 %v4455, %v4468
    %4470 = vdwg.mxu0
    %4471 = vmatpush.bf16.msra.mxu0 %v3585
    %4472 = vmatpush.bf16.msra.mxu0 %v3578
    %4473 = vmatpush.bf16.msra.mxu0 %v3571
    %4474 = vmatpush.bf16.msra.mxu0 %v3564
    %4475 = vmatpush.bf16.msra.mxu0 %v3557
    %4476 = vmatpush.bf16.msra.mxu0 %v3550
    %4477 = vmatpush.bf16.msra.mxu0 %v3543
    %4478 = vmatpush.bf16.msra.mxu0 %v3536
    %4479 = vmatmul.bf16.gmra.mxu0 %v1204
    %v4480 = vpop.f32.mrf.mxu0
    %v4481 = vadd.f32 %v4467, %v4480
    %v4482 = vpop.f32.mrf.mxu0
    %v4483 = vadd.f32 %v4469, %v4482
    %4484 = vdwg.mxu0
    %4485 = vmatpush.bf16.msra.mxu0 %v3194
    %4486 = vmatpush.bf16.msra.mxu0 %v3187
    %4487 = vmatpush.bf16.msra.mxu0 %v3180
    %4488 = vmatpush.bf16.msra.mxu0 %v3173
    %4489 = vmatpush.bf16.msra.mxu0 %v3166
    %4490 = vmatpush.bf16.msra.mxu0 %v3159
    %4491 = vmatpush.bf16.msra.mxu0 %v3152
    %4492 = vmatpush.bf16.msra.mxu0 %v3145
    %4493 = vmatmul.bf16.gmra.mxu0 %v1197
    %v4494 = vpop.f32.mrf.mxu0
    %v4495 = vadd.f32 %v1723, %v4494
    %v4496 = vpop.f32.mrf.mxu0
    %v4497 = vadd.f32 %v1723, %v4496
    %4498 = vdwg.mxu0
    %4499 = vmatpush.bf16.msra.mxu0 %v3250
    %4500 = vmatpush.bf16.msra.mxu0 %v3243
    %4501 = vmatpush.bf16.msra.mxu0 %v3236
    %4502 = vmatpush.bf16.msra.mxu0 %v3229
    %4503 = vmatpush.bf16.msra.mxu0 %v3222
    %4504 = vmatpush.bf16.msra.mxu0 %v3215
    %4505 = vmatpush.bf16.msra.mxu0 %v3208
    %4506 = vmatpush.bf16.msra.mxu0 %v3201
    %4507 = vmatmul.bf16.gmra.mxu0 %v1198
    %v4508 = vpop.f32.mrf.mxu0
    %v4509 = vadd.f32 %v4495, %v4508
    %v4510 = vpop.f32.mrf.mxu0
    %v4511 = vadd.f32 %v4497, %v4510
    %4512 = vdwg.mxu0
    %4513 = vmatpush.bf16.msra.mxu0 %v3306
    %4514 = vmatpush.bf16.msra.mxu0 %v3299
    %4515 = vmatpush.bf16.msra.mxu0 %v3292
    %4516 = vmatpush.bf16.msra.mxu0 %v3285
    %4517 = vmatpush.bf16.msra.mxu0 %v3278
    %4518 = vmatpush.bf16.msra.mxu0 %v3271
    %4519 = vmatpush.bf16.msra.mxu0 %v3264
    %4520 = vmatpush.bf16.msra.mxu0 %v3257
    %4521 = vmatmul.bf16.gmra.mxu0 %v1199
    %v4522 = vpop.f32.mrf.mxu0
    %v4523 = vadd.f32 %v4509, %v4522
    %v4524 = vpop.f32.mrf.mxu0
    %v4525 = vadd.f32 %v4511, %v4524
    %4526 = vdwg.mxu0
    %4527 = vmatpush.bf16.msra.mxu0 %v3362
    %4528 = vmatpush.bf16.msra.mxu0 %v3355
    %4529 = vmatpush.bf16.msra.mxu0 %v3348
    %4530 = vmatpush.bf16.msra.mxu0 %v3341
    %4531 = vmatpush.bf16.msra.mxu0 %v3334
    %4532 = vmatpush.bf16.msra.mxu0 %v3327
    %4533 = vmatpush.bf16.msra.mxu0 %v3320
    %4534 = vmatpush.bf16.msra.mxu0 %v3313
    %4535 = vmatmul.bf16.gmra.mxu0 %v1200
    %v4536 = vpop.f32.mrf.mxu0
    %v4537 = vadd.f32 %v4523, %v4536
    %v4538 = vpop.f32.mrf.mxu0
    %v4539 = vadd.f32 %v4525, %v4538
    %4540 = vdwg.mxu0
    %4541 = vmatpush.bf16.msra.mxu0 %v3418
    %4542 = vmatpush.bf16.msra.mxu0 %v3411
    %4543 = vmatpush.bf16.msra.mxu0 %v3404
    %4544 = vmatpush.bf16.msra.mxu0 %v3397
    %4545 = vmatpush.bf16.msra.mxu0 %v3390
    %4546 = vmatpush.bf16.msra.mxu0 %v3383
    %4547 = vmatpush.bf16.msra.mxu0 %v3376
    %4548 = vmatpush.bf16.msra.mxu0 %v3369
    %4549 = vmatmul.bf16.gmra.mxu0 %v1201
    %v4550 = vpop.f32.mrf.mxu0
    %v4551 = vadd.f32 %v4537, %v4550
    %v4552 = vpop.f32.mrf.mxu0
    %v4553 = vadd.f32 %v4539, %v4552
    %4554 = vdwg.mxu0
    %4555 = vmatpush.bf16.msra.mxu0 %v3474
    %4556 = vmatpush.bf16.msra.mxu0 %v3467
    %4557 = vmatpush.bf16.msra.mxu0 %v3460
    %4558 = vmatpush.bf16.msra.mxu0 %v3453
    %4559 = vmatpush.bf16.msra.mxu0 %v3446
    %4560 = vmatpush.bf16.msra.mxu0 %v3439
    %4561 = vmatpush.bf16.msra.mxu0 %v3432
    %4562 = vmatpush.bf16.msra.mxu0 %v3425
    %4563 = vmatmul.bf16.gmra.mxu0 %v1202
    %v4564 = vpop.f32.mrf.mxu0
    %v4565 = vadd.f32 %v4551, %v4564
    %v4566 = vpop.f32.mrf.mxu0
    %v4567 = vadd.f32 %v4553, %v4566
    %4568 = vdwg.mxu0
    %4569 = vmatpush.bf16.msra.mxu0 %v3530
    %4570 = vmatpush.bf16.msra.mxu0 %v3523
    %4571 = vmatpush.bf16.msra.mxu0 %v3516
    %4572 = vmatpush.bf16.msra.mxu0 %v3509
    %4573 = vmatpush.bf16.msra.mxu0 %v3502
    %4574 = vmatpush.bf16.msra.mxu0 %v3495
    %4575 = vmatpush.bf16.msra.mxu0 %v3488
    %4576 = vmatpush.bf16.msra.mxu0 %v3481
    %4577 = vmatmul.bf16.gmra.mxu0 %v1203
    %v4578 = vpop.f32.mrf.mxu0
    %v4579 = vadd.f32 %v4565, %v4578
    %v4580 = vpop.f32.mrf.mxu0
    %v4581 = vadd.f32 %v4567, %v4580
    %4582 = vdwg.mxu0
    %4583 = vmatpush.bf16.msra.mxu0 %v3586
    %4584 = vmatpush.bf16.msra.mxu0 %v3579
    %4585 = vmatpush.bf16.msra.mxu0 %v3572
    %4586 = vmatpush.bf16.msra.mxu0 %v3565
    %4587 = vmatpush.bf16.msra.mxu0 %v3558
    %4588 = vmatpush.bf16.msra.mxu0 %v3551
    %4589 = vmatpush.bf16.msra.mxu0 %v3544
    %4590 = vmatpush.bf16.msra.mxu0 %v3537
    %4591 = vmatmul.bf16.gmra.mxu0 %v1204
    %v4592 = vpop.f32.mrf.mxu0
    %v4593 = vadd.f32 %v4579, %v4592
    %v4594 = vpop.f32.mrf.mxu0
    %v4595 = vadd.f32 %v4581, %v4594
    %4596 = vdwg.mxu0
    %4597 = vmatpush.bf16.msra.mxu0 %v3195
    %4598 = vmatpush.bf16.msra.mxu0 %v3188
    %4599 = vmatpush.bf16.msra.mxu0 %v3181
    %4600 = vmatpush.bf16.msra.mxu0 %v3174
    %4601 = vmatpush.bf16.msra.mxu0 %v3167
    %4602 = vmatpush.bf16.msra.mxu0 %v3160
    %4603 = vmatpush.bf16.msra.mxu0 %v3153
    %4604 = vmatpush.bf16.msra.mxu0 %v3146
    %4605 = vmatmul.bf16.gmra.mxu0 %v1197
    %v4606 = vpop.f32.mrf.mxu0
    %v4607 = vadd.f32 %v1724, %v4606
    %v4608 = vpop.f32.mrf.mxu0
    %v4609 = vadd.f32 %v1724, %v4608
    %4610 = vdwg.mxu0
    %4611 = vmatpush.bf16.msra.mxu0 %v3251
    %4612 = vmatpush.bf16.msra.mxu0 %v3244
    %4613 = vmatpush.bf16.msra.mxu0 %v3237
    %4614 = vmatpush.bf16.msra.mxu0 %v3230
    %4615 = vmatpush.bf16.msra.mxu0 %v3223
    %4616 = vmatpush.bf16.msra.mxu0 %v3216
    %4617 = vmatpush.bf16.msra.mxu0 %v3209
    %4618 = vmatpush.bf16.msra.mxu0 %v3202
    %4619 = vmatmul.bf16.gmra.mxu0 %v1198
    %v4620 = vpop.f32.mrf.mxu0
    %v4621 = vadd.f32 %v4607, %v4620
    %v4622 = vpop.f32.mrf.mxu0
    %v4623 = vadd.f32 %v4609, %v4622
    %4624 = vdwg.mxu0
    %4625 = vmatpush.bf16.msra.mxu0 %v3307
    %4626 = vmatpush.bf16.msra.mxu0 %v3300
    %4627 = vmatpush.bf16.msra.mxu0 %v3293
    %4628 = vmatpush.bf16.msra.mxu0 %v3286
    %4629 = vmatpush.bf16.msra.mxu0 %v3279
    %4630 = vmatpush.bf16.msra.mxu0 %v3272
    %4631 = vmatpush.bf16.msra.mxu0 %v3265
    %4632 = vmatpush.bf16.msra.mxu0 %v3258
    %4633 = vmatmul.bf16.gmra.mxu0 %v1199
    %v4634 = vpop.f32.mrf.mxu0
    %v4635 = vadd.f32 %v4621, %v4634
    %v4636 = vpop.f32.mrf.mxu0
    %v4637 = vadd.f32 %v4623, %v4636
    %4638 = vdwg.mxu0
    %4639 = vmatpush.bf16.msra.mxu0 %v3363
    %4640 = vmatpush.bf16.msra.mxu0 %v3356
    %4641 = vmatpush.bf16.msra.mxu0 %v3349
    %4642 = vmatpush.bf16.msra.mxu0 %v3342
    %4643 = vmatpush.bf16.msra.mxu0 %v3335
    %4644 = vmatpush.bf16.msra.mxu0 %v3328
    %4645 = vmatpush.bf16.msra.mxu0 %v3321
    %4646 = vmatpush.bf16.msra.mxu0 %v3314
    %4647 = vmatmul.bf16.gmra.mxu0 %v1200
    %v4648 = vpop.f32.mrf.mxu0
    %v4649 = vadd.f32 %v4635, %v4648
    %v4650 = vpop.f32.mrf.mxu0
    %v4651 = vadd.f32 %v4637, %v4650
    %4652 = vdwg.mxu0
    %4653 = vmatpush.bf16.msra.mxu0 %v3419
    %4654 = vmatpush.bf16.msra.mxu0 %v3412
    %4655 = vmatpush.bf16.msra.mxu0 %v3405
    %4656 = vmatpush.bf16.msra.mxu0 %v3398
    %4657 = vmatpush.bf16.msra.mxu0 %v3391
    %4658 = vmatpush.bf16.msra.mxu0 %v3384
    %4659 = vmatpush.bf16.msra.mxu0 %v3377
    %4660 = vmatpush.bf16.msra.mxu0 %v3370
    %4661 = vmatmul.bf16.gmra.mxu0 %v1201
    %v4662 = vpop.f32.mrf.mxu0
    %v4663 = vadd.f32 %v4649, %v4662
    %v4664 = vpop.f32.mrf.mxu0
    %v4665 = vadd.f32 %v4651, %v4664
    %4666 = vdwg.mxu0
    %4667 = vmatpush.bf16.msra.mxu0 %v3475
    %4668 = vmatpush.bf16.msra.mxu0 %v3468
    %4669 = vmatpush.bf16.msra.mxu0 %v3461
    %4670 = vmatpush.bf16.msra.mxu0 %v3454
    %4671 = vmatpush.bf16.msra.mxu0 %v3447
    %4672 = vmatpush.bf16.msra.mxu0 %v3440
    %4673 = vmatpush.bf16.msra.mxu0 %v3433
    %4674 = vmatpush.bf16.msra.mxu0 %v3426
    %4675 = vmatmul.bf16.gmra.mxu0 %v1202
    %v4676 = vpop.f32.mrf.mxu0
    %v4677 = vadd.f32 %v4663, %v4676
    %v4678 = vpop.f32.mrf.mxu0
    %v4679 = vadd.f32 %v4665, %v4678
    %4680 = vdwg.mxu0
    %4681 = vmatpush.bf16.msra.mxu0 %v3531
    %4682 = vmatpush.bf16.msra.mxu0 %v3524
    %4683 = vmatpush.bf16.msra.mxu0 %v3517
    %4684 = vmatpush.bf16.msra.mxu0 %v3510
    %4685 = vmatpush.bf16.msra.mxu0 %v3503
    %4686 = vmatpush.bf16.msra.mxu0 %v3496
    %4687 = vmatpush.bf16.msra.mxu0 %v3489
    %4688 = vmatpush.bf16.msra.mxu0 %v3482
    %4689 = vmatmul.bf16.gmra.mxu0 %v1203
    %v4690 = vpop.f32.mrf.mxu0
    %v4691 = vadd.f32 %v4677, %v4690
    %v4692 = vpop.f32.mrf.mxu0
    %v4693 = vadd.f32 %v4679, %v4692
    %4694 = vdwg.mxu0
    %4695 = vmatpush.bf16.msra.mxu0 %v3587
    %4696 = vmatpush.bf16.msra.mxu0 %v3580
    %4697 = vmatpush.bf16.msra.mxu0 %v3573
    %4698 = vmatpush.bf16.msra.mxu0 %v3566
    %4699 = vmatpush.bf16.msra.mxu0 %v3559
    %4700 = vmatpush.bf16.msra.mxu0 %v3552
    %4701 = vmatpush.bf16.msra.mxu0 %v3545
    %4702 = vmatpush.bf16.msra.mxu0 %v3538
    %4703 = vmatmul.bf16.gmra.mxu0 %v1204
    %v4704 = vpop.f32.mrf.mxu0
    %v4705 = vadd.f32 %v4691, %v4704
    %v4706 = vpop.f32.mrf.mxu0
    %v4707 = vadd.f32 %v4693, %v4706
    %4708 = vdwg.mxu0
    %4709 = vmatpush.bf16.msra.mxu0 %v3196
    %4710 = vmatpush.bf16.msra.mxu0 %v3189
    %4711 = vmatpush.bf16.msra.mxu0 %v3182
    %4712 = vmatpush.bf16.msra.mxu0 %v3175
    %4713 = vmatpush.bf16.msra.mxu0 %v3168
    %4714 = vmatpush.bf16.msra.mxu0 %v3161
    %4715 = vmatpush.bf16.msra.mxu0 %v3154
    %4716 = vmatpush.bf16.msra.mxu0 %v3147
    %4717 = vmatmul.bf16.gmra.mxu0 %v1197
    %v4718 = vpop.f32.mrf.mxu0
    %v4719 = vadd.f32 %v1725, %v4718
    %v4720 = vpop.f32.mrf.mxu0
    %v4721 = vadd.f32 %v1725, %v4720
    %4722 = vdwg.mxu0
    %4723 = vmatpush.bf16.msra.mxu0 %v3252
    %4724 = vmatpush.bf16.msra.mxu0 %v3245
    %4725 = vmatpush.bf16.msra.mxu0 %v3238
    %4726 = vmatpush.bf16.msra.mxu0 %v3231
    %4727 = vmatpush.bf16.msra.mxu0 %v3224
    %4728 = vmatpush.bf16.msra.mxu0 %v3217
    %4729 = vmatpush.bf16.msra.mxu0 %v3210
    %4730 = vmatpush.bf16.msra.mxu0 %v3203
    %4731 = vmatmul.bf16.gmra.mxu0 %v1198
    %v4732 = vpop.f32.mrf.mxu0
    %v4733 = vadd.f32 %v4719, %v4732
    %v4734 = vpop.f32.mrf.mxu0
    %v4735 = vadd.f32 %v4721, %v4734
    %4736 = vdwg.mxu0
    %4737 = vmatpush.bf16.msra.mxu0 %v3308
    %4738 = vmatpush.bf16.msra.mxu0 %v3301
    %4739 = vmatpush.bf16.msra.mxu0 %v3294
    %4740 = vmatpush.bf16.msra.mxu0 %v3287
    %4741 = vmatpush.bf16.msra.mxu0 %v3280
    %4742 = vmatpush.bf16.msra.mxu0 %v3273
    %4743 = vmatpush.bf16.msra.mxu0 %v3266
    %4744 = vmatpush.bf16.msra.mxu0 %v3259
    %4745 = vmatmul.bf16.gmra.mxu0 %v1199
    %v4746 = vpop.f32.mrf.mxu0
    %v4747 = vadd.f32 %v4733, %v4746
    %v4748 = vpop.f32.mrf.mxu0
    %v4749 = vadd.f32 %v4735, %v4748
    %4750 = vdwg.mxu0
    %4751 = vmatpush.bf16.msra.mxu0 %v3364
    %4752 = vmatpush.bf16.msra.mxu0 %v3357
    %4753 = vmatpush.bf16.msra.mxu0 %v3350
    %4754 = vmatpush.bf16.msra.mxu0 %v3343
    %4755 = vmatpush.bf16.msra.mxu0 %v3336
    %4756 = vmatpush.bf16.msra.mxu0 %v3329
    %4757 = vmatpush.bf16.msra.mxu0 %v3322
    %4758 = vmatpush.bf16.msra.mxu0 %v3315
    %4759 = vmatmul.bf16.gmra.mxu0 %v1200
    %v4760 = vpop.f32.mrf.mxu0
    %v4761 = vadd.f32 %v4747, %v4760
    %v4762 = vpop.f32.mrf.mxu0
    %v4763 = vadd.f32 %v4749, %v4762
    %4764 = vdwg.mxu0
    %4765 = vmatpush.bf16.msra.mxu0 %v3420
    %4766 = vmatpush.bf16.msra.mxu0 %v3413
    %4767 = vmatpush.bf16.msra.mxu0 %v3406
    %4768 = vmatpush.bf16.msra.mxu0 %v3399
    %4769 = vmatpush.bf16.msra.mxu0 %v3392
    %4770 = vmatpush.bf16.msra.mxu0 %v3385
    %4771 = vmatpush.bf16.msra.mxu0 %v3378
    %4772 = vmatpush.bf16.msra.mxu0 %v3371
    %4773 = vmatmul.bf16.gmra.mxu0 %v1201
    %v4774 = vpop.f32.mrf.mxu0
    %v4775 = vadd.f32 %v4761, %v4774
    %v4776 = vpop.f32.mrf.mxu0
    %v4777 = vadd.f32 %v4763, %v4776
    %4778 = vdwg.mxu0
    %4779 = vmatpush.bf16.msra.mxu0 %v3476
    %4780 = vmatpush.bf16.msra.mxu0 %v3469
    %4781 = vmatpush.bf16.msra.mxu0 %v3462
    %4782 = vmatpush.bf16.msra.mxu0 %v3455
    %4783 = vmatpush.bf16.msra.mxu0 %v3448
    %4784 = vmatpush.bf16.msra.mxu0 %v3441
    %4785 = vmatpush.bf16.msra.mxu0 %v3434
    %4786 = vmatpush.bf16.msra.mxu0 %v3427
    %4787 = vmatmul.bf16.gmra.mxu0 %v1202
    %v4788 = vpop.f32.mrf.mxu0
    %v4789 = vadd.f32 %v4775, %v4788
    %v4790 = vpop.f32.mrf.mxu0
    %v4791 = vadd.f32 %v4777, %v4790
    %4792 = vdwg.mxu0
    %4793 = vmatpush.bf16.msra.mxu0 %v3532
    %4794 = vmatpush.bf16.msra.mxu0 %v3525
    %4795 = vmatpush.bf16.msra.mxu0 %v3518
    %4796 = vmatpush.bf16.msra.mxu0 %v3511
    %4797 = vmatpush.bf16.msra.mxu0 %v3504
    %4798 = vmatpush.bf16.msra.mxu0 %v3497
    %4799 = vmatpush.bf16.msra.mxu0 %v3490
    %4800 = vmatpush.bf16.msra.mxu0 %v3483
    %4801 = vmatmul.bf16.gmra.mxu0 %v1203
    %v4802 = vpop.f32.mrf.mxu0
    %v4803 = vadd.f32 %v4789, %v4802
    %v4804 = vpop.f32.mrf.mxu0
    %v4805 = vadd.f32 %v4791, %v4804
    %4806 = vdwg.mxu0
    %4807 = vmatpush.bf16.msra.mxu0 %v3588
    %4808 = vmatpush.bf16.msra.mxu0 %v3581
    %4809 = vmatpush.bf16.msra.mxu0 %v3574
    %4810 = vmatpush.bf16.msra.mxu0 %v3567
    %4811 = vmatpush.bf16.msra.mxu0 %v3560
    %4812 = vmatpush.bf16.msra.mxu0 %v3553
    %4813 = vmatpush.bf16.msra.mxu0 %v3546
    %4814 = vmatpush.bf16.msra.mxu0 %v3539
    %4815 = vmatmul.bf16.gmra.mxu0 %v1204
    %v4816 = vpop.f32.mrf.mxu0
    %v4817 = vadd.f32 %v4803, %v4816
    %v4818 = vpop.f32.mrf.mxu0
    %v4819 = vadd.f32 %v4805, %v4818
    %4820 = vdwg.mxu0
    %v4821 = vmax.f32 %v4145, 0.0
    %v4822 = vmax.f32 %v4257, 0.0
    %v4823 = vmax.f32 %v4369, 0.0
    %v4824 = vmax.f32 %v4481, 0.0
    %v4825 = vmax.f32 %v4593, 0.0
    %v4826 = vmax.f32 %v4705, 0.0
    %v4827 = vmax.f32 %v4817, 0.0
    %v4828 = vmax.f32 %v4147, 0.0
    %v4829 = vmax.f32 %v4259, 0.0
    %v4830 = vmax.f32 %v4371, 0.0
    %v4831 = vmax.f32 %v4483, 0.0
    %v4832 = vmax.f32 %v4595, 0.0
    %v4833 = vmax.f32 %v4707, 0.0
    %v4834 = vmax.f32 %v4819, 0.0
    %v4835 = vpack.c.bf16 %v4828, %v4821
    %v4836 = vpack.c.bf16 %v4829, %v4822
    %v4837 = vpack.c.bf16 %v4830, %v4823
    %v4838 = vpack.c.bf16 %v4831, %v4824
    %v4839 = vpack.c.bf16 %v4832, %v4825
    %v4840 = vpack.c.bf16 %v4833, %v4826
    %v4841 = vpack.c.bf16 %v4834, %v4827
    %v4842 = vld [vmem:[#allocation11] sm:$0xff]
    %v4843 = vld [vmem:[#allocation11 + $0x8] sm:$0xff]
    %v4844 = vld [vmem:[#allocation11 + $0x10] sm:$0xff]
    %v4845 = vld [vmem:[#allocation11 + $0x18] sm:$0xff]
    %v4846 = vld [vmem:[#allocation11 + $0x20] sm:$0xff]
    %v4847 = vld [vmem:[#allocation11 + $0x28] sm:$0xff]
    %v4848 = vld [vmem:[#allocation11 + $0x30] sm:$0xff]
    %v4849 = vld [vmem:[#allocation11 + $0x38] sm:$0xff]
    %v4850 = vld [vmem:[#allocation11 + $0x40] sm:$0xff]
    %v4851 = vld [vmem:[#allocation11 + $0x48] sm:$0xff]
    %v4852 = vld [vmem:[#allocation11 + $0x50] sm:$0xff]
    %v4853 = vld [vmem:[#allocation11 + $0x58] sm:$0xff]
    %v4854 = vld [vmem:[#allocation11 + $0x60] sm:$0xff]
    %v4855 = vld [vmem:[#allocation11 + $0x68] sm:$0xff]
    %v4856 = vld [vmem:[#allocation11 + $0x70] sm:$0xff]
    %v4857 = vld [vmem:[#allocation11 + $0x78] sm:$0xff]
    %v4858 = vld [vmem:[#allocation11 + $0x80] sm:$0xff]
    %v4859 = vld [vmem:[#allocation11 + $0x88] sm:$0xff]
    %v4860 = vld [vmem:[#allocation11 + $0x90] sm:$0xff]
    %v4861 = vld [vmem:[#allocation11 + $0x98] sm:$0xff]
    %v4862 = vld [vmem:[#allocation11 + $0xa0] sm:$0xff]
    %v4863 = vld [vmem:[#allocation11 + $0xa8] sm:$0xff]
    %v4864 = vld [vmem:[#allocation11 + $0xb0] sm:$0xff]
    %v4865 = vld [vmem:[#allocation11 + $0xb8] sm:$0xff]
    %v4866 = vld [vmem:[#allocation11 + $0xc0] sm:$0xff]
    %v4867 = vld [vmem:[#allocation11 + $0xc8] sm:$0xff]
    %v4868 = vld [vmem:[#allocation11 + $0xd0] sm:$0xff]
    %v4869 = vld [vmem:[#allocation11 + $0xd8] sm:$0xff]
    %v4870 = vld [vmem:[#allocation11 + $0xe0] sm:$0xff]
    %v4871 = vld [vmem:[#allocation11 + $0xe8] sm:$0xff]
    %v4872 = vld [vmem:[#allocation11 + $0xf0] sm:$0xff]
    %v4873 = vld [vmem:[#allocation11 + $0xf8] sm:$0xff]
    %v4874 = vld [vmem:[#allocation11 + $0x100] sm:$0xff]
    %v4875 = vld [vmem:[#allocation11 + $0x108] sm:$0xff]
    %v4876 = vld [vmem:[#allocation11 + $0x110] sm:$0xff]
    %v4877 = vld [vmem:[#allocation11 + $0x118] sm:$0xff]
    %v4878 = vld [vmem:[#allocation11 + $0x120] sm:$0xff]
    %v4879 = vld [vmem:[#allocation11 + $0x128] sm:$0xff]
    %v4880 = vld [vmem:[#allocation11 + $0x130] sm:$0xff]
    %v4881 = vld [vmem:[#allocation11 + $0x138] sm:$0xff]
    %v4882 = vld [vmem:[#allocation11 + $0x140] sm:$0xff]
    %v4883 = vld [vmem:[#allocation11 + $0x148] sm:$0xff]
    %v4884 = vld [vmem:[#allocation11 + $0x150] sm:$0xff]
    %v4885 = vld [vmem:[#allocation11 + $0x158] sm:$0xff]
    %v4886 = vld [vmem:[#allocation11 + $0x160] sm:$0xff]
    %v4887 = vld [vmem:[#allocation11 + $0x168] sm:$0xff]
    %v4888 = vld [vmem:[#allocation11 + $0x170] sm:$0xff]
    %v4889 = vld [vmem:[#allocation11 + $0x178] sm:$0xff]
    %v4890 = vld [vmem:[#allocation11 + $0x180] sm:$0xff]
    %v4891 = vld [vmem:[#allocation11 + $0x188] sm:$0xff]
    %v4892 = vld [vmem:[#allocation11 + $0x190] sm:$0xff]
    %v4893 = vld [vmem:[#allocation11 + $0x198] sm:$0xff]
    %v4894 = vld [vmem:[#allocation11 + $0x1a0] sm:$0xff]
    %v4895 = vld [vmem:[#allocation11 + $0x1a8] sm:$0xff]
    %v4896 = vld [vmem:[#allocation11 + $0x1b0] sm:$0xff]
    %v4897 = vld [vmem:[#allocation11 + $0x1b8] sm:$0xff]
    %v4898 = vld [vmem:[#allocation11 + $0x1c0] sm:$0xff]
    %v4899 = vld [vmem:[#allocation11 + $0x1c8] sm:$0xff]
    %v4900 = vld [vmem:[#allocation11 + $0x1d0] sm:$0xff]
    %v4901 = vld [vmem:[#allocation11 + $0x1d8] sm:$0xff]
    %v4902 = vld [vmem:[#allocation11 + $0x1e0] sm:$0xff]
    %v4903 = vld [vmem:[#allocation11 + $0x1e8] sm:$0xff]
    %v4904 = vld [vmem:[#allocation11 + $0x1f0] sm:$0xff]
    %v4905 = vld [vmem:[#allocation11 + $0x1f8] sm:$0xff]
    %v4906 = vld [vmem:[#allocation11 + $0x200] sm:$0xff]
    %v4907 = vld [vmem:[#allocation11 + $0x208] sm:$0xff]
    %v4908 = vld [vmem:[#allocation11 + $0x210] sm:$0xff]
    %v4909 = vld [vmem:[#allocation11 + $0x218] sm:$0xff]
    %v4910 = vld [vmem:[#allocation11 + $0x220] sm:$0xff]
    %v4911 = vld [vmem:[#allocation11 + $0x228] sm:$0xff]
    %v4912 = vld [vmem:[#allocation11 + $0x230] sm:$0xff]
    %v4913 = vld [vmem:[#allocation11 + $0x238] sm:$0xff]
    %v4914 = vld [vmem:[#allocation11 + $0x240] sm:$0xff]
    %v4915 = vld [vmem:[#allocation11 + $0x248] sm:$0xff]
    %v4916 = vld [vmem:[#allocation11 + $0x250] sm:$0xff]
    %v4917 = vld [vmem:[#allocation11 + $0x258] sm:$0xff]
    %v4918 = vld [vmem:[#allocation11 + $0x260] sm:$0xff]
    %v4919 = vld [vmem:[#allocation11 + $0x268] sm:$0xff]
    %v4920 = vld [vmem:[#allocation11 + $0x270] sm:$0xff]
    %v4921 = vld [vmem:[#allocation11 + $0x278] sm:$0xff]
    %v4922 = vld [vmem:[#allocation11 + $0x280] sm:$0xff]
    %v4923 = vld [vmem:[#allocation11 + $0x288] sm:$0xff]
    %v4924 = vld [vmem:[#allocation11 + $0x290] sm:$0xff]
    %v4925 = vld [vmem:[#allocation11 + $0x298] sm:$0xff]
    %v4926 = vld [vmem:[#allocation11 + $0x2a0] sm:$0xff]
    %v4927 = vld [vmem:[#allocation11 + $0x2a8] sm:$0xff]
    %v4928 = vld [vmem:[#allocation11 + $0x2b0] sm:$0xff]
    %v4929 = vld [vmem:[#allocation11 + $0x2b8] sm:$0xff]
    %v4930 = vld [vmem:[#allocation11 + $0x2c0] sm:$0xff]
    %v4931 = vld [vmem:[#allocation11 + $0x2c8] sm:$0xff]
    %v4932 = vld [vmem:[#allocation11 + $0x2d0] sm:$0xff]
    %v4933 = vld [vmem:[#allocation11 + $0x2d8] sm:$0xff]
    %v4934 = vld [vmem:[#allocation11 + $0x2e0] sm:$0xff]
    %v4935 = vld [vmem:[#allocation11 + $0x2e8] sm:$0xff]
    %v4936 = vld [vmem:[#allocation11 + $0x2f0] sm:$0xff]
    %v4937 = vld [vmem:[#allocation11 + $0x2f8] sm:$0xff]
    %v4938 = vld [vmem:[#allocation11 + $0x300] sm:$0xff]
    %v4939 = vld [vmem:[#allocation11 + $0x308] sm:$0xff]
    %v4940 = vld [vmem:[#allocation11 + $0x310] sm:$0xff]
    %v4941 = vld [vmem:[#allocation11 + $0x318] sm:$0xff]
    %v4942 = vld [vmem:[#allocation11 + $0x320] sm:$0xff]
    %v4943 = vld [vmem:[#allocation11 + $0x328] sm:$0xff]
    %v4944 = vld [vmem:[#allocation11 + $0x330] sm:$0xff]
    %v4945 = vld [vmem:[#allocation11 + $0x338] sm:$0xff]
    %v4946 = vld [vmem:[#allocation11 + $0x340] sm:$0xff]
    %v4947 = vld [vmem:[#allocation11 + $0x348] sm:$0xff]
    %v4948 = vld [vmem:[#allocation11 + $0x350] sm:$0xff]
    %v4949 = vld [vmem:[#allocation11 + $0x358] sm:$0xff]
    %v4950 = vld [vmem:[#allocation11 + $0x360] sm:$0xff]
    %v4951 = vld [vmem:[#allocation11 + $0x368] sm:$0xff]
    %v4952 = vld [vmem:[#allocation11 + $0x370] sm:$0xff]
    %v4953 = vld [vmem:[#allocation11 + $0x378] sm:$0xff]
    %v4954 = vld [vmem:[#allocation11 + $0x380] sm:$0xff]
    %v4955 = vld [vmem:[#allocation11 + $0x388] sm:$0xff]
    %v4956 = vld [vmem:[#allocation11 + $0x390] sm:$0xff]
    %v4957 = vld [vmem:[#allocation11 + $0x398] sm:$0xff]
    %v4958 = vld [vmem:[#allocation11 + $0x3a0] sm:$0xff]
    %v4959 = vld [vmem:[#allocation11 + $0x3a8] sm:$0xff]
    %v4960 = vld [vmem:[#allocation11 + $0x3b0] sm:$0xff]
    %v4961 = vld [vmem:[#allocation11 + $0x3b8] sm:$0xff]
    %v4962 = vld [vmem:[#allocation11 + $0x3c0] sm:$0xff]
    %v4963 = vld [vmem:[#allocation11 + $0x3c8] sm:$0xff]
    %v4964 = vld [vmem:[#allocation11 + $0x3d0] sm:$0xff]
    %v4965 = vld [vmem:[#allocation11 + $0x3d8] sm:$0xff]
    %v4966 = vld [vmem:[#allocation11 + $0x3e0] sm:$0xff]
    %v4967 = vld [vmem:[#allocation11 + $0x3e8] sm:$0xff]
    %v4968 = vld [vmem:[#allocation11 + $0x3f0] sm:$0xff]
    %v4969 = vld [vmem:[#allocation11 + $0x3f8] sm:$0xff]
    %v4970 = vld [vmem:[#allocation11 + $0x400] sm:$0xff]
    %v4971 = vld [vmem:[#allocation11 + $0x408] sm:$0xff]
    %v4972 = vld [vmem:[#allocation11 + $0x410] sm:$0xff]
    %v4973 = vld [vmem:[#allocation11 + $0x418] sm:$0xff]
    %v4974 = vld [vmem:[#allocation11 + $0x420] sm:$0xff]
    %v4975 = vld [vmem:[#allocation11 + $0x428] sm:$0xff]
    %v4976 = vld [vmem:[#allocation11 + $0x430] sm:$0xff]
    %v4977 = vld [vmem:[#allocation11 + $0x438] sm:$0xff]
    %v4978 = vld [vmem:[#allocation11 + $0x440] sm:$0xff]
    %v4979 = vld [vmem:[#allocation11 + $0x448] sm:$0xff]
    %v4980 = vld [vmem:[#allocation11 + $0x450] sm:$0xff]
    %v4981 = vld [vmem:[#allocation11 + $0x458] sm:$0xff]
    %v4982 = vld [vmem:[#allocation11 + $0x460] sm:$0xff]
    %v4983 = vld [vmem:[#allocation11 + $0x468] sm:$0xff]
    %v4984 = vld [vmem:[#allocation11 + $0x470] sm:$0xff]
    %v4985 = vld [vmem:[#allocation11 + $0x478] sm:$0xff]
    %v4986 = vld [vmem:[#allocation11 + $0x480] sm:$0xff]
    %v4987 = vld [vmem:[#allocation11 + $0x488] sm:$0xff]
    %v4988 = vld [vmem:[#allocation11 + $0x490] sm:$0xff]
    %v4989 = vld [vmem:[#allocation11 + $0x498] sm:$0xff]
    %v4990 = vld [vmem:[#allocation11 + $0x4a0] sm:$0xff]
    %v4991 = vld [vmem:[#allocation11 + $0x4a8] sm:$0xff]
    %v4992 = vld [vmem:[#allocation11 + $0x4b0] sm:$0xff]
    %v4993 = vld [vmem:[#allocation11 + $0x4b8] sm:$0xff]
    %v4994 = vld [vmem:[#allocation11 + $0x4c0] sm:$0xff]
    %v4995 = vld [vmem:[#allocation11 + $0x4c8] sm:$0xff]
    %v4996 = vld [vmem:[#allocation11 + $0x4d0] sm:$0xff]
    %v4997 = vld [vmem:[#allocation11 + $0x4d8] sm:$0xff]
    %v4998 = vld [vmem:[#allocation11 + $0x4e0] sm:$0xff]
    %v4999 = vld [vmem:[#allocation11 + $0x4e8] sm:$0xff]
    %v5000 = vld [vmem:[#allocation11 + $0x4f0] sm:$0xff]
    %v5001 = vld [vmem:[#allocation11 + $0x4f8] sm:$0xff]
    %v5002 = vld [vmem:[#allocation11 + $0x500] sm:$0xff]
    %v5003 = vld [vmem:[#allocation11 + $0x508] sm:$0xff]
    %v5004 = vld [vmem:[#allocation11 + $0x510] sm:$0xff]
    %v5005 = vld [vmem:[#allocation11 + $0x518] sm:$0xff]
    %v5006 = vld [vmem:[#allocation11 + $0x520] sm:$0xff]
    %v5007 = vld [vmem:[#allocation11 + $0x528] sm:$0xff]
    %v5008 = vld [vmem:[#allocation11 + $0x530] sm:$0xff]
    %v5009 = vld [vmem:[#allocation11 + $0x538] sm:$0xff]
    %v5010 = vld [vmem:[#allocation11 + $0x540] sm:$0xff]
    %v5011 = vld [vmem:[#allocation11 + $0x548] sm:$0xff]
    %v5012 = vld [vmem:[#allocation11 + $0x550] sm:$0xff]
    %v5013 = vld [vmem:[#allocation11 + $0x558] sm:$0xff]
    %v5014 = vld [vmem:[#allocation11 + $0x560] sm:$0xff]
    %v5015 = vld [vmem:[#allocation11 + $0x568] sm:$0xff]
    %v5016 = vld [vmem:[#allocation11 + $0x570] sm:$0xff]
    %v5017 = vld [vmem:[#allocation11 + $0x578] sm:$0xff]
    %v5018 = vld [vmem:[#allocation11 + $0x580] sm:$0xff]
    %v5019 = vld [vmem:[#allocation11 + $0x588] sm:$0xff]
    %v5020 = vld [vmem:[#allocation11 + $0x590] sm:$0xff]
    %v5021 = vld [vmem:[#allocation11 + $0x598] sm:$0xff]
    %v5022 = vld [vmem:[#allocation11 + $0x5a0] sm:$0xff]
    %v5023 = vld [vmem:[#allocation11 + $0x5a8] sm:$0xff]
    %v5024 = vld [vmem:[#allocation11 + $0x5b0] sm:$0xff]
    %v5025 = vld [vmem:[#allocation11 + $0x5b8] sm:$0xff]
    %v5026 = vld [vmem:[#allocation11 + $0x5c0] sm:$0xff]
    %v5027 = vld [vmem:[#allocation11 + $0x5c8] sm:$0xff]
    %v5028 = vld [vmem:[#allocation11 + $0x5d0] sm:$0xff]
    %v5029 = vld [vmem:[#allocation11 + $0x5d8] sm:$0xff]
    %v5030 = vld [vmem:[#allocation11 + $0x5e0] sm:$0xff]
    %v5031 = vld [vmem:[#allocation11 + $0x5e8] sm:$0xff]
    %v5032 = vld [vmem:[#allocation11 + $0x5f0] sm:$0xff]
    %v5033 = vld [vmem:[#allocation11 + $0x5f8] sm:$0xff]
    %v5034 = vld [vmem:[#allocation11 + $0x600] sm:$0xff]
    %v5035 = vld [vmem:[#allocation11 + $0x608] sm:$0xff]
    %v5036 = vld [vmem:[#allocation11 + $0x610] sm:$0xff]
    %v5037 = vld [vmem:[#allocation11 + $0x618] sm:$0xff]
    %v5038 = vld [vmem:[#allocation11 + $0x620] sm:$0xff]
    %v5039 = vld [vmem:[#allocation11 + $0x628] sm:$0xff]
    %v5040 = vld [vmem:[#allocation11 + $0x630] sm:$0xff]
    %v5041 = vld [vmem:[#allocation11 + $0x638] sm:$0xff]
    %v5042 = vld [vmem:[#allocation11 + $0x640] sm:$0xff]
    %v5043 = vld [vmem:[#allocation11 + $0x648] sm:$0xff]
    %v5044 = vld [vmem:[#allocation11 + $0x650] sm:$0xff]
    %v5045 = vld [vmem:[#allocation11 + $0x658] sm:$0xff]
    %v5046 = vld [vmem:[#allocation11 + $0x660] sm:$0xff]
    %v5047 = vld [vmem:[#allocation11 + $0x668] sm:$0xff]
    %v5048 = vld [vmem:[#allocation11 + $0x670] sm:$0xff]
    %v5049 = vld [vmem:[#allocation11 + $0x678] sm:$0xff]
    %v5050 = vld [vmem:[#allocation11 + $0x680] sm:$0xff]
    %v5051 = vld [vmem:[#allocation11 + $0x688] sm:$0xff]
    %v5052 = vld [vmem:[#allocation11 + $0x690] sm:$0xff]
    %v5053 = vld [vmem:[#allocation11 + $0x698] sm:$0xff]
    %v5054 = vld [vmem:[#allocation11 + $0x6a0] sm:$0xff]
    %v5055 = vld [vmem:[#allocation11 + $0x6a8] sm:$0xff]
    %v5056 = vld [vmem:[#allocation11 + $0x6b0] sm:$0xff]
    %v5057 = vld [vmem:[#allocation11 + $0x6b8] sm:$0xff]
    %v5058 = vld [vmem:[#allocation11 + $0x6c0] sm:$0xff]
    %v5059 = vld [vmem:[#allocation11 + $0x6c8] sm:$0xff]
    %v5060 = vld [vmem:[#allocation11 + $0x6d0] sm:$0xff]
    %v5061 = vld [vmem:[#allocation11 + $0x6d8] sm:$0xff]
    %v5062 = vld [vmem:[#allocation11 + $0x6e0] sm:$0xff]
    %v5063 = vld [vmem:[#allocation11 + $0x6e8] sm:$0xff]
    %v5064 = vld [vmem:[#allocation11 + $0x6f0] sm:$0xff]
    %v5065 = vld [vmem:[#allocation11 + $0x6f8] sm:$0xff]
    %v5066 = vld [vmem:[#allocation13] sm:$0xf]
    %v5068 = vperm.slane %v5066, 0
    %v5069 = vperm.slane %v5066, 1
    %v5070 = vperm.slane %v5066, 2
    %v5071 = vperm.slane %v5066, 3
    %v5300 = vunpack.c.l.b16 %v4842
    %v5301 = vunpack.c.h.b16 %v4842
    %v5302 = vunpack.c.l.b16 %v4843
    %v5303 = vunpack.c.h.b16 %v4843
    %v5304 = vunpack.c.l.b16 %v4844
    %v5305 = vunpack.c.h.b16 %v4844
    %v5306 = vunpack.c.l.b16 %v4845
    %v5307 = vunpack.c.h.b16 %v4845
    %v5308 = vunpack.c.l.b16 %v4846
    %v5309 = vunpack.c.h.b16 %v4846
    %v5310 = vunpack.c.l.b16 %v4847
    %v5311 = vunpack.c.h.b16 %v4847
    %v5312 = vunpack.c.l.b16 %v4848
    %v5313 = vunpack.c.h.b16 %v4848
    %v5314 = vunpack.c.l.b16 %v4849
    %v5315 = vunpack.c.h.b16 %v4849
    %v5316 = vunpack.c.l.b16 %v4850
    %v5317 = vunpack.c.h.b16 %v4850
    %v5318 = vunpack.c.l.b16 %v4851
    %v5319 = vunpack.c.h.b16 %v4851
    %v5320 = vunpack.c.l.b16 %v4852
    %v5321 = vunpack.c.h.b16 %v4852
    %v5322 = vunpack.c.l.b16 %v4853
    %v5323 = vunpack.c.h.b16 %v4853
    %v5324 = vunpack.c.l.b16 %v4854
    %v5325 = vunpack.c.h.b16 %v4854
    %v5326 = vunpack.c.l.b16 %v4855
    %v5327 = vunpack.c.h.b16 %v4855
    %v5328 = vunpack.c.l.b16 %v4856
    %v5329 = vunpack.c.h.b16 %v4856
    %v5330 = vunpack.c.l.b16 %v4857
    %v5331 = vunpack.c.h.b16 %v4857
    %v5332 = vunpack.c.l.b16 %v4858
    %v5333 = vunpack.c.h.b16 %v4858
    %v5334 = vunpack.c.l.b16 %v4859
    %v5335 = vunpack.c.h.b16 %v4859
    %v5336 = vunpack.c.l.b16 %v4860
    %v5337 = vunpack.c.h.b16 %v4860
    %v5338 = vunpack.c.l.b16 %v4861
    %v5339 = vunpack.c.h.b16 %v4861
    %v5340 = vunpack.c.l.b16 %v4862
    %v5341 = vunpack.c.h.b16 %v4862
    %v5342 = vunpack.c.l.b16 %v4863
    %v5343 = vunpack.c.h.b16 %v4863
    %v5344 = vunpack.c.l.b16 %v4864
    %v5345 = vunpack.c.h.b16 %v4864
    %v5346 = vunpack.c.l.b16 %v4865
    %v5347 = vunpack.c.h.b16 %v4865
    %v5348 = vunpack.c.l.b16 %v4866
    %v5349 = vunpack.c.h.b16 %v4866
    %v5350 = vunpack.c.l.b16 %v4867
    %v5351 = vunpack.c.h.b16 %v4867
    %v5352 = vunpack.c.l.b16 %v4868
    %v5353 = vunpack.c.h.b16 %v4868
    %v5354 = vunpack.c.l.b16 %v4869
    %v5355 = vunpack.c.h.b16 %v4869
    %v5356 = vunpack.c.l.b16 %v4870
    %v5357 = vunpack.c.h.b16 %v4870
    %v5358 = vunpack.c.l.b16 %v4871
    %v5359 = vunpack.c.h.b16 %v4871
    %v5360 = vunpack.c.l.b16 %v4872
    %v5361 = vunpack.c.h.b16 %v4872
    %v5362 = vunpack.c.l.b16 %v4873
    %v5363 = vunpack.c.h.b16 %v4873
    %v5364 = vunpack.c.l.b16 %v4874
    %v5365 = vunpack.c.h.b16 %v4874
    %v5366 = vunpack.c.l.b16 %v4875
    %v5367 = vunpack.c.h.b16 %v4875
    %v5368 = vunpack.c.l.b16 %v4876
    %v5369 = vunpack.c.h.b16 %v4876
    %v5370 = vunpack.c.l.b16 %v4877
    %v5371 = vunpack.c.h.b16 %v4877
    %v5372 = vunpack.c.l.b16 %v4878
    %v5373 = vunpack.c.h.b16 %v4878
    %v5374 = vunpack.c.l.b16 %v4879
    %v5375 = vunpack.c.h.b16 %v4879
    %v5376 = vunpack.c.l.b16 %v4880
    %v5377 = vunpack.c.h.b16 %v4880
    %v5378 = vunpack.c.l.b16 %v4881
    %v5379 = vunpack.c.h.b16 %v4881
    %v5380 = vunpack.c.l.b16 %v4882
    %v5381 = vunpack.c.h.b16 %v4882
    %v5382 = vunpack.c.l.b16 %v4883
    %v5383 = vunpack.c.h.b16 %v4883
    %v5384 = vunpack.c.l.b16 %v4884
    %v5385 = vunpack.c.h.b16 %v4884
    %v5386 = vunpack.c.l.b16 %v4885
    %v5387 = vunpack.c.h.b16 %v4885
    %v5388 = vunpack.c.l.b16 %v4886
    %v5389 = vunpack.c.h.b16 %v4886
    %v5390 = vunpack.c.l.b16 %v4887
    %v5391 = vunpack.c.h.b16 %v4887
    %v5392 = vunpack.c.l.b16 %v4888
    %v5393 = vunpack.c.h.b16 %v4888
    %v5394 = vunpack.c.l.b16 %v4889
    %v5395 = vunpack.c.h.b16 %v4889
    %v5396 = vunpack.c.l.b16 %v4890
    %v5397 = vunpack.c.h.b16 %v4890
    %v5398 = vunpack.c.l.b16 %v4891
    %v5399 = vunpack.c.h.b16 %v4891
    %v5400 = vunpack.c.l.b16 %v4892
    %v5401 = vunpack.c.h.b16 %v4892
    %v5402 = vunpack.c.l.b16 %v4893
    %v5403 = vunpack.c.h.b16 %v4893
    %v5404 = vunpack.c.l.b16 %v4894
    %v5405 = vunpack.c.h.b16 %v4894
    %v5406 = vunpack.c.l.b16 %v4895
    %v5407 = vunpack.c.h.b16 %v4895
    %v5408 = vunpack.c.l.b16 %v4896
    %v5409 = vunpack.c.h.b16 %v4896
    %v5410 = vunpack.c.l.b16 %v4897
    %v5411 = vunpack.c.h.b16 %v4897
    %v5412 = vunpack.c.l.b16 %v4898
    %v5413 = vunpack.c.h.b16 %v4898
    %v5414 = vunpack.c.l.b16 %v4899
    %v5415 = vunpack.c.h.b16 %v4899
    %v5416 = vunpack.c.l.b16 %v4900
    %v5417 = vunpack.c.h.b16 %v4900
    %v5418 = vunpack.c.l.b16 %v4901
    %v5419 = vunpack.c.h.b16 %v4901
    %v5420 = vunpack.c.l.b16 %v4902
    %v5421 = vunpack.c.h.b16 %v4902
    %v5422 = vunpack.c.l.b16 %v4903
    %v5423 = vunpack.c.h.b16 %v4903
    %v5424 = vunpack.c.l.b16 %v4904
    %v5425 = vunpack.c.h.b16 %v4904
    %v5426 = vunpack.c.l.b16 %v4905
    %v5427 = vunpack.c.h.b16 %v4905
    %v5428 = vunpack.c.l.b16 %v4906
    %v5429 = vunpack.c.h.b16 %v4906
    %v5430 = vunpack.c.l.b16 %v4907
    %v5431 = vunpack.c.h.b16 %v4907
    %v5432 = vunpack.c.l.b16 %v4908
    %v5433 = vunpack.c.h.b16 %v4908
    %v5434 = vunpack.c.l.b16 %v4909
    %v5435 = vunpack.c.h.b16 %v4909
    %v5436 = vunpack.c.l.b16 %v4910
    %v5437 = vunpack.c.h.b16 %v4910
    %v5438 = vunpack.c.l.b16 %v4911
    %v5439 = vunpack.c.h.b16 %v4911
    %v5440 = vunpack.c.l.b16 %v4912
    %v5441 = vunpack.c.h.b16 %v4912
    %v5442 = vunpack.c.l.b16 %v4913
    %v5443 = vunpack.c.h.b16 %v4913
    %v5444 = vunpack.c.l.b16 %v4914
    %v5445 = vunpack.c.h.b16 %v4914
    %v5446 = vunpack.c.l.b16 %v4915
    %v5447 = vunpack.c.h.b16 %v4915
    %v5448 = vunpack.c.l.b16 %v4916
    %v5449 = vunpack.c.h.b16 %v4916
    %v5450 = vunpack.c.l.b16 %v4917
    %v5451 = vunpack.c.h.b16 %v4917
    %v5452 = vunpack.c.l.b16 %v4918
    %v5453 = vunpack.c.h.b16 %v4918
    %v5454 = vunpack.c.l.b16 %v4919
    %v5455 = vunpack.c.h.b16 %v4919
    %v5456 = vunpack.c.l.b16 %v4920
    %v5457 = vunpack.c.h.b16 %v4920
    %v5458 = vunpack.c.l.b16 %v4921
    %v5459 = vunpack.c.h.b16 %v4921
    %v5460 = vunpack.c.l.b16 %v4922
    %v5461 = vunpack.c.h.b16 %v4922
    %v5462 = vunpack.c.l.b16 %v4923
    %v5463 = vunpack.c.h.b16 %v4923
    %v5464 = vunpack.c.l.b16 %v4924
    %v5465 = vunpack.c.h.b16 %v4924
    %v5466 = vunpack.c.l.b16 %v4925
    %v5467 = vunpack.c.h.b16 %v4925
    %v5468 = vunpack.c.l.b16 %v4926
    %v5469 = vunpack.c.h.b16 %v4926
    %v5470 = vunpack.c.l.b16 %v4927
    %v5471 = vunpack.c.h.b16 %v4927
    %v5472 = vunpack.c.l.b16 %v4928
    %v5473 = vunpack.c.h.b16 %v4928
    %v5474 = vunpack.c.l.b16 %v4929
    %v5475 = vunpack.c.h.b16 %v4929
    %v5476 = vunpack.c.l.b16 %v4930
    %v5477 = vunpack.c.h.b16 %v4930
    %v5478 = vunpack.c.l.b16 %v4931
    %v5479 = vunpack.c.h.b16 %v4931
    %v5480 = vunpack.c.l.b16 %v4932
    %v5481 = vunpack.c.h.b16 %v4932
    %v5482 = vunpack.c.l.b16 %v4933
    %v5483 = vunpack.c.h.b16 %v4933
    %v5484 = vunpack.c.l.b16 %v4934
    %v5485 = vunpack.c.h.b16 %v4934
    %v5486 = vunpack.c.l.b16 %v4935
    %v5487 = vunpack.c.h.b16 %v4935
    %v5488 = vunpack.c.l.b16 %v4936
    %v5489 = vunpack.c.h.b16 %v4936
    %v5490 = vunpack.c.l.b16 %v4937
    %v5491 = vunpack.c.h.b16 %v4937
    %v5492 = vunpack.c.l.b16 %v4938
    %v5493 = vunpack.c.h.b16 %v4938
    %v5494 = vunpack.c.l.b16 %v4939
    %v5495 = vunpack.c.h.b16 %v4939
    %v5496 = vunpack.c.l.b16 %v4940
    %v5497 = vunpack.c.h.b16 %v4940
    %v5498 = vunpack.c.l.b16 %v4941
    %v5499 = vunpack.c.h.b16 %v4941
    %v5500 = vunpack.c.l.b16 %v4942
    %v5501 = vunpack.c.h.b16 %v4942
    %v5502 = vunpack.c.l.b16 %v4943
    %v5503 = vunpack.c.h.b16 %v4943
    %v5504 = vunpack.c.l.b16 %v4944
    %v5505 = vunpack.c.h.b16 %v4944
    %v5506 = vunpack.c.l.b16 %v4945
    %v5507 = vunpack.c.h.b16 %v4945
    %v5508 = vunpack.c.l.b16 %v4946
    %v5509 = vunpack.c.h.b16 %v4946
    %v5510 = vunpack.c.l.b16 %v4947
    %v5511 = vunpack.c.h.b16 %v4947
    %v5512 = vunpack.c.l.b16 %v4948
    %v5513 = vunpack.c.h.b16 %v4948
    %v5514 = vunpack.c.l.b16 %v4949
    %v5515 = vunpack.c.h.b16 %v4949
    %v5516 = vunpack.c.l.b16 %v4950
    %v5517 = vunpack.c.h.b16 %v4950
    %v5518 = vunpack.c.l.b16 %v4951
    %v5519 = vunpack.c.h.b16 %v4951
    %v5520 = vunpack.c.l.b16 %v4952
    %v5521 = vunpack.c.h.b16 %v4952
    %v5522 = vunpack.c.l.b16 %v4953
    %v5523 = vunpack.c.h.b16 %v4953
    %v5524 = vunpack.c.l.b16 %v4954
    %v5525 = vunpack.c.h.b16 %v4954
    %v5526 = vunpack.c.l.b16 %v4955
    %v5527 = vunpack.c.h.b16 %v4955
    %v5528 = vunpack.c.l.b16 %v4956
    %v5529 = vunpack.c.h.b16 %v4956
    %v5530 = vunpack.c.l.b16 %v4957
    %v5531 = vunpack.c.h.b16 %v4957
    %v5532 = vunpack.c.l.b16 %v4958
    %v5533 = vunpack.c.h.b16 %v4958
    %v5534 = vunpack.c.l.b16 %v4959
    %v5535 = vunpack.c.h.b16 %v4959
    %v5536 = vunpack.c.l.b16 %v4960
    %v5537 = vunpack.c.h.b16 %v4960
    %v5538 = vunpack.c.l.b16 %v4961
    %v5539 = vunpack.c.h.b16 %v4961
    %v5540 = vunpack.c.l.b16 %v4962
    %v5541 = vunpack.c.h.b16 %v4962
    %v5542 = vunpack.c.l.b16 %v4963
    %v5543 = vunpack.c.h.b16 %v4963
    %v5544 = vunpack.c.l.b16 %v4964
    %v5545 = vunpack.c.h.b16 %v4964
    %v5546 = vunpack.c.l.b16 %v4965
    %v5547 = vunpack.c.h.b16 %v4965
    %v5548 = vunpack.c.l.b16 %v4966
    %v5549 = vunpack.c.h.b16 %v4966
    %v5550 = vunpack.c.l.b16 %v4967
    %v5551 = vunpack.c.h.b16 %v4967
    %v5552 = vunpack.c.l.b16 %v4968
    %v5553 = vunpack.c.h.b16 %v4968
    %v5554 = vunpack.c.l.b16 %v4969
    %v5555 = vunpack.c.h.b16 %v4969
    %v5556 = vunpack.c.l.b16 %v4970
    %v5557 = vunpack.c.h.b16 %v4970
    %v5558 = vunpack.c.l.b16 %v4971
    %v5559 = vunpack.c.h.b16 %v4971
    %v5560 = vunpack.c.l.b16 %v4972
    %v5561 = vunpack.c.h.b16 %v4972
    %v5562 = vunpack.c.l.b16 %v4973
    %v5563 = vunpack.c.h.b16 %v4973
    %v5564 = vunpack.c.l.b16 %v4974
    %v5565 = vunpack.c.h.b16 %v4974
    %v5566 = vunpack.c.l.b16 %v4975
    %v5567 = vunpack.c.h.b16 %v4975
    %v5568 = vunpack.c.l.b16 %v4976
    %v5569 = vunpack.c.h.b16 %v4976
    %v5570 = vunpack.c.l.b16 %v4977
    %v5571 = vunpack.c.h.b16 %v4977
    %v5572 = vunpack.c.l.b16 %v4978
    %v5573 = vunpack.c.h.b16 %v4978
    %v5574 = vunpack.c.l.b16 %v4979
    %v5575 = vunpack.c.h.b16 %v4979
    %v5576 = vunpack.c.l.b16 %v4980
    %v5577 = vunpack.c.h.b16 %v4980
    %v5578 = vunpack.c.l.b16 %v4981
    %v5579 = vunpack.c.h.b16 %v4981
    %v5580 = vunpack.c.l.b16 %v4982
    %v5581 = vunpack.c.h.b16 %v4982
    %v5582 = vunpack.c.l.b16 %v4983
    %v5583 = vunpack.c.h.b16 %v4983
    %v5584 = vunpack.c.l.b16 %v4984
    %v5585 = vunpack.c.h.b16 %v4984
    %v5586 = vunpack.c.l.b16 %v4985
    %v5587 = vunpack.c.h.b16 %v4985
    %v5588 = vunpack.c.l.b16 %v4986
    %v5589 = vunpack.c.h.b16 %v4986
    %v5590 = vunpack.c.l.b16 %v4987
    %v5591 = vunpack.c.h.b16 %v4987
    %v5592 = vunpack.c.l.b16 %v4988
    %v5593 = vunpack.c.h.b16 %v4988
    %v5594 = vunpack.c.l.b16 %v4989
    %v5595 = vunpack.c.h.b16 %v4989
    %v5596 = vunpack.c.l.b16 %v4990
    %v5597 = vunpack.c.h.b16 %v4990
    %v5598 = vunpack.c.l.b16 %v4991
    %v5599 = vunpack.c.h.b16 %v4991
    %v5600 = vunpack.c.l.b16 %v4992
    %v5601 = vunpack.c.h.b16 %v4992
    %v5602 = vunpack.c.l.b16 %v4993
    %v5603 = vunpack.c.h.b16 %v4993
    %v5604 = vunpack.c.l.b16 %v4994
    %v5605 = vunpack.c.h.b16 %v4994
    %v5606 = vunpack.c.l.b16 %v4995
    %v5607 = vunpack.c.h.b16 %v4995
    %v5608 = vunpack.c.l.b16 %v4996
    %v5609 = vunpack.c.h.b16 %v4996
    %v5610 = vunpack.c.l.b16 %v4997
    %v5611 = vunpack.c.h.b16 %v4997
    %v5612 = vunpack.c.l.b16 %v4998
    %v5613 = vunpack.c.h.b16 %v4998
    %v5614 = vunpack.c.l.b16 %v4999
    %v5615 = vunpack.c.h.b16 %v4999
    %v5616 = vunpack.c.l.b16 %v5000
    %v5617 = vunpack.c.h.b16 %v5000
    %v5618 = vunpack.c.l.b16 %v5001
    %v5619 = vunpack.c.h.b16 %v5001
    %v5620 = vunpack.c.l.b16 %v5002
    %v5621 = vunpack.c.h.b16 %v5002
    %v5622 = vunpack.c.l.b16 %v5003
    %v5623 = vunpack.c.h.b16 %v5003
    %v5624 = vunpack.c.l.b16 %v5004
    %v5625 = vunpack.c.h.b16 %v5004
    %v5626 = vunpack.c.l.b16 %v5005
    %v5627 = vunpack.c.h.b16 %v5005
    %v5628 = vunpack.c.l.b16 %v5006
    %v5629 = vunpack.c.h.b16 %v5006
    %v5630 = vunpack.c.l.b16 %v5007
    %v5631 = vunpack.c.h.b16 %v5007
    %v5632 = vunpack.c.l.b16 %v5008
    %v5633 = vunpack.c.h.b16 %v5008
    %v5634 = vunpack.c.l.b16 %v5009
    %v5635 = vunpack.c.h.b16 %v5009
    %v5636 = vunpack.c.l.b16 %v5010
    %v5637 = vunpack.c.h.b16 %v5010
    %v5638 = vunpack.c.l.b16 %v5011
    %v5639 = vunpack.c.h.b16 %v5011
    %v5640 = vunpack.c.l.b16 %v5012
    %v5641 = vunpack.c.h.b16 %v5012
    %v5642 = vunpack.c.l.b16 %v5013
    %v5643 = vunpack.c.h.b16 %v5013
    %v5644 = vunpack.c.l.b16 %v5014
    %v5645 = vunpack.c.h.b16 %v5014
    %v5646 = vunpack.c.l.b16 %v5015
    %v5647 = vunpack.c.h.b16 %v5015
    %v5648 = vunpack.c.l.b16 %v5016
    %v5649 = vunpack.c.h.b16 %v5016
    %v5650 = vunpack.c.l.b16 %v5017
    %v5651 = vunpack.c.h.b16 %v5017
    %v5652 = vunpack.c.l.b16 %v5018
    %v5653 = vunpack.c.h.b16 %v5018
    %v5654 = vunpack.c.l.b16 %v5019
    %v5655 = vunpack.c.h.b16 %v5019
    %v5656 = vunpack.c.l.b16 %v5020
    %v5657 = vunpack.c.h.b16 %v5020
    %v5658 = vunpack.c.l.b16 %v5021
    %v5659 = vunpack.c.h.b16 %v5021
    %v5660 = vunpack.c.l.b16 %v5022
    %v5661 = vunpack.c.h.b16 %v5022
    %v5662 = vunpack.c.l.b16 %v5023
    %v5663 = vunpack.c.h.b16 %v5023
    %v5664 = vunpack.c.l.b16 %v5024
    %v5665 = vunpack.c.h.b16 %v5024
    %v5666 = vunpack.c.l.b16 %v5025
    %v5667 = vunpack.c.h.b16 %v5025
    %v5668 = vunpack.c.l.b16 %v5026
    %v5669 = vunpack.c.h.b16 %v5026
    %v5670 = vunpack.c.l.b16 %v5027
    %v5671 = vunpack.c.h.b16 %v5027
    %v5672 = vunpack.c.l.b16 %v5028
    %v5673 = vunpack.c.h.b16 %v5028
    %v5674 = vunpack.c.l.b16 %v5029
    %v5675 = vunpack.c.h.b16 %v5029
    %v5676 = vunpack.c.l.b16 %v5030
    %v5677 = vunpack.c.h.b16 %v5030
    %v5678 = vunpack.c.l.b16 %v5031
    %v5679 = vunpack.c.h.b16 %v5031
    %v5680 = vunpack.c.l.b16 %v5032
    %v5681 = vunpack.c.h.b16 %v5032
    %v5682 = vunpack.c.l.b16 %v5033
    %v5683 = vunpack.c.h.b16 %v5033
    %v5684 = vunpack.c.l.b16 %v5034
    %v5685 = vunpack.c.h.b16 %v5034
    %v5686 = vunpack.c.l.b16 %v5035
    %v5687 = vunpack.c.h.b16 %v5035
    %v5688 = vunpack.c.l.b16 %v5036
    %v5689 = vunpack.c.h.b16 %v5036
    %v5690 = vunpack.c.l.b16 %v5037
    %v5691 = vunpack.c.h.b16 %v5037
    %v5692 = vunpack.c.l.b16 %v5038
    %v5693 = vunpack.c.h.b16 %v5038
    %v5694 = vunpack.c.l.b16 %v5039
    %v5695 = vunpack.c.h.b16 %v5039
    %v5696 = vunpack.c.l.b16 %v5040
    %v5697 = vunpack.c.h.b16 %v5040
    %v5698 = vunpack.c.l.b16 %v5041
    %v5699 = vunpack.c.h.b16 %v5041
    %v5700 = vunpack.c.l.b16 %v5042
    %v5701 = vunpack.c.h.b16 %v5042
    %v5702 = vunpack.c.l.b16 %v5043
    %v5703 = vunpack.c.h.b16 %v5043
    %v5704 = vunpack.c.l.b16 %v5044
    %v5705 = vunpack.c.h.b16 %v5044
    %v5706 = vunpack.c.l.b16 %v5045
    %v5707 = vunpack.c.h.b16 %v5045
    %v5708 = vunpack.c.l.b16 %v5046
    %v5709 = vunpack.c.h.b16 %v5046
    %v5710 = vunpack.c.l.b16 %v5047
    %v5711 = vunpack.c.h.b16 %v5047
    %v5712 = vunpack.c.l.b16 %v5048
    %v5713 = vunpack.c.h.b16 %v5048
    %v5714 = vunpack.c.l.b16 %v5049
    %v5715 = vunpack.c.h.b16 %v5049
    %v5716 = vunpack.c.l.b16 %v5050
    %v5717 = vunpack.c.h.b16 %v5050
    %v5718 = vunpack.c.l.b16 %v5051
    %v5719 = vunpack.c.h.b16 %v5051
    %v5720 = vunpack.c.l.b16 %v5052
    %v5721 = vunpack.c.h.b16 %v5052
    %v5722 = vunpack.c.l.b16 %v5053
    %v5723 = vunpack.c.h.b16 %v5053
    %v5724 = vunpack.c.l.b16 %v5054
    %v5725 = vunpack.c.h.b16 %v5054
    %v5726 = vunpack.c.l.b16 %v5055
    %v5727 = vunpack.c.h.b16 %v5055
    %v5728 = vunpack.c.l.b16 %v5056
    %v5729 = vunpack.c.h.b16 %v5056
    %v5730 = vunpack.c.l.b16 %v5057
    %v5731 = vunpack.c.h.b16 %v5057
    %v5732 = vunpack.c.l.b16 %v5058
    %v5733 = vunpack.c.h.b16 %v5058
    %v5734 = vunpack.c.l.b16 %v5059
    %v5735 = vunpack.c.h.b16 %v5059
    %v5736 = vunpack.c.l.b16 %v5060
    %v5737 = vunpack.c.h.b16 %v5060
    %v5738 = vunpack.c.l.b16 %v5061
    %v5739 = vunpack.c.h.b16 %v5061
    %v5740 = vunpack.c.l.b16 %v5062
    %v5741 = vunpack.c.h.b16 %v5062
    %v5742 = vunpack.c.l.b16 %v5063
    %v5743 = vunpack.c.h.b16 %v5063
    %v5744 = vunpack.c.l.b16 %v5064
    %v5745 = vunpack.c.h.b16 %v5064
    %v5746 = vunpack.c.l.b16 %v5065
    %v5747 = vunpack.c.h.b16 %v5065
    %v5748 = vpack.c.b16 %v5304, %v5300
    %v5749 = vpack.c.b16 %v5305, %v5301
    %v5750 = vpack.c.b16 %v5306, %v5302
    %v5751 = vpack.c.b16 %v5307, %v5303
    %v5752 = vpack.c.b16 %v5312, %v5308
    %v5753 = vpack.c.b16 %v5313, %v5309
    %v5754 = vpack.c.b16 %v5314, %v5310
    %v5755 = vpack.c.b16 %v5315, %v5311
    %v5756 = vpack.c.b16 %v5320, %v5316
    %v5757 = vpack.c.b16 %v5321, %v5317
    %v5758 = vpack.c.b16 %v5322, %v5318
    %v5759 = vpack.c.b16 %v5323, %v5319
    %v5760 = vpack.c.b16 %v5328, %v5324
    %v5761 = vpack.c.b16 %v5329, %v5325
    %v5762 = vpack.c.b16 %v5330, %v5326
    %v5763 = vpack.c.b16 %v5331, %v5327
    %v5764 = vpack.c.b16 %v5336, %v5332
    %v5765 = vpack.c.b16 %v5337, %v5333
    %v5766 = vpack.c.b16 %v5338, %v5334
    %v5767 = vpack.c.b16 %v5339, %v5335
    %v5768 = vpack.c.b16 %v5344, %v5340
    %v5769 = vpack.c.b16 %v5345, %v5341
    %v5770 = vpack.c.b16 %v5346, %v5342
    %v5771 = vpack.c.b16 %v5347, %v5343
    %v5772 = vpack.c.b16 %v5352, %v5348
    %v5773 = vpack.c.b16 %v5353, %v5349
    %v5774 = vpack.c.b16 %v5354, %v5350
    %v5775 = vpack.c.b16 %v5355, %v5351
    %v5776 = vpack.c.b16 %v5360, %v5356
    %v5777 = vpack.c.b16 %v5361, %v5357
    %v5778 = vpack.c.b16 %v5362, %v5358
    %v5779 = vpack.c.b16 %v5363, %v5359
    %v5780 = vpack.c.b16 %v5368, %v5364
    %v5781 = vpack.c.b16 %v5369, %v5365
    %v5782 = vpack.c.b16 %v5370, %v5366
    %v5783 = vpack.c.b16 %v5371, %v5367
    %v5784 = vpack.c.b16 %v5376, %v5372
    %v5785 = vpack.c.b16 %v5377, %v5373
    %v5786 = vpack.c.b16 %v5378, %v5374
    %v5787 = vpack.c.b16 %v5379, %v5375
    %v5788 = vpack.c.b16 %v5384, %v5380
    %v5789 = vpack.c.b16 %v5385, %v5381
    %v5790 = vpack.c.b16 %v5386, %v5382
    %v5791 = vpack.c.b16 %v5387, %v5383
    %v5792 = vpack.c.b16 %v5392, %v5388
    %v5793 = vpack.c.b16 %v5393, %v5389
    %v5794 = vpack.c.b16 %v5394, %v5390
    %v5795 = vpack.c.b16 %v5395, %v5391
    %v5796 = vpack.c.b16 %v5400, %v5396
    %v5797 = vpack.c.b16 %v5401, %v5397
    %v5798 = vpack.c.b16 %v5402, %v5398
    %v5799 = vpack.c.b16 %v5403, %v5399
    %v5800 = vpack.c.b16 %v5408, %v5404
    %v5801 = vpack.c.b16 %v5409, %v5405
    %v5802 = vpack.c.b16 %v5410, %v5406
    %v5803 = vpack.c.b16 %v5411, %v5407
    %v5804 = vpack.c.b16 %v5416, %v5412
    %v5805 = vpack.c.b16 %v5417, %v5413
    %v5806 = vpack.c.b16 %v5418, %v5414
    %v5807 = vpack.c.b16 %v5419, %v5415
    %v5808 = vpack.c.b16 %v5424, %v5420
    %v5809 = vpack.c.b16 %v5425, %v5421
    %v5810 = vpack.c.b16 %v5426, %v5422
    %v5811 = vpack.c.b16 %v5427, %v5423
    %v5812 = vpack.c.b16 %v5432, %v5428
    %v5813 = vpack.c.b16 %v5433, %v5429
    %v5814 = vpack.c.b16 %v5434, %v5430
    %v5815 = vpack.c.b16 %v5435, %v5431
    %v5816 = vpack.c.b16 %v5440, %v5436
    %v5817 = vpack.c.b16 %v5441, %v5437
    %v5818 = vpack.c.b16 %v5442, %v5438
    %v5819 = vpack.c.b16 %v5443, %v5439
    %v5820 = vpack.c.b16 %v5448, %v5444
    %v5821 = vpack.c.b16 %v5449, %v5445
    %v5822 = vpack.c.b16 %v5450, %v5446
    %v5823 = vpack.c.b16 %v5451, %v5447
    %v5824 = vpack.c.b16 %v5456, %v5452
    %v5825 = vpack.c.b16 %v5457, %v5453
    %v5826 = vpack.c.b16 %v5458, %v5454
    %v5827 = vpack.c.b16 %v5459, %v5455
    %v5828 = vpack.c.b16 %v5464, %v5460
    %v5829 = vpack.c.b16 %v5465, %v5461
    %v5830 = vpack.c.b16 %v5466, %v5462
    %v5831 = vpack.c.b16 %v5467, %v5463
    %v5832 = vpack.c.b16 %v5472, %v5468
    %v5833 = vpack.c.b16 %v5473, %v5469
    %v5834 = vpack.c.b16 %v5474, %v5470
    %v5835 = vpack.c.b16 %v5475, %v5471
    %v5836 = vpack.c.b16 %v5480, %v5476
    %v5837 = vpack.c.b16 %v5481, %v5477
    %v5838 = vpack.c.b16 %v5482, %v5478
    %v5839 = vpack.c.b16 %v5483, %v5479
    %v5840 = vpack.c.b16 %v5488, %v5484
    %v5841 = vpack.c.b16 %v5489, %v5485
    %v5842 = vpack.c.b16 %v5490, %v5486
    %v5843 = vpack.c.b16 %v5491, %v5487
    %v5844 = vpack.c.b16 %v5496, %v5492
    %v5845 = vpack.c.b16 %v5497, %v5493
    %v5846 = vpack.c.b16 %v5498, %v5494
    %v5847 = vpack.c.b16 %v5499, %v5495
    %v5848 = vpack.c.b16 %v5504, %v5500
    %v5849 = vpack.c.b16 %v5505, %v5501
    %v5850 = vpack.c.b16 %v5506, %v5502
    %v5851 = vpack.c.b16 %v5507, %v5503
    %v5852 = vpack.c.b16 %v5512, %v5508
    %v5853 = vpack.c.b16 %v5513, %v5509
    %v5854 = vpack.c.b16 %v5514, %v5510
    %v5855 = vpack.c.b16 %v5515, %v5511
    %v5856 = vpack.c.b16 %v5520, %v5516
    %v5857 = vpack.c.b16 %v5521, %v5517
    %v5858 = vpack.c.b16 %v5522, %v5518
    %v5859 = vpack.c.b16 %v5523, %v5519
    %v5860 = vpack.c.b16 %v5528, %v5524
    %v5861 = vpack.c.b16 %v5529, %v5525
    %v5862 = vpack.c.b16 %v5530, %v5526
    %v5863 = vpack.c.b16 %v5531, %v5527
    %v5864 = vpack.c.b16 %v5536, %v5532
    %v5865 = vpack.c.b16 %v5537, %v5533
    %v5866 = vpack.c.b16 %v5538, %v5534
    %v5867 = vpack.c.b16 %v5539, %v5535
    %v5868 = vpack.c.b16 %v5544, %v5540
    %v5869 = vpack.c.b16 %v5545, %v5541
    %v5870 = vpack.c.b16 %v5546, %v5542
    %v5871 = vpack.c.b16 %v5547, %v5543
    %v5872 = vpack.c.b16 %v5552, %v5548
    %v5873 = vpack.c.b16 %v5553, %v5549
    %v5874 = vpack.c.b16 %v5554, %v5550
    %v5875 = vpack.c.b16 %v5555, %v5551
    %v5876 = vpack.c.b16 %v5560, %v5556
    %v5877 = vpack.c.b16 %v5561, %v5557
    %v5878 = vpack.c.b16 %v5562, %v5558
    %v5879 = vpack.c.b16 %v5563, %v5559
    %v5880 = vpack.c.b16 %v5568, %v5564
    %v5881 = vpack.c.b16 %v5569, %v5565
    %v5882 = vpack.c.b16 %v5570, %v5566
    %v5883 = vpack.c.b16 %v5571, %v5567
    %v5884 = vpack.c.b16 %v5576, %v5572
    %v5885 = vpack.c.b16 %v5577, %v5573
    %v5886 = vpack.c.b16 %v5578, %v5574
    %v5887 = vpack.c.b16 %v5579, %v5575
    %v5888 = vpack.c.b16 %v5584, %v5580
    %v5889 = vpack.c.b16 %v5585, %v5581
    %v5890 = vpack.c.b16 %v5586, %v5582
    %v5891 = vpack.c.b16 %v5587, %v5583
    %v5892 = vpack.c.b16 %v5592, %v5588
    %v5893 = vpack.c.b16 %v5593, %v5589
    %v5894 = vpack.c.b16 %v5594, %v5590
    %v5895 = vpack.c.b16 %v5595, %v5591
    %v5896 = vpack.c.b16 %v5600, %v5596
    %v5897 = vpack.c.b16 %v5601, %v5597
    %v5898 = vpack.c.b16 %v5602, %v5598
    %v5899 = vpack.c.b16 %v5603, %v5599
    %v5900 = vpack.c.b16 %v5608, %v5604
    %v5901 = vpack.c.b16 %v5609, %v5605
    %v5902 = vpack.c.b16 %v5610, %v5606
    %v5903 = vpack.c.b16 %v5611, %v5607
    %v5904 = vpack.c.b16 %v5616, %v5612
    %v5905 = vpack.c.b16 %v5617, %v5613
    %v5906 = vpack.c.b16 %v5618, %v5614
    %v5907 = vpack.c.b16 %v5619, %v5615
    %v5908 = vpack.c.b16 %v5624, %v5620
    %v5909 = vpack.c.b16 %v5625, %v5621
    %v5910 = vpack.c.b16 %v5626, %v5622
    %v5911 = vpack.c.b16 %v5627, %v5623
    %v5912 = vpack.c.b16 %v5632, %v5628
    %v5913 = vpack.c.b16 %v5633, %v5629
    %v5914 = vpack.c.b16 %v5634, %v5630
    %v5915 = vpack.c.b16 %v5635, %v5631
    %v5916 = vpack.c.b16 %v5640, %v5636
    %v5917 = vpack.c.b16 %v5641, %v5637
    %v5918 = vpack.c.b16 %v5642, %v5638
    %v5919 = vpack.c.b16 %v5643, %v5639
    %v5920 = vpack.c.b16 %v5648, %v5644
    %v5921 = vpack.c.b16 %v5649, %v5645
    %v5922 = vpack.c.b16 %v5650, %v5646
    %v5923 = vpack.c.b16 %v5651, %v5647
    %v5924 = vpack.c.b16 %v5656, %v5652
    %v5925 = vpack.c.b16 %v5657, %v5653
    %v5926 = vpack.c.b16 %v5658, %v5654
    %v5927 = vpack.c.b16 %v5659, %v5655
    %v5928 = vpack.c.b16 %v5664, %v5660
    %v5929 = vpack.c.b16 %v5665, %v5661
    %v5930 = vpack.c.b16 %v5666, %v5662
    %v5931 = vpack.c.b16 %v5667, %v5663
    %v5932 = vpack.c.b16 %v5672, %v5668
    %v5933 = vpack.c.b16 %v5673, %v5669
    %v5934 = vpack.c.b16 %v5674, %v5670
    %v5935 = vpack.c.b16 %v5675, %v5671
    %v5936 = vpack.c.b16 %v5680, %v5676
    %v5937 = vpack.c.b16 %v5681, %v5677
    %v5938 = vpack.c.b16 %v5682, %v5678
    %v5939 = vpack.c.b16 %v5683, %v5679
    %v5940 = vpack.c.b16 %v5688, %v5684
    %v5941 = vpack.c.b16 %v5689, %v5685
    %v5942 = vpack.c.b16 %v5690, %v5686
    %v5943 = vpack.c.b16 %v5691, %v5687
    %v5944 = vpack.c.b16 %v5696, %v5692
    %v5945 = vpack.c.b16 %v5697, %v5693
    %v5946 = vpack.c.b16 %v5698, %v5694
    %v5947 = vpack.c.b16 %v5699, %v5695
    %v5948 = vpack.c.b16 %v5704, %v5700
    %v5949 = vpack.c.b16 %v5705, %v5701
    %v5950 = vpack.c.b16 %v5706, %v5702
    %v5951 = vpack.c.b16 %v5707, %v5703
    %v5952 = vpack.c.b16 %v5712, %v5708
    %v5953 = vpack.c.b16 %v5713, %v5709
    %v5954 = vpack.c.b16 %v5714, %v5710
    %v5955 = vpack.c.b16 %v5715, %v5711
    %v5956 = vpack.c.b16 %v5720, %v5716
    %v5957 = vpack.c.b16 %v5721, %v5717
    %v5958 = vpack.c.b16 %v5722, %v5718
    %v5959 = vpack.c.b16 %v5723, %v5719
    %v5960 = vpack.c.b16 %v5728, %v5724
    %v5961 = vpack.c.b16 %v5729, %v5725
    %v5962 = vpack.c.b16 %v5730, %v5726
    %v5963 = vpack.c.b16 %v5731, %v5727
    %v5964 = vpack.c.b16 %v5736, %v5732
    %v5965 = vpack.c.b16 %v5737, %v5733
    %v5966 = vpack.c.b16 %v5738, %v5734
    %v5967 = vpack.c.b16 %v5739, %v5735
    %v5968 = vpack.c.b16 %v5744, %v5740
    %v5969 = vpack.c.b16 %v5745, %v5741
    %v5970 = vpack.c.b16 %v5746, %v5742
    %v5971 = vpack.c.b16 %v5747, %v5743
    %6196 = vmatpush.bf16.msra.mxu0 %v5776
    %6197 = vmatpush.bf16.msra.mxu0 %v5772
    %6198 = vmatpush.bf16.msra.mxu0 %v5768
    %6199 = vmatpush.bf16.msra.mxu0 %v5764
    %6200 = vmatpush.bf16.msra.mxu0 %v5760
    %6201 = vmatpush.bf16.msra.mxu0 %v5756
    %6202 = vmatpush.bf16.msra.mxu0 %v5752
    %6203 = vmatpush.bf16.msra.mxu0 %v5748
    %6204 = vmatmul.bf16.gmra.mxu0 %v4835
    %v6205 = vpop.f32.mrf.mxu0
    %v6206 = vadd.f32 %v5068, %v6205
    %v6207 = vpop.f32.mrf.mxu0
    %v6208 = vadd.f32 %v5068, %v6207
    %6209 = vdwg.mxu0
    %6210 = vmatpush.bf16.msra.mxu0 %v5808
    %6211 = vmatpush.bf16.msra.mxu0 %v5804
    %6212 = vmatpush.bf16.msra.mxu0 %v5800
    %6213 = vmatpush.bf16.msra.mxu0 %v5796
    %6214 = vmatpush.bf16.msra.mxu0 %v5792
    %6215 = vmatpush.bf16.msra.mxu0 %v5788
    %6216 = vmatpush.bf16.msra.mxu0 %v5784
    %6217 = vmatpush.bf16.msra.mxu0 %v5780
    %6218 = vmatmul.bf16.gmra.mxu0 %v4836
    %v6219 = vpop.f32.mrf.mxu0
    %v6220 = vadd.f32 %v6206, %v6219
    %v6221 = vpop.f32.mrf.mxu0
    %v6222 = vadd.f32 %v6208, %v6221
    %6223 = vdwg.mxu0
    %6224 = vmatpush.bf16.msra.mxu0 %v5840
    %6225 = vmatpush.bf16.msra.mxu0 %v5836
    %6226 = vmatpush.bf16.msra.mxu0 %v5832
    %6227 = vmatpush.bf16.msra.mxu0 %v5828
    %6228 = vmatpush.bf16.msra.mxu0 %v5824
    %6229 = vmatpush.bf16.msra.mxu0 %v5820
    %6230 = vmatpush.bf16.msra.mxu0 %v5816
    %6231 = vmatpush.bf16.msra.mxu0 %v5812
    %6232 = vmatmul.bf16.gmra.mxu0 %v4837
    %v6233 = vpop.f32.mrf.mxu0
    %v6234 = vadd.f32 %v6220, %v6233
    %v6235 = vpop.f32.mrf.mxu0
    %v6236 = vadd.f32 %v6222, %v6235
    %6237 = vdwg.mxu0
    %6238 = vmatpush.bf16.msra.mxu0 %v5872
    %6239 = vmatpush.bf16.msra.mxu0 %v5868
    %6240 = vmatpush.bf16.msra.mxu0 %v5864
    %6241 = vmatpush.bf16.msra.mxu0 %v5860
    %6242 = vmatpush.bf16.msra.mxu0 %v5856
    %6243 = vmatpush.bf16.msra.mxu0 %v5852
    %6244 = vmatpush.bf16.msra.mxu0 %v5848
    %6245 = vmatpush.bf16.msra.mxu0 %v5844
    %6246 = vmatmul.bf16.gmra.mxu0 %v4838
    %v6247 = vpop.f32.mrf.mxu0
    %v6248 = vadd.f32 %v6234, %v6247
    %v6249 = vpop.f32.mrf.mxu0
    %v6250 = vadd.f32 %v6236, %v6249
    %6251 = vdwg.mxu0
    %6252 = vmatpush.bf16.msra.mxu0 %v5904
    %6253 = vmatpush.bf16.msra.mxu0 %v5900
    %6254 = vmatpush.bf16.msra.mxu0 %v5896
    %6255 = vmatpush.bf16.msra.mxu0 %v5892
    %6256 = vmatpush.bf16.msra.mxu0 %v5888
    %6257 = vmatpush.bf16.msra.mxu0 %v5884
    %6258 = vmatpush.bf16.msra.mxu0 %v5880
    %6259 = vmatpush.bf16.msra.mxu0 %v5876
    %6260 = vmatmul.bf16.gmra.mxu0 %v4839
    %v6261 = vpop.f32.mrf.mxu0
    %v6262 = vadd.f32 %v6248, %v6261
    %v6263 = vpop.f32.mrf.mxu0
    %v6264 = vadd.f32 %v6250, %v6263
    %6265 = vdwg.mxu0
    %6266 = vmatpush.bf16.msra.mxu0 %v5936
    %6267 = vmatpush.bf16.msra.mxu0 %v5932
    %6268 = vmatpush.bf16.msra.mxu0 %v5928
    %6269 = vmatpush.bf16.msra.mxu0 %v5924
    %6270 = vmatpush.bf16.msra.mxu0 %v5920
    %6271 = vmatpush.bf16.msra.mxu0 %v5916
    %6272 = vmatpush.bf16.msra.mxu0 %v5912
    %6273 = vmatpush.bf16.msra.mxu0 %v5908
    %6274 = vmatmul.bf16.gmra.mxu0 %v4840
    %v6275 = vpop.f32.mrf.mxu0
    %v6276 = vadd.f32 %v6262, %v6275
    %v6277 = vpop.f32.mrf.mxu0
    %v6278 = vadd.f32 %v6264, %v6277
    %6279 = vdwg.mxu0
    %6280 = vmatpush.bf16.msra.mxu0 %v5968
    %6281 = vmatpush.bf16.msra.mxu0 %v5964
    %6282 = vmatpush.bf16.msra.mxu0 %v5960
    %6283 = vmatpush.bf16.msra.mxu0 %v5956
    %6284 = vmatpush.bf16.msra.mxu0 %v5952
    %6285 = vmatpush.bf16.msra.mxu0 %v5948
    %6286 = vmatpush.bf16.msra.mxu0 %v5944
    %6287 = vmatpush.bf16.msra.mxu0 %v5940
    %6288 = vmatmul.bf16.gmra.mxu0 %v4841
    %v6289 = vpop.f32.mrf.mxu0
    %v6290 = vadd.f32 %v6276, %v6289
    %v6291 = vpop.f32.mrf.mxu0
    %v6292 = vadd.f32 %v6278, %v6291
    %6293 = vdwg.mxu0
    %6294 = vmatpush.bf16.msra.mxu0 %v5777
    %6295 = vmatpush.bf16.msra.mxu0 %v5773
    %6296 = vmatpush.bf16.msra.mxu0 %v5769
    %6297 = vmatpush.bf16.msra.mxu0 %v5765
    %6298 = vmatpush.bf16.msra.mxu0 %v5761
    %6299 = vmatpush.bf16.msra.mxu0 %v5757
    %6300 = vmatpush.bf16.msra.mxu0 %v5753
    %6301 = vmatpush.bf16.msra.mxu0 %v5749
    %6302 = vmatmul.bf16.gmra.mxu0 %v4835
    %v6303 = vpop.f32.mrf.mxu0
    %v6304 = vadd.f32 %v5069, %v6303
    %v6305 = vpop.f32.mrf.mxu0
    %v6306 = vadd.f32 %v5069, %v6305
    %6307 = vdwg.mxu0
    %6308 = vmatpush.bf16.msra.mxu0 %v5809
    %6309 = vmatpush.bf16.msra.mxu0 %v5805
    %6310 = vmatpush.bf16.msra.mxu0 %v5801
    %6311 = vmatpush.bf16.msra.mxu0 %v5797
    %6312 = vmatpush.bf16.msra.mxu0 %v5793
    %6313 = vmatpush.bf16.msra.mxu0 %v5789
    %6314 = vmatpush.bf16.msra.mxu0 %v5785
    %6315 = vmatpush.bf16.msra.mxu0 %v5781
    %6316 = vmatmul.bf16.gmra.mxu0 %v4836
    %v6317 = vpop.f32.mrf.mxu0
    %v6318 = vadd.f32 %v6304, %v6317
    %v6319 = vpop.f32.mrf.mxu0
    %v6320 = vadd.f32 %v6306, %v6319
    %6321 = vdwg.mxu0
    %6322 = vmatpush.bf16.msra.mxu0 %v5841
    %6323 = vmatpush.bf16.msra.mxu0 %v5837
    %6324 = vmatpush.bf16.msra.mxu0 %v5833
    %6325 = vmatpush.bf16.msra.mxu0 %v5829
    %6326 = vmatpush.bf16.msra.mxu0 %v5825
    %6327 = vmatpush.bf16.msra.mxu0 %v5821
    %6328 = vmatpush.bf16.msra.mxu0 %v5817
    %6329 = vmatpush.bf16.msra.mxu0 %v5813
    %6330 = vmatmul.bf16.gmra.mxu0 %v4837
    %v6331 = vpop.f32.mrf.mxu0
    %v6332 = vadd.f32 %v6318, %v6331
    %v6333 = vpop.f32.mrf.mxu0
    %v6334 = vadd.f32 %v6320, %v6333
    %6335 = vdwg.mxu0
    %6336 = vmatpush.bf16.msra.mxu0 %v5873
    %6337 = vmatpush.bf16.msra.mxu0 %v5869
    %6338 = vmatpush.bf16.msra.mxu0 %v5865
    %6339 = vmatpush.bf16.msra.mxu0 %v5861
    %6340 = vmatpush.bf16.msra.mxu0 %v5857
    %6341 = vmatpush.bf16.msra.mxu0 %v5853
    %6342 = vmatpush.bf16.msra.mxu0 %v5849
    %6343 = vmatpush.bf16.msra.mxu0 %v5845
    %6344 = vmatmul.bf16.gmra.mxu0 %v4838
    %v6345 = vpop.f32.mrf.mxu0
    %v6346 = vadd.f32 %v6332, %v6345
    %v6347 = vpop.f32.mrf.mxu0
    %v6348 = vadd.f32 %v6334, %v6347
    %6349 = vdwg.mxu0
    %6350 = vmatpush.bf16.msra.mxu0 %v5905
    %6351 = vmatpush.bf16.msra.mxu0 %v5901
    %6352 = vmatpush.bf16.msra.mxu0 %v5897
    %6353 = vmatpush.bf16.msra.mxu0 %v5893
    %6354 = vmatpush.bf16.msra.mxu0 %v5889
    %6355 = vmatpush.bf16.msra.mxu0 %v5885
    %6356 = vmatpush.bf16.msra.mxu0 %v5881
    %6357 = vmatpush.bf16.msra.mxu0 %v5877
    %6358 = vmatmul.bf16.gmra.mxu0 %v4839
    %v6359 = vpop.f32.mrf.mxu0
    %v6360 = vadd.f32 %v6346, %v6359
    %v6361 = vpop.f32.mrf.mxu0
    %v6362 = vadd.f32 %v6348, %v6361
    %6363 = vdwg.mxu0
    %6364 = vmatpush.bf16.msra.mxu0 %v5937
    %6365 = vmatpush.bf16.msra.mxu0 %v5933
    %6366 = vmatpush.bf16.msra.mxu0 %v5929
    %6367 = vmatpush.bf16.msra.mxu0 %v5925
    %6368 = vmatpush.bf16.msra.mxu0 %v5921
    %6369 = vmatpush.bf16.msra.mxu0 %v5917
    %6370 = vmatpush.bf16.msra.mxu0 %v5913
    %6371 = vmatpush.bf16.msra.mxu0 %v5909
    %6372 = vmatmul.bf16.gmra.mxu0 %v4840
    %v6373 = vpop.f32.mrf.mxu0
    %v6374 = vadd.f32 %v6360, %v6373
    %v6375 = vpop.f32.mrf.mxu0
    %v6376 = vadd.f32 %v6362, %v6375
    %6377 = vdwg.mxu0
    %6378 = vmatpush.bf16.msra.mxu0 %v5969
    %6379 = vmatpush.bf16.msra.mxu0 %v5965
    %6380 = vmatpush.bf16.msra.mxu0 %v5961
    %6381 = vmatpush.bf16.msra.mxu0 %v5957
    %6382 = vmatpush.bf16.msra.mxu0 %v5953
    %6383 = vmatpush.bf16.msra.mxu0 %v5949
    %6384 = vmatpush.bf16.msra.mxu0 %v5945
    %6385 = vmatpush.bf16.msra.mxu0 %v5941
    %6386 = vmatmul.bf16.gmra.mxu0 %v4841
    %v6387 = vpop.f32.mrf.mxu0
    %v6388 = vadd.f32 %v6374, %v6387
    %v6389 = vpop.f32.mrf.mxu0
    %v6390 = vadd.f32 %v6376, %v6389
    %6391 = vdwg.mxu0
    %6392 = vmatpush.bf16.msra.mxu0 %v5778
    %6393 = vmatpush.bf16.msra.mxu0 %v5774
    %6394 = vmatpush.bf16.msra.mxu0 %v5770
    %6395 = vmatpush.bf16.msra.mxu0 %v5766
    %6396 = vmatpush.bf16.msra.mxu0 %v5762
    %6397 = vmatpush.bf16.msra.mxu0 %v5758
    %6398 = vmatpush.bf16.msra.mxu0 %v5754
    %6399 = vmatpush.bf16.msra.mxu0 %v5750
    %6400 = vmatmul.bf16.gmra.mxu0 %v4835
    %v6401 = vpop.f32.mrf.mxu0
    %v6402 = vadd.f32 %v5070, %v6401
    %v6403 = vpop.f32.mrf.mxu0
    %v6404 = vadd.f32 %v5070, %v6403
    %6405 = vdwg.mxu0
    %6406 = vmatpush.bf16.msra.mxu0 %v5810
    %6407 = vmatpush.bf16.msra.mxu0 %v5806
    %6408 = vmatpush.bf16.msra.mxu0 %v5802
    %6409 = vmatpush.bf16.msra.mxu0 %v5798
    %6410 = vmatpush.bf16.msra.mxu0 %v5794
    %6411 = vmatpush.bf16.msra.mxu0 %v5790
    %6412 = vmatpush.bf16.msra.mxu0 %v5786
    %6413 = vmatpush.bf16.msra.mxu0 %v5782
    %6414 = vmatmul.bf16.gmra.mxu0 %v4836
    %v6415 = vpop.f32.mrf.mxu0
    %v6416 = vadd.f32 %v6402, %v6415
    %v6417 = vpop.f32.mrf.mxu0
    %v6418 = vadd.f32 %v6404, %v6417
    %6419 = vdwg.mxu0
    %6420 = vmatpush.bf16.msra.mxu0 %v5842
    %6421 = vmatpush.bf16.msra.mxu0 %v5838
    %6422 = vmatpush.bf16.msra.mxu0 %v5834
    %6423 = vmatpush.bf16.msra.mxu0 %v5830
    %6424 = vmatpush.bf16.msra.mxu0 %v5826
    %6425 = vmatpush.bf16.msra.mxu0 %v5822
    %6426 = vmatpush.bf16.msra.mxu0 %v5818
    %6427 = vmatpush.bf16.msra.mxu0 %v5814
    %6428 = vmatmul.bf16.gmra.mxu0 %v4837
    %v6429 = vpop.f32.mrf.mxu0
    %v6430 = vadd.f32 %v6416, %v6429
    %v6431 = vpop.f32.mrf.mxu0
    %v6432 = vadd.f32 %v6418, %v6431
    %6433 = vdwg.mxu0
    %6434 = vmatpush.bf16.msra.mxu0 %v5874
    %6435 = vmatpush.bf16.msra.mxu0 %v5870
    %6436 = vmatpush.bf16.msra.mxu0 %v5866
    %6437 = vmatpush.bf16.msra.mxu0 %v5862
    %6438 = vmatpush.bf16.msra.mxu0 %v5858
    %6439 = vmatpush.bf16.msra.mxu0 %v5854
    %6440 = vmatpush.bf16.msra.mxu0 %v5850
    %6441 = vmatpush.bf16.msra.mxu0 %v5846
    %6442 = vmatmul.bf16.gmra.mxu0 %v4838
    %v6443 = vpop.f32.mrf.mxu0
    %v6444 = vadd.f32 %v6430, %v6443
    %v6445 = vpop.f32.mrf.mxu0
    %v6446 = vadd.f32 %v6432, %v6445
    %6447 = vdwg.mxu0
    %6448 = vmatpush.bf16.msra.mxu0 %v5906
    %6449 = vmatpush.bf16.msra.mxu0 %v5902
    %6450 = vmatpush.bf16.msra.mxu0 %v5898
    %6451 = vmatpush.bf16.msra.mxu0 %v5894
    %6452 = vmatpush.bf16.msra.mxu0 %v5890
    %6453 = vmatpush.bf16.msra.mxu0 %v5886
    %6454 = vmatpush.bf16.msra.mxu0 %v5882
    %6455 = vmatpush.bf16.msra.mxu0 %v5878
    %6456 = vmatmul.bf16.gmra.mxu0 %v4839
    %v6457 = vpop.f32.mrf.mxu0
    %v6458 = vadd.f32 %v6444, %v6457
    %v6459 = vpop.f32.mrf.mxu0
    %v6460 = vadd.f32 %v6446, %v6459
    %6461 = vdwg.mxu0
    %6462 = vmatpush.bf16.msra.mxu0 %v5938
    %6463 = vmatpush.bf16.msra.mxu0 %v5934
    %6464 = vmatpush.bf16.msra.mxu0 %v5930
    %6465 = vmatpush.bf16.msra.mxu0 %v5926
    %6466 = vmatpush.bf16.msra.mxu0 %v5922
    %6467 = vmatpush.bf16.msra.mxu0 %v5918
    %6468 = vmatpush.bf16.msra.mxu0 %v5914
    %6469 = vmatpush.bf16.msra.mxu0 %v5910
    %6470 = vmatmul.bf16.gmra.mxu0 %v4840
    %v6471 = vpop.f32.mrf.mxu0
    %v6472 = vadd.f32 %v6458, %v6471
    %v6473 = vpop.f32.mrf.mxu0
    %v6474 = vadd.f32 %v6460, %v6473
    %6475 = vdwg.mxu0
    %6476 = vmatpush.bf16.msra.mxu0 %v5970
    %6477 = vmatpush.bf16.msra.mxu0 %v5966
    %6478 = vmatpush.bf16.msra.mxu0 %v5962
    %6479 = vmatpush.bf16.msra.mxu0 %v5958
    %6480 = vmatpush.bf16.msra.mxu0 %v5954
    %6481 = vmatpush.bf16.msra.mxu0 %v5950
    %6482 = vmatpush.bf16.msra.mxu0 %v5946
    %6483 = vmatpush.bf16.msra.mxu0 %v5942
    %6484 = vmatmul.bf16.gmra.mxu0 %v4841
    %v6485 = vpop.f32.mrf.mxu0
    %v6486 = vadd.f32 %v6472, %v6485
    %v6487 = vpop.f32.mrf.mxu0
    %v6488 = vadd.f32 %v6474, %v6487
    %6489 = vdwg.mxu0
    %6490 = vmatpush.bf16.msra.mxu0 %v5779
    %6491 = vmatpush.bf16.msra.mxu0 %v5775
    %6492 = vmatpush.bf16.msra.mxu0 %v5771
    %6493 = vmatpush.bf16.msra.mxu0 %v5767
    %6494 = vmatpush.bf16.msra.mxu0 %v5763
    %6495 = vmatpush.bf16.msra.mxu0 %v5759
    %6496 = vmatpush.bf16.msra.mxu0 %v5755
    %6497 = vmatpush.bf16.msra.mxu0 %v5751
    %6498 = vmatmul.bf16.gmra.mxu0 %v4835
    %v6499 = vpop.f32.mrf.mxu0
    %v6500 = vadd.f32 %v5071, %v6499
    %v6501 = vpop.f32.mrf.mxu0
    %v6502 = vadd.f32 %v5071, %v6501
    %6503 = vdwg.mxu0
    %6504 = vmatpush.bf16.msra.mxu0 %v5811
    %6505 = vmatpush.bf16.msra.mxu0 %v5807
    %6506 = vmatpush.bf16.msra.mxu0 %v5803
    %6507 = vmatpush.bf16.msra.mxu0 %v5799
    %6508 = vmatpush.bf16.msra.mxu0 %v5795
    %6509 = vmatpush.bf16.msra.mxu0 %v5791
    %6510 = vmatpush.bf16.msra.mxu0 %v5787
    %6511 = vmatpush.bf16.msra.mxu0 %v5783
    %6512 = vmatmul.bf16.gmra.mxu0 %v4836
    %v6513 = vpop.f32.mrf.mxu0
    %v6514 = vadd.f32 %v6500, %v6513
    %v6515 = vpop.f32.mrf.mxu0
    %v6516 = vadd.f32 %v6502, %v6515
    %6517 = vdwg.mxu0
    %6518 = vmatpush.bf16.msra.mxu0 %v5843
    %6519 = vmatpush.bf16.msra.mxu0 %v5839
    %6520 = vmatpush.bf16.msra.mxu0 %v5835
    %6521 = vmatpush.bf16.msra.mxu0 %v5831
    %6522 = vmatpush.bf16.msra.mxu0 %v5827
    %6523 = vmatpush.bf16.msra.mxu0 %v5823
    %6524 = vmatpush.bf16.msra.mxu0 %v5819
    %6525 = vmatpush.bf16.msra.mxu0 %v5815
    %6526 = vmatmul.bf16.gmra.mxu0 %v4837
    %v6527 = vpop.f32.mrf.mxu0
    %v6528 = vadd.f32 %v6514, %v6527
    %v6529 = vpop.f32.mrf.mxu0
    %v6530 = vadd.f32 %v6516, %v6529
    %6531 = vdwg.mxu0
    %6532 = vmatpush.bf16.msra.mxu0 %v5875
    %6533 = vmatpush.bf16.msra.mxu0 %v5871
    %6534 = vmatpush.bf16.msra.mxu0 %v5867
    %6535 = vmatpush.bf16.msra.mxu0 %v5863
    %6536 = vmatpush.bf16.msra.mxu0 %v5859
    %6537 = vmatpush.bf16.msra.mxu0 %v5855
    %6538 = vmatpush.bf16.msra.mxu0 %v5851
    %6539 = vmatpush.bf16.msra.mxu0 %v5847
    %6540 = vmatmul.bf16.gmra.mxu0 %v4838
    %v6541 = vpop.f32.mrf.mxu0
    %v6542 = vadd.f32 %v6528, %v6541
    %v6543 = vpop.f32.mrf.mxu0
    %v6544 = vadd.f32 %v6530, %v6543
    %6545 = vdwg.mxu0
    %6546 = vmatpush.bf16.msra.mxu0 %v5907
    %6547 = vmatpush.bf16.msra.mxu0 %v5903
    %6548 = vmatpush.bf16.msra.mxu0 %v5899
    %6549 = vmatpush.bf16.msra.mxu0 %v5895
    %6550 = vmatpush.bf16.msra.mxu0 %v5891
    %6551 = vmatpush.bf16.msra.mxu0 %v5887
    %6552 = vmatpush.bf16.msra.mxu0 %v5883
    %6553 = vmatpush.bf16.msra.mxu0 %v5879
    %6554 = vmatmul.bf16.gmra.mxu0 %v4839
    %v6555 = vpop.f32.mrf.mxu0
    %v6556 = vadd.f32 %v6542, %v6555
    %v6557 = vpop.f32.mrf.mxu0
    %v6558 = vadd.f32 %v6544, %v6557
    %6559 = vdwg.mxu0
    %6560 = vmatpush.bf16.msra.mxu0 %v5939
    %6561 = vmatpush.bf16.msra.mxu0 %v5935
    %6562 = vmatpush.bf16.msra.mxu0 %v5931
    %6563 = vmatpush.bf16.msra.mxu0 %v5927
    %6564 = vmatpush.bf16.msra.mxu0 %v5923
    %6565 = vmatpush.bf16.msra.mxu0 %v5919
    %6566 = vmatpush.bf16.msra.mxu0 %v5915
    %6567 = vmatpush.bf16.msra.mxu0 %v5911
    %6568 = vmatmul.bf16.gmra.mxu0 %v4840
    %v6569 = vpop.f32.mrf.mxu0
    %v6570 = vadd.f32 %v6556, %v6569
    %v6571 = vpop.f32.mrf.mxu0
    %v6572 = vadd.f32 %v6558, %v6571
    %6573 = vdwg.mxu0
    %6574 = vmatpush.bf16.msra.mxu0 %v5971
    %6575 = vmatpush.bf16.msra.mxu0 %v5967
    %6576 = vmatpush.bf16.msra.mxu0 %v5963
    %6577 = vmatpush.bf16.msra.mxu0 %v5959
    %6578 = vmatpush.bf16.msra.mxu0 %v5955
    %6579 = vmatpush.bf16.msra.mxu0 %v5951
    %6580 = vmatpush.bf16.msra.mxu0 %v5947
    %6581 = vmatpush.bf16.msra.mxu0 %v5943
    %6582 = vmatmul.bf16.gmra.mxu0 %v4841
    %v6583 = vpop.f32.mrf.mxu0
    %v6584 = vadd.f32 %v6570, %v6583
    %v6585 = vpop.f32.mrf.mxu0
    %v6586 = vadd.f32 %v6572, %v6585
    %6587 = vdwg.mxu0
    %v6588 = vmax.f32 %v6290, 0.0
    %v6589 = vmax.f32 %v6388, 0.0
    %v6590 = vmax.f32 %v6486, 0.0
    %v6591 = vmax.f32 %v6584, 0.0
    %v6592 = vmax.f32 %v6292, 0.0
    %v6593 = vmax.f32 %v6390, 0.0
    %v6594 = vmax.f32 %v6488, 0.0
    %v6595 = vmax.f32 %v6586, 0.0
    %v6596 = vpack.c.bf16 %v6592, %v6588
    %v6597 = vpack.c.bf16 %v6593, %v6589
    %v6598 = vpack.c.bf16 %v6594, %v6590
    %v6599 = vpack.c.bf16 %v6595, %v6591
    %v6600 = vld [vmem:[#allocation14] sm:$0xf]
    %v6601 = vld [vmem:[#allocation14 + $0x4] sm:$0xf]
    %v6602 = vld [vmem:[#allocation14 + $0x8] sm:$0xf]
    %v6603 = vld [vmem:[#allocation14 + $0xc] sm:$0xf]
    %v6604 = vld [vmem:[#allocation14 + $0x10] sm:$0xf]
    %v6605 = vld [vmem:[#allocation14 + $0x14] sm:$0xf]
    %v6606 = vld [vmem:[#allocation14 + $0x18] sm:$0xf]
    %v6607 = vld [vmem:[#allocation14 + $0x1c] sm:$0xf]
    %v6608 = vld [vmem:[#allocation14 + $0x20] sm:$0xf]
    %v6609 = vld [vmem:[#allocation14 + $0x24] sm:$0xf]
    %v6610 = vld [vmem:[#allocation14 + $0x28] sm:$0xf]
    %v6611 = vld [vmem:[#allocation14 + $0x2c] sm:$0xf]
    %v6612 = vld [vmem:[#allocation14 + $0x30] sm:$0xf]
    %v6613 = vld [vmem:[#allocation14 + $0x34] sm:$0xf]
    %v6614 = vld [vmem:[#allocation14 + $0x38] sm:$0xf]
    %v6615 = vld [vmem:[#allocation14 + $0x3c] sm:$0xf]
    %v6616 = vld [vmem:[#allocation14 + $0x40] sm:$0xf]
    %v6617 = vld [vmem:[#allocation14 + $0x44] sm:$0xf]
    %v6618 = vld [vmem:[#allocation14 + $0x48] sm:$0xf]
    %v6619 = vld [vmem:[#allocation14 + $0x4c] sm:$0xf]
    %v6620 = vld [vmem:[#allocation14 + $0x50] sm:$0xf]
    %v6621 = vld [vmem:[#allocation14 + $0x54] sm:$0xf]
    %v6622 = vld [vmem:[#allocation14 + $0x58] sm:$0xf]
    %v6623 = vld [vmem:[#allocation14 + $0x5c] sm:$0xf]
    %v6624 = vld [vmem:[#allocation14 + $0x60] sm:$0xf]
    %v6625 = vld [vmem:[#allocation14 + $0x64] sm:$0xf]
    %v6626 = vld [vmem:[#allocation14 + $0x68] sm:$0xf]
    %v6627 = vld [vmem:[#allocation14 + $0x6c] sm:$0xf]
    %v6628 = vld [vmem:[#allocation14 + $0x70] sm:$0xf]
    %v6629 = vld [vmem:[#allocation14 + $0x74] sm:$0xf]
    %v6630 = vld [vmem:[#allocation14 + $0x78] sm:$0xf]
    %v6631 = vld [vmem:[#allocation14 + $0x7c] sm:$0xf]
    %v6632 = vld [vmem:[#allocation14 + $0x80] sm:$0xf]
    %v6633 = vld [vmem:[#allocation14 + $0x84] sm:$0xf]
    %v6634 = vld [vmem:[#allocation14 + $0x88] sm:$0xf]
    %v6635 = vld [vmem:[#allocation14 + $0x8c] sm:$0xf]
    %v6636 = vld [vmem:[#allocation14 + $0x90] sm:$0xf]
    %v6637 = vld [vmem:[#allocation14 + $0x94] sm:$0xf]
    %v6638 = vld [vmem:[#allocation14 + $0x98] sm:$0xf]
    %v6639 = vld [vmem:[#allocation14 + $0x9c] sm:$0xf]
    %v6640 = vld [vmem:[#allocation14 + $0xa0] sm:$0xf]
    %v6641 = vld [vmem:[#allocation14 + $0xa4] sm:$0xf]
    %v6642 = vld [vmem:[#allocation14 + $0xa8] sm:$0xf]
    %v6643 = vld [vmem:[#allocation14 + $0xac] sm:$0xf]
    %v6644 = vld [vmem:[#allocation14 + $0xb0] sm:$0xf]
    %v6645 = vld [vmem:[#allocation14 + $0xb4] sm:$0xf]
    %v6646 = vld [vmem:[#allocation14 + $0xb8] sm:$0xf]
    %v6647 = vld [vmem:[#allocation14 + $0xbc] sm:$0xf]
    %v6648 = vld [vmem:[#allocation14 + $0xc0] sm:$0xf]
    %v6649 = vld [vmem:[#allocation14 + $0xc4] sm:$0xf]
    %v6650 = vld [vmem:[#allocation14 + $0xc8] sm:$0xf]
    %v6651 = vld [vmem:[#allocation14 + $0xcc] sm:$0xf]
    %v6652 = vld [vmem:[#allocation14 + $0xd0] sm:$0xf]
    %v6653 = vld [vmem:[#allocation14 + $0xd4] sm:$0xf]
    %v6654 = vld [vmem:[#allocation14 + $0xd8] sm:$0xf]
    %v6655 = vld [vmem:[#allocation14 + $0xdc] sm:$0xf]
    %v6656 = vld [vmem:[#allocation14 + $0xe0] sm:$0xf]
    %v6657 = vld [vmem:[#allocation14 + $0xe4] sm:$0xf]
    %v6658 = vld [vmem:[#allocation14 + $0xe8] sm:$0xf]
    %v6659 = vld [vmem:[#allocation14 + $0xec] sm:$0xf]
    %v6660 = vld [vmem:[#allocation14 + $0xf0] sm:$0xf]
    %v6661 = vld [vmem:[#allocation14 + $0xf4] sm:$0xf]
    %v6662 = vld [vmem:[#allocation14 + $0xf8] sm:$0xf]
    %v6663 = vld [vmem:[#allocation14 + $0xfc] sm:$0xf]
    %v6664 = vld [vmem:[#allocation16] sm:$0x1]
    %v6666 = vperm.slane %v6664, 0
    %v6732 = vunpack.c.l.b16 %v6600
    %v6733 = vunpack.c.l.b16 %v6601
    %v6734 = vunpack.c.l.b16 %v6602
    %v6735 = vunpack.c.l.b16 %v6603
    %v6736 = vunpack.c.l.b16 %v6604
    %v6737 = vunpack.c.l.b16 %v6605
    %v6738 = vunpack.c.l.b16 %v6606
    %v6739 = vunpack.c.l.b16 %v6607
    %v6740 = vunpack.c.l.b16 %v6608
    %v6741 = vunpack.c.l.b16 %v6609
    %v6742 = vunpack.c.l.b16 %v6610
    %v6743 = vunpack.c.l.b16 %v6611
    %v6744 = vunpack.c.l.b16 %v6612
    %v6745 = vunpack.c.l.b16 %v6613
    %v6746 = vunpack.c.l.b16 %v6614
    %v6747 = vunpack.c.l.b16 %v6615
    %v6748 = vunpack.c.l.b16 %v6616
    %v6749 = vunpack.c.l.b16 %v6617
    %v6750 = vunpack.c.l.b16 %v6618
    %v6751 = vunpack.c.l.b16 %v6619
    %v6752 = vunpack.c.l.b16 %v6620
    %v6753 = vunpack.c.l.b16 %v6621
    %v6754 = vunpack.c.l.b16 %v6622
    %v6755 = vunpack.c.l.b16 %v6623
    %v6756 = vunpack.c.l.b16 %v6624
    %v6757 = vunpack.c.l.b16 %v6625
    %v6758 = vunpack.c.l.b16 %v6626
    %v6759 = vunpack.c.l.b16 %v6627
    %v6760 = vunpack.c.l.b16 %v6628
    %v6761 = vunpack.c.l.b16 %v6629
    %v6762 = vunpack.c.l.b16 %v6630
    %v6763 = vunpack.c.l.b16 %v6631
    %v6764 = vunpack.c.l.b16 %v6632
    %v6765 = vunpack.c.l.b16 %v6633
    %v6766 = vunpack.c.l.b16 %v6634
    %v6767 = vunpack.c.l.b16 %v6635
    %v6768 = vunpack.c.l.b16 %v6636
    %v6769 = vunpack.c.l.b16 %v6637
    %v6770 = vunpack.c.l.b16 %v6638
    %v6771 = vunpack.c.l.b16 %v6639
    %v6772 = vunpack.c.l.b16 %v6640
    %v6773 = vunpack.c.l.b16 %v6641
    %v6774 = vunpack.c.l.b16 %v6642
    %v6775 = vunpack.c.l.b16 %v6643
    %v6776 = vunpack.c.l.b16 %v6644
    %v6777 = vunpack.c.l.b16 %v6645
    %v6778 = vunpack.c.l.b16 %v6646
    %v6779 = vunpack.c.l.b16 %v6647
    %v6780 = vunpack.c.l.b16 %v6648
    %v6781 = vunpack.c.l.b16 %v6649
    %v6782 = vunpack.c.l.b16 %v6650
    %v6783 = vunpack.c.l.b16 %v6651
    %v6784 = vunpack.c.l.b16 %v6652
    %v6785 = vunpack.c.l.b16 %v6653
    %v6786 = vunpack.c.l.b16 %v6654
    %v6787 = vunpack.c.l.b16 %v6655
    %v6788 = vunpack.c.l.b16 %v6656
    %v6789 = vunpack.c.l.b16 %v6657
    %v6790 = vunpack.c.l.b16 %v6658
    %v6791 = vunpack.c.l.b16 %v6659
    %v6792 = vunpack.c.l.b16 %v6660
    %v6793 = vunpack.c.l.b16 %v6661
    %v6794 = vunpack.c.l.b16 %v6662
    %v6795 = vunpack.c.l.b16 %v6663
    %v6796 = vpack.c.b16 %v6733, %v6732
    %v6797 = vpack.c.b16 %v6735, %v6734
    %v6798 = vpack.c.b16 %v6737, %v6736
    %v6799 = vpack.c.b16 %v6739, %v6738
    %v6800 = vpack.c.b16 %v6741, %v6740
    %v6801 = vpack.c.b16 %v6743, %v6742
    %v6802 = vpack.c.b16 %v6745, %v6744
    %v6803 = vpack.c.b16 %v6747, %v6746
    %v6804 = vpack.c.b16 %v6749, %v6748
    %v6805 = vpack.c.b16 %v6751, %v6750
    %v6806 = vpack.c.b16 %v6753, %v6752
    %v6807 = vpack.c.b16 %v6755, %v6754
    %v6808 = vpack.c.b16 %v6757, %v6756
    %v6809 = vpack.c.b16 %v6759, %v6758
    %v6810 = vpack.c.b16 %v6761, %v6760
    %v6811 = vpack.c.b16 %v6763, %v6762
    %v6812 = vpack.c.b16 %v6765, %v6764
    %v6813 = vpack.c.b16 %v6767, %v6766
    %v6814 = vpack.c.b16 %v6769, %v6768
    %v6815 = vpack.c.b16 %v6771, %v6770
    %v6816 = vpack.c.b16 %v6773, %v6772
    %v6817 = vpack.c.b16 %v6775, %v6774
    %v6818 = vpack.c.b16 %v6777, %v6776
    %v6819 = vpack.c.b16 %v6779, %v6778
    %v6820 = vpack.c.b16 %v6781, %v6780
    %v6821 = vpack.c.b16 %v6783, %v6782
    %v6822 = vpack.c.b16 %v6785, %v6784
    %v6823 = vpack.c.b16 %v6787, %v6786
    %v6824 = vpack.c.b16 %v6789, %v6788
    %v6825 = vpack.c.b16 %v6791, %v6790
    %v6826 = vpack.c.b16 %v6793, %v6792
    %v6827 = vpack.c.b16 %v6795, %v6794
    %6860 = vmatpush.bf16.msra.mxu0 %v6803
    %6861 = vmatpush.bf16.msra.mxu0 %v6802
    %6862 = vmatpush.bf16.msra.mxu0 %v6801
    %6863 = vmatpush.bf16.msra.mxu0 %v6800
    %6864 = vmatpush.bf16.msra.mxu0 %v6799
    %6865 = vmatpush.bf16.msra.mxu0 %v6798
    %6866 = vmatpush.bf16.msra.mxu0 %v6797
    %6867 = vmatpush.bf16.msra.mxu0 %v6796
    %6868 = vmatmul.bf16.gmra.mxu0 %v6596
    %v6869 = vpop.f32.mrf.mxu0
    %v6870 = vadd.f32 %v6666, %v6869
    %v6871 = vpop.f32.mrf.mxu0
    %v6872 = vadd.f32 %v6666, %v6871
    %6873 = vdwg.mxu0
    %6874 = vmatpush.bf16.msra.mxu0 %v6811
    %6875 = vmatpush.bf16.msra.mxu0 %v6810
    %6876 = vmatpush.bf16.msra.mxu0 %v6809
    %6877 = vmatpush.bf16.msra.mxu0 %v6808
    %6878 = vmatpush.bf16.msra.mxu0 %v6807
    %6879 = vmatpush.bf16.msra.mxu0 %v6806
    %6880 = vmatpush.bf16.msra.mxu0 %v6805
    %6881 = vmatpush.bf16.msra.mxu0 %v6804
    %6882 = vmatmul.bf16.gmra.mxu0 %v6597
    %v6883 = vpop.f32.mrf.mxu0
    %v6884 = vadd.f32 %v6870, %v6883
    %v6885 = vpop.f32.mrf.mxu0
    %v6886 = vadd.f32 %v6872, %v6885
    %6887 = vdwg.mxu0
    %6888 = vmatpush.bf16.msra.mxu0 %v6819
    %6889 = vmatpush.bf16.msra.mxu0 %v6818
    %6890 = vmatpush.bf16.msra.mxu0 %v6817
    %6891 = vmatpush.bf16.msra.mxu0 %v6816
    %6892 = vmatpush.bf16.msra.mxu0 %v6815
    %6893 = vmatpush.bf16.msra.mxu0 %v6814
    %6894 = vmatpush.bf16.msra.mxu0 %v6813
    %6895 = vmatpush.bf16.msra.mxu0 %v6812
    %6896 = vmatmul.bf16.gmra.mxu0 %v6598
    %v6897 = vpop.f32.mrf.mxu0
    %v6898 = vadd.f32 %v6884, %v6897
    %v6899 = vpop.f32.mrf.mxu0
    %v6900 = vadd.f32 %v6886, %v6899
    %6901 = vdwg.mxu0
    %6902 = vmatpush.bf16.msra.mxu0 %v6827
    %6903 = vmatpush.bf16.msra.mxu0 %v6826
    %6904 = vmatpush.bf16.msra.mxu0 %v6825
    %6905 = vmatpush.bf16.msra.mxu0 %v6824
    %6906 = vmatpush.bf16.msra.mxu0 %v6823
    %6907 = vmatpush.bf16.msra.mxu0 %v6822
    %6908 = vmatpush.bf16.msra.mxu0 %v6821
    %6909 = vmatpush.bf16.msra.mxu0 %v6820
    %6910 = vmatmul.bf16.gmra.mxu0 %v6599
    %v6911 = vpop.f32.mrf.mxu0
    %v6912 = vadd.f32 %v6898, %v6911
    %v6913 = vpop.f32.mrf.mxu0
    %v6914 = vadd.f32 %v6900, %v6913
    %6915 = vdwg.mxu0
    %v6916 = vmax.f32 %v6912, 0.0
    %v6917 = vmax.f32 %v6914, 0.0
    %v6918 = vpack.c.bf16 %v6916, %v6916
    %v6919 = vpack.c.bf16 %v6917, %v6917
    %6920 = vst [vmem:[#allocation17] sm:$0xf] %v6918
    %6921 = vst [vmem:[#allocation17 + $0x4] sm:$0xf] %v6919
    // Predicated region
    $region74: #{tpu_custom_call.1} parent=1 // pred_check
      _
    $region75: #{tpu_custom_call.1} parent=1 // pred_check_branch
      %6923 = sbr.rel (0) target = $region77
    $region76: #{tpu_custom_call.1} parent=1 // pred_region
      %6925 = vsyncadd [#allocation4], 0
      %s6926 = sshll.u32 [#allocation17], 4
      %s6927 = int_to_ptr.vmem [resolvable:$true] %s6926
      %s6928 = sshll.u32 %s9, 4
      %s6929 = int_to_ptr.hbm [resolvable:$true] %s6928
      %6934 = dma.vmem_to_hbm [thread:$0]  %s6927, 128, %s6929, [#allocation4], 64, 64, 4
    $region77: #{tpu_custom_call.1} parent=1 // pred_fallthru
      _
    // Predicated region
    $region78: #{tpu_custom_call.1} parent=1 // pred_check
      _
    $region79: #{tpu_custom_call.1} parent=1 // pred_check_branch
      %6936 = sbr.rel (0) target = $region81
    $region80: #{tpu_custom_call.1} parent=1 // pred_region
      %6938 = dma.done [#allocation4], 128
    $region81: #{tpu_custom_call.1} parent=1 // pred_fallthru
      _
    %6939 = vsyncpa [#allocation3], 1
    %6940 = vsyncpa [#allocation6], 1
    %6941 = vsyncpa [#allocation9], 1
    %6942 = vsyncpa [#allocation12], 1
    %6943 = vsyncpa [#allocation15], 1
    %6944 = vsyncpa [#allocation4], 1

// kernel: tpu_custom_call.1
$region0: #{tpu_custom_call.1}
  #allocation0 [shape = 'u32[]', space=smem, size = 0x4, offset = 0x4, fixed_abs, tag = 'smem constant byte address 0x4 - core index']
  #allocation1 [shape = 'u32[72,128]{1,0:T(1,128)}', space=vmem, size = 0x9000, scoped, tag = 'internal scratch']
  %s0 = inlined_call_operand.hbm [shape: f32[16,256], index: 0, kind: input, shape index: {}]
  %s1 = inlined_call_operand.hbm [shape: bf16[256,1024], index: 1, kind: input, shape index: {}]
  %s2 = inlined_call_operand.hbm [shape: f32[1,1024], index: 2, kind: input, shape index: {}]
  %s3 = inlined_call_operand.hbm [shape: bf16[1024,896], index: 3, kind: input, shape index: {}]
  %s4 = inlined_call_operand.hbm [shape: f32[1,896], index: 4, kind: input, shape index: {}]
  %s5 = inlined_call_operand.hbm [shape: bf16[896,512], index: 5, kind: input, shape index: {}]
  %s6 = inlined_call_operand.hbm [shape: f32[1,512], index: 6, kind: input, shape index: {}]
  %s7 = inlined_call_operand.hbm [shape: bf16[512,128], index: 7, kind: input, shape index: {}]
  %s8 = inlined_call_operand.hbm [shape: f32[1,128], index: 8, kind: input, shape index: {}]
  %s9 = inlined_call_operand.hbm [shape: bf16[16,128], index: 9, kind: output, shape index: {}]
  %s10 = sld [smem:[#allocation0]]
  $region82: #{tpu_custom_call.1} parent=0
    _
  %s12 = ssub.s32 1, %s10
  %s13 = scalar_select 0, %s12, %s10
  $region1: #{tpu_custom_call.1} parent=0
    #allocation2 [shape = 'u8[16384]{0}', space=vmem, size = 0x4000, scoped, tag = 'input window, operand 0, single buffered']
    #allocation3 [shape = 's32[1]{0}', space=sflag, size = 0x4, scoped, tag = 'scoped memory for tpu_custom_call.1']
    #allocation4 [shape = 's32[1]{0}', space=sflag, size = 0x4, scoped, tag = 'scoped memory for tpu_custom_call.1']
    #allocation5 [shape = 'u8[524288]{0}', space=vmem, size = 0x80000, scoped, tag = 'input window, operand 1, single buffered']
    #allocation6 [shape = 's32[1]{0}', space=sflag, size = 0x4, scoped, tag = 'scoped memory for tpu_custom_call.1']
    #allocation7 [shape = 'u8[4096]{0}', space=vmem, size = 0x1000, scoped, tag = 'input window, operand 2, single buffered']
    #allocation8 [shape = 'u8[1835008]{0}', space=vmem, size = 0x1c0000, scoped, tag = 'input window, operand 3, single buffered']
    #allocation9 [shape = 's32[1]{0}', space=sflag, size = 0x4, scoped, tag = 'scoped memory for tpu_custom_call.1']
    #allocation10 [shape = 'u8[3584]{0}', space=vmem, size = 0x1000, scoped, tag = 'input window, operand 4, single buffered']
    #allocation11 [shape = 'u8[917504]{0}', space=vmem, size = 0xe0000, scoped, tag = 'input window, operand 5, single buffered']
    #allocation12 [shape = 's32[1]{0}', space=sflag, size = 0x4, scoped, tag = 'scoped memory for tpu_custom_call.1']
    #allocation13 [shape = 'u8[2048]{0}', space=vmem, size = 0x800, scoped, tag = 'input window, operand 6, single buffered']
    #allocation14 [shape = 'u8[131072]{0}', space=vmem, size = 0x20000, scoped, tag = 'input window, operand 7, single buffered']
    #allocation15 [shape = 's32[1]{0}', space=sflag, size = 0x4, scoped, tag = 'scoped memory for tpu_custom_call.1']
    #allocation16 [shape = 'u8[512]{0}', space=vmem, size = 0x400, scoped, tag = 'input window, operand 8, single buffered']
    #allocation17 [shape = 'u8[4096]{0}', space=vmem, size = 0x1000, scoped, tag = 'output window, operand 0, single buffered']
    %14 = vsyncpa [#allocation3], 0
    %15 = vsyncpa [#allocation6], 0
    %16 = vsyncpa [#allocation9], 0
    %17 = vsyncpa [#allocation12], 0
    %18 = vsyncpa [#allocation15], 0
    %19 = vsyncpa [#allocation4], 0
    // Predicated region
    $region2: #{tpu_custom_call.1} parent=1 // pred_check
      _
    $region3: #{tpu_custom_call.1} parent=1 // pred_check_branch
      %21 = sbr.rel (0) target = $region5
    $region4: #{tpu_custom_call.1} parent=1 // pred_region
      %23 = vsyncadd [#allocation3], 0
      %s24 = sshll.u32 %s0, 4
      %s25 = int_to_ptr.hbm [resolvable:$true] %s24
      %s26 = sshll.u32 [#allocation2], 4
      %s27 = int_to_ptr.vmem [resolvable:$true] %s26
      %32 = dma.hbm_to_vmem [thread:$0]  %s25, 512, %s27, [#allocation3], 256, 256, 16
    $region5: #{tpu_custom_call.1} parent=1 // pred_fallthru
      _
    // Predicated region
    $region6: #{tpu_custom_call.1} parent=1 // pred_check
      _
    $region7: #{tpu_custom_call.1} parent=1 // pred_check_branch
      %34 = sbr.rel (0) target = $region9
    $region8: #{tpu_custom_call.1} parent=1 // pred_region
      %36 = vsyncadd [#allocation6], 0
      %s37 = sshll.u32 %s1, 4
      %s38 = int_to_ptr.hbm [resolvable:$true] %s37
      %s39 = sshll.u32 [#allocation5], 4
      %s40 = int_to_ptr.vmem [resolvable:$true] %s39
      %45 = dma.hbm_to_vmem [thread:$0]  %s38, 16384, %s40, [#allocation6], 512, 512, 32
    $region9: #{tpu_custom_call.1} parent=1 // pred_fallthru
      _
    // Predicated region
    $region10: #{tpu_custom_call.1} parent=1 // pred_check
      _
    $region11: #{tpu_custom_call.1} parent=1 // pred_check_branch
      %47 = sbr.rel (0) target = $region13
    $region12: #{tpu_custom_call.1} parent=1 // pred_region
      %49 = vsyncadd [#allocation6], 0
      %s51 = sshll.u32 %s2, 4
      %s52 = int_to_ptr.hbm [resolvable:$true] %s51
      %s53 = sshll.u32 [#allocation7], 4
      %s54 = int_to_ptr.vmem [resolvable:$true] %s53
      %56 = dma.hbm_to_vmem [thread:$0]  %s52, 128, %s54, [#allocation6]
    $region13: #{tpu_custom_call.1} parent=1 // pred_fallthru
      _
    // Predicated region
    $region14: #{tpu_custom_call.1} parent=1 // pred_check
      _
    $region15: #{tpu_custom_call.1} parent=1 // pred_check_branch
      %58 = sbr.rel (0) target = $region17
    $region16: #{tpu_custom_call.1} parent=1 // pred_region
      %60 = vsyncadd [#allocation9], 0
      %s61 = sshll.u32 %s3, 4
      %s62 = int_to_ptr.hbm [resolvable:$true] %s61
      %s63 = sshll.u32 [#allocation8], 4
      %s64 = int_to_ptr.vmem [resolvable:$true] %s63
      %69 = dma.hbm_to_vmem [thread:$0]  %s62, 57344, %s64, [#allocation9], 448, 448, 28
    $region17: #{tpu_custom_call.1} parent=1 // pred_fallthru
      _
    // Predicated region
    $region18: #{tpu_custom_call.1} parent=1 // pred_check
      _
    $region19: #{tpu_custom_call.1} parent=1 // pred_check_branch
      %71 = sbr.rel (0) target = $region21
    $region20: #{tpu_custom_call.1} parent=1 // pred_region
      %73 = vsyncadd [#allocation9], 0
      %s75 = sshll.u32 %s4, 4
      %s76 = int_to_ptr.hbm [resolvable:$true] %s75
      %s77 = sshll.u32 [#allocation10], 4
      %s78 = int_to_ptr.vmem [resolvable:$true] %s77
      %80 = dma.hbm_to_vmem [thread:$0]  %s76, 112, %s78, [#allocation9]
    $region21: #{tpu_custom_call.1} parent=1 // pred_fallthru
      _
    // Predicated region
    $region22: #{tpu_custom_call.1} parent=1 // pred_check
      _
    $region23: #{tpu_custom_call.1} parent=1 // pred_check_branch
      %82 = sbr.rel (0) target = $region25
    $region24: #{tpu_custom_call.1} parent=1 // pred_region
      %84 = vsyncadd [#allocation12], 0
      %s85 = sshll.u32 %s5, 4
      %s86 = int_to_ptr.hbm [resolvable:$true] %s85
      %s87 = sshll.u32 [#allocation11], 4
      %s88 = int_to_ptr.vmem [resolvable:$true] %s87
      %93 = dma.hbm_to_vmem [thread:$0]  %s86, 28672, %s88, [#allocation12], 256, 256, 16
    $region25: #{tpu_custom_call.1} parent=1 // pred_fallthru
      _
    // Predicated region
    $region26: #{tpu_custom_call.1} parent=1 // pred_check
      _
    $region27: #{tpu_custom_call.1} parent=1 // pred_check_branch
      %95 = sbr.rel (0) target = $region29
    $region28: #{tpu_custom_call.1} parent=1 // pred_region
      %97 = vsyncadd [#allocation12], 0
      %s99 = sshll.u32 %s6, 4
      %s100 = int_to_ptr.hbm [resolvable:$true] %s99
      %s101 = sshll.u32 [#allocation13], 4
      %s102 = int_to_ptr.vmem [resolvable:$true] %s101
      %104 = dma.hbm_to_vmem [thread:$0]  %s100, 64, %s102, [#allocation12]
    $region29: #{tpu_custom_call.1} parent=1 // pred_fallthru
      _
    // Predicated region
    $region30: #{tpu_custom_call.1} parent=1 // pred_check
      _
    $region31: #{tpu_custom_call.1} parent=1 // pred_check_branch
      %106 = sbr.rel (0) target = $region33
    $region32: #{tpu_custom_call.1} parent=1 // pred_region
      %108 = vsyncadd [#allocation15], 0
      %s109 = sshll.u32 %s7, 4
      %s110 = int_to_ptr.hbm [resolvable:$true] %s109
      %s111 = sshll.u32 [#allocation14], 4
      %s112 = int_to_ptr.vmem [resolvable:$true] %s111
      %117 = dma.hbm_to_vmem [thread:$0]  %s110, 4096, %s112, [#allocation15], 64, 64, 4
    $region33: #{tpu_custom_call.1} parent=1 // pred_fallthru
      _
    // Predicated region
    $region34: #{tpu_custom_call.1} parent=1 // pred_check
      _
    $region35: #{tpu_custom_call.1} parent=1 // pred_check_branch
      %119 = sbr.rel (0) target = $region37
    $region36: #{tpu_custom_call.1} parent=1 // pred_region
      %121 = vsyncadd [#allocation15], 0
      %s123 = sshll.u32 %s8, 4
      %s124 = int_to_ptr.hbm [resolvable:$true] %s123
      %s125 = sshll.u32 [#allocation16], 4
      %s126 = int_to_ptr.vmem [resolvable:$true] %s125
      %128 = dma.hbm_to_vmem [thread:$0]  %s124, 16, %s126, [#allocation15]
    $region37: #{tpu_custom_call.1} parent=1 // pred_fallthru
      _
    // Predicated region
    $region38: #{tpu_custom_call.1} parent=1 // pred_check
      _
    $region39: #{tpu_custom_call.1} parent=1 // pred_check_branch
      %130 = sbr.rel (0) target = $region41
    $region40: #{tpu_custom_call.1} parent=1 // pred_region
      %132 = dma.done [#allocation3], 512
    $region41: #{tpu_custom_call.1} parent=1 // pred_fallthru
      _
    // Predicated region
    $region42: #{tpu_custom_call.1} parent=1 // pred_check
      _
    $region43: #{tpu_custom_call.1} parent=1 // pred_check_branch
      %134 = sbr.rel (0) target = $region45
    $region44: #{tpu_custom_call.1} parent=1 // pred_region
      %136 = dma.done [#allocation6], 16384
    $region45: #{tpu_custom_call.1} parent=1 // pred_fallthru
      _
    // Predicated region
    $region46: #{tpu_custom_call.1} parent=1 // pred_check
      _
    $region47: #{tpu_custom_call.1} parent=1 // pred_check_branch
      %138 = sbr.rel (0) target = $region49
    $region48: #{tpu_custom_call.1} parent=1 // pred_region
      %140 = dma.done [#allocation6], 128
    $region49: #{tpu_custom_call.1} parent=1 // pred_fallthru
      _
    // Predicated region
    $region50: #{tpu_custom_call.1} parent=1 // pred_check
      _
    $region51: #{tpu_custom_call.1} parent=1 // pred_check_branch
      %142 = sbr.rel (0) target = $region53
    $region52: #{tpu_custom_call.1} parent=1 // pred_region
      %144 = dma.done [#allocation9], 57344
    $region53: #{tpu_custom_call.1} parent=1 // pred_fallthru
      _
    // Predicated region
    $region54: #{tpu_custom_call.1} parent=1 // pred_check
      _
    $region55: #{tpu_custom_call.1} parent=1 // pred_check_branch
      %146 = sbr.rel (0) target = $region57
    $region56: #{tpu_custom_call.1} parent=1 // pred_region
      %148 = dma.done [#allocation9], 112
    $region57: #{tpu_custom_call.1} parent=1 // pred_fallthru
      _
    // Predicated region
    $region58: #{tpu_custom_call.1} parent=1 // pred_check
      _
    $region59: #{tpu_custom_call.1} parent=1 // pred_check_branch
      %150 = sbr.rel (0) target = $region61
    $region60: #{tpu_custom_call.1} parent=1 // pred_region
      %152 = dma.done [#allocation12], 28672
    $region61: #{tpu_custom_call.1} parent=1 // pred_fallthru
      _
    // Predicated region
    $region62: #{tpu_custom_call.1} parent=1 // pred_check
      _
    $region63: #{tpu_custom_call.1} parent=1 // pred_check_branch
      %154 = sbr.rel (0) target = $region65
    $region64: #{tpu_custom_call.1} parent=1 // pred_region
      %156 = dma.done [#allocation12], 64
    $region65: #{tpu_custom_call.1} parent=1 // pred_fallthru
      _
    // Predicated region
    $region66: #{tpu_custom_call.1} parent=1 // pred_check
      _
    $region67: #{tpu_custom_call.1} parent=1 // pred_check_branch
      %158 = sbr.rel (0) target = $region69
    $region68: #{tpu_custom_call.1} parent=1 // pred_region
      %160 = dma.done [#allocation15], 4096
    $region69: #{tpu_custom_call.1} parent=1 // pred_fallthru
      _
    // Predicated region
    $region70: #{tpu_custom_call.1} parent=1 // pred_check
      _
    $region71: #{tpu_custom_call.1} parent=1 // pred_check_branch
      %162 = sbr.rel (0) target = $region73
    $region72: #{tpu_custom_call.1} parent=1 // pred_region
      %164 = dma.done [#allocation15], 16
    $region73: #{tpu_custom_call.1} parent=1 // pred_fallthru
      _
    %v165 = vld [vmem:[#allocation2] sm:$0xff]
    %v166 = vld [vmem:[#allocation2 + $0x8] sm:$0xff]
    %v167 = vld [vmem:[#allocation2 + $0x10] sm:$0xff]
    %v168 = vld [vmem:[#allocation2 + $0x18] sm:$0xff]
    %v169 = vpack.c.bf16 %v167, %v165
    %v170 = vpack.c.bf16 %v168, %v166
    %v171 = vld [vmem:[#allocation5] sm:$0xff]
    %v172 = vld [vmem:[#allocation5 + $0x8] sm:$0xff]
    %v173 = vld [vmem:[#allocation5 + $0x10] sm:$0xff]
    %v174 = vld [vmem:[#allocation5 + $0x18] sm:$0xff]
    %v175 = vld [vmem:[#allocation5 + $0x20] sm:$0xff]
    %v176 = vld [vmem:[#allocation5 + $0x28] sm:$0xff]
    %v177 = vld [vmem:[#allocation5 + $0x30] sm:$0xff]
    %v178 = vld [vmem:[#allocation5 + $0x38] sm:$0xff]
    %v179 = vld [vmem:[#allocation5 + $0x40] sm:$0xff]
    %v180 = vld [vmem:[#allocation5 + $0x48] sm:$0xff]
    %v181 = vld [vmem:[#allocation5 + $0x50] sm:$0xff]
    %v182 = vld [vmem:[#allocation5 + $0x58] sm:$0xff]
    %v183 = vld [vmem:[#allocation5 + $0x60] sm:$0xff]
    %v184 = vld [vmem:[#allocation5 + $0x68] sm:$0xff]
    %v185 = vld [vmem:[#allocation5 + $0x70] sm:$0xff]
    %v186 = vld [vmem:[#allocation5 + $0x78] sm:$0xff]
    %v187 = vld [vmem:[#allocation5 + $0x80] sm:$0xff]
    %v188 = vld [vmem:[#allocation5 + $0x88] sm:$0xff]
    %v189 = vld [vmem:[#allocation5 + $0x90] sm:$0xff]
    %v190 = vld [vmem:[#allocation5 + $0x98] sm:$0xff]
    %v191 = vld [vmem:[#allocation5 + $0xa0] sm:$0xff]
    %v192 = vld [vmem:[#allocation5 + $0xa8] sm:$0xff]
    %v193 = vld [vmem:[#allocation5 + $0xb0] sm:$0xff]
    %v194 = vld [vmem:[#allocation5 + $0xb8] sm:$0xff]
    %v195 = vld [vmem:[#allocation5 + $0xc0] sm:$0xff]
    %v196 = vld [vmem:[#allocation5 + $0xc8] sm:$0xff]
    %v197 = vld [vmem:[#allocation5 + $0xd0] sm:$0xff]
    %v198 = vld [vmem:[#allocation5 + $0xd8] sm:$0xff]
    %v199 = vld [vmem:[#allocation5 + $0xe0] sm:$0xff]
    %v200 = vld [vmem:[#allocation5 + $0xe8] sm:$0xff]
    %v201 = vld [vmem:[#allocation5 + $0xf0] sm:$0xff]
    %v202 = vld [vmem:[#allocation5 + $0xf8] sm:$0xff]
    %v203 = vld [vmem:[#allocation5 + $0x100] sm:$0xff]
    %v204 = vld [vmem:[#allocation5 + $0x108] sm:$0xff]
    %v205 = vld [vmem:[#allocation5 + $0x110] sm:$0xff]
    %v206 = vld [vmem:[#allocation5 + $0x118] sm:$0xff]
    %v207 = vld [vmem:[#allocation5 + $0x120] sm:$0xff]
    %v208 = vld [vmem:[#allocation5 + $0x128] sm:$0xff]
    %v209 = vld [vmem:[#allocation5 + $0x130] sm:$0xff]
    %v210 = vld [vmem:[#allocation5 + $0x138] sm:$0xff]
    %v211 = vld [vmem:[#allocation5 + $0x140] sm:$0xff]
    %v212 = vld [vmem:[#allocation5 + $0x148] sm:$0xff]
    %v213 = vld [vmem:[#allocation5 + $0x150] sm:$0xff]
    %v214 = vld [vmem:[#allocation5 + $0x158] sm:$0xff]
    %v215 = vld [vmem:[#allocation5 + $0x160] sm:$0xff]
    %v216 = vld [vmem:[#allocation5 + $0x168] sm:$0xff]
    %v217 = vld [vmem:[#allocation5 + $0x170] sm:$0xff]
    %v218 = vld [vmem:[#allocation5 + $0x178] sm:$0xff]
    %v219 = vld [vmem:[#allocation5 + $0x180] sm:$0xff]
    %v220 = vld [vmem:[#allocation5 + $0x188] sm:$0xff]
    %v221 = vld [vmem:[#allocation5 + $0x190] sm:$0xff]
    %v222 = vld [vmem:[#allocation5 + $0x198] sm:$0xff]
    %v223 = vld [vmem:[#allocation5 + $0x1a0] sm:$0xff]
    %v224 = vld [vmem:[#allocation5 + $0x1a8] sm:$0xff]
    %v225 = vld [vmem:[#allocation5 + $0x1b0] sm:$0xff]
    %v226 = vld [vmem:[#allocation5 + $0x1b8] sm:$0xff]
    %v227 = vld [vmem:[#allocation5 + $0x1c0] sm:$0xff]
    %v228 = vld [vmem:[#allocation5 + $0x1c8] sm:$0xff]
    %v229 = vld [vmem:[#allocation5 + $0x1d0] sm:$0xff]
    %v230 = vld [vmem:[#allocation5 + $0x1d8] sm:$0xff]
    %v231 = vld [vmem:[#allocation5 + $0x1e0] sm:$0xff]
    %v232 = vld [vmem:[#allocation5 + $0x1e8] sm:$0xff]
    %v233 = vld [vmem:[#allocation5 + $0x1f0] sm:$0xff]
    %v234 = vld [vmem:[#allocation5 + $0x1f8] sm:$0xff]
    %v235 = vld [vmem:[#allocation5 + $0x200] sm:$0xff]
    %v236 = vld [vmem:[#allocation5 + $0x208] sm:$0xff]
    %v237 = vld [vmem:[#allocation5 + $0x210] sm:$0xff]
    %v238 = vld [vmem:[#allocation5 + $0x218] sm:$0xff]
    %v239 = vld [vmem:[#allocation5 + $0x220] sm:$0xff]
    %v240 = vld [vmem:[#allocation5 + $0x228] sm:$0xff]
    %v241 = vld [vmem:[#allocation5 + $0x230] sm:$0xff]
    %v242 = vld [vmem:[#allocation5 + $0x238] sm:$0xff]
    %v243 = vld [vmem:[#allocation5 + $0x240] sm:$0xff]
    %v244 = vld [vmem:[#allocation5 + $0x248] sm:$0xff]
    %v245 = vld [vmem:[#allocation5 + $0x250] sm:$0xff]
    %v246 = vld [vmem:[#allocation5 + $0x258] sm:$0xff]
    %v247 = vld [vmem:[#allocation5 + $0x260] sm:$0xff]
    %v248 = vld [vmem:[#allocation5 + $0x268] sm:$0xff]
    %v249 = vld [vmem:[#allocation5 + $0x270] sm:$0xff]
    %v250 = vld [vmem:[#allocation5 + $0x278] sm:$0xff]
    %v251 = vld [vmem:[#allocation5 + $0x280] sm:$0xff]
    %v252 = vld [vmem:[#allocation5 + $0x288] sm:$0xff]
    %v253 = vld [vmem:[#allocation5 + $0x290] sm:$0xff]
    %v254 = vld [vmem:[#allocation5 + $0x298] sm:$0xff]
    %v255 = vld [vmem:[#allocation5 + $0x2a0] sm:$0xff]
    %v256 = vld [vmem:[#allocation5 + $0x2a8] sm:$0xff]
    %v257 = vld [vmem:[#allocation5 + $0x2b0] sm:$0xff]
    %v258 = vld [vmem:[#allocation5 + $0x2b8] sm:$0xff]
    %v259 = vld [vmem:[#allocation5 + $0x2c0] sm:$0xff]
    %v260 = vld [vmem:[#allocation5 + $0x2c8] sm:$0xff]
    %v261 = vld [vmem:[#allocation5 + $0x2d0] sm:$0xff]
    %v262 = vld [vmem:[#allocation5 + $0x2d8] sm:$0xff]
    %v263 = vld [vmem:[#allocation5 + $0x2e0] sm:$0xff]
    %v264 = vld [vmem:[#allocation5 + $0x2e8] sm:$0xff]
    %v265 = vld [vmem:[#allocation5 + $0x2f0] sm:$0xff]
    %v266 = vld [vmem:[#allocation5 + $0x2f8] sm:$0xff]
    %v267 = vld [vmem:[#allocation5 + $0x300] sm:$0xff]
    %v268 = vld [vmem:[#allocation5 + $0x308] sm:$0xff]
    %v269 = vld [vmem:[#allocation5 + $0x310] sm:$0xff]
    %v270 = vld [vmem:[#allocation5 + $0x318] sm:$0xff]
    %v271 = vld [vmem:[#allocation5 + $0x320] sm:$0xff]
    %v272 = vld [vmem:[#allocation5 + $0x328] sm:$0xff]
    %v273 = vld [vmem:[#allocation5 + $0x330] sm:$0xff]
    %v274 = vld [vmem:[#allocation5 + $0x338] sm:$0xff]
    %v275 = vld [vmem:[#allocation5 + $0x340] sm:$0xff]
    %v276 = vld [vmem:[#allocation5 + $0x348] sm:$0xff]
    %v277 = vld [vmem:[#allocation5 + $0x350] sm:$0xff]
    %v278 = vld [vmem:[#allocation5 + $0x358] sm:$0xff]
    %v279 = vld [vmem:[#allocation5 + $0x360] sm:$0xff]
    %v280 = vld [vmem:[#allocation5 + $0x368] sm:$0xff]
    %v281 = vld [vmem:[#allocation5 + $0x370] sm:$0xff]
    %v282 = vld [vmem:[#allocation5 + $0x378] sm:$0xff]
    %v283 = vld [vmem:[#allocation5 + $0x380] sm:$0xff]
    %v284 = vld [vmem:[#allocation5 + $0x388] sm:$0xff]
    %v285 = vld [vmem:[#allocation5 + $0x390] sm:$0xff]
    %v286 = vld [vmem:[#allocation5 + $0x398] sm:$0xff]
    %v287 = vld [vmem:[#allocation5 + $0x3a0] sm:$0xff]
    %v288 = vld [vmem:[#allocation5 + $0x3a8] sm:$0xff]
    %v289 = vld [vmem:[#allocation5 + $0x3b0] sm:$0xff]
    %v290 = vld [vmem:[#allocation5 + $0x3b8] sm:$0xff]
    %v291 = vld [vmem:[#allocation5 + $0x3c0] sm:$0xff]
    %v292 = vld [vmem:[#allocation5 + $0x3c8] sm:$0xff]
    %v293 = vld [vmem:[#allocation5 + $0x3d0] sm:$0xff]
    %v294 = vld [vmem:[#allocation5 + $0x3d8] sm:$0xff]
    %v295 = vld [vmem:[#allocation5 + $0x3e0] sm:$0xff]
    %v296 = vld [vmem:[#allocation5 + $0x3e8] sm:$0xff]
    %v297 = vld [vmem:[#allocation5 + $0x3f0] sm:$0xff]
    %v298 = vld [vmem:[#allocation5 + $0x3f8] sm:$0xff]
    %v299 = vld [vmem:[#allocation7] sm:$0xff]
    %v301 = vperm.slane %v299, 0
    %v302 = vperm.slane %v299, 1
    %v303 = vperm.slane %v299, 2
    %v304 = vperm.slane %v299, 3
    %v305 = vperm.slane %v299, 4
    %v306 = vperm.slane %v299, 5
    %v307 = vperm.slane %v299, 6
    %v308 = vperm.slane %v299, 7
    %v445 = vunpack.c.l.b16 %v171
    %v446 = vunpack.c.h.b16 %v171
    %v447 = vunpack.c.l.b16 %v172
    %v448 = vunpack.c.h.b16 %v172
    %v449 = vunpack.c.l.b16 %v173
    %v450 = vunpack.c.h.b16 %v173
    %v451 = vunpack.c.l.b16 %v174
    %v452 = vunpack.c.h.b16 %v174
    %v453 = vunpack.c.l.b16 %v175
    %v454 = vunpack.c.h.b16 %v175
    %v455 = vunpack.c.l.b16 %v176
    %v456 = vunpack.c.h.b16 %v176
    %v457 = vunpack.c.l.b16 %v177
    %v458 = vunpack.c.h.b16 %v177
    %v459 = vunpack.c.l.b16 %v178
    %v460 = vunpack.c.h.b16 %v178
    %v461 = vunpack.c.l.b16 %v179
    %v462 = vunpack.c.h.b16 %v179
    %v463 = vunpack.c.l.b16 %v180
    %v464 = vunpack.c.h.b16 %v180
    %v465 = vunpack.c.l.b16 %v181
    %v466 = vunpack.c.h.b16 %v181
    %v467 = vunpack.c.l.b16 %v182
    %v468 = vunpack.c.h.b16 %v182
    %v469 = vunpack.c.l.b16 %v183
    %v470 = vunpack.c.h.b16 %v183
    %v471 = vunpack.c.l.b16 %v184
    %v472 = vunpack.c.h.b16 %v184
    %v473 = vunpack.c.l.b16 %v185
    %v474 = vunpack.c.h.b16 %v185
    %v475 = vunpack.c.l.b16 %v186
    %v476 = vunpack.c.h.b16 %v186
    %v477 = vunpack.c.l.b16 %v187
    %v478 = vunpack.c.h.b16 %v187
    %v479 = vunpack.c.l.b16 %v188
    %v480 = vunpack.c.h.b16 %v188
    %v481 = vunpack.c.l.b16 %v189
    %v482 = vunpack.c.h.b16 %v189
    %v483 = vunpack.c.l.b16 %v190
    %v484 = vunpack.c.h.b16 %v190
    %v485 = vunpack.c.l.b16 %v191
    %v486 = vunpack.c.h.b16 %v191
    %v487 = vunpack.c.l.b16 %v192
    %v488 = vunpack.c.h.b16 %v192
    %v489 = vunpack.c.l.b16 %v193
    %v490 = vunpack.c.h.b16 %v193
    %v491 = vunpack.c.l.b16 %v194
    %v492 = vunpack.c.h.b16 %v194
    %v493 = vunpack.c.l.b16 %v195
    %v494 = vunpack.c.h.b16 %v195
    %v495 = vunpack.c.l.b16 %v196
    %v496 = vunpack.c.h.b16 %v196
    %v497 = vunpack.c.l.b16 %v197
    %v498 = vunpack.c.h.b16 %v197
    %v499 = vunpack.c.l.b16 %v198
    %v500 = vunpack.c.h.b16 %v198
    %v501 = vunpack.c.l.b16 %v199
    %v502 = vunpack.c.h.b16 %v199
    %v503 = vunpack.c.l.b16 %v200
    %v504 = vunpack.c.h.b16 %v200
    %v505 = vunpack.c.l.b16 %v201
    %v506 = vunpack.c.h.b16 %v201
    %v507 = vunpack.c.l.b16 %v202
    %v508 = vunpack.c.h.b16 %v202
    %v509 = vunpack.c.l.b16 %v203
    %v510 = vunpack.c.h.b16 %v203
    %v511 = vunpack.c.l.b16 %v204
    %v512 = vunpack.c.h.b16 %v204
    %v513 = vunpack.c.l.b16 %v205
    %v514 = vunpack.c.h.b16 %v205
    %v515 = vunpack.c.l.b16 %v206
    %v516 = vunpack.c.h.b16 %v206
    %v517 = vunpack.c.l.b16 %v207
    %v518 = vunpack.c.h.b16 %v207
    %v519 = vunpack.c.l.b16 %v208
    %v520 = vunpack.c.h.b16 %v208
    %v521 = vunpack.c.l.b16 %v209
    %v522 = vunpack.c.h.b16 %v209
    %v523 = vunpack.c.l.b16 %v210
    %v524 = vunpack.c.h.b16 %v210
    %v525 = vunpack.c.l.b16 %v211
    %v526 = vunpack.c.h.b16 %v211
    %v527 = vunpack.c.l.b16 %v212
    %v528 = vunpack.c.h.b16 %v212
    %v529 = vunpack.c.l.b16 %v213
    %v530 = vunpack.c.h.b16 %v213
    %v531 = vunpack.c.l.b16 %v214
    %v532 = vunpack.c.h.b16 %v214
    %v533 = vunpack.c.l.b16 %v215
    %v534 = vunpack.c.h.b16 %v215
    %v535 = vunpack.c.l.b16 %v216
    %v536 = vunpack.c.h.b16 %v216
    %v537 = vunpack.c.l.b16 %v217
    %v538 = vunpack.c.h.b16 %v217
    %v539 = vunpack.c.l.b16 %v218
    %v540 = vunpack.c.h.b16 %v218
    %v541 = vunpack.c.l.b16 %v219
    %v542 = vunpack.c.h.b16 %v219
    %v543 = vunpack.c.l.b16 %v220
    %v544 = vunpack.c.h.b16 %v220
    %v545 = vunpack.c.l.b16 %v221
    %v546 = vunpack.c.h.b16 %v221
    %v547 = vunpack.c.l.b16 %v222
    %v548 = vunpack.c.h.b16 %v222
    %v549 = vunpack.c.l.b16 %v223
    %v550 = vunpack.c.h.b16 %v223
    %v551 = vunpack.c.l.b16 %v224
    %v552 = vunpack.c.h.b16 %v224
    %v553 = vunpack.c.l.b16 %v225
    %v554 = vunpack.c.h.b16 %v225
    %v555 = vunpack.c.l.b16 %v226
    %v556 = vunpack.c.h.b16 %v226
    %v557 = vunpack.c.l.b16 %v227
    %v558 = vunpack.c.h.b16 %v227
    %v559 = vunpack.c.l.b16 %v228
    %v560 = vunpack.c.h.b16 %v228
    %v561 = vunpack.c.l.b16 %v229
    %v562 = vunpack.c.h.b16 %v229
    %v563 = vunpack.c.l.b16 %v230
    %v564 = vunpack.c.h.b16 %v230
    %v565 = vunpack.c.l.b16 %v231
    %v566 = vunpack.c.h.b16 %v231
    %v567 = vunpack.c.l.b16 %v232
    %v568 = vunpack.c.h.b16 %v232
    %v569 = vunpack.c.l.b16 %v233
    %v570 = vunpack.c.h.b16 %v233
    %v571 = vunpack.c.l.b16 %v234
    %v572 = vunpack.c.h.b16 %v234
    %v573 = vunpack.c.l.b16 %v235
    %v574 = vunpack.c.h.b16 %v235
    %v575 = vunpack.c.l.b16 %v236
    %v576 = vunpack.c.h.b16 %v236
    %v577 = vunpack.c.l.b16 %v237
    %v578 = vunpack.c.h.b16 %v237
    %v579 = vunpack.c.l.b16 %v238
    %v580 = vunpack.c.h.b16 %v238
    %v581 = vunpack.c.l.b16 %v239
    %v582 = vunpack.c.h.b16 %v239
    %v583 = vunpack.c.l.b16 %v240
    %v584 = vunpack.c.h.b16 %v240
    %v585 = vunpack.c.l.b16 %v241
    %v586 = vunpack.c.h.b16 %v241
    %v587 = vunpack.c.l.b16 %v242
    %v588 = vunpack.c.h.b16 %v242
    %v589 = vunpack.c.l.b16 %v243
    %v590 = vunpack.c.h.b16 %v243
    %v591 = vunpack.c.l.b16 %v244
    %v592 = vunpack.c.h.b16 %v244
    %v593 = vunpack.c.l.b16 %v245
    %v594 = vunpack.c.h.b16 %v245
    %v595 = vunpack.c.l.b16 %v246
    %v596 = vunpack.c.h.b16 %v246
    %v597 = vunpack.c.l.b16 %v247
    %v598 = vunpack.c.h.b16 %v247
    %v599 = vunpack.c.l.b16 %v248
    %v600 = vunpack.c.h.b16 %v248
    %v601 = vunpack.c.l.b16 %v249
    %v602 = vunpack.c.h.b16 %v249
    %v603 = vunpack.c.l.b16 %v250
    %v604 = vunpack.c.h.b16 %v250
    %v605 = vunpack.c.l.b16 %v251
    %v606 = vunpack.c.h.b16 %v251
    %v607 = vunpack.c.l.b16 %v252
    %v608 = vunpack.c.h.b16 %v252
    %v609 = vunpack.c.l.b16 %v253
    %v610 = vunpack.c.h.b16 %v253
    %v611 = vunpack.c.l.b16 %v254
    %v612 = vunpack.c.h.b16 %v254
    %v613 = vunpack.c.l.b16 %v255
    %v614 = vunpack.c.h.b16 %v255
    %v615 = vunpack.c.l.b16 %v256
    %v616 = vunpack.c.h.b16 %v256
    %v617 = vunpack.c.l.b16 %v257
    %v618 = vunpack.c.h.b16 %v257
    %v619 = vunpack.c.l.b16 %v258
    %v620 = vunpack.c.h.b16 %v258
    %v621 = vunpack.c.l.b16 %v259
    %v622 = vunpack.c.h.b16 %v259
    %v623 = vunpack.c.l.b16 %v260
    %v624 = vunpack.c.h.b16 %v260
    %v625 = vunpack.c.l.b16 %v261
    %v626 = vunpack.c.h.b16 %v261
    %v627 = vunpack.c.l.b16 %v262
    %v628 = vunpack.c.h.b16 %v262
    %v629 = vunpack.c.l.b16 %v263
    %v630 = vunpack.c.h.b16 %v263
    %v631 = vunpack.c.l.b16 %v264
    %v632 = vunpack.c.h.b16 %v264
    %v633 = vunpack.c.l.b16 %v265
    %v634 = vunpack.c.h.b16 %v265
    %v635 = vunpack.c.l.b16 %v266
    %v636 = vunpack.c.h.b16 %v266
    %v637 = vunpack.c.l.b16 %v267
    %v638 = vunpack.c.h.b16 %v267
    %v639 = vunpack.c.l.b16 %v268
    %v640 = vunpack.c.h.b16 %v268
    %v641 = vunpack.c.l.b16 %v269
    %v642 = vunpack.c.h.b16 %v269
    %v643 = vunpack.c.l.b16 %v270
    %v644 = vunpack.c.h.b16 %v270
    %v645 = vunpack.c.l.b16 %v271
    %v646 = vunpack.c.h.b16 %v271
    %v647 = vunpack.c.l.b16 %v272
    %v648 = vunpack.c.h.b16 %v272
    %v649 = vunpack.c.l.b16 %v273
    %v650 = vunpack.c.h.b16 %v273
    %v651 = vunpack.c.l.b16 %v274
    %v652 = vunpack.c.h.b16 %v274
    %v653 = vunpack.c.l.b16 %v275
    %v654 = vunpack.c.h.b16 %v275
    %v655 = vunpack.c.l.b16 %v276
    %v656 = vunpack.c.h.b16 %v276
    %v657 = vunpack.c.l.b16 %v277
    %v658 = vunpack.c.h.b16 %v277
    %v659 = vunpack.c.l.b16 %v278
    %v660 = vunpack.c.h.b16 %v278
    %v661 = vunpack.c.l.b16 %v279
    %v662 = vunpack.c.h.b16 %v279
    %v663 = vunpack.c.l.b16 %v280
    %v664 = vunpack.c.h.b16 %v280
    %v665 = vunpack.c.l.b16 %v281
    %v666 = vunpack.c.h.b16 %v281
    %v667 = vunpack.c.l.b16 %v282
    %v668 = vunpack.c.h.b16 %v282
    %v669 = vunpack.c.l.b16 %v283
    %v670 = vunpack.c.h.b16 %v283
    %v671 = vunpack.c.l.b16 %v284
    %v672 = vunpack.c.h.b16 %v284
    %v673 = vunpack.c.l.b16 %v285
    %v674 = vunpack.c.h.b16 %v285
    %v675 = vunpack.c.l.b16 %v286
    %v676 = vunpack.c.h.b16 %v286
    %v677 = vunpack.c.l.b16 %v287
    %v678 = vunpack.c.h.b16 %v287
    %v679 = vunpack.c.l.b16 %v288
    %v680 = vunpack.c.h.b16 %v288
    %v681 = vunpack.c.l.b16 %v289
    %v682 = vunpack.c.h.b16 %v289
    %v683 = vunpack.c.l.b16 %v290
    %v684 = vunpack.c.h.b16 %v290
    %v685 = vunpack.c.l.b16 %v291
    %v686 = vunpack.c.h.b16 %v291
    %v687 = vunpack.c.l.b16 %v292
    %v688 = vunpack.c.h.b16 %v292
    %v689 = vunpack.c.l.b16 %v293
    %v690 = vunpack.c.h.b16 %v293
    %v691 = vunpack.c.l.b16 %v294
    %v692 = vunpack.c.h.b16 %v294
    %v693 = vunpack.c.l.b16 %v295
    %v694 = vunpack.c.h.b16 %v295
    %v695 = vunpack.c.l.b16 %v296
    %v696 = vunpack.c.h.b16 %v296
    %v697 = vunpack.c.l.b16 %v297
    %v698 = vunpack.c.h.b16 %v297
    %v699 = vunpack.c.l.b16 %v298
    %v700 = vunpack.c.h.b16 %v298
    %v701 = vpack.c.b16 %v453, %v445
    %v702 = vpack.c.b16 %v454, %v446
    %v703 = vpack.c.b16 %v455, %v447
    %v704 = vpack.c.b16 %v456, %v448
    %v705 = vpack.c.b16 %v457, %v449
    %v706 = vpack.c.b16 %v458, %v450
    %v707 = vpack.c.b16 %v459, %v451
    %v708 = vpack.c.b16 %v460, %v452
    %v709 = vpack.c.b16 %v469, %v461
    %v710 = vpack.c.b16 %v470, %v462
    %v711 = vpack.c.b16 %v471, %v463
    %v712 = vpack.c.b16 %v472, %v464
    %v713 = vpack.c.b16 %v473, %v465
    %v714 = vpack.c.b16 %v474, %v466
    %v715 = vpack.c.b16 %v475, %v467
    %v716 = vpack.c.b16 %v476, %v468
    %v717 = vpack.c.b16 %v485, %v477
    %v718 = vpack.c.b16 %v486, %v478
    %v719 = vpack.c.b16 %v487, %v479
    %v720 = vpack.c.b16 %v488, %v480
    %v721 = vpack.c.b16 %v489, %v481
    %v722 = vpack.c.b16 %v490, %v482
    %v723 = vpack.c.b16 %v491, %v483
    %v724 = vpack.c.b16 %v492, %v484
    %v725 = vpack.c.b16 %v501, %v493
    %v726 = vpack.c.b16 %v502, %v494
    %v727 = vpack.c.b16 %v503, %v495
    %v728 = vpack.c.b16 %v504, %v496
    %v729 = vpack.c.b16 %v505, %v497
    %v730 = vpack.c.b16 %v506, %v498
    %v731 = vpack.c.b16 %v507, %v499
    %v732 = vpack.c.b16 %v508, %v500
    %v733 = vpack.c.b16 %v517, %v509
    %v734 = vpack.c.b16 %v518, %v510
    %v735 = vpack.c.b16 %v519, %v511
    %v736 = vpack.c.b16 %v520, %v512
    %v737 = vpack.c.b16 %v521, %v513
    %v738 = vpack.c.b16 %v522, %v514
    %v739 = vpack.c.b16 %v523, %v515
    %v740 = vpack.c.b16 %v524, %v516
    %v741 = vpack.c.b16 %v533, %v525
    %v742 = vpack.c.b16 %v534, %v526
    %v743 = vpack.c.b16 %v535, %v527
    %v744 = vpack.c.b16 %v536, %v528
    %v745 = vpack.c.b16 %v537, %v529
    %v746 = vpack.c.b16 %v538, %v530
    %v747 = vpack.c.b16 %v539, %v531
    %v748 = vpack.c.b16 %v540, %v532
    %v749 = vpack.c.b16 %v549, %v541
    %v750 = vpack.c.b16 %v550, %v542
    %v751 = vpack.c.b16 %v551, %v543
    %v752 = vpack.c.b16 %v552, %v544
    %v753 = vpack.c.b16 %v553, %v545
    %v754 = vpack.c.b16 %v554, %v546
    %v755 = vpack.c.b16 %v555, %v547
    %v756 = vpack.c.b16 %v556, %v548
    %v757 = vpack.c.b16 %v565, %v557
    %v758 = vpack.c.b16 %v566, %v558
    %v759 = vpack.c.b16 %v567, %v559
    %v760 = vpack.c.b16 %v568, %v560
    %v761 = vpack.c.b16 %v569, %v561
    %v762 = vpack.c.b16 %v570, %v562
    %v763 = vpack.c.b16 %v571, %v563
    %v764 = vpack.c.b16 %v572, %v564
    %v765 = vpack.c.b16 %v581, %v573
    %v766 = vpack.c.b16 %v582, %v574
    %v767 = vpack.c.b16 %v583, %v575
    %v768 = vpack.c.b16 %v584, %v576
    %v769 = vpack.c.b16 %v585, %v577
    %v770 = vpack.c.b16 %v586, %v578
    %v771 = vpack.c.b16 %v587, %v579
    %v772 = vpack.c.b16 %v588, %v580
    %v773 = vpack.c.b16 %v597, %v589
    %v774 = vpack.c.b16 %v598, %v590
    %v775 = vpack.c.b16 %v599, %v591
    %v776 = vpack.c.b16 %v600, %v592
    %v777 = vpack.c.b16 %v601, %v593
    %v778 = vpack.c.b16 %v602, %v594
    %v779 = vpack.c.b16 %v603, %v595
    %v780 = vpack.c.b16 %v604, %v596
    %v781 = vpack.c.b16 %v613, %v605
    %v782 = vpack.c.b16 %v614, %v606
    %v783 = vpack.c.b16 %v615, %v607
    %v784 = vpack.c.b16 %v616, %v608
    %v785 = vpack.c.b16 %v617, %v609
    %v786 = vpack.c.b16 %v618, %v610
    %v787 = vpack.c.b16 %v619, %v611
    %v788 = vpack.c.b16 %v620, %v612
    %v789 = vpack.c.b16 %v629, %v621
    %v790 = vpack.c.b16 %v630, %v622
    %v791 = vpack.c.b16 %v631, %v623
    %v792 = vpack.c.b16 %v632, %v624
    %v793 = vpack.c.b16 %v633, %v625
    %v794 = vpack.c.b16 %v634, %v626
    %v795 = vpack.c.b16 %v635, %v627
    %v796 = vpack.c.b16 %v636, %v628
    %v797 = vpack.c.b16 %v645, %v637
    %v798 = vpack.c.b16 %v646, %v638
    %v799 = vpack.c.b16 %v647, %v639
    %v800 = vpack.c.b16 %v648, %v640
    %v801 = vpack.c.b16 %v649, %v641
    %v802 = vpack.c.b16 %v650, %v642
    %v803 = vpack.c.b16 %v651, %v643
    %v804 = vpack.c.b16 %v652, %v644
    %v805 = vpack.c.b16 %v661, %v653
    %v806 = vpack.c.b16 %v662, %v654
    %v807 = vpack.c.b16 %v663, %v655
    %v808 = vpack.c.b16 %v664, %v656
    %v809 = vpack.c.b16 %v665, %v657
    %v810 = vpack.c.b16 %v666, %v658
    %v811 = vpack.c.b16 %v667, %v659
    %v812 = vpack.c.b16 %v668, %v660
    %v813 = vpack.c.b16 %v677, %v669
    %v814 = vpack.c.b16 %v678, %v670
    %v815 = vpack.c.b16 %v679, %v671
    %v816 = vpack.c.b16 %v680, %v672
    %v817 = vpack.c.b16 %v681, %v673
    %v818 = vpack.c.b16 %v682, %v674
    %v819 = vpack.c.b16 %v683, %v675
    %v820 = vpack.c.b16 %v684, %v676
    %v821 = vpack.c.b16 %v693, %v685
    %v822 = vpack.c.b16 %v694, %v686
    %v823 = vpack.c.b16 %v695, %v687
    %v824 = vpack.c.b16 %v696, %v688
    %v825 = vpack.c.b16 %v697, %v689
    %v826 = vpack.c.b16 %v698, %v690
    %v827 = vpack.c.b16 %v699, %v691
    %v828 = vpack.c.b16 %v700, %v692
    %957 = vmatpush.bf16.msra.mxu0 %v757
    %958 = vmatpush.bf16.msra.mxu0 %v749
    %959 = vmatpush.bf16.msra.mxu0 %v741
    %960 = vmatpush.bf16.msra.mxu0 %v733
    %961 = vmatpush.bf16.msra.mxu0 %v725
    %962 = vmatpush.bf16.msra.mxu0 %v717
    %963 = vmatpush.bf16.msra.mxu0 %v709
    %964 = vmatpush.bf16.msra.mxu0 %v701
    %965 = vmatmul.bf16.gmra.mxu0 %v169
    %v966 = vpop.f32.mrf.mxu0
    %v967 = vadd.f32 %v301, %v966
    %v968 = vpop.f32.mrf.mxu0
    %v969 = vadd.f32 %v301, %v968
    %970 = vdwg.mxu0
    %971 = vmatpush.bf16.msra.mxu0 %v821
    %972 = vmatpush.bf16.msra.mxu0 %v813
    %973 = vmatpush.bf16.msra.mxu0 %v805
    %974 = vmatpush.bf16.msra.mxu0 %v797
    %975 = vmatpush.bf16.msra.mxu0 %v789
    %976 = vmatpush.bf16.msra.mxu0 %v781
    %977 = vmatpush.bf16.msra.mxu0 %v773
    %978 = vmatpush.bf16.msra.mxu0 %v765
    %979 = vmatmul.bf16.gmra.mxu0 %v170
    %v980 = vpop.f32.mrf.mxu0
    %v981 = vadd.f32 %v967, %v980
    %v982 = vpop.f32.mrf.mxu0
    %v983 = vadd.f32 %v969, %v982
    %984 = vdwg.mxu0
    %985 = vmatpush.bf16.msra.mxu0 %v758
    %986 = vmatpush.bf16.msra.mxu0 %v750
    %987 = vmatpush.bf16.msra.mxu0 %v742
    %988 = vmatpush.bf16.msra.mxu0 %v734
    %989 = vmatpush.bf16.msra.mxu0 %v726
    %990 = vmatpush.bf16.msra.mxu0 %v718
    %991 = vmatpush.bf16.msra.mxu0 %v710
    %992 = vmatpush.bf16.msra.mxu0 %v702
    %993 = vmatmul.bf16.gmra.mxu0 %v169
    %v994 = vpop.f32.mrf.mxu0
    %v995 = vadd.f32 %v302, %v994
    %v996 = vpop.f32.mrf.mxu0
    %v997 = vadd.f32 %v302, %v996
    %998 = vdwg.mxu0
    %999 = vmatpush.bf16.msra.mxu0 %v822
    %1000 = vmatpush.bf16.msra.mxu0 %v814
    %1001 = vmatpush.bf16.msra.mxu0 %v806
    %1002 = vmatpush.bf16.msra.mxu0 %v798
    %1003 = vmatpush.bf16.msra.mxu0 %v790
    %1004 = vmatpush.bf16.msra.mxu0 %v782
    %1005 = vmatpush.bf16.msra.mxu0 %v774
    %1006 = vmatpush.bf16.msra.mxu0 %v766
    %1007 = vmatmul.bf16.gmra.mxu0 %v170
    %v1008 = vpop.f32.mrf.mxu0
    %v1009 = vadd.f32 %v995, %v1008
    %v1010 = vpop.f32.mrf.mxu0
    %v1011 = vadd.f32 %v997, %v1010
    %1012 = vdwg.mxu0
    %1013 = vmatpush.bf16.msra.mxu0 %v759
    %1014 = vmatpush.bf16.msra.mxu0 %v751
    %1015 = vmatpush.bf16.msra.mxu0 %v743
    %1016 = vmatpush.bf16.msra.mxu0 %v735
    %1017 = vmatpush.bf16.msra.mxu0 %v727
    %1018 = vmatpush.bf16.msra.mxu0 %v719
    %1019 = vmatpush.bf16.msra.mxu0 %v711
    %1020 = vmatpush.bf16.msra.mxu0 %v703
    %1021 = vmatmul.bf16.gmra.mxu0 %v169
    %v1022 = vpop.f32.mrf.mxu0
    %v1023 = vadd.f32 %v303, %v1022
    %v1024 = vpop.f32.mrf.mxu0
    %v1025 = vadd.f32 %v303, %v1024
    %1026 = vdwg.mxu0
    %1027 = vmatpush.bf16.msra.mxu0 %v823
    %1028 = vmatpush.bf16.msra.mxu0 %v815
    %1029 = vmatpush.bf16.msra.mxu0 %v807
    %1030 = vmatpush.bf16.msra.mxu0 %v799
    %1031 = vmatpush.bf16.msra.mxu0 %v791
    %1032 = vmatpush.bf16.msra.mxu0 %v783
    %1033 = vmatpush.bf16.msra.mxu0 %v775
    %1034 = vmatpush.bf16.msra.mxu0 %v767
    %1035 = vmatmul.bf16.gmra.mxu0 %v170
    %v1036 = vpop.f32.mrf.mxu0
    %v1037 = vadd.f32 %v1023, %v1036
    %v1038 = vpop.f32.mrf.mxu0
    %v1039 = vadd.f32 %v1025, %v1038
    %1040 = vdwg.mxu0
    %1041 = vmatpush.bf16.msra.mxu0 %v760
    %1042 = vmatpush.bf16.msra.mxu0 %v752
    %1043 = vmatpush.bf16.msra.mxu0 %v744
    %1044 = vmatpush.bf16.msra.mxu0 %v736
    %1045 = vmatpush.bf16.msra.mxu0 %v728
    %1046 = vmatpush.bf16.msra.mxu0 %v720
    %1047 = vmatpush.bf16.msra.mxu0 %v712
    %1048 = vmatpush.bf16.msra.mxu0 %v704
    %1049 = vmatmul.bf16.gmra.mxu0 %v169
    %v1050 = vpop.f32.mrf.mxu0
    %v1051 = vadd.f32 %v304, %v1050
    %v1052 = vpop.f32.mrf.mxu0
    %v1053 = vadd.f32 %v304, %v1052
    %1054 = vdwg.mxu0
    %1055 = vmatpush.bf16.msra.mxu0 %v824
    %1056 = vmatpush.bf16.msra.mxu0 %v816
    %1057 = vmatpush.bf16.msra.mxu0 %v808
    %1058 = vmatpush.bf16.msra.mxu0 %v800
    %1059 = vmatpush.bf16.msra.mxu0 %v792
    %1060 = vmatpush.bf16.msra.mxu0 %v784
    %1061 = vmatpush.bf16.msra.mxu0 %v776
    %1062 = vmatpush.bf16.msra.mxu0 %v768
    %1063 = vmatmul.bf16.gmra.mxu0 %v170
    %v1064 = vpop.f32.mrf.mxu0
    %v1065 = vadd.f32 %v1051, %v1064
    %v1066 = vpop.f32.mrf.mxu0
    %v1067 = vadd.f32 %v1053, %v1066
    %1068 = vdwg.mxu0
    %1069 = vmatpush.bf16.msra.mxu0 %v761
    %1070 = vmatpush.bf16.msra.mxu0 %v753
    %1071 = vmatpush.bf16.msra.mxu0 %v745
    %1072 = vmatpush.bf16.msra.mxu0 %v737
    %1073 = vmatpush.bf16.msra.mxu0 %v729
    %1074 = vmatpush.bf16.msra.mxu0 %v721
    %1075 = vmatpush.bf16.msra.mxu0 %v713
    %1076 = vmatpush.bf16.msra.mxu0 %v705
    %1077 = vmatmul.bf16.gmra.mxu0 %v169
    %v1078 = vpop.f32.mrf.mxu0
    %v1079 = vadd.f32 %v305, %v1078
    %v1080 = vpop.f32.mrf.mxu0
    %v1081 = vadd.f32 %v305, %v1080
    %1082 = vdwg.mxu0
    %1083 = vmatpush.bf16.msra.mxu0 %v825
    %1084 = vmatpush.bf16.msra.mxu0 %v817
    %1085 = vmatpush.bf16.msra.mxu0 %v809
    %1086 = vmatpush.bf16.msra.mxu0 %v801
    %1087 = vmatpush.bf16.msra.mxu0 %v793
    %1088 = vmatpush.bf16.msra.mxu0 %v785
    %1089 = vmatpush.bf16.msra.mxu0 %v777
    %1090 = vmatpush.bf16.msra.mxu0 %v769
    %1091 = vmatmul.bf16.gmra.mxu0 %v170
    %v1092 = vpop.f32.mrf.mxu0
    %v1093 = vadd.f32 %v1079, %v1092
    %v1094 = vpop.f32.mrf.mxu0
    %v1095 = vadd.f32 %v1081, %v1094
    %1096 = vdwg.mxu0
    %1097 = vmatpush.bf16.msra.mxu0 %v762
    %1098 = vmatpush.bf16.msra.mxu0 %v754
    %1099 = vmatpush.bf16.msra.mxu0 %v746
    %1100 = vmatpush.bf16.msra.mxu0 %v738
    %1101 = vmatpush.bf16.msra.mxu0 %v730
    %1102 = vmatpush.bf16.msra.mxu0 %v722
    %1103 = vmatpush.bf16.msra.mxu0 %v714
    %1104 = vmatpush.bf16.msra.mxu0 %v706
    %1105 = vmatmul.bf16.gmra.mxu0 %v169
    %v1106 = vpop.f32.mrf.mxu0
    %v1107 = vadd.f32 %v306, %v1106
    %v1108 = vpop.f32.mrf.mxu0
    %v1109 = vadd.f32 %v306, %v1108
    %1110 = vdwg.mxu0
    %1111 = vmatpush.bf16.msra.mxu0 %v826
    %1112 = vmatpush.bf16.msra.mxu0 %v818
    %1113 = vmatpush.bf16.msra.mxu0 %v810
    %1114 = vmatpush.bf16.msra.mxu0 %v802
    %1115 = vmatpush.bf16.msra.mxu0 %v794
    %1116 = vmatpush.bf16.msra.mxu0 %v786
    %1117 = vmatpush.bf16.msra.mxu0 %v778
    %1118 = vmatpush.bf16.msra.mxu0 %v770
    %1119 = vmatmul.bf16.gmra.mxu0 %v170
    %v1120 = vpop.f32.mrf.mxu0
    %v1121 = vadd.f32 %v1107, %v1120
    %v1122 = vpop.f32.mrf.mxu0
    %v1123 = vadd.f32 %v1109, %v1122
    %1124 = vdwg.mxu0
    %1125 = vmatpush.bf16.msra.mxu0 %v763
    %1126 = vmatpush.bf16.msra.mxu0 %v755
    %1127 = vmatpush.bf16.msra.mxu0 %v747
    %1128 = vmatpush.bf16.msra.mxu0 %v739
    %1129 = vmatpush.bf16.msra.mxu0 %v731
    %1130 = vmatpush.bf16.msra.mxu0 %v723
    %1131 = vmatpush.bf16.msra.mxu0 %v715
    %1132 = vmatpush.bf16.msra.mxu0 %v707
    %1133 = vmatmul.bf16.gmra.mxu0 %v169
    %v1134 = vpop.f32.mrf.mxu0
    %v1135 = vadd.f32 %v307, %v1134
    %v1136 = vpop.f32.mrf.mxu0
    %v1137 = vadd.f32 %v307, %v1136
    %1138 = vdwg.mxu0
    %1139 = vmatpush.bf16.msra.mxu0 %v827
    %1140 = vmatpush.bf16.msra.mxu0 %v819
    %1141 = vmatpush.bf16.msra.mxu0 %v811
    %1142 = vmatpush.bf16.msra.mxu0 %v803
    %1143 = vmatpush.bf16.msra.mxu0 %v795
    %1144 = vmatpush.bf16.msra.mxu0 %v787
    %1145 = vmatpush.bf16.msra.mxu0 %v779
    %1146 = vmatpush.bf16.msra.mxu0 %v771
    %1147 = vmatmul.bf16.gmra.mxu0 %v170
    %v1148 = vpop.f32.mrf.mxu0
    %v1149 = vadd.f32 %v1135, %v1148
    %v1150 = vpop.f32.mrf.mxu0
    %v1151 = vadd.f32 %v1137, %v1150
    %1152 = vdwg.mxu0
    %1153 = vmatpush.bf16.msra.mxu0 %v764
    %1154 = vmatpush.bf16.msra.mxu0 %v756
    %1155 = vmatpush.bf16.msra.mxu0 %v748
    %1156 = vmatpush.bf16.msra.mxu0 %v740
    %1157 = vmatpush.bf16.msra.mxu0 %v732
    %1158 = vmatpush.bf16.msra.mxu0 %v724
    %1159 = vmatpush.bf16.msra.mxu0 %v716
    %1160 = vmatpush.bf16.msra.mxu0 %v708
    %1161 = vmatmul.bf16.gmra.mxu0 %v169
    %v1162 = vpop.f32.mrf.mxu0
    %v1163 = vadd.f32 %v308, %v1162
    %v1164 = vpop.f32.mrf.mxu0
    %v1165 = vadd.f32 %v308, %v1164
    %1166 = vdwg.mxu0
    %1167 = vmatpush.bf16.msra.mxu0 %v828
    %1168 = vmatpush.bf16.msra.mxu0 %v820
    %1169 = vmatpush.bf16.msra.mxu0 %v812
    %1170 = vmatpush.bf16.msra.mxu0 %v804
    %1171 = vmatpush.bf16.msra.mxu0 %v796
    %1172 = vmatpush.bf16.msra.mxu0 %v788
    %1173 = vmatpush.bf16.msra.mxu0 %v780
    %1174 = vmatpush.bf16.msra.mxu0 %v772
    %1175 = vmatmul.bf16.gmra.mxu0 %v170
    %v1176 = vpop.f32.mrf.mxu0
    %v1177 = vadd.f32 %v1163, %v1176
    %v1178 = vpop.f32.mrf.mxu0
    %v1179 = vadd.f32 %v1165, %v1178
    %1180 = vdwg.mxu0
    %v1181 = vmax.f32 %v981, 0.0
    %v1182 = vmax.f32 %v1009, 0.0
    %v1183 = vmax.f32 %v1037, 0.0
    %v1184 = vmax.f32 %v1065, 0.0
    %v1185 = vmax.f32 %v1093, 0.0
    %v1186 = vmax.f32 %v1121, 0.0
    %v1187 = vmax.f32 %v1149, 0.0
    %v1188 = vmax.f32 %v1177, 0.0
    %v1189 = vmax.f32 %v983, 0.0
    %v1190 = vmax.f32 %v1011, 0.0
    %v1191 = vmax.f32 %v1039, 0.0
    %v1192 = vmax.f32 %v1067, 0.0
    %v1193 = vmax.f32 %v1095, 0.0
    %v1194 = vmax.f32 %v1123, 0.0
    %v1195 = vmax.f32 %v1151, 0.0
    %v1196 = vmax.f32 %v1179, 0.0
    %v1197 = vpack.c.bf16 %v1189, %v1181
    %v1198 = vpack.c.bf16 %v1190, %v1182
    %v1199 = vpack.c.bf16 %v1191, %v1183
    %v1200 = vpack.c.bf16 %v1192, %v1184
    %v1201 = vpack.c.bf16 %v1193, %v1185
    %v1202 = vpack.c.bf16 %v1194, %v1186
    %v1203 = vpack.c.bf16 %v1195, %v1187
    %v1204 = vpack.c.bf16 %v1196, %v1188
    %v1205 = vld [vmem:[#allocation8] sm:$0xff]
    %v1206 = vld [vmem:[#allocation8 + $0x8] sm:$0xff]
    %v1207 = vld [vmem:[#allocation8 + $0x10] sm:$0xff]
    %v1208 = vld [vmem:[#allocation8 + $0x18] sm:$0xf]
    %v1209 = vld [vmem:[#allocation8 + $0x1c] sm:$0xff]
    %v1210 = vld [vmem:[#allocation8 + $0x24] sm:$0xff]
    %v1211 = vld [vmem:[#allocation8 + $0x2c] sm:$0xff]
    %v1212 = vld [vmem:[#allocation8 + $0x34] sm:$0xf]
    %v1213 = vld [vmem:[#allocation8 + $0x38] sm:$0xff]
    %v1214 = vld [vmem:[#allocation8 + $0x40] sm:$0xff]
    %v1215 = vld [vmem:[#allocation8 + $0x48] sm:$0xff]
    %v1216 = vld [vmem:[#allocation8 + $0x50] sm:$0xf]
    %v1217 = vld [vmem:[#allocation8 + $0x54] sm:$0xff]
    %v1218 = vld [vmem:[#allocation8 + $0x5c] sm:$0xff]
    %v1219 = vld [vmem:[#allocation8 + $0x64] sm:$0xff]
    %v1220 = vld [vmem:[#allocation8 + $0x6c] sm:$0xf]
    %v1221 = vld [vmem:[#allocation8 + $0x70] sm:$0xff]
    %v1222 = vld [vmem:[#allocation8 + $0x78] sm:$0xff]
    %v1223 = vld [vmem:[#allocation8 + $0x80] sm:$0xff]
    %v1224 = vld [vmem:[#allocation8 + $0x88] sm:$0xf]
    %v1225 = vld [vmem:[#allocation8 + $0x8c] sm:$0xff]
    %v1226 = vld [vmem:[#allocation8 + $0x94] sm:$0xff]
    %v1227 = vld [vmem:[#allocation8 + $0x9c] sm:$0xff]
    %v1228 = vld [vmem:[#allocation8 + $0xa4] sm:$0xf]
    %v1229 = vld [vmem:[#allocation8 + $0xa8] sm:$0xff]
    %v1230 = vld [vmem:[#allocation8 + $0xb0] sm:$0xff]
    %v1231 = vld [vmem:[#allocation8 + $0xb8] sm:$0xff]
    %v1232 = vld [vmem:[#allocation8 + $0xc0] sm:$0xf]
    %v1233 = vld [vmem:[#allocation8 + $0xc4] sm:$0xff]
    %v1234 = vld [vmem:[#allocation8 + $0xcc] sm:$0xff]
    %v1235 = vld [vmem:[#allocation8 + $0xd4] sm:$0xff]
    %v1236 = vld [vmem:[#allocation8 + $0xdc] sm:$0xf]
    %v1237 = vld [vmem:[#allocation8 + $0xe0] sm:$0xff]
    %v1238 = vld [vmem:[#allocation8 + $0xe8] sm:$0xff]
    %v1239 = vld [vmem:[#allocation8 + $0xf0] sm:$0xff]
    %v1240 = vld [vmem:[#allocation8 + $0xf8] sm:$0xf]
    %v1241 = vld [vmem:[#allocation8 + $0xfc] sm:$0xff]
    %v1242 = vld [vmem:[#allocation8 + $0x104] sm:$0xff]
    %v1243 = vld [vmem:[#allocation8 + $0x10c] sm:$0xff]
    %v1244 = vld [vmem:[#allocation8 + $0x114] sm:$0xf]
    %v1245 = vld [vmem:[#allocation8 + $0x118] sm:$0xff]
    %v1246 = vld [vmem:[#allocation8 + $0x120] sm:$0xff]
    %v1247 = vld [vmem:[#allocation8 + $0x128] sm:$0xff]
    %v1248 = vld [vmem:[#allocation8 + $0x130] sm:$0xf]
    %v1249 = vld [vmem:[#allocation8 + $0x134] sm:$0xff]
    %v1250 = vld [vmem:[#allocation8 + $0x13c] sm:$0xff]
    %v1251 = vld [vmem:[#allocation8 + $0x144] sm:$0xff]
    %v1252 = vld [vmem:[#allocation8 + $0x14c] sm:$0xf]
    %v1253 = vld [vmem:[#allocation8 + $0x150] sm:$0xff]
    %v1254 = vld [vmem:[#allocation8 + $0x158] sm:$0xff]
    %v1255 = vld [vmem:[#allocation8 + $0x160] sm:$0xff]
    %v1256 = vld [vmem:[#allocation8 + $0x168] sm:$0xf]
    %v1257 = vld [vmem:[#allocation8 + $0x16c] sm:$0xff]
    %v1258 = vld [vmem:[#allocation8 + $0x174] sm:$0xff]
    %v1259 = vld [vmem:[#allocation8 + $0x17c] sm:$0xff]
    %v1260 = vld [vmem:[#allocation8 + $0x184] sm:$0xf]
    %v1261 = vld [vmem:[#allocation8 + $0x188] sm:$0xff]
    %v1262 = vld [vmem:[#allocation8 + $0x190] sm:$0xff]
    %v1263 = vld [vmem:[#allocation8 + $0x198] sm:$0xff]
    %v1264 = vld [vmem:[#allocation8 + $0x1a0] sm:$0xf]
    %v1265 = vld [vmem:[#allocation8 + $0x1a4] sm:$0xff]
    %v1266 = vld [vmem:[#allocation8 + $0x1ac] sm:$0xff]
    %v1267 = vld [vmem:[#allocation8 + $0x1b4] sm:$0xff]
    %v1268 = vld [vmem:[#allocation8 + $0x1bc] sm:$0xf]
    %v1269 = vld [vmem:[#allocation8 + $0x1c0] sm:$0xff]
    %v1270 = vld [vmem:[#allocation8 + $0x1c8] sm:$0xff]
    %v1271 = vld [vmem:[#allocation8 + $0x1d0] sm:$0xff]
    %v1272 = vld [vmem:[#allocation8 + $0x1d8] sm:$0xf]
    %v1273 = vld [vmem:[#allocation8 + $0x1dc] sm:$0xff]
    %v1274 = vld [vmem:[#allocation8 + $0x1e4] sm:$0xff]
    %v1275 = vld [vmem:[#allocation8 + $0x1ec] sm:$0xff]
    %v1276 = vld [vmem:[#allocation8 + $0x1f4] sm:$0xf]
    %v1277 = vld [vmem:[#allocation8 + $0x1f8] sm:$0xff]
    %v1278 = vld [vmem:[#allocation8 + $0x200] sm:$0xff]
    %v1279 = vld [vmem:[#allocation8 + $0x208] sm:$0xff]
    %v1280 = vld [vmem:[#allocation8 + $0x210] sm:$0xf]
    %v1281 = vld [vmem:[#allocation8 + $0x214] sm:$0xff]
    %v1282 = vld [vmem:[#allocation8 + $0x21c] sm:$0xff]
    %v1283 = vld [vmem:[#allocation8 + $0x224] sm:$0xff]
    %v1284 = vld [vmem:[#allocation8 + $0x22c] sm:$0xf]
    %v1285 = vld [vmem:[#allocation8 + $0x230] sm:$0xff]
    %v1286 = vld [vmem:[#allocation8 + $0x238] sm:$0xff]
    %v1287 = vld [vmem:[#allocation8 + $0x240] sm:$0xff]
    %v1288 = vld [vmem:[#allocation8 + $0x248] sm:$0xf]
    %v1289 = vld [vmem:[#allocation8 + $0x24c] sm:$0xff]
    %v1290 = vld [vmem:[#allocation8 + $0x254] sm:$0xff]
    %v1291 = vld [vmem:[#allocation8 + $0x25c] sm:$0xff]
    %v1292 = vld [vmem:[#allocation8 + $0x264] sm:$0xf]
    %v1293 = vld [vmem:[#allocation8 + $0x268] sm:$0xff]
    %v1294 = vld [vmem:[#allocation8 + $0x270] sm:$0xff]
    %v1295 = vld [vmem:[#allocation8 + $0x278] sm:$0xff]
    %v1296 = vld [vmem:[#allocation8 + $0x280] sm:$0xf]
    %v1297 = vld [vmem:[#allocation8 + $0x284] sm:$0xff]
    %v1298 = vld [vmem:[#allocation8 + $0x28c] sm:$0xff]
    %v1299 = vld [vmem:[#allocation8 + $0x294] sm:$0xff]
    %v1300 = vld [vmem:[#allocation8 + $0x29c] sm:$0xf]
    %v1301 = vld [vmem:[#allocation8 + $0x2a0] sm:$0xff]
    %v1302 = vld [vmem:[#allocation8 + $0x2a8] sm:$0xff]
    %v1303 = vld [vmem:[#allocation8 + $0x2b0] sm:$0xff]
    %v1304 = vld [vmem:[#allocation8 + $0x2b8] sm:$0xf]
    %v1305 = vld [vmem:[#allocation8 + $0x2bc] sm:$0xff]
    %v1306 = vld [vmem:[#allocation8 + $0x2c4] sm:$0xff]
    %v1307 = vld [vmem:[#allocation8 + $0x2cc] sm:$0xff]
    %v1308 = vld [vmem:[#allocation8 + $0x2d4] sm:$0xf]
    %v1309 = vld [vmem:[#allocation8 + $0x2d8] sm:$0xff]
    %v1310 = vld [vmem:[#allocation8 + $0x2e0] sm:$0xff]
    %v1311 = vld [vmem:[#allocation8 + $0x2e8] sm:$0xff]
    %v1312 = vld [vmem:[#allocation8 + $0x2f0] sm:$0xf]
    %v1313 = vld [vmem:[#allocation8 + $0x2f4] sm:$0xff]
    %v1314 = vld [vmem:[#allocation8 + $0x2fc] sm:$0xff]
    %v1315 = vld [vmem:[#allocation8 + $0x304] sm:$0xff]
    %v1316 = vld [vmem:[#allocation8 + $0x30c] sm:$0xf]
    %v1317 = vld [vmem:[#allocation8 + $0x310] sm:$0xff]
    %v1318 = vld [vmem:[#allocation8 + $0x318] sm:$0xff]
    %v1319 = vld [vmem:[#allocation8 + $0x320] sm:$0xff]
    %v1320 = vld [vmem:[#allocation8 + $0x328] sm:$0xf]
    %v1321 = vld [vmem:[#allocation8 + $0x32c] sm:$0xff]
    %v1322 = vld [vmem:[#allocation8 + $0x334] sm:$0xff]
    %v1323 = vld [vmem:[#allocation8 + $0x33c] sm:$0xff]
    %v1324 = vld [vmem:[#allocation8 + $0x344] sm:$0xf]
    %v1325 = vld [vmem:[#allocation8 + $0x348] sm:$0xff]
    %v1326 = vld [vmem:[#allocation8 + $0x350] sm:$0xff]
    %v1327 = vld [vmem:[#allocation8 + $0x358] sm:$0xff]
    %v1328 = vld [vmem:[#allocation8 + $0x360] sm:$0xf]
    %v1329 = vld [vmem:[#allocation8 + $0x364] sm:$0xff]
    %v1330 = vld [vmem:[#allocation8 + $0x36c] sm:$0xff]
    %v1331 = vld [vmem:[#allocation8 + $0x374] sm:$0xff]
    %v1332 = vld [vmem:[#allocation8 + $0x37c] sm:$0xf]
    %v1333 = vld [vmem:[#allocation8 + $0x380] sm:$0xff]
    %v1334 = vld [vmem:[#allocation8 + $0x388] sm:$0xff]
    %v1335 = vld [vmem:[#allocation8 + $0x390] sm:$0xff]
    %v1336 = vld [vmem:[#allocation8 + $0x398] sm:$0xf]
    %v1337 = vld [vmem:[#allocation8 + $0x39c] sm:$0xff]
    %v1338 = vld [vmem:[#allocation8 + $0x3a4] sm:$0xff]
    %v1339 = vld [vmem:[#allocation8 + $0x3ac] sm:$0xff]
    %v1340 = vld [vmem:[#allocation8 + $0x3b4] sm:$0xf]
    %v1341 = vld [vmem:[#allocation8 + $0x3b8] sm:$0xff]
    %v1342 = vld [vmem:[#allocation8 + $0x3c0] sm:$0xff]
    %v1343 = vld [vmem:[#allocation8 + $0x3c8] sm:$0xff]
    %v1344 = vld [vmem:[#allocation8 + $0x3d0] sm:$0xf]
    %v1345 = vld [vmem:[#allocation8 + $0x3d4] sm:$0xff]
    %v1346 = vld [vmem:[#allocation8 + $0x3dc] sm:$0xff]
    %v1347 = vld [vmem:[#allocation8 + $0x3e4] sm:$0xff]
    %v1348 = vld [vmem:[#allocation8 + $0x3ec] sm:$0xf]
    %v1349 = vld [vmem:[#allocation8 + $0x3f0] sm:$0xff]
    %v1350 = vld [vmem:[#allocation8 + $0x3f8] sm:$0xff]
    %v1351 = vld [vmem:[#allocation8 + $0x400] sm:$0xff]
    %v1352 = vld [vmem:[#allocation8 + $0x408] sm:$0xf]
    %v1353 = vld [vmem:[#allocation8 + $0x40c] sm:$0xff]
    %v1354 = vld [vmem:[#allocation8 + $0x414] sm:$0xff]
    %v1355 = vld [vmem:[#allocation8 + $0x41c] sm:$0xff]
    %v1356 = vld [vmem:[#allocation8 + $0x424] sm:$0xf]
    %v1357 = vld [vmem:[#allocation8 + $0x428] sm:$0xff]
    %v1358 = vld [vmem:[#allocation8 + $0x430] sm:$0xff]
    %v1359 = vld [vmem:[#allocation8 + $0x438] sm:$0xff]
    %v1360 = vld [vmem:[#allocation8 + $0x440] sm:$0xf]
    %v1361 = vld [vmem:[#allocation8 + $0x444] sm:$0xff]
    %v1362 = vld [vmem:[#allocation8 + $0x44c] sm:$0xff]
    %v1363 = vld [vmem:[#allocation8 + $0x454] sm:$0xff]
    %v1364 = vld [vmem:[#allocation8 + $0x45c] sm:$0xf]
    %v1365 = vld [vmem:[#allocation8 + $0x460] sm:$0xff]
    %v1366 = vld [vmem:[#allocation8 + $0x468] sm:$0xff]
    %v1367 = vld [vmem:[#allocation8 + $0x470] sm:$0xff]
    %v1368 = vld [vmem:[#allocation8 + $0x478] sm:$0xf]
    %v1369 = vld [vmem:[#allocation8 + $0x47c] sm:$0xff]
    %v1370 = vld [vmem:[#allocation8 + $0x484] sm:$0xff]
    %v1371 = vld [vmem:[#allocation8 + $0x48c] sm:$0xff]
    %v1372 = vld [vmem:[#allocation8 + $0x494] sm:$0xf]
    %v1373 = vld [vmem:[#allocation8 + $0x498] sm:$0xff]
    %v1374 = vld [vmem:[#allocation8 + $0x4a0] sm:$0xff]
    %v1375 = vld [vmem:[#allocation8 + $0x4a8] sm:$0xff]
    %v1376 = vld [vmem:[#allocation8 + $0x4b0] sm:$0xf]
    %v1377 = vld [vmem:[#allocation8 + $0x4b4] sm:$0xff]
    %v1378 = vld [vmem:[#allocation8 + $0x4bc] sm:$0xff]
    %v1379 = vld [vmem:[#allocation8 + $0x4c4] sm:$0xff]
    %v1380 = vld [vmem:[#allocation8 + $0x4cc] sm:$0xf]
    %v1381 = vld [vmem:[#allocation8 + $0x4d0] sm:$0xff]
    %v1382 = vld [vmem:[#allocation8 + $0x4d8] sm:$0xff]
    %v1383 = vld [vmem:[#allocation8 + $0x4e0] sm:$0xff]
    %v1384 = vld [vmem:[#allocation8 + $0x4e8] sm:$0xf]
    %v1385 = vld [vmem:[#allocation8 + $0x4ec] sm:$0xff]
    %v1386 = vld [vmem:[#allocation8 + $0x4f4] sm:$0xff]
    %v1387 = vld [vmem:[#allocation8 + $0x4fc] sm:$0xff]
    %v1388 = vld [vmem:[#allocation8 + $0x504] sm:$0xf]
    %v1389 = vld [vmem:[#allocation8 + $0x508] sm:$0xff]
    %v1390 = vld [vmem:[#allocation8 + $0x510] sm:$0xff]
    %v1391 = vld [vmem:[#allocation8 + $0x518] sm:$0xff]
    %v1392 = vld [vmem:[#allocation8 + $0x520] sm:$0xf]
    %v1393 = vld [vmem:[#allocation8 + $0x524] sm:$0xff]
    %v1394 = vld [vmem:[#allocation8 + $0x52c] sm:$0xff]
    %v1395 = vld [vmem:[#allocation8 + $0x534] sm:$0xff]
    %v1396 = vld [vmem:[#allocation8 + $0x53c] sm:$0xf]
    %v1397 = vld [vmem:[#allocation8 + $0x540] sm:$0xff]
    %v1398 = vld [vmem:[#allocation8 + $0x548] sm:$0xff]
    %v1399 = vld [vmem:[#allocation8 + $0x550] sm:$0xff]
    %v1400 = vld [vmem:[#allocation8 + $0x558] sm:$0xf]
    %v1401 = vld [vmem:[#allocation8 + $0x55c] sm:$0xff]
    %v1402 = vld [vmem:[#allocation8 + $0x564] sm:$0xff]
    %v1403 = vld [vmem:[#allocation8 + $0x56c] sm:$0xff]
    %v1404 = vld [vmem:[#allocation8 + $0x574] sm:$0xf]
    %v1405 = vld [vmem:[#allocation8 + $0x578] sm:$0xff]
    %v1406 = vld [vmem:[#allocation8 + $0x580] sm:$0xff]
    %v1407 = vld [vmem:[#allocation8 + $0x588] sm:$0xff]
    %v1408 = vld [vmem:[#allocation8 + $0x590] sm:$0xf]
    %v1409 = vld [vmem:[#allocation8 + $0x594] sm:$0xff]
    %v1410 = vld [vmem:[#allocation8 + $0x59c] sm:$0xff]
    %v1411 = vld [vmem:[#allocation8 + $0x5a4] sm:$0xff]
    %v1412 = vld [vmem:[#allocation8 + $0x5ac] sm:$0xf]
    %v1413 = vld [vmem:[#allocation8 + $0x5b0] sm:$0xff]
    %v1414 = vld [vmem:[#allocation8 + $0x5b8] sm:$0xff]
    %v1415 = vld [vmem:[#allocation8 + $0x5c0] sm:$0xff]
    %v1416 = vld [vmem:[#allocation8 + $0x5c8] sm:$0xf]
    %v1417 = vld [vmem:[#allocation8 + $0x5cc] sm:$0xff]
    %v1418 = vld [vmem:[#allocation8 + $0x5d4] sm:$0xff]
    %v1419 = vld [vmem:[#allocation8 + $0x5dc] sm:$0xff]
    %v1420 = vld [vmem:[#allocation8 + $0x5e4] sm:$0xf]
    %v1421 = vld [vmem:[#allocation8 + $0x5e8] sm:$0xff]
    %v1422 = vld [vmem:[#allocation8 + $0x5f0] sm:$0xff]
    %v1423 = vld [vmem:[#allocation8 + $0x5f8] sm:$0xff]
    %v1424 = vld [vmem:[#allocation8 + $0x600] sm:$0xf]
    %v1425 = vld [vmem:[#allocation8 + $0x604] sm:$0xff]
    %v1426 = vld [vmem:[#allocation8 + $0x60c] sm:$0xff]
    %v1427 = vld [vmem:[#allocation8 + $0x614] sm:$0xff]
    %v1428 = vld [vmem:[#allocation8 + $0x61c] sm:$0xf]
    %v1429 = vld [vmem:[#allocation8 + $0x620] sm:$0xff]
    %v1430 = vld [vmem:[#allocation8 + $0x628] sm:$0xff]
    %v1431 = vld [vmem:[#allocation8 + $0x630] sm:$0xff]
    %v1432 = vld [vmem:[#allocation8 + $0x638] sm:$0xf]
    %v1433 = vld [vmem:[#allocation8 + $0x63c] sm:$0xff]
    %v1434 = vld [vmem:[#allocation8 + $0x644] sm:$0xff]
    %v1435 = vld [vmem:[#allocation8 + $0x64c] sm:$0xff]
    %v1436 = vld [vmem:[#allocation8 + $0x654] sm:$0xf]
    %v1437 = vld [vmem:[#allocation8 + $0x658] sm:$0xff]
    %v1438 = vld [vmem:[#allocation8 + $0x660] sm:$0xff]
    %v1439 = vld [vmem:[#allocation8 + $0x668] sm:$0xff]
    %v1440 = vld [vmem:[#allocation8 + $0x670] sm:$0xf]
    %v1441 = vld [vmem:[#allocation8 + $0x674] sm:$0xff]
    %v1442 = vld [vmem:[#allocation8 + $0x67c] sm:$0xff]
    %v1443 = vld [vmem:[#allocation8 + $0x684] sm:$0xff]
    %v1444 = vld [vmem:[#allocation8 + $0x68c] sm:$0xf]
    %v1445 = vld [vmem:[#allocation8 + $0x690] sm:$0xff]
    %v1446 = vld [vmem:[#allocation8 + $0x698] sm:$0xff]
    %v1447 = vld [vmem:[#allocation8 + $0x6a0] sm:$0xff]
    %v1448 = vld [vmem:[#allocation8 + $0x6a8] sm:$0xf]
    %v1449 = vld [vmem:[#allocation8 + $0x6ac] sm:$0xff]
    %v1450 = vld [vmem:[#allocation8 + $0x6b4] sm:$0xff]
    %v1451 = vld [vmem:[#allocation8 + $0x6bc] sm:$0xff]
    %v1452 = vld [vmem:[#allocation8 + $0x6c4] sm:$0xf]
    %v1453 = vld [vmem:[#allocation8 + $0x6c8] sm:$0xff]
    %v1454 = vld [vmem:[#allocation8 + $0x6d0] sm:$0xff]
    %v1455 = vld [vmem:[#allocation8 + $0x6d8] sm:$0xff]
    %v1456 = vld [vmem:[#allocation8 + $0x6e0] sm:$0xf]
    %v1457 = vld [vmem:[#allocation8 + $0x6e4] sm:$0xff]
    %v1458 = vld [vmem:[#allocation8 + $0x6ec] sm:$0xff]
    %v1459 = vld [vmem:[#allocation8 + $0x6f4] sm:$0xff]
    %v1460 = vld [vmem:[#allocation8 + $0x6fc] sm:$0xf]
    %v1461 = vld [vmem:[#allocation8 + $0x700] sm:$0xff]
    %v1462 = vld [vmem:[#allocation8 + $0x708] sm:$0xff]
    %v1463 = vld [vmem:[#allocation8 + $0x710] sm:$0xff]
    %v1464 = vld [vmem:[#allocation8 + $0x718] sm:$0xf]
    %v1465 = vld [vmem:[#allocation8 + $0x71c] sm:$0xff]
    %v1466 = vld [vmem:[#allocation8 + $0x724] sm:$0xff]
    %v1467 = vld [vmem:[#allocation8 + $0x72c] sm:$0xff]
    %v1468 = vld [vmem:[#allocation8 + $0x734] sm:$0xf]
    %v1469 = vld [vmem:[#allocation8 + $0x738] sm:$0xff]
    %v1470 = vld [vmem:[#allocation8 + $0x740] sm:$0xff]
    %v1471 = vld [vmem:[#allocation8 + $0x748] sm:$0xff]
    %v1472 = vld [vmem:[#allocation8 + $0x750] sm:$0xf]
    %v1473 = vld [vmem:[#allocation8 + $0x754] sm:$0xff]
    %v1474 = vld [vmem:[#allocation8 + $0x75c] sm:$0xff]
    %v1475 = vld [vmem:[#allocation8 + $0x764] sm:$0xff]
    %v1476 = vld [vmem:[#allocation8 + $0x76c] sm:$0xf]
    %v1477 = vld [vmem:[#allocation8 + $0x770] sm:$0xff]
    %v1478 = vld [vmem:[#allocation8 + $0x778] sm:$0xff]
    %v1479 = vld [vmem:[#allocation8 + $0x780] sm:$0xff]
    %v1480 = vld [vmem:[#allocation8 + $0x788] sm:$0xf]
    %v1481 = vld [vmem:[#allocation8 + $0x78c] sm:$0xff]
    %v1482 = vld [vmem:[#allocation8 + $0x794] sm:$0xff]
    %v1483 = vld [vmem:[#allocation8 + $0x79c] sm:$0xff]
    %v1484 = vld [vmem:[#allocation8 + $0x7a4] sm:$0xf]
    %v1485 = vld [vmem:[#allocation8 + $0x7a8] sm:$0xff]
    %v1486 = vld [vmem:[#allocation8 + $0x7b0] sm:$0xff]
    %v1487 = vld [vmem:[#allocation8 + $0x7b8] sm:$0xff]
    %v1488 = vld [vmem:[#allocation8 + $0x7c0] sm:$0xf]
    %v1489 = vld [vmem:[#allocation8 + $0x7c4] sm:$0xff]
    %v1490 = vld [vmem:[#allocation8 + $0x7cc] sm:$0xff]
    %v1491 = vld [vmem:[#allocation8 + $0x7d4] sm:$0xff]
    %v1492 = vld [vmem:[#allocation8 + $0x7dc] sm:$0xf]
    %v1493 = vld [vmem:[#allocation8 + $0x7e0] sm:$0xff]
    %v1494 = vld [vmem:[#allocation8 + $0x7e8] sm:$0xff]
    %v1495 = vld [vmem:[#allocation8 + $0x7f0] sm:$0xff]
    %v1496 = vld [vmem:[#allocation8 + $0x7f8] sm:$0xf]
    %v1497 = vld [vmem:[#allocation8 + $0x7fc] sm:$0xff]
    %v1498 = vld [vmem:[#allocation8 + $0x804] sm:$0xff]
    %v1499 = vld [vmem:[#allocation8 + $0x80c] sm:$0xff]
    %v1500 = vld [vmem:[#allocation8 + $0x814] sm:$0xf]
    %v1501 = vld [vmem:[#allocation8 + $0x818] sm:$0xff]
    %v1502 = vld [vmem:[#allocation8 + $0x820] sm:$0xff]
    %v1503 = vld [vmem:[#allocation8 + $0x828] sm:$0xff]
    %v1504 = vld [vmem:[#allocation8 + $0x830] sm:$0xf]
    %v1505 = vld [vmem:[#allocation8 + $0x834] sm:$0xff]
    %v1506 = vld [vmem:[#allocation8 + $0x83c] sm:$0xff]
    %v1507 = vld [vmem:[#allocation8 + $0x844] sm:$0xff]
    %v1508 = vld [vmem:[#allocation8 + $0x84c] sm:$0xf]
    %v1509 = vld [vmem:[#allocation8 + $0x850] sm:$0xff]
    %v1510 = vld [vmem:[#allocation8 + $0x858] sm:$0xff]
    %v1511 = vld [vmem:[#allocation8 + $0x860] sm:$0xff]
    %v1512 = vld [vmem:[#allocation8 + $0x868] sm:$0xf]
    %v1513 = vld [vmem:[#allocation8 + $0x86c] sm:$0xff]
    %v1514 = vld [vmem:[#allocation8 + $0x874] sm:$0xff]
    %v1515 = vld [vmem:[#allocation8 + $0x87c] sm:$0xff]
    %v1516 = vld [vmem:[#allocation8 + $0x884] sm:$0xf]
    %v1517 = vld [vmem:[#allocation8 + $0x888] sm:$0xff]
    %v1518 = vld [vmem:[#allocation8 + $0x890] sm:$0xff]
    %v1519 = vld [vmem:[#allocation8 + $0x898] sm:$0xff]
    %v1520 = vld [vmem:[#allocation8 + $0x8a0] sm:$0xf]
    %v1521 = vld [vmem:[#allocation8 + $0x8a4] sm:$0xff]
    %v1522 = vld [vmem:[#allocation8 + $0x8ac] sm:$0xff]
    %v1523 = vld [vmem:[#allocation8 + $0x8b4] sm:$0xff]
    %v1524 = vld [vmem:[#allocation8 + $0x8bc] sm:$0xf]
    %v1525 = vld [vmem:[#allocation8 + $0x8c0] sm:$0xff]
    %v1526 = vld [vmem:[#allocation8 + $0x8c8] sm:$0xff]
    %v1527 = vld [vmem:[#allocation8 + $0x8d0] sm:$0xff]
    %v1528 = vld [vmem:[#allocation8 + $0x8d8] sm:$0xf]
    %v1529 = vld [vmem:[#allocation8 + $0x8dc] sm:$0xff]
    %v1530 = vld [vmem:[#allocation8 + $0x8e4] sm:$0xff]
    %v1531 = vld [vmem:[#allocation8 + $0x8ec] sm:$0xff]
    %v1532 = vld [vmem:[#allocation8 + $0x8f4] sm:$0xf]
    %v1533 = vld [vmem:[#allocation8 + $0x8f8] sm:$0xff]
    %v1534 = vld [vmem:[#allocation8 + $0x900] sm:$0xff]
    %v1535 = vld [vmem:[#allocation8 + $0x908] sm:$0xff]
    %v1536 = vld [vmem:[#allocation8 + $0x910] sm:$0xf]
    %v1537 = vld [vmem:[#allocation8 + $0x914] sm:$0xff]
    %v1538 = vld [vmem:[#allocation8 + $0x91c] sm:$0xff]
    %v1539 = vld [vmem:[#allocation8 + $0x924] sm:$0xff]
    %v1540 = vld [vmem:[#allocation8 + $0x92c] sm:$0xf]
    %v1541 = vld [vmem:[#allocation8 + $0x930] sm:$0xff]
    %v1542 = vld [vmem:[#allocation8 + $0x938] sm:$0xff]
    %v1543 = vld [vmem:[#allocation8 + $0x940] sm:$0xff]
    %v1544 = vld [vmem:[#allocation8 + $0x948] sm:$0xf]
    %v1545 = vld [vmem:[#allocation8 + $0x94c] sm:$0xff]
    %v1546 = vld [vmem:[#allocation8 + $0x954] sm:$0xff]
    %v1547 = vld [vmem:[#allocation8 + $0x95c] sm:$0xff]
    %v1548 = vld [vmem:[#allocation8 + $0x964] sm:$0xf]
    %v1549 = vld [vmem:[#allocation8 + $0x968] sm:$0xff]
    %v1550 = vld [vmem:[#allocation8 + $0x970] sm:$0xff]
    %v1551 = vld [vmem:[#allocation8 + $0x978] sm:$0xff]
    %v1552 = vld [vmem:[#allocation8 + $0x980] sm:$0xf]
    %v1553 = vld [vmem:[#allocation8 + $0x984] sm:$0xff]
    %v1554 = vld [vmem:[#allocation8 + $0x98c] sm:$0xff]
    %v1555 = vld [vmem:[#allocation8 + $0x994] sm:$0xff]
    %v1556 = vld [vmem:[#allocation8 + $0x99c] sm:$0xf]
    %v1557 = vld [vmem:[#allocation8 + $0x9a0] sm:$0xff]
    %v1558 = vld [vmem:[#allocation8 + $0x9a8] sm:$0xff]
    %v1559 = vld [vmem:[#allocation8 + $0x9b0] sm:$0xff]
    %v1560 = vld [vmem:[#allocation8 + $0x9b8] sm:$0xf]
    %v1561 = vld [vmem:[#allocation8 + $0x9bc] sm:$0xff]
    %v1562 = vld [vmem:[#allocation8 + $0x9c4] sm:$0xff]
    %v1563 = vld [vmem:[#allocation8 + $0x9cc] sm:$0xff]
    %v1564 = vld [vmem:[#allocation8 + $0x9d4] sm:$0xf]
    %v1565 = vld [vmem:[#allocation8 + $0x9d8] sm:$0xff]
    %v1566 = vld [vmem:[#allocation8 + $0x9e0] sm:$0xff]
    %v1567 = vld [vmem:[#allocation8 + $0x9e8] sm:$0xff]
    %v1568 = vld [vmem:[#allocation8 + $0x9f0] sm:$0xf]
    %v1569 = vld [vmem:[#allocation8 + $0x9f4] sm:$0xff]
    %v1570 = vld [vmem:[#allocation8 + $0x9fc] sm:$0xff]
    %v1571 = vld [vmem:[#allocation8 + $0xa04] sm:$0xff]
    %v1572 = vld [vmem:[#allocation8 + $0xa0c] sm:$0xf]
    %v1573 = vld [vmem:[#allocation8 + $0xa10] sm:$0xff]
    %v1574 = vld [vmem:[#allocation8 + $0xa18] sm:$0xff]
    %v1575 = vld [vmem:[#allocation8 + $0xa20] sm:$0xff]
    %v1576 = vld [vmem:[#allocation8 + $0xa28] sm:$0xf]
    %v1577 = vld [vmem:[#allocation8 + $0xa2c] sm:$0xff]
    %v1578 = vld [vmem:[#allocation8 + $0xa34] sm:$0xff]
    %v1579 = vld [vmem:[#allocation8 + $0xa3c] sm:$0xff]
    %v1580 = vld [vmem:[#allocation8 + $0xa44] sm:$0xf]
    %v1581 = vld [vmem:[#allocation8 + $0xa48] sm:$0xff]
    %v1582 = vld [vmem:[#allocation8 + $0xa50] sm:$0xff]
    %v1583 = vld [vmem:[#allocation8 + $0xa58] sm:$0xff]
    %v1584 = vld [vmem:[#allocation8 + $0xa60] sm:$0xf]
    %v1585 = vld [vmem:[#allocation8 + $0xa64] sm:$0xff]
    %v1586 = vld [vmem:[#allocation8 + $0xa6c] sm:$0xff]
    %v1587 = vld [vmem:[#allocation8 + $0xa74] sm:$0xff]
    %v1588 = vld [vmem:[#allocation8 + $0xa7c] sm:$0xf]
    %v1589 = vld [vmem:[#allocation8 + $0xa80] sm:$0xff]
    %v1590 = vld [vmem:[#allocation8 + $0xa88] sm:$0xff]
    %v1591 = vld [vmem:[#allocation8 + $0xa90] sm:$0xff]
    %v1592 = vld [vmem:[#allocation8 + $0xa98] sm:$0xf]
    %v1593 = vld [vmem:[#allocation8 + $0xa9c] sm:$0xff]
    %v1594 = vld [vmem:[#allocation8 + $0xaa4] sm:$0xff]
    %v1595 = vld [vmem:[#allocation8 + $0xaac] sm:$0xff]
    %v1596 = vld [vmem:[#allocation8 + $0xab4] sm:$0xf]
    %v1597 = vld [vmem:[#allocation8 + $0xab8] sm:$0xff]
    %v1598 = vld [vmem:[#allocation8 + $0xac0] sm:$0xff]
    %v1599 = vld [vmem:[#allocation8 + $0xac8] sm:$0xff]
    %v1600 = vld [vmem:[#allocation8 + $0xad0] sm:$0xf]
    %v1601 = vld [vmem:[#allocation8 + $0xad4] sm:$0xff]
    %v1602 = vld [vmem:[#allocation8 + $0xadc] sm:$0xff]
    %v1603 = vld [vmem:[#allocation8 + $0xae4] sm:$0xff]
    %v1604 = vld [vmem:[#allocation8 + $0xaec] sm:$0xf]
    %v1605 = vld [vmem:[#allocation8 + $0xaf0] sm:$0xff]
    %v1606 = vld [vmem:[#allocation8 + $0xaf8] sm:$0xff]
    %v1607 = vld [vmem:[#allocation8 + $0xb00] sm:$0xff]
    %v1608 = vld [vmem:[#allocation8 + $0xb08] sm:$0xf]
    %v1609 = vld [vmem:[#allocation8 + $0xb0c] sm:$0xff]
    %v1610 = vld [vmem:[#allocation8 + $0xb14] sm:$0xff]
    %v1611 = vld [vmem:[#allocation8 + $0xb1c] sm:$0xff]
    %v1612 = vld [vmem:[#allocation8 + $0xb24] sm:$0xf]
    %v1613 = vld [vmem:[#allocation8 + $0xb28] sm:$0xff]
    %v1614 = vld [vmem:[#allocation8 + $0xb30] sm:$0xff]
    %v1615 = vld [vmem:[#allocation8 + $0xb38] sm:$0xff]
    %v1616 = vld [vmem:[#allocation8 + $0xb40] sm:$0xf]
    %v1617 = vld [vmem:[#allocation8 + $0xb44] sm:$0xff]
    %v1618 = vld [vmem:[#allocation8 + $0xb4c] sm:$0xff]
    %v1619 = vld [vmem:[#allocation8 + $0xb54] sm:$0xff]
    %v1620 = vld [vmem:[#allocation8 + $0xb5c] sm:$0xf]
    %v1621 = vld [vmem:[#allocation8 + $0xb60] sm:$0xff]
    %v1622 = vld [vmem:[#allocation8 + $0xb68] sm:$0xff]
    %v1623 = vld [vmem:[#allocation8 + $0xb70] sm:$0xff]
    %v1624 = vld [vmem:[#allocation8 + $0xb78] sm:$0xf]
    %v1625 = vld [vmem:[#allocation8 + $0xb7c] sm:$0xff]
    %v1626 = vld [vmem:[#allocation8 + $0xb84] sm:$0xff]
    %v1627 = vld [vmem:[#allocation8 + $0xb8c] sm:$0xff]
    %v1628 = vld [vmem:[#allocation8 + $0xb94] sm:$0xf]
    %v1629 = vld [vmem:[#allocation8 + $0xb98] sm:$0xff]
    %v1630 = vld [vmem:[#allocation8 + $0xba0] sm:$0xff]
    %v1631 = vld [vmem:[#allocation8 + $0xba8] sm:$0xff]
    %v1632 = vld [vmem:[#allocation8 + $0xbb0] sm:$0xf]
    %v1633 = vld [vmem:[#allocation8 + $0xbb4] sm:$0xff]
    %v1634 = vld [vmem:[#allocation8 + $0xbbc] sm:$0xff]
    %v1635 = vld [vmem:[#allocation8 + $0xbc4] sm:$0xff]
    %v1636 = vld [vmem:[#allocation8 + $0xbcc] sm:$0xf]
    %v1637 = vld [vmem:[#allocation8 + $0xbd0] sm:$0xff]
    %v1638 = vld [vmem:[#allocation8 + $0xbd8] sm:$0xff]
    %v1639 = vld [vmem:[#allocation8 + $0xbe0] sm:$0xff]
    %v1640 = vld [vmem:[#allocation8 + $0xbe8] sm:$0xf]
    %v1641 = vld [vmem:[#allocation8 + $0xbec] sm:$0xff]
    %v1642 = vld [vmem:[#allocation8 + $0xbf4] sm:$0xff]
    %v1643 = vld [vmem:[#allocation8 + $0xbfc] sm:$0xff]
    %v1644 = vld [vmem:[#allocation8 + $0xc04] sm:$0xf]
    %v1645 = vld [vmem:[#allocation8 + $0xc08] sm:$0xff]
    %v1646 = vld [vmem:[#allocation8 + $0xc10] sm:$0xff]
    %v1647 = vld [vmem:[#allocation8 + $0xc18] sm:$0xff]
    %v1648 = vld [vmem:[#allocation8 + $0xc20] sm:$0xf]
    %v1649 = vld [vmem:[#allocation8 + $0xc24] sm:$0xff]
    %v1650 = vld [vmem:[#allocation8 + $0xc2c] sm:$0xff]
    %v1651 = vld [vmem:[#allocation8 + $0xc34] sm:$0xff]
    %v1652 = vld [vmem:[#allocation8 + $0xc3c] sm:$0xf]
    %v1653 = vld [vmem:[#allocation8 + $0xc40] sm:$0xff]
    %v1654 = vld [vmem:[#allocation8 + $0xc48] sm:$0xff]
    %v1655 = vld [vmem:[#allocation8 + $0xc50] sm:$0xff]
    %v1656 = vld [vmem:[#allocation8 + $0xc58] sm:$0xf]
    %v1657 = vld [vmem:[#allocation8 + $0xc5c] sm:$0xff]
    %v1658 = vld [vmem:[#allocation8 + $0xc64] sm:$0xff]
    %v1659 = vld [vmem:[#allocation8 + $0xc6c] sm:$0xff]
    %v1660 = vld [vmem:[#allocation8 + $0xc74] sm:$0xf]
    %v1661 = vld [vmem:[#allocation8 + $0xc78] sm:$0xff]
    %v1662 = vld [vmem:[#allocation8 + $0xc80] sm:$0xff]
    %v1663 = vld [vmem:[#allocation8 + $0xc88] sm:$0xff]
    %v1664 = vld [vmem:[#allocation8 + $0xc90] sm:$0xf]
    %v1665 = vld [vmem:[#allocation8 + $0xc94] sm:$0xff]
    %v1666 = vld [vmem:[#allocation8 + $0xc9c] sm:$0xff]
    %v1667 = vld [vmem:[#allocation8 + $0xca4] sm:$0xff]
    %v1668 = vld [vmem:[#allocation8 + $0xcac] sm:$0xf]
    %v1669 = vld [vmem:[#allocation8 + $0xcb0] sm:$0xff]
    %v1670 = vld [vmem:[#allocation8 + $0xcb8] sm:$0xff]
    %v1671 = vld [vmem:[#allocation8 + $0xcc0] sm:$0xff]
    %v1672 = vld [vmem:[#allocation8 + $0xcc8] sm:$0xf]
    %v1673 = vld [vmem:[#allocation8 + $0xccc] sm:$0xff]
    %v1674 = vld [vmem:[#allocation8 + $0xcd4] sm:$0xff]
    %v1675 = vld [vmem:[#allocation8 + $0xcdc] sm:$0xff]
    %v1676 = vld [vmem:[#allocation8 + $0xce4] sm:$0xf]
    %v1677 = vld [vmem:[#allocation8 + $0xce8] sm:$0xff]
    %v1678 = vld [vmem:[#allocation8 + $0xcf0] sm:$0xff]
    %v1679 = vld [vmem:[#allocation8 + $0xcf8] sm:$0xff]
    %v1680 = vld [vmem:[#allocation8 + $0xd00] sm:$0xf]
    %v1681 = vld [vmem:[#allocation8 + $0xd04] sm:$0xff]
    %v1682 = vld [vmem:[#allocation8 + $0xd0c] sm:$0xff]
    %v1683 = vld [vmem:[#allocation8 + $0xd14] sm:$0xff]
    %v1684 = vld [vmem:[#allocation8 + $0xd1c] sm:$0xf]
    %v1685 = vld [vmem:[#allocation8 + $0xd20] sm:$0xff]
    %v1686 = vld [vmem:[#allocation8 + $0xd28] sm:$0xff]
    %v1687 = vld [vmem:[#allocation8 + $0xd30] sm:$0xff]
    %v1688 = vld [vmem:[#allocation8 + $0xd38] sm:$0xf]
    %v1689 = vld [vmem:[#allocation8 + $0xd3c] sm:$0xff]
    %v1690 = vld [vmem:[#allocation8 + $0xd44] sm:$0xff]
    %v1691 = vld [vmem:[#allocation8 + $0xd4c] sm:$0xff]
    %v1692 = vld [vmem:[#allocation8 + $0xd54] sm:$0xf]
    %v1693 = vld [vmem:[#allocation8 + $0xd58] sm:$0xff]
    %v1694 = vld [vmem:[#allocation8 + $0xd60] sm:$0xff]
    %v1695 = vld [vmem:[#allocation8 + $0xd68] sm:$0xff]
    %v1696 = vld [vmem:[#allocation8 + $0xd70] sm:$0xf]
    %v1697 = vld [vmem:[#allocation8 + $0xd74] sm:$0xff]
    %v1698 = vld [vmem:[#allocation8 + $0xd7c] sm:$0xff]
    %v1699 = vld [vmem:[#allocation8 + $0xd84] sm:$0xff]
    %v1700 = vld [vmem:[#allocation8 + $0xd8c] sm:$0xf]
    %v1701 = vld [vmem:[#allocation8 + $0xd90] sm:$0xff]
    %v1702 = vld [vmem:[#allocation8 + $0xd98] sm:$0xff]
    %v1703 = vld [vmem:[#allocation8 + $0xda0] sm:$0xff]
    %v1704 = vld [vmem:[#allocation8 + $0xda8] sm:$0xf]
    %v1705 = vld [vmem:[#allocation8 + $0xdac] sm:$0xff]
    %v1706 = vld [vmem:[#allocation8 + $0xdb4] sm:$0xff]
    %v1707 = vld [vmem:[#allocation8 + $0xdbc] sm:$0xff]
    %v1708 = vld [vmem:[#allocation8 + $0xdc4] sm:$0xf]
    %v1709 = vld [vmem:[#allocation8 + $0xdc8] sm:$0xff]
    %v1710 = vld [vmem:[#allocation8 + $0xdd0] sm:$0xff]
    %v1711 = vld [vmem:[#allocation8 + $0xdd8] sm:$0xff]
    %v1712 = vld [vmem:[#allocation8 + $0xde0] sm:$0xf]
    %v1713 = vld [vmem:[#allocation8 + $0xde4] sm:$0xff]
    %v1714 = vld [vmem:[#allocation8 + $0xdec] sm:$0xff]
    %v1715 = vld [vmem:[#allocation8 + $0xdf4] sm:$0xff]
    %v1716 = vld [vmem:[#allocation8 + $0xdfc] sm:$0xf]
    %v1717 = vld [vmem:[#allocation10] sm:$0xff]
    %v1719 = vperm.slane %v1717, 0
    %v1720 = vperm.slane %v1717, 1
    %v1721 = vperm.slane %v1717, 2
    %v1722 = vperm.slane %v1717, 3
    %v1723 = vperm.slane %v1717, 4
    %v1724 = vperm.slane %v1717, 5
    %v1725 = vperm.slane %v1717, 6
    %v2245 = vunpack.c.l.b16 %v1205
    %v2246 = vunpack.c.h.b16 %v1205
    %v2247 = vunpack.c.l.b16 %v1206
    %v2248 = vunpack.c.h.b16 %v1206
    %v2249 = vunpack.c.l.b16 %v1207
    %v2250 = vunpack.c.h.b16 %v1207
    %v2251 = vunpack.c.l.b16 %v1208
    %v2252 = vunpack.c.l.b16 %v1209
    %v2253 = vunpack.c.h.b16 %v1209
    %v2254 = vunpack.c.l.b16 %v1210
    %v2255 = vunpack.c.h.b16 %v1210
    %v2256 = vunpack.c.l.b16 %v1211
    %v2257 = vunpack.c.h.b16 %v1211
    %v2258 = vunpack.c.l.b16 %v1212
    %v2259 = vunpack.c.l.b16 %v1213
    %v2260 = vunpack.c.h.b16 %v1213
    %v2261 = vunpack.c.l.b16 %v1214
    %v2262 = vunpack.c.h.b16 %v1214
    %v2263 = vunpack.c.l.b16 %v1215
    %v2264 = vunpack.c.h.b16 %v1215
    %v2265 = vunpack.c.l.b16 %v1216
    %v2266 = vunpack.c.l.b16 %v1217
    %v2267 = vunpack.c.h.b16 %v1217
    %v2268 = vunpack.c.l.b16 %v1218
    %v2269 = vunpack.c.h.b16 %v1218
    %v2270 = vunpack.c.l.b16 %v1219
    %v2271 = vunpack.c.h.b16 %v1219
    %v2272 = vunpack.c.l.b16 %v1220
    %v2273 = vunpack.c.l.b16 %v1221
    %v2274 = vunpack.c.h.b16 %v1221
    %v2275 = vunpack.c.l.b16 %v1222
    %v2276 = vunpack.c.h.b16 %v1222
    %v2277 = vunpack.c.l.b16 %v1223
    %v2278 = vunpack.c.h.b16 %v1223
    %v2279 = vunpack.c.l.b16 %v1224
    %v2280 = vunpack.c.l.b16 %v1225
    %v2281 = vunpack.c.h.b16 %v1225
    %v2282 = vunpack.c.l.b16 %v1226
    %v2283 = vunpack.c.h.b16 %v1226
    %v2284 = vunpack.c.l.b16 %v1227
    %v2285 = vunpack.c.h.b16 %v1227
    %v2286 = vunpack.c.l.b16 %v1228
    %v2287 = vunpack.c.l.b16 %v1229
    %v2288 = vunpack.c.h.b16 %v1229
    %v2289 = vunpack.c.l.b16 %v1230
    %v2290 = vunpack.c.h.b16 %v1230
    %v2291 = vunpack.c.l.b16 %v1231
    %v2292 = vunpack.c.h.b16 %v1231
    %v2293 = vunpack.c.l.b16 %v1232
    %v2294 = vunpack.c.l.b16 %v1233
    %v2295 = vunpack.c.h.b16 %v1233
    %v2296 = vunpack.c.l.b16 %v1234
    %v2297 = vunpack.c.h.b16 %v1234
    %v2298 = vunpack.c.l.b16 %v1235
    %v2299 = vunpack.c.h.b16 %v1235
    %v2300 = vunpack.c.l.b16 %v1236
    %v2301 = vunpack.c.l.b16 %v1237
    %v2302 = vunpack.c.h.b16 %v1237
    %v2303 = vunpack.c.l.b16 %v1238
    %v2304 = vunpack.c.h.b16 %v1238
    %v2305 = vunpack.c.l.b16 %v1239
    %v2306 = vunpack.c.h.b16 %v1239
    %v2307 = vunpack.c.l.b16 %v1240
    %v2308 = vunpack.c.l.b16 %v1241
    %v2309 = vunpack.c.h.b16 %v1241
    %v2310 = vunpack.c.l.b16 %v1242
    %v2311 = vunpack.c.h.b16 %v1242
    %v2312 = vunpack.c.l.b16 %v1243
    %v2313 = vunpack.c.h.b16 %v1243
    %v2314 = vunpack.c.l.b16 %v1244
    %v2315 = vunpack.c.l.b16 %v1245
    %v2316 = vunpack.c.h.b16 %v1245
    %v2317 = vunpack.c.l.b16 %v1246
    %v2318 = vunpack.c.h.b16 %v1246
    %v2319 = vunpack.c.l.b16 %v1247
    %v2320 = vunpack.c.h.b16 %v1247
    %v2321 = vunpack.c.l.b16 %v1248
    %v2322 = vunpack.c.l.b16 %v1249
    %v2323 = vunpack.c.h.b16 %v1249
    %v2324 = vunpack.c.l.b16 %v1250
    %v2325 = vunpack.c.h.b16 %v1250
    %v2326 = vunpack.c.l.b16 %v1251
    %v2327 = vunpack.c.h.b16 %v1251
    %v2328 = vunpack.c.l.b16 %v1252
    %v2329 = vunpack.c.l.b16 %v1253
    %v2330 = vunpack.c.h.b16 %v1253
    %v2331 = vunpack.c.l.b16 %v1254
    %v2332 = vunpack.c.h.b16 %v1254
    %v2333 = vunpack.c.l.b16 %v1255
    %v2334 = vunpack.c.h.b16 %v1255
    %v2335 = vunpack.c.l.b16 %v1256
    %v2336 = vunpack.c.l.b16 %v1257
    %v2337 = vunpack.c.h.b16 %v1257
    %v2338 = vunpack.c.l.b16 %v1258
    %v2339 = vunpack.c.h.b16 %v1258
    %v2340 = vunpack.c.l.b16 %v1259
    %v2341 = vunpack.c.h.b16 %v1259
    %v2342 = vunpack.c.l.b16 %v1260
    %v2343 = vunpack.c.l.b16 %v1261
    %v2344 = vunpack.c.h.b16 %v1261
    %v2345 = vunpack.c.l.b16 %v1262
    %v2346 = vunpack.c.h.b16 %v1262
    %v2347 = vunpack.c.l.b16 %v1263
    %v2348 = vunpack.c.h.b16 %v1263
    %v2349 = vunpack.c.l.b16 %v1264
    %v2350 = vunpack.c.l.b16 %v1265
    %v2351 = vunpack.c.h.b16 %v1265
    %v2352 = vunpack.c.l.b16 %v1266
    %v2353 = vunpack.c.h.b16 %v1266
    %v2354 = vunpack.c.l.b16 %v1267
    %v2355 = vunpack.c.h.b16 %v1267
    %v2356 = vunpack.c.l.b16 %v1268
    %v2357 = vunpack.c.l.b16 %v1269
    %v2358 = vunpack.c.h.b16 %v1269
    %v2359 = vunpack.c.l.b16 %v1270
    %v2360 = vunpack.c.h.b16 %v1270
    %v2361 = vunpack.c.l.b16 %v1271
    %v2362 = vunpack.c.h.b16 %v1271
    %v2363 = vunpack.c.l.b16 %v1272
    %v2364 = vunpack.c.l.b16 %v1273
    %v2365 = vunpack.c.h.b16 %v1273
    %v2366 = vunpack.c.l.b16 %v1274
    %v2367 = vunpack.c.h.b16 %v1274
    %v2368 = vunpack.c.l.b16 %v1275
    %v2369 = vunpack.c.h.b16 %v1275
    %v2370 = vunpack.c.l.b16 %v1276
    %v2371 = vunpack.c.l.b16 %v1277
    %v2372 = vunpack.c.h.b16 %v1277
    %v2373 = vunpack.c.l.b16 %v1278
    %v2374 = vunpack.c.h.b16 %v1278
    %v2375 = vunpack.c.l.b16 %v1279
    %v2376 = vunpack.c.h.b16 %v1279
    %v2377 = vunpack.c.l.b16 %v1280
    %v2378 = vunpack.c.l.b16 %v1281
    %v2379 = vunpack.c.h.b16 %v1281
    %v2380 = vunpack.c.l.b16 %v1282
    %v2381 = vunpack.c.h.b16 %v1282
    %v2382 = vunpack.c.l.b16 %v1283
    %v2383 = vunpack.c.h.b16 %v1283
    %v2384 = vunpack.c.l.b16 %v1284
    %v2385 = vunpack.c.l.b16 %v1285
    %v2386 = vunpack.c.h.b16 %v1285
    %v2387 = vunpack.c.l.b16 %v1286
    %v2388 = vunpack.c.h.b16 %v1286
    %v2389 = vunpack.c.l.b16 %v1287
    %v2390 = vunpack.c.h.b16 %v1287
    %v2391 = vunpack.c.l.b16 %v1288
    %v2392 = vunpack.c.l.b16 %v1289
    %v2393 = vunpack.c.h.b16 %v1289
    %v2394 = vunpack.c.l.b16 %v1290
    %v2395 = vunpack.c.h.b16 %v1290
    %v2396 = vunpack.c.l.b16 %v1291
    %v2397 = vunpack.c.h.b16 %v1291
    %v2398 = vunpack.c.l.b16 %v1292
    %v2399 = vunpack.c.l.b16 %v1293
    %v2400 = vunpack.c.h.b16 %v1293
    %v2401 = vunpack.c.l.b16 %v1294
    %v2402 = vunpack.c.h.b16 %v1294
    %v2403 = vunpack.c.l.b16 %v1295
    %v2404 = vunpack.c.h.b16 %v1295
    %v2405 = vunpack.c.l.b16 %v1296
    %v2406 = vunpack.c.l.b16 %v1297
    %v2407 = vunpack.c.h.b16 %v1297
    %v2408 = vunpack.c.l.b16 %v1298
    %v2409 = vunpack.c.h.b16 %v1298
    %v2410 = vunpack.c.l.b16 %v1299
    %v2411 = vunpack.c.h.b16 %v1299
    %v2412 = vunpack.c.l.b16 %v1300
    %v2413 = vunpack.c.l.b16 %v1301
    %v2414 = vunpack.c.h.b16 %v1301
    %v2415 = vunpack.c.l.b16 %v1302
    %v2416 = vunpack.c.h.b16 %v1302
    %v2417 = vunpack.c.l.b16 %v1303
    %v2418 = vunpack.c.h.b16 %v1303
    %v2419 = vunpack.c.l.b16 %v1304
    %v2420 = vunpack.c.l.b16 %v1305
    %v2421 = vunpack.c.h.b16 %v1305
    %v2422 = vunpack.c.l.b16 %v1306
    %v2423 = vunpack.c.h.b16 %v1306
    %v2424 = vunpack.c.l.b16 %v1307
    %v2425 = vunpack.c.h.b16 %v1307
    %v2426 = vunpack.c.l.b16 %v1308
    %v2427 = vunpack.c.l.b16 %v1309
    %v2428 = vunpack.c.h.b16 %v1309
    %v2429 = vunpack.c.l.b16 %v1310
    %v2430 = vunpack.c.h.b16 %v1310
    %v2431 = vunpack.c.l.b16 %v1311
    %v2432 = vunpack.c.h.b16 %v1311
    %v2433 = vunpack.c.l.b16 %v1312
    %v2434 = vunpack.c.l.b16 %v1313
    %v2435 = vunpack.c.h.b16 %v1313
    %v2436 = vunpack.c.l.b16 %v1314
    %v2437 = vunpack.c.h.b16 %v1314
    %v2438 = vunpack.c.l.b16 %v1315
    %v2439 = vunpack.c.h.b16 %v1315
    %v2440 = vunpack.c.l.b16 %v1316
    %v2441 = vunpack.c.l.b16 %v1317
    %v2442 = vunpack.c.h.b16 %v1317
    %v2443 = vunpack.c.l.b16 %v1318
    %v2444 = vunpack.c.h.b16 %v1318
    %v2445 = vunpack.c.l.b16 %v1319
    %v2446 = vunpack.c.h.b16 %v1319
    %v2447 = vunpack.c.l.b16 %v1320
    %v2448 = vunpack.c.l.b16 %v1321
    %v2449 = vunpack.c.h.b16 %v1321
    %v2450 = vunpack.c.l.b16 %v1322
    %v2451 = vunpack.c.h.b16 %v1322
    %v2452 = vunpack.c.l.b16 %v1323
    %v2453 = vunpack.c.h.b16 %v1323
    %v2454 = vunpack.c.l.b16 %v1324
    %v2455 = vunpack.c.l.b16 %v1325
    %v2456 = vunpack.c.h.b16 %v1325
    %v2457 = vunpack.c.l.b16 %v1326
    %v2458 = vunpack.c.h.b16 %v1326
    %v2459 = vunpack.c.l.b16 %v1327
    %v2460 = vunpack.c.h.b16 %v1327
    %v2461 = vunpack.c.l.b16 %v1328
    %v2462 = vunpack.c.l.b16 %v1329
    %v2463 = vunpack.c.h.b16 %v1329
    %v2464 = vunpack.c.l.b16 %v1330
    %v2465 = vunpack.c.h.b16 %v1330
    %v2466 = vunpack.c.l.b16 %v1331
    %v2467 = vunpack.c.h.b16 %v1331
    %v2468 = vunpack.c.l.b16 %v1332
    %v2469 = vunpack.c.l.b16 %v1333
    %v2470 = vunpack.c.h.b16 %v1333
    %v2471 = vunpack.c.l.b16 %v1334
    %v2472 = vunpack.c.h.b16 %v1334
    %v2473 = vunpack.c.l.b16 %v1335
    %v2474 = vunpack.c.h.b16 %v1335
    %v2475 = vunpack.c.l.b16 %v1336
    %v2476 = vunpack.c.l.b16 %v1337
    %v2477 = vunpack.c.h.b16 %v1337
    %v2478 = vunpack.c.l.b16 %v1338
    %v2479 = vunpack.c.h.b16 %v1338
    %v2480 = vunpack.c.l.b16 %v1339
    %v2481 = vunpack.c.h.b16 %v1339
    %v2482 = vunpack.c.l.b16 %v1340
    %v2483 = vunpack.c.l.b16 %v1341
    %v2484 = vunpack.c.h.b16 %v1341
    %v2485 = vunpack.c.l.b16 %v1342
    %v2486 = vunpack.c.h.b16 %v1342
    %v2487 = vunpack.c.l.b16 %v1343
    %v2488 = vunpack.c.h.b16 %v1343
    %v2489 = vunpack.c.l.b16 %v1344
    %v2490 = vunpack.c.l.b16 %v1345
    %v2491 = vunpack.c.h.b16 %v1345
    %v2492 = vunpack.c.l.b16 %v1346
    %v2493 = vunpack.c.h.b16 %v1346
    %v2494 = vunpack.c.l.b16 %v1347
    %v2495 = vunpack.c.h.b16 %v1347
    %v2496 = vunpack.c.l.b16 %v1348
    %v2497 = vunpack.c.l.b16 %v1349
    %v2498 = vunpack.c.h.b16 %v1349
    %v2499 = vunpack.c.l.b16 %v1350
    %v2500 = vunpack.c.h.b16 %v1350
    %v2501 = vunpack.c.l.b16 %v1351
    %v2502 = vunpack.c.h.b16 %v1351
    %v2503 = vunpack.c.l.b16 %v1352
    %v2504 = vunpack.c.l.b16 %v1353
    %v2505 = vunpack.c.h.b16 %v1353
    %v2506 = vunpack.c.l.b16 %v1354
    %v2507 = vunpack.c.h.b16 %v1354
    %v2508 = vunpack.c.l.b16 %v1355
    %v2509 = vunpack.c.h.b16 %v1355
    %v2510 = vunpack.c.l.b16 %v1356
    %v2511 = vunpack.c.l.b16 %v1357
    %v2512 = vunpack.c.h.b16 %v1357
    %v2513 = vunpack.c.l.b16 %v1358
    %v2514 = vunpack.c.h.b16 %v1358
    %v2515 = vunpack.c.l.b16 %v1359
    %v2516 = vunpack.c.h.b16 %v1359
    %v2517 = vunpack.c.l.b16 %v1360
    %v2518 = vunpack.c.l.b16 %v1361
    %v2519 = vunpack.c.h.b16 %v1361
    %v2520 = vunpack.c.l.b16 %v1362
    %v2521 = vunpack.c.h.b16 %v1362
    %v2522 = vunpack.c.l.b16 %v1363
    %v2523 = vunpack.c.h.b16 %v1363
    %v2524 = vunpack.c.l.b16 %v1364
    %v2525 = vunpack.c.l.b16 %v1365
    %v2526 = vunpack.c.h.b16 %v1365
    %v2527 = vunpack.c.l.b16 %v1366
    %v2528 = vunpack.c.h.b16 %v1366
    %v2529 = vunpack.c.l.b16 %v1367
    %v2530 = vunpack.c.h.b16 %v1367
    %v2531 = vunpack.c.l.b16 %v1368
    %v2532 = vunpack.c.l.b16 %v1369
    %v2533 = vunpack.c.h.b16 %v1369
    %v2534 = vunpack.c.l.b16 %v1370
    %v2535 = vunpack.c.h.b16 %v1370
    %v2536 = vunpack.c.l.b16 %v1371
    %v2537 = vunpack.c.h.b16 %v1371
    %v2538 = vunpack.c.l.b16 %v1372
    %v2539 = vunpack.c.l.b16 %v1373
    %v2540 = vunpack.c.h.b16 %v1373
    %v2541 = vunpack.c.l.b16 %v1374
    %v2542 = vunpack.c.h.b16 %v1374
    %v2543 = vunpack.c.l.b16 %v1375
    %v2544 = vunpack.c.h.b16 %v1375
    %v2545 = vunpack.c.l.b16 %v1376
    %v2546 = vunpack.c.l.b16 %v1377
    %v2547 = vunpack.c.h.b16 %v1377
    %v2548 = vunpack.c.l.b16 %v1378
    %v2549 = vunpack.c.h.b16 %v1378
    %v2550 = vunpack.c.l.b16 %v1379
    %v2551 = vunpack.c.h.b16 %v1379
    %v2552 = vunpack.c.l.b16 %v1380
    %v2553 = vunpack.c.l.b16 %v1381
    %v2554 = vunpack.c.h.b16 %v1381
    %v2555 = vunpack.c.l.b16 %v1382
    %v2556 = vunpack.c.h.b16 %v1382
    %v2557 = vunpack.c.l.b16 %v1383
    %v2558 = vunpack.c.h.b16 %v1383
    %v2559 = vunpack.c.l.b16 %v1384
    %v2560 = vunpack.c.l.b16 %v1385
    %v2561 = vunpack.c.h.b16 %v1385
    %v2562 = vunpack.c.l.b16 %v1386
    %v2563 = vunpack.c.h.b16 %v1386
    %v2564 = vunpack.c.l.b16 %v1387
    %v2565 = vunpack.c.h.b16 %v1387
    %v2566 = vunpack.c.l.b16 %v1388
    %v2567 = vunpack.c.l.b16 %v1389
    %v2568 = vunpack.c.h.b16 %v1389
    %v2569 = vunpack.c.l.b16 %v1390
    %v2570 = vunpack.c.h.b16 %v1390
    %v2571 = vunpack.c.l.b16 %v1391
    %v2572 = vunpack.c.h.b16 %v1391
    %v2573 = vunpack.c.l.b16 %v1392
    %v2574 = vunpack.c.l.b16 %v1393
    %v2575 = vunpack.c.h.b16 %v1393
    %v2576 = vunpack.c.l.b16 %v1394
    %v2577 = vunpack.c.h.b16 %v1394
    %v2578 = vunpack.c.l.b16 %v1395
    %v2579 = vunpack.c.h.b16 %v1395
    %v2580 = vunpack.c.l.b16 %v1396
    %v2581 = vunpack.c.l.b16 %v1397
    %v2582 = vunpack.c.h.b16 %v1397
    %v2583 = vunpack.c.l.b16 %v1398
    %v2584 = vunpack.c.h.b16 %v1398
    %v2585 = vunpack.c.l.b16 %v1399
    %v2586 = vunpack.c.h.b16 %v1399
    %v2587 = vunpack.c.l.b16 %v1400
    %v2588 = vunpack.c.l.b16 %v1401
    %v2589 = vunpack.c.h.b16 %v1401
    %v2590 = vunpack.c.l.b16 %v1402
    %v2591 = vunpack.c.h.b16 %v1402
    %v2592 = vunpack.c.l.b16 %v1403
    %v2593 = vunpack.c.h.b16 %v1403
    %v2594 = vunpack.c.l.b16 %v1404
    %v2595 = vunpack.c.l.b16 %v1405
    %v2596 = vunpack.c.h.b16 %v1405
    %v2597 = vunpack.c.l.b16 %v1406
    %v2598 = vunpack.c.h.b16 %v1406
    %v2599 = vunpack.c.l.b16 %v1407
    %v2600 = vunpack.c.h.b16 %v1407
    %v2601 = vunpack.c.l.b16 %v1408
    %v2602 = vunpack.c.l.b16 %v1409
    %v2603 = vunpack.c.h.b16 %v1409
    %v2604 = vunpack.c.l.b16 %v1410
    %v2605 = vunpack.c.h.b16 %v1410
    %v2606 = vunpack.c.l.b16 %v1411
    %v2607 = vunpack.c.h.b16 %v1411
    %v2608 = vunpack.c.l.b16 %v1412
    %v2609 = vunpack.c.l.b16 %v1413
    %v2610 = vunpack.c.h.b16 %v1413
    %v2611 = vunpack.c.l.b16 %v1414
    %v2612 = vunpack.c.h.b16 %v1414
    %v2613 = vunpack.c.l.b16 %v1415
    %v2614 = vunpack.c.h.b16 %v1415
    %v2615 = vunpack.c.l.b16 %v1416
    %v2616 = vunpack.c.l.b16 %v1417
    %v2617 = vunpack.c.h.b16 %v1417
    %v2618 = vunpack.c.l.b16 %v1418
    %v2619 = vunpack.c.h.b16 %v1418
    %v2620 = vunpack.c.l.b16 %v1419
    %v2621 = vunpack.c.h.b16 %v1419
    %v2622 = vunpack.c.l.b16 %v1420
    %v2623 = vunpack.c.l.b16 %v1421
    %v2624 = vunpack.c.h.b16 %v1421
    %v2625 = vunpack.c.l.b16 %v1422
    %v2626 = vunpack.c.h.b16 %v1422
    %v2627 = vunpack.c.l.b16 %v1423
    %v2628 = vunpack.c.h.b16 %v1423
    %v2629 = vunpack.c.l.b16 %v1424
    %v2630 = vunpack.c.l.b16 %v1425
    %v2631 = vunpack.c.h.b16 %v1425
    %v2632 = vunpack.c.l.b16 %v1426
    %v2633 = vunpack.c.h.b16 %v1426
    %v2634 = vunpack.c.l.b16 %v1427
    %v2635 = vunpack.c.h.b16 %v1427
    %v2636 = vunpack.c.l.b16 %v1428
    %v2637 = vunpack.c.l.b16 %v1429
    %v2638 = vunpack.c.h.b16 %v1429
    %v2639 = vunpack.c.l.b16 %v1430
    %v2640 = vunpack.c.h.b16 %v1430
    %v2641 = vunpack.c.l.b16 %v1431
    %v2642 = vunpack.c.h.b16 %v1431
    %v2643 = vunpack.c.l.b16 %v1432
    %v2644 = vunpack.c.l.b16 %v1433
    %v2645 = vunpack.c.h.b16 %v1433
    %v2646 = vunpack.c.l.b16 %v1434
    %v2647 = vunpack.c.h.b16 %v1434
    %v2648 = vunpack.c.l.b16 %v1435
    %v2649 = vunpack.c.h.b16 %v1435
    %v2650 = vunpack.c.l.b16 %v1436
    %v2651 = vunpack.c.l.b16 %v1437
    %v2652 = vunpack.c.h.b16 %v1437
    %v2653 = vunpack.c.l.b16 %v1438
    %v2654 = vunpack.c.h.b16 %v1438
    %v2655 = vunpack.c.l.b16 %v1439
    %v2656 = vunpack.c.h.b16 %v1439
    %v2657 = vunpack.c.l.b16 %v1440
    %v2658 = vunpack.c.l.b16 %v1441
    %v2659 = vunpack.c.h.b16 %v1441
    %v2660 = vunpack.c.l.b16 %v1442
    %v2661 = vunpack.c.h.b16 %v1442
    %v2662 = vunpack.c.l.b16 %v1443
    %v2663 = vunpack.c.h.b16 %v1443
    %v2664 = vunpack.c.l.b16 %v1444
    %v2665 = vunpack.c.l.b16 %v1445
    %v2666 = vunpack.c.h.b16 %v1445
    %v2667 = vunpack.c.l.b16 %v1446
    %v2668 = vunpack.c.h.b16 %v1446
    %v2669 = vunpack.c.l.b16 %v1447
    %v2670 = vunpack.c.h.b16 %v1447
    %v2671 = vunpack.c.l.b16 %v1448
    %v2672 = vunpack.c.l.b16 %v1449
    %v2673 = vunpack.c.h.b16 %v1449
    %v2674 = vunpack.c.l.b16 %v1450
    %v2675 = vunpack.c.h.b16 %v1450
    %v2676 = vunpack.c.l.b16 %v1451
    %v2677 = vunpack.c.h.b16 %v1451
    %v2678 = vunpack.c.l.b16 %v1452
    %v2679 = vunpack.c.l.b16 %v1453
    %v2680 = vunpack.c.h.b16 %v1453
    %v2681 = vunpack.c.l.b16 %v1454
    %v2682 = vunpack.c.h.b16 %v1454
    %v2683 = vunpack.c.l.b16 %v1455
    %v2684 = vunpack.c.h.b16 %v1455
    %v2685 = vunpack.c.l.b16 %v1456
    %v2686 = vunpack.c.l.b16 %v1457
    %v2687 = vunpack.c.h.b16 %v1457
    %v2688 = vunpack.c.l.b16 %v1458
    %v2689 = vunpack.c.h.b16 %v1458
    %v2690 = vunpack.c.l.b16 %v1459
    %v2691 = vunpack.c.h.b16 %v1459
    %v2692 = vunpack.c.l.b16 %v1460
    %v2693 = vunpack.c.l.b16 %v1461
    %v2694 = vunpack.c.h.b16 %v1461
    %v2695 = vunpack.c.l.b16 %v1462
    %v2696 = vunpack.c.h.b16 %v1462
    %v2697 = vunpack.c.l.b16 %v1463
    %v2698 = vunpack.c.h.b16 %v1463
    %v2699 = vunpack.c.l.b16 %v1464
    %v2700 = vunpack.c.l.b16 %v1465
    %v2701 = vunpack.c.h.b16 %v1465
    %v2702 = vunpack.c.l.b16 %v1466
    %v2703 = vunpack.c.h.b16 %v1466
    %v2704 = vunpack.c.l.b16 %v1467
    %v2705 = vunpack.c.h.b16 %v1467
    %v2706 = vunpack.c.l.b16 %v1468
    %v2707 = vunpack.c.l.b16 %v1469
    %v2708 = vunpack.c.h.b16 %v1469
    %v2709 = vunpack.c.l.b16 %v1470
    %v2710 = vunpack.c.h.b16 %v1470
    %v2711 = vunpack.c.l.b16 %v1471
    %v2712 = vunpack.c.h.b16 %v1471
    %v2713 = vunpack.c.l.b16 %v1472
    %v2714 = vunpack.c.l.b16 %v1473
    %v2715 = vunpack.c.h.b16 %v1473
    %v2716 = vunpack.c.l.b16 %v1474
    %v2717 = vunpack.c.h.b16 %v1474
    %v2718 = vunpack.c.l.b16 %v1475
    %v2719 = vunpack.c.h.b16 %v1475
    %v2720 = vunpack.c.l.b16 %v1476
    %v2721 = vunpack.c.l.b16 %v1477
    %v2722 = vunpack.c.h.b16 %v1477
    %v2723 = vunpack.c.l.b16 %v1478
    %v2724 = vunpack.c.h.b16 %v1478
    %v2725 = vunpack.c.l.b16 %v1479
    %v2726 = vunpack.c.h.b16 %v1479
    %v2727 = vunpack.c.l.b16 %v1480
    %v2728 = vunpack.c.l.b16 %v1481
    %v2729 = vunpack.c.h.b16 %v1481
    %v2730 = vunpack.c.l.b16 %v1482
    %v2731 = vunpack.c.h.b16 %v1482
    %v2732 = vunpack.c.l.b16 %v1483
    %v2733 = vunpack.c.h.b16 %v1483
    %v2734 = vunpack.c.l.b16 %v1484
    %v2735 = vunpack.c.l.b16 %v1485
    %v2736 = vunpack.c.h.b16 %v1485
    %v2737 = vunpack.c.l.b16 %v1486
    %v2738 = vunpack.c.h.b16 %v1486
    %v2739 = vunpack.c.l.b16 %v1487
    %v2740 = vunpack.c.h.b16 %v1487
    %v2741 = vunpack.c.l.b16 %v1488
    %v2742 = vunpack.c.l.b16 %v1489
    %v2743 = vunpack.c.h.b16 %v1489
    %v2744 = vunpack.c.l.b16 %v1490
    %v2745 = vunpack.c.h.b16 %v1490
    %v2746 = vunpack.c.l.b16 %v1491
    %v2747 = vunpack.c.h.b16 %v1491
    %v2748 = vunpack.c.l.b16 %v1492
    %v2749 = vunpack.c.l.b16 %v1493
    %v2750 = vunpack.c.h.b16 %v1493
    %v2751 = vunpack.c.l.b16 %v1494
    %v2752 = vunpack.c.h.b16 %v1494
    %v2753 = vunpack.c.l.b16 %v1495
    %v2754 = vunpack.c.h.b16 %v1495
    %v2755 = vunpack.c.l.b16 %v1496
    %v2756 = vunpack.c.l.b16 %v1497
    %v2757 = vunpack.c.h.b16 %v1497
    %v2758 = vunpack.c.l.b16 %v1498
    %v2759 = vunpack.c.h.b16 %v1498
    %v2760 = vunpack.c.l.b16 %v1499
    %v2761 = vunpack.c.h.b16 %v1499
    %v2762 = vunpack.c.l.b16 %v1500
    %v2763 = vunpack.c.l.b16 %v1501
    %v2764 = vunpack.c.h.b16 %v1501
    %v2765 = vunpack.c.l.b16 %v1502
    %v2766 = vunpack.c.h.b16 %v1502
    %v2767 = vunpack.c.l.b16 %v1503
    %v2768 = vunpack.c.h.b16 %v1503
    %v2769 = vunpack.c.l.b16 %v1504
    %v2770 = vunpack.c.l.b16 %v1505
    %v2771 = vunpack.c.h.b16 %v1505
    %v2772 = vunpack.c.l.b16 %v1506
    %v2773 = vunpack.c.h.b16 %v1506
    %v2774 = vunpack.c.l.b16 %v1507
    %v2775 = vunpack.c.h.b16 %v1507
    %v2776 = vunpack.c.l.b16 %v1508
    %v2777 = vunpack.c.l.b16 %v1509
    %v2778 = vunpack.c.h.b16 %v1509
    %v2779 = vunpack.c.l.b16 %v1510
    %v2780 = vunpack.c.h.b16 %v1510
    %v2781 = vunpack.c.l.b16 %v1511
    %v2782 = vunpack.c.h.b16 %v1511
    %v2783 = vunpack.c.l.b16 %v1512
    %v2784 = vunpack.c.l.b16 %v1513
    %v2785 = vunpack.c.h.b16 %v1513
    %v2786 = vunpack.c.l.b16 %v1514
    %v2787 = vunpack.c.h.b16 %v1514
    %v2788 = vunpack.c.l.b16 %v1515
    %v2789 = vunpack.c.h.b16 %v1515
    %v2790 = vunpack.c.l.b16 %v1516
    %v2791 = vunpack.c.l.b16 %v1517
    %v2792 = vunpack.c.h.b16 %v1517
    %v2793 = vunpack.c.l.b16 %v1518
    %v2794 = vunpack.c.h.b16 %v1518
    %v2795 = vunpack.c.l.b16 %v1519
    %v2796 = vunpack.c.h.b16 %v1519
    %v2797 = vunpack.c.l.b16 %v1520
    %v2798 = vunpack.c.l.b16 %v1521
    %v2799 = vunpack.c.h.b16 %v1521
    %v2800 = vunpack.c.l.b16 %v1522
    %v2801 = vunpack.c.h.b16 %v1522
    %v2802 = vunpack.c.l.b16 %v1523
    %v2803 = vunpack.c.h.b16 %v1523
    %v2804 = vunpack.c.l.b16 %v1524
    %v2805 = vunpack.c.l.b16 %v1525
    %v2806 = vunpack.c.h.b16 %v1525
    %v2807 = vunpack.c.l.b16 %v1526
    %v2808 = vunpack.c.h.b16 %v1526
    %v2809 = vunpack.c.l.b16 %v1527
    %v2810 = vunpack.c.h.b16 %v1527
    %v2811 = vunpack.c.l.b16 %v1528
    %v2812 = vunpack.c.l.b16 %v1529
    %v2813 = vunpack.c.h.b16 %v1529
    %v2814 = vunpack.c.l.b16 %v1530
    %v2815 = vunpack.c.h.b16 %v1530
    %v2816 = vunpack.c.l.b16 %v1531
    %v2817 = vunpack.c.h.b16 %v1531
    %v2818 = vunpack.c.l.b16 %v1532
    %v2819 = vunpack.c.l.b16 %v1533
    %v2820 = vunpack.c.h.b16 %v1533
    %v2821 = vunpack.c.l.b16 %v1534
    %v2822 = vunpack.c.h.b16 %v1534
    %v2823 = vunpack.c.l.b16 %v1535
    %v2824 = vunpack.c.h.b16 %v1535
    %v2825 = vunpack.c.l.b16 %v1536
    %v2826 = vunpack.c.l.b16 %v1537
    %v2827 = vunpack.c.h.b16 %v1537
    %v2828 = vunpack.c.l.b16 %v1538
    %v2829 = vunpack.c.h.b16 %v1538
    %v2830 = vunpack.c.l.b16 %v1539
    %v2831 = vunpack.c.h.b16 %v1539
    %v2832 = vunpack.c.l.b16 %v1540
    %v2833 = vunpack.c.l.b16 %v1541
    %v2834 = vunpack.c.h.b16 %v1541
    %v2835 = vunpack.c.l.b16 %v1542
    %v2836 = vunpack.c.h.b16 %v1542
    %v2837 = vunpack.c.l.b16 %v1543
    %v2838 = vunpack.c.h.b16 %v1543
    %v2839 = vunpack.c.l.b16 %v1544
    %v2840 = vunpack.c.l.b16 %v1545
    %v2841 = vunpack.c.h.b16 %v1545
    %v2842 = vunpack.c.l.b16 %v1546
    %v2843 = vunpack.c.h.b16 %v1546
    %v2844 = vunpack.c.l.b16 %v1547
    %v2845 = vunpack.c.h.b16 %v1547
    %v2846 = vunpack.c.l.b16 %v1548
    %v2847 = vunpack.c.l.b16 %v1549
    %v2848 = vunpack.c.h.b16 %v1549
    %v2849 = vunpack.c.l.b16 %v1550
    %v2850 = vunpack.c.h.b16 %v1550
    %v2851 = vunpack.c.l.b16 %v1551
    %v2852 = vunpack.c.h.b16 %v1551
    %v2853 = vunpack.c.l.b16 %v1552
    %v2854 = vunpack.c.l.b16 %v1553
    %v2855 = vunpack.c.h.b16 %v1553
    %v2856 = vunpack.c.l.b16 %v1554
    %v2857 = vunpack.c.h.b16 %v1554
    %v2858 = vunpack.c.l.b16 %v1555
    %v2859 = vunpack.c.h.b16 %v1555
    %v2860 = vunpack.c.l.b16 %v1556
    %v2861 = vunpack.c.l.b16 %v1557
    %v2862 = vunpack.c.h.b16 %v1557
    %v2863 = vunpack.c.l.b16 %v1558
    %v2864 = vunpack.c.h.b16 %v1558
    %v2865 = vunpack.c.l.b16 %v1559
    %v2866 = vunpack.c.h.b16 %v1559
    %v2867 = vunpack.c.l.b16 %v1560
    %v2868 = vunpack.c.l.b16 %v1561
    %v2869 = vunpack.c.h.b16 %v1561
    %v2870 = vunpack.c.l.b16 %v1562
    %v2871 = vunpack.c.h.b16 %v1562
    %v2872 = vunpack.c.l.b16 %v1563
    %v2873 = vunpack.c.h.b16 %v1563
    %v2874 = vunpack.c.l.b16 %v1564
    %v2875 = vunpack.c.l.b16 %v1565
    %v2876 = vunpack.c.h.b16 %v1565
    %v2877 = vunpack.c.l.b16 %v1566
    %v2878 = vunpack.c.h.b16 %v1566
    %v2879 = vunpack.c.l.b16 %v1567
    %v2880 = vunpack.c.h.b16 %v1567
    %v2881 = vunpack.c.l.b16 %v1568
    %v2882 = vunpack.c.l.b16 %v1569
    %v2883 = vunpack.c.h.b16 %v1569
    %v2884 = vunpack.c.l.b16 %v1570
    %v2885 = vunpack.c.h.b16 %v1570
    %v2886 = vunpack.c.l.b16 %v1571
    %v2887 = vunpack.c.h.b16 %v1571
    %v2888 = vunpack.c.l.b16 %v1572
    %v2889 = vunpack.c.l.b16 %v1573
    %v2890 = vunpack.c.h.b16 %v1573
    %v2891 = vunpack.c.l.b16 %v1574
    %v2892 = vunpack.c.h.b16 %v1574
    %v2893 = vunpack.c.l.b16 %v1575
    %v2894 = vunpack.c.h.b16 %v1575
    %v2895 = vunpack.c.l.b16 %v1576
    %v2896 = vunpack.c.l.b16 %v1577
    %v2897 = vunpack.c.h.b16 %v1577
    %v2898 = vunpack.c.l.b16 %v1578
    %v2899 = vunpack.c.h.b16 %v1578
    %v2900 = vunpack.c.l.b16 %v1579
    %v2901 = vunpack.c.h.b16 %v1579
    %v2902 = vunpack.c.l.b16 %v1580
    %v2903 = vunpack.c.l.b16 %v1581
    %v2904 = vunpack.c.h.b16 %v1581
    %v2905 = vunpack.c.l.b16 %v1582
    %v2906 = vunpack.c.h.b16 %v1582
    %v2907 = vunpack.c.l.b16 %v1583
    %v2908 = vunpack.c.h.b16 %v1583
    %v2909 = vunpack.c.l.b16 %v1584
    %v2910 = vunpack.c.l.b16 %v1585
    %v2911 = vunpack.c.h.b16 %v1585
    %v2912 = vunpack.c.l.b16 %v1586
    %v2913 = vunpack.c.h.b16 %v1586
    %v2914 = vunpack.c.l.b16 %v1587
    %v2915 = vunpack.c.h.b16 %v1587
    %v2916 = vunpack.c.l.b16 %v1588
    %v2917 = vunpack.c.l.b16 %v1589
    %v2918 = vunpack.c.h.b16 %v1589
    %v2919 = vunpack.c.l.b16 %v1590
    %v2920 = vunpack.c.h.b16 %v1590
    %v2921 = vunpack.c.l.b16 %v1591
    %v2922 = vunpack.c.h.b16 %v1591
    %v2923 = vunpack.c.l.b16 %v1592
    %v2924 = vunpack.c.l.b16 %v1593
    %v2925 = vunpack.c.h.b16 %v1593
    %v2926 = vunpack.c.l.b16 %v1594
    %v2927 = vunpack.c.h.b16 %v1594
    %v2928 = vunpack.c.l.b16 %v1595
    %v2929 = vunpack.c.h.b16 %v1595
    %v2930 = vunpack.c.l.b16 %v1596
    %v2931 = vunpack.c.l.b16 %v1597
    %v2932 = vunpack.c.h.b16 %v1597
    %v2933 = vunpack.c.l.b16 %v1598
    %v2934 = vunpack.c.h.b16 %v1598
    %v2935 = vunpack.c.l.b16 %v1599
    %v2936 = vunpack.c.h.b16 %v1599
    %v2937 = vunpack.c.l.b16 %v1600
    %v2938 = vunpack.c.l.b16 %v1601
    %v2939 = vunpack.c.h.b16 %v1601
    %v2940 = vunpack.c.l.b16 %v1602
    %v2941 = vunpack.c.h.b16 %v1602
    %v2942 = vunpack.c.l.b16 %v1603
    %v2943 = vunpack.c.h.b16 %v1603
    %v2944 = vunpack.c.l.b16 %v1604
    %v2945 = vunpack.c.l.b16 %v1605
    %v2946 = vunpack.c.h.b16 %v1605
    %v2947 = vunpack.c.l.b16 %v1606
    %v2948 = vunpack.c.h.b16 %v1606
    %v2949 = vunpack.c.l.b16 %v1607
    %v2950 = vunpack.c.h.b16 %v1607
    %v2951 = vunpack.c.l.b16 %v1608
    %v2952 = vunpack.c.l.b16 %v1609
    %v2953 = vunpack.c.h.b16 %v1609
    %v2954 = vunpack.c.l.b16 %v1610
    %v2955 = vunpack.c.h.b16 %v1610
    %v2956 = vunpack.c.l.b16 %v1611
    %v2957 = vunpack.c.h.b16 %v1611
    %v2958 = vunpack.c.l.b16 %v1612
    %v2959 = vunpack.c.l.b16 %v1613
    %v2960 = vunpack.c.h.b16 %v1613
    %v2961 = vunpack.c.l.b16 %v1614
    %v2962 = vunpack.c.h.b16 %v1614
    %v2963 = vunpack.c.l.b16 %v1615
    %v2964 = vunpack.c.h.b16 %v1615
    %v2965 = vunpack.c.l.b16 %v1616
    %v2966 = vunpack.c.l.b16 %v1617
    %v2967 = vunpack.c.h.b16 %v1617
    %v2968 = vunpack.c.l.b16 %v1618
    %v2969 = vunpack.c.h.b16 %v1618
    %v2970 = vunpack.c.l.b16 %v1619
    %v2971 = vunpack.c.h.b16 %v1619
    %v2972 = vunpack.c.l.b16 %v1620
    %v2973 = vunpack.c.l.b16 %v1621
    %v2974 = vunpack.c.h.b16 %v1621
    %v2975 = vunpack.c.l.b16 %v1622
    %v2976 = vunpack.c.h.b16 %v1622
    %v2977 = vunpack.c.l.b16 %v1623
    %v2978 = vunpack.c.h.b16 %v1623
    %v2979 = vunpack.c.l.b16 %v1624
    %v2980 = vunpack.c.l.b16 %v1625
    %v2981 = vunpack.c.h.b16 %v1625
    %v2982 = vunpack.c.l.b16 %v1626
    %v2983 = vunpack.c.h.b16 %v1626
    %v2984 = vunpack.c.l.b16 %v1627
    %v2985 = vunpack.c.h.b16 %v1627
    %v2986 = vunpack.c.l.b16 %v1628
    %v2987 = vunpack.c.l.b16 %v1629
    %v2988 = vunpack.c.h.b16 %v1629
    %v2989 = vunpack.c.l.b16 %v1630
    %v2990 = vunpack.c.h.b16 %v1630
    %v2991 = vunpack.c.l.b16 %v1631
    %v2992 = vunpack.c.h.b16 %v1631
    %v2993 = vunpack.c.l.b16 %v1632
    %v2994 = vunpack.c.l.b16 %v1633
    %v2995 = vunpack.c.h.b16 %v1633
    %v2996 = vunpack.c.l.b16 %v1634
    %v2997 = vunpack.c.h.b16 %v1634
    %v2998 = vunpack.c.l.b16 %v1635
    %v2999 = vunpack.c.h.b16 %v1635
    %v3000 = vunpack.c.l.b16 %v1636
    %v3001 = vunpack.c.l.b16 %v1637
    %v3002 = vunpack.c.h.b16 %v1637
    %v3003 = vunpack.c.l.b16 %v1638
    %v3004 = vunpack.c.h.b16 %v1638
    %v3005 = vunpack.c.l.b16 %v1639
    %v3006 = vunpack.c.h.b16 %v1639
    %v3007 = vunpack.c.l.b16 %v1640
    %v3008 = vunpack.c.l.b16 %v1641
    %v3009 = vunpack.c.h.b16 %v1641
    %v3010 = vunpack.c.l.b16 %v1642
    %v3011 = vunpack.c.h.b16 %v1642
    %v3012 = vunpack.c.l.b16 %v1643
    %v3013 = vunpack.c.h.b16 %v1643
    %v3014 = vunpack.c.l.b16 %v1644
    %v3015 = vunpack.c.l.b16 %v1645
    %v3016 = vunpack.c.h.b16 %v1645
    %v3017 = vunpack.c.l.b16 %v1646
    %v3018 = vunpack.c.h.b16 %v1646
    %v3019 = vunpack.c.l.b16 %v1647
    %v3020 = vunpack.c.h.b16 %v1647
    %v3021 = vunpack.c.l.b16 %v1648
    %v3022 = vunpack.c.l.b16 %v1649
    %v3023 = vunpack.c.h.b16 %v1649
    %v3024 = vunpack.c.l.b16 %v1650
    %v3025 = vunpack.c.h.b16 %v1650
    %v3026 = vunpack.c.l.b16 %v1651
    %v3027 = vunpack.c.h.b16 %v1651
    %v3028 = vunpack.c.l.b16 %v1652
    %v3029 = vunpack.c.l.b16 %v1653
    %v3030 = vunpack.c.h.b16 %v1653
    %v3031 = vunpack.c.l.b16 %v1654
    %v3032 = vunpack.c.h.b16 %v1654
    %v3033 = vunpack.c.l.b16 %v1655
    %v3034 = vunpack.c.h.b16 %v1655
    %v3035 = vunpack.c.l.b16 %v1656
    %v3036 = vunpack.c.l.b16 %v1657
    %v3037 = vunpack.c.h.b16 %v1657
    %v3038 = vunpack.c.l.b16 %v1658
    %v3039 = vunpack.c.h.b16 %v1658
    %v3040 = vunpack.c.l.b16 %v1659
    %v3041 = vunpack.c.h.b16 %v1659
    %v3042 = vunpack.c.l.b16 %v1660
    %v3043 = vunpack.c.l.b16 %v1661
    %v3044 = vunpack.c.h.b16 %v1661
    %v3045 = vunpack.c.l.b16 %v1662
    %v3046 = vunpack.c.h.b16 %v1662
    %v3047 = vunpack.c.l.b16 %v1663
    %v3048 = vunpack.c.h.b16 %v1663
    %v3049 = vunpack.c.l.b16 %v1664
    %v3050 = vunpack.c.l.b16 %v1665
    %v3051 = vunpack.c.h.b16 %v1665
    %v3052 = vunpack.c.l.b16 %v1666
    %v3053 = vunpack.c.h.b16 %v1666
    %v3054 = vunpack.c.l.b16 %v1667
    %v3055 = vunpack.c.h.b16 %v1667
    %v3056 = vunpack.c.l.b16 %v1668
    %v3057 = vunpack.c.l.b16 %v1669
    %v3058 = vunpack.c.h.b16 %v1669
    %v3059 = vunpack.c.l.b16 %v1670
    %v3060 = vunpack.c.h.b16 %v1670
    %v3061 = vunpack.c.l.b16 %v1671
    %v3062 = vunpack.c.h.b16 %v1671
    %v3063 = vunpack.c.l.b16 %v1672
    %v3064 = vunpack.c.l.b16 %v1673
    %v3065 = vunpack.c.h.b16 %v1673
    %v3066 = vunpack.c.l.b16 %v1674
    %v3067 = vunpack.c.h.b16 %v1674
    %v3068 = vunpack.c.l.b16 %v1675
    %v3069 = vunpack.c.h.b16 %v1675
    %v3070 = vunpack.c.l.b16 %v1676
    %v3071 = vunpack.c.l.b16 %v1677
    %v3072 = vunpack.c.h.b16 %v1677
    %v3073 = vunpack.c.l.b16 %v1678
    %v3074 = vunpack.c.h.b16 %v1678
    %v3075 = vunpack.c.l.b16 %v1679
    %v3076 = vunpack.c.h.b16 %v1679
    %v3077 = vunpack.c.l.b16 %v1680
    %v3078 = vunpack.c.l.b16 %v1681
    %v3079 = vunpack.c.h.b16 %v1681
    %v3080 = vunpack.c.l.b16 %v1682
    %v3081 = vunpack.c.h.b16 %v1682
    %v3082 = vunpack.c.l.b16 %v1683
    %v3083 = vunpack.c.h.b16 %v1683
    %v3084 = vunpack.c.l.b16 %v1684
    %v3085 = vunpack.c.l.b16 %v1685
    %v3086 = vunpack.c.h.b16 %v1685
    %v3087 = vunpack.c.l.b16 %v1686
    %v3088 = vunpack.c.h.b16 %v1686
    %v3089 = vunpack.c.l.b16 %v1687
    %v3090 = vunpack.c.h.b16 %v1687
    %v3091 = vunpack.c.l.b16 %v1688
    %v3092 = vunpack.c.l.b16 %v1689
    %v3093 = vunpack.c.h.b16 %v1689
    %v3094 = vunpack.c.l.b16 %v1690
    %v3095 = vunpack.c.h.b16 %v1690
    %v3096 = vunpack.c.l.b16 %v1691
    %v3097 = vunpack.c.h.b16 %v1691
    %v3098 = vunpack.c.l.b16 %v1692
    %v3099 = vunpack.c.l.b16 %v1693
    %v3100 = vunpack.c.h.b16 %v1693
    %v3101 = vunpack.c.l.b16 %v1694
    %v3102 = vunpack.c.h.b16 %v1694
    %v3103 = vunpack.c.l.b16 %v1695
    %v3104 = vunpack.c.h.b16 %v1695
    %v3105 = vunpack.c.l.b16 %v1696
    %v3106 = vunpack.c.l.b16 %v1697
    %v3107 = vunpack.c.h.b16 %v1697
    %v3108 = vunpack.c.l.b16 %v1698
    %v3109 = vunpack.c.h.b16 %v1698
    %v3110 = vunpack.c.l.b16 %v1699
    %v3111 = vunpack.c.h.b16 %v1699
    %v3112 = vunpack.c.l.b16 %v1700
    %v3113 = vunpack.c.l.b16 %v1701
    %v3114 = vunpack.c.h.b16 %v1701
    %v3115 = vunpack.c.l.b16 %v1702
    %v3116 = vunpack.c.h.b16 %v1702
    %v3117 = vunpack.c.l.b16 %v1703
    %v3118 = vunpack.c.h.b16 %v1703
    %v3119 = vunpack.c.l.b16 %v1704
    %v3120 = vunpack.c.l.b16 %v1705
    %v3121 = vunpack.c.h.b16 %v1705
    %v3122 = vunpack.c.l.b16 %v1706
    %v3123 = vunpack.c.h.b16 %v1706
    %v3124 = vunpack.c.l.b16 %v1707
    %v3125 = vunpack.c.h.b16 %v1707
    %v3126 = vunpack.c.l.b16 %v1708
    %v3127 = vunpack.c.l.b16 %v1709
    %v3128 = vunpack.c.h.b16 %v1709
    %v3129 = vunpack.c.l.b16 %v1710
    %v3130 = vunpack.c.h.b16 %v1710
    %v3131 = vunpack.c.l.b16 %v1711
    %v3132 = vunpack.c.h.b16 %v1711
    %v3133 = vunpack.c.l.b16 %v1712
    %v3134 = vunpack.c.l.b16 %v1713
    %v3135 = vunpack.c.h.b16 %v1713
    %v3136 = vunpack.c.l.b16 %v1714
    %v3137 = vunpack.c.h.b16 %v1714
    %v3138 = vunpack.c.l.b16 %v1715
    %v3139 = vunpack.c.h.b16 %v1715
    %v3140 = vunpack.c.l.b16 %v1716
    %v3141 = vpack.c.b16 %v2252, %v2245
    %v3142 = vpack.c.b16 %v2253, %v2246
    %v3143 = vpack.c.b16 %v2254, %v2247
    %v3144 = vpack.c.b16 %v2255, %v2248
    %v3145 = vpack.c.b16 %v2256, %v2249
    %v3146 = vpack.c.b16 %v2257, %v2250
    %v3147 = vpack.c.b16 %v2258, %v2251
    %v3148 = vpack.c.b16 %v2266, %v2259
    %v3149 = vpack.c.b16 %v2267, %v2260
    %v3150 = vpack.c.b16 %v2268, %v2261
    %v3151 = vpack.c.b16 %v2269, %v2262
    %v3152 = vpack.c.b16 %v2270, %v2263
    %v3153 = vpack.c.b16 %v2271, %v2264
    %v3154 = vpack.c.b16 %v2272, %v2265
    %v3155 = vpack.c.b16 %v2280, %v2273
    %v3156 = vpack.c.b16 %v2281, %v2274
    %v3157 = vpack.c.b16 %v2282, %v2275
    %v3158 = vpack.c.b16 %v2283, %v2276
    %v3159 = vpack.c.b16 %v2284, %v2277
    %v3160 = vpack.c.b16 %v2285, %v2278
    %v3161 = vpack.c.b16 %v2286, %v2279
    %v3162 = vpack.c.b16 %v2294, %v2287
    %v3163 = vpack.c.b16 %v2295, %v2288
    %v3164 = vpack.c.b16 %v2296, %v2289
    %v3165 = vpack.c.b16 %v2297, %v2290
    %v3166 = vpack.c.b16 %v2298, %v2291
    %v3167 = vpack.c.b16 %v2299, %v2292
    %v3168 = vpack.c.b16 %v2300, %v2293
    %v3169 = vpack.c.b16 %v2308, %v2301
    %v3170 = vpack.c.b16 %v2309, %v2302
    %v3171 = vpack.c.b16 %v2310, %v2303
    %v3172 = vpack.c.b16 %v2311, %v2304
    %v3173 = vpack.c.b16 %v2312, %v2305
    %v3174 = vpack.c.b16 %v2313, %v2306
    %v3175 = vpack.c.b16 %v2314, %v2307
    %v3176 = vpack.c.b16 %v2322, %v2315
    %v3177 = vpack.c.b16 %v2323, %v2316
    %v3178 = vpack.c.b16 %v2324, %v2317
    %v3179 = vpack.c.b16 %v2325, %v2318
    %v3180 = vpack.c.b16 %v2326, %v2319
    %v3181 = vpack.c.b16 %v2327, %v2320
    %v3182 = vpack.c.b16 %v2328, %v2321
    %v3183 = vpack.c.b16 %v2336, %v2329
    %v3184 = vpack.c.b16 %v2337, %v2330
    %v3185 = vpack.c.b16 %v2338, %v2331
    %v3186 = vpack.c.b16 %v2339, %v2332
    %v3187 = vpack.c.b16 %v2340, %v2333
    %v3188 = vpack.c.b16 %v2341, %v2334
    %v3189 = vpack.c.b16 %v2342, %v2335
    %v3190 = vpack.c.b16 %v2350, %v2343
    %v3191 = vpack.c.b16 %v2351, %v2344
    %v3192 = vpack.c.b16 %v2352, %v2345
    %v3193 = vpack.c.b16 %v2353, %v2346
    %v3194 = vpack.c.b16 %v2354, %v2347
    %v3195 = vpack.c.b16 %v2355, %v2348
    %v3196 = vpack.c.b16 %v2356, %v2349
    %v3197 = vpack.c.b16 %v2364, %v2357
    %v3198 = vpack.c.b16 %v2365, %v2358
    %v3199 = vpack.c.b16 %v2366, %v2359
    %v3200 = vpack.c.b16 %v2367, %v2360
    %v3201 = vpack.c.b16 %v2368, %v2361
    %v3202 = vpack.c.b16 %v2369, %v2362
    %v3203 = vpack.c.b16 %v2370, %v2363
    %v3204 = vpack.c.b16 %v2378, %v2371
    %v3205 = vpack.c.b16 %v2379, %v2372
    %v3206 = vpack.c.b16 %v2380, %v2373
    %v3207 = vpack.c.b16 %v2381, %v2374
    %v3208 = vpack.c.b16 %v2382, %v2375
    %v3209 = vpack.c.b16 %v2383, %v2376
    %v3210 = vpack.c.b16 %v2384, %v2377
    %v3211 = vpack.c.b16 %v2392, %v2385
    %v3212 = vpack.c.b16 %v2393, %v2386
    %v3213 = vpack.c.b16 %v2394, %v2387
    %v3214 = vpack.c.b16 %v2395, %v2388
    %v3215 = vpack.c.b16 %v2396, %v2389
    %v3216 = vpack.c.b16 %v2397, %v2390
    %v3217 = vpack.c.b16 %v2398, %v2391
    %v3218 = vpack.c.b16 %v2406, %v2399
    %v3219 = vpack.c.b16 %v2407, %v2400
    %v3220 = vpack.c.b16 %v2408, %v2401
    %v3221 = vpack.c.b16 %v2409, %v2402
    %v3222 = vpack.c.b16 %v2410, %v2403
    %v3223 = vpack.c.b16 %v2411, %v2404
    %v3224 = vpack.c.b16 %v2412, %v2405
    %v3225 = vpack.c.b16 %v2420, %v2413
    %v3226 = vpack.c.b16 %v2421, %v2414
    %v3227 = vpack.c.b16 %v2422, %v2415
    %v3228 = vpack.c.b16 %v2423, %v2416
    %v3229 = vpack.c.b16 %v2424, %v2417
    %v3230 = vpack.c.b16 %v2425, %v2418
    %v3231 = vpack.c.b16 %v2426, %v2419
    %v3232 = vpack.c.b16 %v2434, %v2427
    %v3233 = vpack.c.b16 %v2435, %v2428
    %v3234 = vpack.c.b16 %v2436, %v2429
    %v3235 = vpack.c.b16 %v2437, %v2430
    %v3236 = vpack.c.b16 %v2438, %v2431
    %v3237 = vpack.c.b16 %v2439, %v2432
    %v3238 = vpack.c.b16 %v2440, %v2433
    %v3239 = vpack.c.b16 %v2448, %v2441
    %v3240 = vpack.c.b16 %v2449, %v2442
    %v3241 = vpack.c.b16 %v2450, %v2443
    %v3242 = vpack.c.b16 %v2451, %v2444
    %v3243 = vpack.c.b16 %v2452, %v2445
    %v3244 = vpack.c.b16 %v2453, %v2446
    %v3245 = vpack.c.b16 %v2454, %v2447
    %v3246 = vpack.c.b16 %v2462, %v2455
    %v3247 = vpack.c.b16 %v2463, %v2456
    %v3248 = vpack.c.b16 %v2464, %v2457
    %v3249 = vpack.c.b16 %v2465, %v2458
    %v3250 = vpack.c.b16 %v2466, %v2459
    %v3251 = vpack.c.b16 %v2467, %v2460
    %v3252 = vpack.c.b16 %v2468, %v2461
    %v3253 = vpack.c.b16 %v2476, %v2469
    %v3254 = vpack.c.b16 %v2477, %v2470
    %v3255 = vpack.c.b16 %v2478, %v2471
    %v3256 = vpack.c.b16 %v2479, %v2472
    %v3257 = vpack.c.b16 %v2480, %v2473
    %v3258 = vpack.c.b16 %v2481, %v2474
    %v3259 = vpack.c.b16 %v2482, %v2475
    %v3260 = vpack.c.b16 %v2490, %v2483
    %v3261 = vpack.c.b16 %v2491, %v2484
    %v3262 = vpack.c.b16 %v2492, %v2485
    %v3263 = vpack.c.b16 %v2493, %v2486
    %v3264 = vpack.c.b16 %v2494, %v2487
    %v3265 = vpack.c.b16 %v2495, %v2488
    %v3266 = vpack.c.b16 %v2496, %v2489
    %v3267 = vpack.c.b16 %v2504, %v2497
    %v3268 = vpack.c.b16 %v2505, %v2498
    %v3269 = vpack.c.b16 %v2506, %v2499
    %v3270 = vpack.c.b16 %v2507, %v2500
    %v3271 = vpack.c.b16 %v2508, %v2501
    %v3272 = vpack.c.b16 %v2509, %v2502
    %v3273 = vpack.c.b16 %v2510, %v2503
    %v3274 = vpack.c.b16 %v2518, %v2511
    %v3275 = vpack.c.b16 %v2519, %v2512
    %v3276 = vpack.c.b16 %v2520, %v2513
    %v3277 = vpack.c.b16 %v2521, %v2514
    %v3278 = vpack.c.b16 %v2522, %v2515
    %v3279 = vpack.c.b16 %v2523, %v2516
    %v3280 = vpack.c.b16 %v2524, %v2517
    %v3281 = vpack.c.b16 %v2532, %v2525
    %v3282 = vpack.c.b16 %v2533, %v2526
    %v3283 = vpack.c.b16 %v2534, %v2527
    %v3284 = vpack.c.b16 %v2535, %v2528
    %v3285 = vpack.c.b16 %v2536, %v2529
    %v3286 = vpack.c.b16 %v2537, %v2530
    %v3287 = vpack.c.b16 %v2538, %v2531
    %v3288 = vpack.c.b16 %v2546, %v2539
    %v3289 = vpack.c.b16 %v2547, %v2540
    %v3290 = vpack.c.b16 %v2548, %v2541
    %v3291 = vpack.c.b16 %v2549, %v2542
    %v3292 = vpack.c.b16 %v2550, %v2543
    %v3293 = vpack.c.b16 %v2551, %v2544
    %v3294 = vpack.c.b16 %v2552, %v2545
    %v3295 = vpack.c.b16 %v2560, %v2553
    %v3296 = vpack.c.b16 %v2561, %v2554
    %v3297 = vpack.c.b16 %v2562, %v2555
    %v3298 = vpack.c.b16 %v2563, %v2556
    %v3299 = vpack.c.b16 %v2564, %v2557
    %v3300 = vpack.c.b16 %v2565, %v2558
    %v3301 = vpack.c.b16 %v2566, %v2559
    %v3302 = vpack.c.b16 %v2574, %v2567
    %v3303 = vpack.c.b16 %v2575, %v2568
    %v3304 = vpack.c.b16 %v2576, %v2569
    %v3305 = vpack.c.b16 %v2577, %v2570
    %v3306 = vpack.c.b16 %v2578, %v2571
    %v3307 = vpack.c.b16 %v2579, %v2572
    %v3308 = vpack.c.b16 %v2580, %v2573
    %v3309 = vpack.c.b16 %v2588, %v2581
    %v3310 = vpack.c.b16 %v2589, %v2582
    %v3311 = vpack.c.b16 %v2590, %v2583
    %v3312 = vpack.c.b16 %v2591, %v2584
    %v3313 = vpack.c.b16 %v2592, %v2585
    %v3314 = vpack.c.b16 %v2593, %v2586
    %v3315 = vpack.c.b16 %v2594, %v2587
    %v3316 = vpack.c.b16 %v2602, %v2595
    %v3317 = vpack.c.b16 %v2603, %v2596
    %v3318 = vpack.c.b16 %v2604, %v2597
    %v3319 = vpack.c.b16 %v2605, %v2598
    %v3320 = vpack.c.b16 %v2606, %v2599
    %v3321 = vpack.c.b16 %v2607, %v2600
    %v3322 = vpack.c.b16 %v2608, %v2601
    %v3323 = vpack.c.b16 %v2616, %v2609
    %v3324 = vpack.c.b16 %v2617, %v2610
    %v3325 = vpack.c.b16 %v2618, %v2611
    %v3326 = vpack.c.b16 %v2619, %v2612
    %v3327 = vpack.c.b16 %v2620, %v2613
    %v3328 = vpack.c.b16 %v2621, %v2614
    %v3329 = vpack.c.b16 %v2622, %v2615
    %v3330 = vpack.c.b16 %v2630, %v2623
    %v3331 = vpack.c.b16 %v2631, %v2624
    %v3332 = vpack.c.b16 %v2632, %v2625
    %v3333 = vpack.c.b16 %v2633, %v2626
    %v3334 = vpack.c.b16 %v2634, %v2627
    %v3335 = vpack.c.b16 %v2635, %v2628
    %v3336 = vpack.c.b16 %v2636, %v2629
    %v3337 = vpack.c.b16 %v2644, %v2637
    %v3338 = vpack.c.b16 %v2645, %v2638
    %v3339 = vpack.c.b16 %v2646, %v2639
    %v3340 = vpack.c.b16 %v2647, %v2640
    %v3341 = vpack.c.b16 %v2648, %v2641
    %v3342 = vpack.c.b16 %v2649, %v2642
    %v3343 = vpack.c.b16 %v2650, %v2643
    %v3344 = vpack.c.b16 %v2658, %v2651
    %v3345 = vpack.c.b16 %v2659, %v2652
    %v3346 = vpack.c.b16 %v2660, %v2653
    %v3347 = vpack.c.b16 %v2661, %v2654
    %v3348 = vpack.c.b16 %v2662, %v2655
    %v3349 = vpack.c.b16 %v2663, %v2656
    %v3350 = vpack.c.b16 %v2664, %v2657
    %v3351 = vpack.c.b16 %v2672, %v2665
    %v3352 = vpack.c.b16 %v2673, %v2666
    %v3353 = vpack.c.b16 %v2674, %v2667
    %v3354 = vpack.c.b16 %v2675, %v2668
    %v3355 = vpack.c.b16 %v2676, %v2669
    %v3356 = vpack.c.b16 %v2677, %v2670
    %v3357 = vpack.c.b16 %v2678, %v2671
    %v3358 = vpack.c.b16 %v2686, %v2679
    %v3359 = vpack.c.b16 %v2687, %v2680
    %v3360 = vpack.c.b16 %v2688, %v2681
    %v3361 = vpack.c.b16 %v2689, %v2682
    %v3362 = vpack.c.b16 %v2690, %v2683
    %v3363 = vpack.c.b16 %v2691, %v2684
    %v3364 = vpack.c.b16 %v2692, %v2685
    %v3365 = vpack.c.b16 %v2700, %v2693
    %v3366 = vpack.c.b16 %v2701, %v2694
    %v3367 = vpack.c.b16 %v2702, %v2695
    %v3368 = vpack.c.b16 %v2703, %v2696
    %v3369 = vpack.c.b16 %v2704, %v2697
    %v3370 = vpack.c.b16 %v2705, %v2698
    %v3371 = vpack.c.b16 %v2706, %v2699
    %v3372 = vpack.c.b16 %v2714, %v2707
    %v3373 = vpack.c.b16 %v2715, %v2708
    %v3374 = vpack.c.b16 %v2716, %v2709
    %v3375 = vpack.c.b16 %v2717, %v2710
    %v3376 = vpack.c.b16 %v2718, %v2711
    %v3377 = vpack.c.b16 %v2719, %v2712
    %v3378 = vpack.c.b16 %v2720, %v2713
    %v3379 = vpack.c.b16 %v2728, %v2721
    %v3380 = vpack.c.b16 %v2729, %v2722
    %v3381 = vpack.c.b16 %v2730, %v2723
    %v3382 = vpack.c.b16 %v2731, %v2724
    %v3383 = vpack.c.b16 %v2732, %v2725
    %v3384 = vpack.c.b16 %v2733, %v2726
    %v3385 = vpack.c.b16 %v2734, %v2727
    %v3386 = vpack.c.b16 %v2742, %v2735
    %v3387 = vpack.c.b16 %v2743, %v2736
    %v3388 = vpack.c.b16 %v2744, %v2737
    %v3389 = vpack.c.b16 %v2745, %v2738
    %v3390 = vpack.c.b16 %v2746, %v2739
    %v3391 = vpack.c.b16 %v2747, %v2740
    %v3392 = vpack.c.b16 %v2748, %v2741
    %v3393 = vpack.c.b16 %v2756, %v2749
    %v3394 = vpack.c.b16 %v2757, %v2750
    %v3395 = vpack.c.b16 %v2758, %v2751
    %v3396 = vpack.c.b16 %v2759, %v2752
    %v3397 = vpack.c.b16 %v2760, %v2753
    %v3398 = vpack.c.b16 %v2761, %v2754
    %v3399 = vpack.c.b16 %v2762, %v2755
    %v3400 = vpack.c.b16 %v2770, %v2763
    %v3401 = vpack.c.b16 %v2771, %v2764
    %v3402 = vpack.c.b16 %v2772, %v2765
    %v3403 = vpack.c.b16 %v2773, %v2766
    %v3404 = vpack.c.b16 %v2774, %v2767
    %v3405 = vpack.c.b16 %v2775, %v2768
    %v3406 = vpack.c.b16 %v2776, %v2769
    %v3407 = vpack.c.b16 %v2784, %v2777
    %v3408 = vpack.c.b16 %v2785, %v2778
    %v3409 = vpack.c.b16 %v2786, %v2779
    %v3410 = vpack.c.b16 %v2787, %v2780
    %v3411 = vpack.c.b16 %v2788, %v2781
    %v3412 = vpack.c.b16 %v2789, %v2782
    %v3413 = vpack.c.b16 %v2790, %v2783
    %v3414 = vpack.c.b16 %v2798, %v2791
    %v3415 = vpack.c.b16 %v2799, %v2792
    %v3416 = vpack.c.b16 %v2800, %v2793
    %v3417 = vpack.c.b16 %v2801, %v2794
    %v3418 = vpack.c.b16 %v2802, %v2795
    %v3419 = vpack.c.b16 %v2803, %v2796
    %v3420 = vpack.c.b16 %v2804, %v2797
    %v3421 = vpack.c.b16 %v2812, %v2805
    %v3422 = vpack.c.b16 %v2813, %v2806
    %v3423 = vpack.c.b16 %v2814, %v2807
    %v3424 = vpack.c.b16 %v2815, %v2808
    %v3425 = vpack.c.b16 %v2816, %v2809
    %v3426 = vpack.c.b16 %v2817, %v2810
    %v3427 = vpack.c.b16 %v2818, %v2811
    %v3428 = vpack.c.b16 %v2826, %v2819
    %v3429 = vpack.c.b16 %v2827, %v2820
    %v3430 = vpack.c.b16 %v2828, %v2821
    %v3431 = vpack.c.b16 %v2829, %v2822
    %v3432 = vpack.c.b16 %v2830, %v2823
    %v3433 = vpack.c.b16 %v2831, %v2824
    %v3434 = vpack.c.b16 %v2832, %v2825
    %v3435 = vpack.c.b16 %v2840, %v2833
    %v3436 = vpack.c.b16 %v2841, %v2834
    %v3437 = vpack.c.b16 %v2842, %v2835
    %v3438 = vpack.c.b16 %v2843, %v2836
    %v3439 = vpack.c.b16 %v2844, %v2837
    %v3440 = vpack.c.b16 %v2845, %v2838
    %v3441 = vpack.c.b16 %v2846, %v2839
    %v3442 = vpack.c.b16 %v2854, %v2847
    %v3443 = vpack.c.b16 %v2855, %v2848
    %v3444 = vpack.c.b16 %v2856, %v2849
    %v3445 = vpack.c.b16 %v2857, %v2850
    %v3446 = vpack.c.b16 %v2858, %v2851
    %v3447 = vpack.c.b16 %v2859, %v2852
    %v3448 = vpack.c.b16 %v2860, %v2853
    %v3449 = vpack.c.b16 %v2868, %v2861
    %v3450 = vpack.c.b16 %v2869, %v2862
    %v3451 = vpack.c.b16 %v2870, %v2863
    %v3452 = vpack.c.b16 %v2871, %v2864
    %v3453 = vpack.c.b16 %v2872, %v2865
    %v3454 = vpack.c.b16 %v2873, %v2866
    %v3455 = vpack.c.b16 %v2874, %v2867
    %v3456 = vpack.c.b16 %v2882, %v2875
    %v3457 = vpack.c.b16 %v2883, %v2876
    %v3458 = vpack.c.b16 %v2884, %v2877
    %v3459 = vpack.c.b16 %v2885, %v2878
    %v3460 = vpack.c.b16 %v2886, %v2879
    %v3461 = vpack.c.b16 %v2887, %v2880
    %v3462 = vpack.c.b16 %v2888, %v2881
    %v3463 = vpack.c.b16 %v2896, %v2889
    %v3464 = vpack.c.b16 %v2897, %v2890
    %v3465 = vpack.c.b16 %v2898, %v2891
    %v3466 = vpack.c.b16 %v2899, %v2892
    %v3467 = vpack.c.b16 %v2900, %v2893
    %v3468 = vpack.c.b16 %v2901, %v2894
    %v3469 = vpack.c.b16 %v2902, %v2895
    %v3470 = vpack.c.b16 %v2910, %v2903
    %v3471 = vpack.c.b16 %v2911, %v2904
    %v3472 = vpack.c.b16 %v2912, %v2905
    %v3473 = vpack.c.b16 %v2913, %v2906
    %v3474 = vpack.c.b16 %v2914, %v2907
    %v3475 = vpack.c.b16 %v2915, %v2908
    %v3476 = vpack.c.b16 %v2916, %v2909
    %v3477 = vpack.c.b16 %v2924, %v2917
    %v3478 = vpack.c.b16 %v2925, %v2918
    %v3479 = vpack.c.b16 %v2926, %v2919
    %v3480 = vpack.c.b16 %v2927, %v2920
    %v3481 = vpack.c.b16 %v2928, %v2921
    %v3482 = vpack.c.b16 %v2929, %v2922
    %v3483 = vpack.c.b16 %v2930, %v2923
    %v3484 = vpack.c.b16 %v2938, %v2931
    %v3485 = vpack.c.b16 %v2939, %v2932
    %v3486 = vpack.c.b16 %v2940, %v2933
    %v3487 = vpack.c.b16 %v2941, %v2934
    %v3488 = vpack.c.b16 %v2942, %v2935
    %v3489 = vpack.c.b16 %v2943, %v2936
    %v3490 = vpack.c.b16 %v2944, %v2937
    %v3491 = vpack.c.b16 %v2952, %v2945
    %v3492 = vpack.c.b16 %v2953, %v2946
    %v3493 = vpack.c.b16 %v2954, %v2947
    %v3494 = vpack.c.b16 %v2955, %v2948
    %v3495 = vpack.c.b16 %v2956, %v2949
    %v3496 = vpack.c.b16 %v2957, %v2950
    %v3497 = vpack.c.b16 %v2958, %v2951
    %v3498 = vpack.c.b16 %v2966, %v2959
    %v3499 = vpack.c.b16 %v2967, %v2960
    %v3500 = vpack.c.b16 %v2968, %v2961
    %v3501 = vpack.c.b16 %v2969, %v2962
    %v3502 = vpack.c.b16 %v2970, %v2963
    %v3503 = vpack.c.b16 %v2971, %v2964
    %v3504 = vpack.c.b16 %v2972, %v2965
    %v3505 = vpack.c.b16 %v2980, %v2973
    %v3506 = vpack.c.b16 %v2981, %v2974
    %v3507 = vpack.c.b16 %v2982, %v2975
    %v3508 = vpack.c.b16 %v2983, %v2976
    %v3509 = vpack.c.b16 %v2984, %v2977
    %v3510 = vpack.c.b16 %v2985, %v2978
    %v3511 = vpack.c.b16 %v2986, %v2979
    %v3512 = vpack.c.b16 %v2994, %v2987
    %v3513 = vpack.c.b16 %v2995, %v2988
    %v3514 = vpack.c.b16 %v2996, %v2989
    %v3515 = vpack.c.b16 %v2997, %v2990
    %v3516 = vpack.c.b16 %v2998, %v2991
    %v3517 = vpack.c.b16 %v2999, %v2992
    %v3518 = vpack.c.b16 %v3000, %v2993
    %v3519 = vpack.c.b16 %v3008, %v3001
    %v3520 = vpack.c.b16 %v3009, %v3002
    %v3521 = vpack.c.b16 %v3010, %v3003
    %v3522 = vpack.c.b16 %v3011, %v3004
    %v3523 = vpack.c.b16 %v3012, %v3005
    %v3524 = vpack.c.b16 %v3013, %v3006
    %v3525 = vpack.c.b16 %v3014, %v3007
    %v3526 = vpack.c.b16 %v3022, %v3015
    %v3527 = vpack.c.b16 %v3023, %v3016
    %v3528 = vpack.c.b16 %v3024, %v3017
    %v3529 = vpack.c.b16 %v3025, %v3018
    %v3530 = vpack.c.b16 %v3026, %v3019
    %v3531 = vpack.c.b16 %v3027, %v3020
    %v3532 = vpack.c.b16 %v3028, %v3021
    %v3533 = vpack.c.b16 %v3036, %v3029
    %v3534 = vpack.c.b16 %v3037, %v3030
    %v3535 = vpack.c.b16 %v3038, %v3031
    %v3536 = vpack.c.b16 %v3039, %v3032
    %v3537 = vpack.c.b16 %v3040, %v3033
    %v3538 = vpack.c.b16 %v3041, %v3034
    %v3539 = vpack.c.b16 %v3042, %v3035
    %v3540 = vpack.c.b16 %v3050, %v3043
    %v3541 = vpack.c.b16 %v3051, %v3044
    %v3542 = vpack.c.b16 %v3052, %v3045
    %v3543 = vpack.c.b16 %v3053, %v3046
    %v3544 = vpack.c.b16 %v3054, %v3047
    %v3545 = vpack.c.b16 %v3055, %v3048
    %v3546 = vpack.c.b16 %v3056, %v3049
    %v3547 = vpack.c.b16 %v3064, %v3057
    %v3548 = vpack.c.b16 %v3065, %v3058
    %v3549 = vpack.c.b16 %v3066, %v3059
    %v3550 = vpack.c.b16 %v3067, %v3060
    %v3551 = vpack.c.b16 %v3068, %v3061
    %v3552 = vpack.c.b16 %v3069, %v3062
    %v3553 = vpack.c.b16 %v3070, %v3063
    %v3554 = vpack.c.b16 %v3078, %v3071
    %v3555 = vpack.c.b16 %v3079, %v3072
    %v3556 = vpack.c.b16 %v3080, %v3073
    %v3557 = vpack.c.b16 %v3081, %v3074
    %v3558 = vpack.c.b16 %v3082, %v3075
    %v3559 = vpack.c.b16 %v3083, %v3076
    %v3560 = vpack.c.b16 %v3084, %v3077
    %v3561 = vpack.c.b16 %v3092, %v3085
    %v3562 = vpack.c.b16 %v3093, %v3086
    %v3563 = vpack.c.b16 %v3094, %v3087
    %v3564 = vpack.c.b16 %v3095, %v3088
    %v3565 = vpack.c.b16 %v3096, %v3089
    %v3566 = vpack.c.b16 %v3097, %v3090
    %v3567 = vpack.c.b16 %v3098, %v3091
    %v3568 = vpack.c.b16 %v3106, %v3099
    %v3569 = vpack.c.b16 %v3107, %v3100
    %v3570 = vpack.c.b16 %v3108, %v3101
    %v3571 = vpack.c.b16 %v3109, %v3102
    %v3572 = vpack.c.b16 %v3110, %v3103
    %v3573 = vpack.c.b16 %v3111, %v3104
    %v3574 = vpack.c.b16 %v3112, %v3105
    %v3575 = vpack.c.b16 %v3120, %v3113
    %v3576 = vpack.c.b16 %v3121, %v3114
    %v3577 = vpack.c.b16 %v3122, %v3115
    %v3578 = vpack.c.b16 %v3123, %v3116
    %v3579 = vpack.c.b16 %v3124, %v3117
    %v3580 = vpack.c.b16 %v3125, %v3118
    %v3581 = vpack.c.b16 %v3126, %v3119
    %v3582 = vpack.c.b16 %v3134, %v3127
    %v3583 = vpack.c.b16 %v3135, %v3128
    %v3584 = vpack.c.b16 %v3136, %v3129
    %v3585 = vpack.c.b16 %v3137, %v3130
    %v3586 = vpack.c.b16 %v3138, %v3131
    %v3587 = vpack.c.b16 %v3139, %v3132
    %v3588 = vpack.c.b16 %v3140, %v3133
    %4037 = vmatpush.bf16.msra.mxu0 %v3190
    %4038 = vmatpush.bf16.msra.mxu0 %v3183
    %4039 = vmatpush.bf16.msra.mxu0 %v3176
    %4040 = vmatpush.bf16.msra.mxu0 %v3169
    %4041 = vmatpush.bf16.msra.mxu0 %v3162
    %4042 = vmatpush.bf16.msra.mxu0 %v3155
    %4043 = vmatpush.bf16.msra.mxu0 %v3148
    %4044 = vmatpush.bf16.msra.mxu0 %v3141
    %4045 = vmatmul.bf16.gmra.mxu0 %v1197
    %v4046 = vpop.f32.mrf.mxu0
    %v4047 = vadd.f32 %v1719, %v4046
    %v4048 = vpop.f32.mrf.mxu0
    %v4049 = vadd.f32 %v1719, %v4048
    %4050 = vdwg.mxu0
    %4051 = vmatpush.bf16.msra.mxu0 %v3246
    %4052 = vmatpush.bf16.msra.mxu0 %v3239
    %4053 = vmatpush.bf16.msra.mxu0 %v3232
    %4054 = vmatpush.bf16.msra.mxu0 %v3225
    %4055 = vmatpush.bf16.msra.mxu0 %v3218
    %4056 = vmatpush.bf16.msra.mxu0 %v3211
    %4057 = vmatpush.bf16.msra.mxu0 %v3204
    %4058 = vmatpush.bf16.msra.mxu0 %v3197
    %4059 = vmatmul.bf16.gmra.mxu0 %v1198
    %v4060 = vpop.f32.mrf.mxu0
    %v4061 = vadd.f32 %v4047, %v4060
    %v4062 = vpop.f32.mrf.mxu0
    %v4063 = vadd.f32 %v4049, %v4062
    %4064 = vdwg.mxu0
    %4065 = vmatpush.bf16.msra.mxu0 %v3302
    %4066 = vmatpush.bf16.msra.mxu0 %v3295
    %4067 = vmatpush.bf16.msra.mxu0 %v3288
    %4068 = vmatpush.bf16.msra.mxu0 %v3281
    %4069 = vmatpush.bf16.msra.mxu0 %v3274
    %4070 = vmatpush.bf16.msra.mxu0 %v3267
    %4071 = vmatpush.bf16.msra.mxu0 %v3260
    %4072 = vmatpush.bf16.msra.mxu0 %v3253
    %4073 = vmatmul.bf16.gmra.mxu0 %v1199
    %v4074 = vpop.f32.mrf.mxu0
    %v4075 = vadd.f32 %v4061, %v4074
    %v4076 = vpop.f32.mrf.mxu0
    %v4077 = vadd.f32 %v4063, %v4076
    %4078 = vdwg.mxu0
    %4079 = vmatpush.bf16.msra.mxu0 %v3358
    %4080 = vmatpush.bf16.msra.mxu0 %v3351
    %4081 = vmatpush.bf16.msra.mxu0 %v3344
    %4082 = vmatpush.bf16.msra.mxu0 %v3337
    %4083 = vmatpush.bf16.msra.mxu0 %v3330
    %4084 = vmatpush.bf16.msra.mxu0 %v3323
    %4085 = vmatpush.bf16.msra.mxu0 %v3316
    %4086 = vmatpush.bf16.msra.mxu0 %v3309
    %4087 = vmatmul.bf16.gmra.mxu0 %v1200
    %v4088 = vpop.f32.mrf.mxu0
    %v4089 = vadd.f32 %v4075, %v4088
    %v4090 = vpop.f32.mrf.mxu0
    %v4091 = vadd.f32 %v4077, %v4090
    %4092 = vdwg.mxu0
    %4093 = vmatpush.bf16.msra.mxu0 %v3414
    %4094 = vmatpush.bf16.msra.mxu0 %v3407
    %4095 = vmatpush.bf16.msra.mxu0 %v3400
    %4096 = vmatpush.bf16.msra.mxu0 %v3393
    %4097 = vmatpush.bf16.msra.mxu0 %v3386
    %4098 = vmatpush.bf16.msra.mxu0 %v3379
    %4099 = vmatpush.bf16.msra.mxu0 %v3372
    %4100 = vmatpush.bf16.msra.mxu0 %v3365
    %4101 = vmatmul.bf16.gmra.mxu0 %v1201
    %v4102 = vpop.f32.mrf.mxu0
    %v4103 = vadd.f32 %v4089, %v4102
    %v4104 = vpop.f32.mrf.mxu0
    %v4105 = vadd.f32 %v4091, %v4104
    %4106 = vdwg.mxu0
    %4107 = vmatpush.bf16.msra.mxu0 %v3470
    %4108 = vmatpush.bf16.msra.mxu0 %v3463
    %4109 = vmatpush.bf16.msra.mxu0 %v3456
    %4110 = vmatpush.bf16.msra.mxu0 %v3449
    %4111 = vmatpush.bf16.msra.mxu0 %v3442
    %4112 = vmatpush.bf16.msra.mxu0 %v3435
    %4113 = vmatpush.bf16.msra.mxu0 %v3428
    %4114 = vmatpush.bf16.msra.mxu0 %v3421
    %4115 = vmatmul.bf16.gmra.mxu0 %v1202
    %v4116 = vpop.f32.mrf.mxu0
    %v4117 = vadd.f32 %v4103, %v4116
    %v4118 = vpop.f32.mrf.mxu0
    %v4119 = vadd.f32 %v4105, %v4118
    %4120 = vdwg.mxu0
    %4121 = vmatpush.bf16.msra.mxu0 %v3526
    %4122 = vmatpush.bf16.msra.mxu0 %v3519
    %4123 = vmatpush.bf16.msra.mxu0 %v3512
    %4124 = vmatpush.bf16.msra.mxu0 %v3505
    %4125 = vmatpush.bf16.msra.mxu0 %v3498
    %4126 = vmatpush.bf16.msra.mxu0 %v3491
    %4127 = vmatpush.bf16.msra.mxu0 %v3484
    %4128 = vmatpush.bf16.msra.mxu0 %v3477
    %4129 = vmatmul.bf16.gmra.mxu0 %v1203
    %v4130 = vpop.f32.mrf.mxu0
    %v4131 = vadd.f32 %v4117, %v4130
    %v4132 = vpop.f32.mrf.mxu0
    %v4133 = vadd.f32 %v4119, %v4132
    %4134 = vdwg.mxu0
    %4135 = vmatpush.bf16.msra.mxu0 %v3582
    %4136 = vmatpush.bf16.msra.mxu0 %v3575
    %4137 = vmatpush.bf16.msra.mxu0 %v3568
    %4138 = vmatpush.bf16.msra.mxu0 %v3561
    %4139 = vmatpush.bf16.msra.mxu0 %v3554
    %4140 = vmatpush.bf16.msra.mxu0 %v3547
    %4141 = vmatpush.bf16.msra.mxu0 %v3540
    %4142 = vmatpush.bf16.msra.mxu0 %v3533
    %4143 = vmatmul.bf16.gmra.mxu0 %v1204
    %v4144 = vpop.f32.mrf.mxu0
    %v4145 = vadd.f32 %v4131, %v4144
    %v4146 = vpop.f32.mrf.mxu0
    %v4147 = vadd.f32 %v4133, %v4146
    %4148 = vdwg.mxu0
    %4149 = vmatpush.bf16.msra.mxu0 %v3191
    %4150 = vmatpush.bf16.msra.mxu0 %v3184
    %4151 = vmatpush.bf16.msra.mxu0 %v3177
    %4152 = vmatpush.bf16.msra.mxu0 %v3170
    %4153 = vmatpush.bf16.msra.mxu0 %v3163
    %4154 = vmatpush.bf16.msra.mxu0 %v3156
    %4155 = vmatpush.bf16.msra.mxu0 %v3149
    %4156 = vmatpush.bf16.msra.mxu0 %v3142
    %4157 = vmatmul.bf16.gmra.mxu0 %v1197
    %v4158 = vpop.f32.mrf.mxu0
    %v4159 = vadd.f32 %v1720, %v4158
    %v4160 = vpop.f32.mrf.mxu0
    %v4161 = vadd.f32 %v1720, %v4160
    %4162 = vdwg.mxu0
    %4163 = vmatpush.bf16.msra.mxu0 %v3247
    %4164 = vmatpush.bf16.msra.mxu0 %v3240
    %4165 = vmatpush.bf16.msra.mxu0 %v3233
    %4166 = vmatpush.bf16.msra.mxu0 %v3226
    %4167 = vmatpush.bf16.msra.mxu0 %v3219
    %4168 = vmatpush.bf16.msra.mxu0 %v3212
    %4169 = vmatpush.bf16.msra.mxu0 %v3205
    %4170 = vmatpush.bf16.msra.mxu0 %v3198
    %4171 = vmatmul.bf16.gmra.mxu0 %v1198
    %v4172 = vpop.f32.mrf.mxu0
    %v4173 = vadd.f32 %v4159, %v4172
    %v4174 = vpop.f32.mrf.mxu0
    %v4175 = vadd.f32 %v4161, %v4174
    %4176 = vdwg.mxu0
    %4177 = vmatpush.bf16.msra.mxu0 %v3303
    %4178 = vmatpush.bf16.msra.mxu0 %v3296
    %4179 = vmatpush.bf16.msra.mxu0 %v3289
    %4180 = vmatpush.bf16.msra.mxu0 %v3282
    %4181 = vmatpush.bf16.msra.mxu0 %v3275
    %4182 = vmatpush.bf16.msra.mxu0 %v3268
    %4183 = vmatpush.bf16.msra.mxu0 %v3261
    %4184 = vmatpush.bf16.msra.mxu0 %v3254
    %4185 = vmatmul.bf16.gmra.mxu0 %v1199
    %v4186 = vpop.f32.mrf.mxu0
    %v4187 = vadd.f32 %v4173, %v4186
    %v4188 = vpop.f32.mrf.mxu0
    %v4189 = vadd.f32 %v4175, %v4188
    %4190 = vdwg.mxu0
    %4191 = vmatpush.bf16.msra.mxu0 %v3359
    %4192 = vmatpush.bf16.msra.mxu0 %v3352
    %4193 = vmatpush.bf16.msra.mxu0 %v3345
    %4194 = vmatpush.bf16.msra.mxu0 %v3338
    %4195 = vmatpush.bf16.msra.mxu0 %v3331
    %4196 = vmatpush.bf16.msra.mxu0 %v3324
    %4197 = vmatpush.bf16.msra.mxu0 %v3317
    %4198 = vmatpush.bf16.msra.mxu0 %v3310
    %4199 = vmatmul.bf16.gmra.mxu0 %v1200
    %v4200 = vpop.f32.mrf.mxu0
    %v4201 = vadd.f32 %v4187, %v4200
    %v4202 = vpop.f32.mrf.mxu0
    %v4203 = vadd.f32 %v4189, %v4202
    %4204 = vdwg.mxu0
    %4205 = vmatpush.bf16.msra.mxu0 %v3415
    %4206 = vmatpush.bf16.msra.mxu0 %v3408
    %4207 = vmatpush.bf16.msra.mxu0 %v3401
    %4208 = vmatpush.bf16.msra.mxu0 %v3394
    %4209 = vmatpush.bf16.msra.mxu0 %v3387
    %4210 = vmatpush.bf16.msra.mxu0 %v3380
    %4211 = vmatpush.bf16.msra.mxu0 %v3373
    %4212 = vmatpush.bf16.msra.mxu0 %v3366
    %4213 = vmatmul.bf16.gmra.mxu0 %v1201
    %v4214 = vpop.f32.mrf.mxu0
    %v4215 = vadd.f32 %v4201, %v4214
    %v4216 = vpop.f32.mrf.mxu0
    %v4217 = vadd.f32 %v4203, %v4216
    %4218 = vdwg.mxu0
    %4219 = vmatpush.bf16.msra.mxu0 %v3471
    %4220 = vmatpush.bf16.msra.mxu0 %v3464
    %4221 = vmatpush.bf16.msra.mxu0 %v3457
    %4222 = vmatpush.bf16.msra.mxu0 %v3450
    %4223 = vmatpush.bf16.msra.mxu0 %v3443
    %4224 = vmatpush.bf16.msra.mxu0 %v3436
    %4225 = vmatpush.bf16.msra.mxu0 %v3429
    %4226 = vmatpush.bf16.msra.mxu0 %v3422
    %4227 = vmatmul.bf16.gmra.mxu0 %v1202
    %v4228 = vpop.f32.mrf.mxu0
    %v4229 = vadd.f32 %v4215, %v4228
    %v4230 = vpop.f32.mrf.mxu0
    %v4231 = vadd.f32 %v4217, %v4230
    %4232 = vdwg.mxu0
    %4233 = vmatpush.bf16.msra.mxu0 %v3527
    %4234 = vmatpush.bf16.msra.mxu0 %v3520
    %4235 = vmatpush.bf16.msra.mxu0 %v3513
    %4236 = vmatpush.bf16.msra.mxu0 %v3506
    %4237 = vmatpush.bf16.msra.mxu0 %v3499
    %4238 = vmatpush.bf16.msra.mxu0 %v3492
    %4239 = vmatpush.bf16.msra.mxu0 %v3485
    %4240 = vmatpush.bf16.msra.mxu0 %v3478
    %4241 = vmatmul.bf16.gmra.mxu0 %v1203
    %v4242 = vpop.f32.mrf.mxu0
    %v4243 = vadd.f32 %v4229, %v4242
    %v4244 = vpop.f32.mrf.mxu0
    %v4245 = vadd.f32 %v4231, %v4244
    %4246 = vdwg.mxu0
    %4247 = vmatpush.bf16.msra.mxu0 %v3583
    %4248 = vmatpush.bf16.msra.mxu0 %v3576
    %4249 = vmatpush.bf16.msra.mxu0 %v3569
    %4250 = vmatpush.bf16.msra.mxu0 %v3562
    %4251 = vmatpush.bf16.msra.mxu0 %v3555
    %4252 = vmatpush.bf16.msra.mxu0 %v3548
    %4253 = vmatpush.bf16.msra.mxu0 %v3541
    %4254 = vmatpush.bf16.msra.mxu0 %v3534
    %4255 = vmatmul.bf16.gmra.mxu0 %v1204
    %v4256 = vpop.f32.mrf.mxu0
    %v4257 = vadd.f32 %v4243, %v4256
    %v4258 = vpop.f32.mrf.mxu0
    %v4259 = vadd.f32 %v4245, %v4258
    %4260 = vdwg.mxu0
    %4261 = vmatpush.bf16.msra.mxu0 %v3192
    %4262 = vmatpush.bf16.msra.mxu0 %v3185
    %4263 = vmatpush.bf16.msra.mxu0 %v3178
    %4264 = vmatpush.bf16.msra.mxu0 %v3171
    %4265 = vmatpush.bf16.msra.mxu0 %v3164
    %4266 = vmatpush.bf16.msra.mxu0 %v3157
    %4267 = vmatpush.bf16.msra.mxu0 %v3150
    %4268 = vmatpush.bf16.msra.mxu0 %v3143
    %4269 = vmatmul.bf16.gmra.mxu0 %v1197
    %v4270 = vpop.f32.mrf.mxu0
    %v4271 = vadd.f32 %v1721, %v4270
    %v4272 = vpop.f32.mrf.mxu0
    %v4273 = vadd.f32 %v1721, %v4272
    %4274 = vdwg.mxu0
    %4275 = vmatpush.bf16.msra.mxu0 %v3248
    %4276 = vmatpush.bf16.msra.mxu0 %v3241
    %4277 = vmatpush.bf16.msra.mxu0 %v3234
    %4278 = vmatpush.bf16.msra.mxu0 %v3227
    %4279 = vmatpush.bf16.msra.mxu0 %v3220
    %4280 = vmatpush.bf16.msra.mxu0 %v3213
    %4281 = vmatpush.bf16.msra.mxu0 %v3206
    %4282 = vmatpush.bf16.msra.mxu0 %v3199
    %4283 = vmatmul.bf16.gmra.mxu0 %v1198
    %v4284 = vpop.f32.mrf.mxu0
    %v4285 = vadd.f32 %v4271, %v4284
    %v4286 = vpop.f32.mrf.mxu0
    %v4287 = vadd.f32 %v4273, %v4286
    %4288 = vdwg.mxu0
    %4289 = vmatpush.bf16.msra.mxu0 %v3304
    %4290 = vmatpush.bf16.msra.mxu0 %v3297
    %4291 = vmatpush.bf16.msra.mxu0 %v3290
    %4292 = vmatpush.bf16.msra.mxu0 %v3283
    %4293 = vmatpush.bf16.msra.mxu0 %v3276
    %4294 = vmatpush.bf16.msra.mxu0 %v3269
    %4295 = vmatpush.bf16.msra.mxu0 %v3262
    %4296 = vmatpush.bf16.msra.mxu0 %v3255
    %4297 = vmatmul.bf16.gmra.mxu0 %v1199
    %v4298 = vpop.f32.mrf.mxu0
    %v4299 = vadd.f32 %v4285, %v4298
    %v4300 = vpop.f32.mrf.mxu0
    %v4301 = vadd.f32 %v4287, %v4300
    %4302 = vdwg.mxu0
    %4303 = vmatpush.bf16.msra.mxu0 %v3360
    %4304 = vmatpush.bf16.msra.mxu0 %v3353
    %4305 = vmatpush.bf16.msra.mxu0 %v3346
    %4306 = vmatpush.bf16.msra.mxu0 %v3339
    %4307 = vmatpush.bf16.msra.mxu0 %v3332
    %4308 = vmatpush.bf16.msra.mxu0 %v3325
    %4309 = vmatpush.bf16.msra.mxu0 %v3318
    %4310 = vmatpush.bf16.msra.mxu0 %v3311
    %4311 = vmatmul.bf16.gmra.mxu0 %v1200
    %v4312 = vpop.f32.mrf.mxu0
    %v4313 = vadd.f32 %v4299, %v4312
    %v4314 = vpop.f32.mrf.mxu0
    %v4315 = vadd.f32 %v4301, %v4314
    %4316 = vdwg.mxu0
    %4317 = vmatpush.bf16.msra.mxu0 %v3416
    %4318 = vmatpush.bf16.msra.mxu0 %v3409
    %4319 = vmatpush.bf16.msra.mxu0 %v3402
    %4320 = vmatpush.bf16.msra.mxu0 %v3395
    %4321 = vmatpush.bf16.msra.mxu0 %v3388
    %4322 = vmatpush.bf16.msra.mxu0 %v3381
    %4323 = vmatpush.bf16.msra.mxu0 %v3374
    %4324 = vmatpush.bf16.msra.mxu0 %v3367
    %4325 = vmatmul.bf16.gmra.mxu0 %v1201
    %v4326 = vpop.f32.mrf.mxu0
    %v4327 = vadd.f32 %v4313, %v4326
    %v4328 = vpop.f32.mrf.mxu0
    %v4329 = vadd.f32 %v4315, %v4328
    %4330 = vdwg.mxu0
    %4331 = vmatpush.bf16.msra.mxu0 %v3472
    %4332 = vmatpush.bf16.msra.mxu0 %v3465
    %4333 = vmatpush.bf16.msra.mxu0 %v3458
    %4334 = vmatpush.bf16.msra.mxu0 %v3451
    %4335 = vmatpush.bf16.msra.mxu0 %v3444
    %4336 = vmatpush.bf16.msra.mxu0 %v3437
    %4337 = vmatpush.bf16.msra.mxu0 %v3430
    %4338 = vmatpush.bf16.msra.mxu0 %v3423
    %4339 = vmatmul.bf16.gmra.mxu0 %v1202
    %v4340 = vpop.f32.mrf.mxu0
    %v4341 = vadd.f32 %v4327, %v4340
    %v4342 = vpop.f32.mrf.mxu0
    %v4343 = vadd.f32 %v4329, %v4342
    %4344 = vdwg.mxu0
    %4345 = vmatpush.bf16.msra.mxu0 %v3528
    %4346 = vmatpush.bf16.msra.mxu0 %v3521
    %4347 = vmatpush.bf16.msra.mxu0 %v3514
    %4348 = vmatpush.bf16.msra.mxu0 %v3507
    %4349 = vmatpush.bf16.msra.mxu0 %v3500
    %4350 = vmatpush.bf16.msra.mxu0 %v3493
    %4351 = vmatpush.bf16.msra.mxu0 %v3486
    %4352 = vmatpush.bf16.msra.mxu0 %v3479
    %4353 = vmatmul.bf16.gmra.mxu0 %v1203
    %v4354 = vpop.f32.mrf.mxu0
    %v4355 = vadd.f32 %v4341, %v4354
    %v4356 = vpop.f32.mrf.mxu0
    %v4357 = vadd.f32 %v4343, %v4356
    %4358 = vdwg.mxu0
    %4359 = vmatpush.bf16.msra.mxu0 %v3584
    %4360 = vmatpush.bf16.msra.mxu0 %v3577
    %4361 = vmatpush.bf16.msra.mxu0 %v3570
    %4362 = vmatpush.bf16.msra.mxu0 %v3563
    %4363 = vmatpush.bf16.msra.mxu0 %v3556
    %4364 = vmatpush.bf16.msra.mxu0 %v3549
    %4365 = vmatpush.bf16.msra.mxu0 %v3542
    %4366 = vmatpush.bf16.msra.mxu0 %v3535
    %4367 = vmatmul.bf16.gmra.mxu0 %v1204
    %v4368 = vpop.f32.mrf.mxu0
    %v4369 = vadd.f32 %v4355, %v4368
    %v4370 = vpop.f32.mrf.mxu0
    %v4371 = vadd.f32 %v4357, %v4370
    %4372 = vdwg.mxu0
    %4373 = vmatpush.bf16.msra.mxu0 %v3193
    %4374 = vmatpush.bf16.msra.mxu0 %v3186
    %4375 = vmatpush.bf16.msra.mxu0 %v3179
    %4376 = vmatpush.bf16.msra.mxu0 %v3172
    %4377 = vmatpush.bf16.msra.mxu0 %v3165
    %4378 = vmatpush.bf16.msra.mxu0 %v3158
    %4379 = vmatpush.bf16.msra.mxu0 %v3151
    %4380 = vmatpush.bf16.msra.mxu0 %v3144
    %4381 = vmatmul.bf16.gmra.mxu0 %v1197
    %v4382 = vpop.f32.mrf.mxu0
    %v4383 = vadd.f32 %v1722, %v4382
    %v4384 = vpop.f32.mrf.mxu0
    %v4385 = vadd.f32 %v1722, %v4384
    %4386 = vdwg.mxu0
    %4387 = vmatpush.bf16.msra.mxu0 %v3249
    %4388 = vmatpush.bf16.msra.mxu0 %v3242
    %4389 = vmatpush.bf16.msra.mxu0 %v3235
    %4390 = vmatpush.bf16.msra.mxu0 %v3228
    %4391 = vmatpush.bf16.msra.mxu0 %v3221
    %4392 = vmatpush.bf16.msra.mxu0 %v3214
    %4393 = vmatpush.bf16.msra.mxu0 %v3207
    %4394 = vmatpush.bf16.msra.mxu0 %v3200
    %4395 = vmatmul.bf16.gmra.mxu0 %v1198
    %v4396 = vpop.f32.mrf.mxu0
    %v4397 = vadd.f32 %v4383, %v4396
    %v4398 = vpop.f32.mrf.mxu0
    %v4399 = vadd.f32 %v4385, %v4398
    %4400 = vdwg.mxu0
    %4401 = vmatpush.bf16.msra.mxu0 %v3305
    %4402 = vmatpush.bf16.msra.mxu0 %v3298
    %4403 = vmatpush.bf16.msra.mxu0 %v3291
    %4404 = vmatpush.bf16.msra.mxu0 %v3284
    %4405 = vmatpush.bf16.msra.mxu0 %v3277
    %4406 = vmatpush.bf16.msra.mxu0 %v3270
    %4407 = vmatpush.bf16.msra.mxu0 %v3263
    %4408 = vmatpush.bf16.msra.mxu0 %v3256
    %4409 = vmatmul.bf16.gmra.mxu0 %v1199
    %v4410 = vpop.f32.mrf.mxu0
    %v4411 = vadd.f32 %v4397, %v4410
    %v4412 = vpop.f32.mrf.mxu0
    %v4413 = vadd.f32 %v4399, %v4412
    %4414 = vdwg.mxu0
    %4415 = vmatpush.bf16.msra.mxu0 %v3361
    %4416 = vmatpush.bf16.msra.mxu0 %v3354
    %4417 = vmatpush.bf16.msra.mxu0 %v3347
    %4418 = vmatpush.bf16.msra.mxu0 %v3340
    %4419 = vmatpush.bf16.msra.mxu0 %v3333
    %4420 = vmatpush.bf16.msra.mxu0 %v3326
    %4421 = vmatpush.bf16.msra.mxu0 %v3319
    %4422 = vmatpush.bf16.msra.mxu0 %v3312
    %4423 = vmatmul.bf16.gmra.mxu0 %v1200
    %v4424 = vpop.f32.mrf.mxu0
    %v4425 = vadd.f32 %v4411, %v4424
    %v4426 = vpop.f32.mrf.mxu0
    %v4427 = vadd.f32 %v4413, %v4426
    %4428 = vdwg.mxu0
    %4429 = vmatpush.bf16.msra.mxu0 %v3417
    %4430 = vmatpush.bf16.msra.mxu0 %v3410
    %4431 = vmatpush.bf16.msra.mxu0 %v3403
    %4432 = vmatpush.bf16.msra.mxu0 %v3396
    %4433 = vmatpush.bf16.msra.mxu0 %v3389
    %4434 = vmatpush.bf16.msra.mxu0 %v3382
    %4435 = vmatpush.bf16.msra.mxu0 %v3375
    %4436 = vmatpush.bf16.msra.mxu0 %v3368
    %4437 = vmatmul.bf16.gmra.mxu0 %v1201
    %v4438 = vpop.f32.mrf.mxu0
    %v4439 = vadd.f32 %v4425, %v4438
    %v4440 = vpop.f32.mrf.mxu0
    %v4441 = vadd.f32 %v4427, %v4440
    %4442 = vdwg.mxu0
    %4443 = vmatpush.bf16.msra.mxu0 %v3473
    %4444 = vmatpush.bf16.msra.mxu0 %v3466
    %4445 = vmatpush.bf16.msra.mxu0 %v3459
    %4446 = vmatpush.bf16.msra.mxu0 %v3452
    %4447 = vmatpush.bf16.msra.mxu0 %v3445
    %4448 = vmatpush.bf16.msra.mxu0 %v3438
    %4449 = vmatpush.bf16.msra.mxu0 %v3431
    %4450 = vmatpush.bf16.msra.mxu0 %v3424
    %4451 = vmatmul.bf16.gmra.mxu0 %v1202
    %v4452 = vpop.f32.mrf.mxu0
    %v4453 = vadd.f32 %v4439, %v4452
    %v4454 = vpop.f32.mrf.mxu0
    %v4455 = vadd.f32 %v4441, %v4454
    %4456 = vdwg.mxu0
    %4457 = vmatpush.bf16.msra.mxu0 %v3529
    %4458 = vmatpush.bf16.msra.mxu0 %v3522
    %4459 = vmatpush.bf16.msra.mxu0 %v3515
    %4460 = vmatpush.bf16.msra.mxu0 %v3508
    %4461 = vmatpush.bf16.msra.mxu0 %v3501
    %4462 = vmatpush.bf16.msra.mxu0 %v3494
    %4463 = vmatpush.bf16.msra.mxu0 %v3487
    %4464 = vmatpush.bf16.msra.mxu0 %v3480
    %4465 = vmatmul.bf16.gmra.mxu0 %v1203
    %v4466 = vpop.f32.mrf.mxu0
    %v4467 = vadd.f32 %v4453, %v4466
    %v4468 = vpop.f32.mrf.mxu0
    %v4469 = vadd.f32 %v4455, %v4468
    %4470 = vdwg.mxu0
    %4471 = vmatpush.bf16.msra.mxu0 %v3585
    %4472 = vmatpush.bf16.msra.mxu0 %v3578
    %4473 = vmatpush.bf16.msra.mxu0 %v3571
    %4474 = vmatpush.bf16.msra.mxu0 %v3564
    %4475 = vmatpush.bf16.msra.mxu0 %v3557
    %4476 = vmatpush.bf16.msra.mxu0 %v3550
    %4477 = vmatpush.bf16.msra.mxu0 %v3543
    %4478 = vmatpush.bf16.msra.mxu0 %v3536
    %4479 = vmatmul.bf16.gmra.mxu0 %v1204
    %v4480 = vpop.f32.mrf.mxu0
    %v4481 = vadd.f32 %v4467, %v4480
    %v4482 = vpop.f32.mrf.mxu0
    %v4483 = vadd.f32 %v4469, %v4482
    %4484 = vdwg.mxu0
    %4485 = vmatpush.bf16.msra.mxu0 %v3194
    %4486 = vmatpush.bf16.msra.mxu0 %v3187
    %4487 = vmatpush.bf16.msra.mxu0 %v3180
    %4488 = vmatpush.bf16.msra.mxu0 %v3173
    %4489 = vmatpush.bf16.msra.mxu0 %v3166
    %4490 = vmatpush.bf16.msra.mxu0 %v3159
    %4491 = vmatpush.bf16.msra.mxu0 %v3152
    %4492 = vmatpush.bf16.msra.mxu0 %v3145
    %4493 = vmatmul.bf16.gmra.mxu0 %v1197
    %v4494 = vpop.f32.mrf.mxu0
    %v4495 = vadd.f32 %v1723, %v4494
    %v4496 = vpop.f32.mrf.mxu0
    %v4497 = vadd.f32 %v1723, %v4496
    %4498 = vdwg.mxu0
    %4499 = vmatpush.bf16.msra.mxu0 %v3250
    %4500 = vmatpush.bf16.msra.mxu0 %v3243
    %4501 = vmatpush.bf16.msra.mxu0 %v3236
    %4502 = vmatpush.bf16.msra.mxu0 %v3229
    %4503 = vmatpush.bf16.msra.mxu0 %v3222
    %4504 = vmatpush.bf16.msra.mxu0 %v3215
    %4505 = vmatpush.bf16.msra.mxu0 %v3208
    %4506 = vmatpush.bf16.msra.mxu0 %v3201
    %4507 = vmatmul.bf16.gmra.mxu0 %v1198
    %v4508 = vpop.f32.mrf.mxu0
    %v4509 = vadd.f32 %v4495, %v4508
    %v4510 = vpop.f32.mrf.mxu0
    %v4511 = vadd.f32 %v4497, %v4510
    %4512 = vdwg.mxu0
    %4513 = vmatpush.bf16.msra.mxu0 %v3306
    %4514 = vmatpush.bf16.msra.mxu0 %v3299
    %4515 = vmatpush.bf16.msra.mxu0 %v3292
    %4516 = vmatpush.bf16.msra.mxu0 %v3285
    %4517 = vmatpush.bf16.msra.mxu0 %v3278
    %4518 = vmatpush.bf16.msra.mxu0 %v3271
    %4519 = vmatpush.bf16.msra.mxu0 %v3264
    %4520 = vmatpush.bf16.msra.mxu0 %v3257
    %4521 = vmatmul.bf16.gmra.mxu0 %v1199
    %v4522 = vpop.f32.mrf.mxu0
    %v4523 = vadd.f32 %v4509, %v4522
    %v4524 = vpop.f32.mrf.mxu0
    %v4525 = vadd.f32 %v4511, %v4524
    %4526 = vdwg.mxu0
    %4527 = vmatpush.bf16.msra.mxu0 %v3362
    %4528 = vmatpush.bf16.msra.mxu0 %v3355
    %4529 = vmatpush.bf16.msra.mxu0 %v3348
    %4530 = vmatpush.bf16.msra.mxu0 %v3341
    %4531 = vmatpush.bf16.msra.mxu0 %v3334
    %4532 = vmatpush.bf16.msra.mxu0 %v3327
    %4533 = vmatpush.bf16.msra.mxu0 %v3320
    %4534 = vmatpush.bf16.msra.mxu0 %v3313
    %4535 = vmatmul.bf16.gmra.mxu0 %v1200
    %v4536 = vpop.f32.mrf.mxu0
    %v4537 = vadd.f32 %v4523, %v4536
    %v4538 = vpop.f32.mrf.mxu0
    %v4539 = vadd.f32 %v4525, %v4538
    %4540 = vdwg.mxu0
    %4541 = vmatpush.bf16.msra.mxu0 %v3418
    %4542 = vmatpush.bf16.msra.mxu0 %v3411
    %4543 = vmatpush.bf16.msra.mxu0 %v3404
    %4544 = vmatpush.bf16.msra.mxu0 %v3397
    %4545 = vmatpush.bf16.msra.mxu0 %v3390
    %4546 = vmatpush.bf16.msra.mxu0 %v3383
    %4547 = vmatpush.bf16.msra.mxu0 %v3376
    %4548 = vmatpush.bf16.msra.mxu0 %v3369
    %4549 = vmatmul.bf16.gmra.mxu0 %v1201
    %v4550 = vpop.f32.mrf.mxu0
    %v4551 = vadd.f32 %v4537, %v4550
    %v4552 = vpop.f32.mrf.mxu0
    %v4553 = vadd.f32 %v4539, %v4552
    %4554 = vdwg.mxu0
    %4555 = vmatpush.bf16.msra.mxu0 %v3474
    %4556 = vmatpush.bf16.msra.mxu0 %v3467
    %4557 = vmatpush.bf16.msra.mxu0 %v3460
    %4558 = vmatpush.bf16.msra.mxu0 %v3453
    %4559 = vmatpush.bf16.msra.mxu0 %v3446
    %4560 = vmatpush.bf16.msra.mxu0 %v3439
    %4561 = vmatpush.bf16.msra.mxu0 %v3432
    %4562 = vmatpush.bf16.msra.mxu0 %v3425
    %4563 = vmatmul.bf16.gmra.mxu0 %v1202
    %v4564 = vpop.f32.mrf.mxu0
    %v4565 = vadd.f32 %v4551, %v4564
    %v4566 = vpop.f32.mrf.mxu0
    %v4567 = vadd.f32 %v4553, %v4566
    %4568 = vdwg.mxu0
    %4569 = vmatpush.bf16.msra.mxu0 %v3530
    %4570 = vmatpush.bf16.msra.mxu0 %v3523
    %4571 = vmatpush.bf16.msra.mxu0 %v3516
    %4572 = vmatpush.bf16.msra.mxu0 %v3509
    %4573 = vmatpush.bf16.msra.mxu0 %v3502
    %4574 = vmatpush.bf16.msra.mxu0 %v3495
    %4575 = vmatpush.bf16.msra.mxu0 %v3488
    %4576 = vmatpush.bf16.msra.mxu0 %v3481
    %4577 = vmatmul.bf16.gmra.mxu0 %v1203
    %v4578 = vpop.f32.mrf.mxu0
    %v4579 = vadd.f32 %v4565, %v4578
    %v4580 = vpop.f32.mrf.mxu0
    %v4581 = vadd.f32 %v4567, %v4580
    %4582 = vdwg.mxu0
    %4583 = vmatpush.bf16.msra.mxu0 %v3586
    %4584 = vmatpush.bf16.msra.mxu0 %v3579
    %4585 = vmatpush.bf16.msra.mxu0 %v3572
    %4586 = vmatpush.bf16.msra.mxu0 %v3565
    %4587 = vmatpush.bf16.msra.mxu0 %v3558
    %4588 = vmatpush.bf16.msra.mxu0 %v3551
    %4589 = vmatpush.bf16.msra.mxu0 %v3544
    %4590 = vmatpush.bf16.msra.mxu0 %v3537
    %4591 = vmatmul.bf16.gmra.mxu0 %v1204
    %v4592 = vpop.f32.mrf.mxu0
    %v4593 = vadd.f32 %v4579, %v4592
    %v4594 = vpop.f32.mrf.mxu0
    %v4595 = vadd.f32 %v4581, %v4594
    %4596 = vdwg.mxu0
    %4597 = vmatpush.bf16.msra.mxu0 %v3195
    %4598 = vmatpush.bf16.msra.mxu0 %v3188
    %4599 = vmatpush.bf16.msra.mxu0 %v3181
    %4600 = vmatpush.bf16.msra.mxu0 %v3174
    %4601 = vmatpush.bf16.msra.mxu0 %v3167
    %4602 = vmatpush.bf16.msra.mxu0 %v3160
    %4603 = vmatpush.bf16.msra.mxu0 %v3153
    %4604 = vmatpush.bf16.msra.mxu0 %v3146
    %4605 = vmatmul.bf16.gmra.mxu0 %v1197
    %v4606 = vpop.f32.mrf.mxu0
    %v4607 = vadd.f32 %v1724, %v4606
    %v4608 = vpop.f32.mrf.mxu0
    %v4609 = vadd.f32 %v1724, %v4608
    %4610 = vdwg.mxu0
    %4611 = vmatpush.bf16.msra.mxu0 %v3251
    %4612 = vmatpush.bf16.msra.mxu0 %v3244
    %4613 = vmatpush.bf16.msra.mxu0 %v3237
    %4614 = vmatpush.bf16.msra.mxu0 %v3230
    %4615 = vmatpush.bf16.msra.mxu0 %v3223
    %4616 = vmatpush.bf16.msra.mxu0 %v3216
    %4617 = vmatpush.bf16.msra.mxu0 %v3209
    %4618 = vmatpush.bf16.msra.mxu0 %v3202
    %4619 = vmatmul.bf16.gmra.mxu0 %v1198
    %v4620 = vpop.f32.mrf.mxu0
    %v4621 = vadd.f32 %v4607, %v4620
    %v4622 = vpop.f32.mrf.mxu0
    %v4623 = vadd.f32 %v4609, %v4622
    %4624 = vdwg.mxu0
    %4625 = vmatpush.bf16.msra.mxu0 %v3307
    %4626 = vmatpush.bf16.msra.mxu0 %v3300
    %4627 = vmatpush.bf16.msra.mxu0 %v3293
    %4628 = vmatpush.bf16.msra.mxu0 %v3286
    %4629 = vmatpush.bf16.msra.mxu0 %v3279
    %4630 = vmatpush.bf16.msra.mxu0 %v3272
    %4631 = vmatpush.bf16.msra.mxu0 %v3265
    %4632 = vmatpush.bf16.msra.mxu0 %v3258
    %4633 = vmatmul.bf16.gmra.mxu0 %v1199
    %v4634 = vpop.f32.mrf.mxu0
    %v4635 = vadd.f32 %v4621, %v4634
    %v4636 = vpop.f32.mrf.mxu0
    %v4637 = vadd.f32 %v4623, %v4636
    %4638 = vdwg.mxu0
    %4639 = vmatpush.bf16.msra.mxu0 %v3363
    %4640 = vmatpush.bf16.msra.mxu0 %v3356
    %4641 = vmatpush.bf16.msra.mxu0 %v3349
    %4642 = vmatpush.bf16.msra.mxu0 %v3342
    %4643 = vmatpush.bf16.msra.mxu0 %v3335
    %4644 = vmatpush.bf16.msra.mxu0 %v3328
    %4645 = vmatpush.bf16.msra.mxu0 %v3321
    %4646 = vmatpush.bf16.msra.mxu0 %v3314
    %4647 = vmatmul.bf16.gmra.mxu0 %v1200
    %v4648 = vpop.f32.mrf.mxu0
    %v4649 = vadd.f32 %v4635, %v4648
    %v4650 = vpop.f32.mrf.mxu0
    %v4651 = vadd.f32 %v4637, %v4650
    %4652 = vdwg.mxu0
    %4653 = vmatpush.bf16.msra.mxu0 %v3419
    %4654 = vmatpush.bf16.msra.mxu0 %v3412
    %4655 = vmatpush.bf16.msra.mxu0 %v3405
    %4656 = vmatpush.bf16.msra.mxu0 %v3398
    %4657 = vmatpush.bf16.msra.mxu0 %v3391
    %4658 = vmatpush.bf16.msra.mxu0 %v3384
    %4659 = vmatpush.bf16.msra.mxu0 %v3377
    %4660 = vmatpush.bf16.msra.mxu0 %v3370
    %4661 = vmatmul.bf16.gmra.mxu0 %v1201
    %v4662 = vpop.f32.mrf.mxu0
    %v4663 = vadd.f32 %v4649, %v4662
    %v4664 = vpop.f32.mrf.mxu0
    %v4665 = vadd.f32 %v4651, %v4664
    %4666 = vdwg.mxu0
    %4667 = vmatpush.bf16.msra.mxu0 %v3475
    %4668 = vmatpush.bf16.msra.mxu0 %v3468
    %4669 = vmatpush.bf16.msra.mxu0 %v3461
    %4670 = vmatpush.bf16.msra.mxu0 %v3454
    %4671 = vmatpush.bf16.msra.mxu0 %v3447
    %4672 = vmatpush.bf16.msra.mxu0 %v3440
    %4673 = vmatpush.bf16.msra.mxu0 %v3433
    %4674 = vmatpush.bf16.msra.mxu0 %v3426
    %4675 = vmatmul.bf16.gmra.mxu0 %v1202
    %v4676 = vpop.f32.mrf.mxu0
    %v4677 = vadd.f32 %v4663, %v4676
    %v4678 = vpop.f32.mrf.mxu0
    %v4679 = vadd.f32 %v4665, %v4678
    %4680 = vdwg.mxu0
    %4681 = vmatpush.bf16.msra.mxu0 %v3531
    %4682 = vmatpush.bf16.msra.mxu0 %v3524
    %4683 = vmatpush.bf16.msra.mxu0 %v3517
    %4684 = vmatpush.bf16.msra.mxu0 %v3510
    %4685 = vmatpush.bf16.msra.mxu0 %v3503
    %4686 = vmatpush.bf16.msra.mxu0 %v3496
    %4687 = vmatpush.bf16.msra.mxu0 %v3489
    %4688 = vmatpush.bf16.msra.mxu0 %v3482
    %4689 = vmatmul.bf16.gmra.mxu0 %v1203
    %v4690 = vpop.f32.mrf.mxu0
    %v4691 = vadd.f32 %v4677, %v4690
    %v4692 = vpop.f32.mrf.mxu0
    %v4693 = vadd.f32 %v4679, %v4692
    %4694 = vdwg.mxu0
    %4695 = vmatpush.bf16.msra.mxu0 %v3587
    %4696 = vmatpush.bf16.msra.mxu0 %v3580
    %4697 = vmatpush.bf16.msra.mxu0 %v3573
    %4698 = vmatpush.bf16.msra.mxu0 %v3566
    %4699 = vmatpush.bf16.msra.mxu0 %v3559
    %4700 = vmatpush.bf16.msra.mxu0 %v3552
    %4701 = vmatpush.bf16.msra.mxu0 %v3545
    %4702 = vmatpush.bf16.msra.mxu0 %v3538
    %4703 = vmatmul.bf16.gmra.mxu0 %v1204
    %v4704 = vpop.f32.mrf.mxu0
    %v4705 = vadd.f32 %v4691, %v4704
    %v4706 = vpop.f32.mrf.mxu0
    %v4707 = vadd.f32 %v4693, %v4706
    %4708 = vdwg.mxu0
    %4709 = vmatpush.bf16.msra.mxu0 %v3196
    %4710 = vmatpush.bf16.msra.mxu0 %v3189
    %4711 = vmatpush.bf16.msra.mxu0 %v3182
    %4712 = vmatpush.bf16.msra.mxu0 %v3175
    %4713 = vmatpush.bf16.msra.mxu0 %v3168
    %4714 = vmatpush.bf16.msra.mxu0 %v3161
    %4715 = vmatpush.bf16.msra.mxu0 %v3154
    %4716 = vmatpush.bf16.msra.mxu0 %v3147
    %4717 = vmatmul.bf16.gmra.mxu0 %v1197
    %v4718 = vpop.f32.mrf.mxu0
    %v4719 = vadd.f32 %v1725, %v4718
    %v4720 = vpop.f32.mrf.mxu0
    %v4721 = vadd.f32 %v1725, %v4720
    %4722 = vdwg.mxu0
    %4723 = vmatpush.bf16.msra.mxu0 %v3252
    %4724 = vmatpush.bf16.msra.mxu0 %v3245
    %4725 = vmatpush.bf16.msra.mxu0 %v3238
    %4726 = vmatpush.bf16.msra.mxu0 %v3231
    %4727 = vmatpush.bf16.msra.mxu0 %v3224
    %4728 = vmatpush.bf16.msra.mxu0 %v3217
    %4729 = vmatpush.bf16.msra.mxu0 %v3210
    %4730 = vmatpush.bf16.msra.mxu0 %v3203
    %4731 = vmatmul.bf16.gmra.mxu0 %v1198
    %v4732 = vpop.f32.mrf.mxu0
    %v4733 = vadd.f32 %v4719, %v4732
    %v4734 = vpop.f32.mrf.mxu0
    %v4735 = vadd.f32 %v4721, %v4734
    %4736 = vdwg.mxu0
    %4737 = vmatpush.bf16.msra.mxu0 %v3308
    %4738 = vmatpush.bf16.msra.mxu0 %v3301
    %4739 = vmatpush.bf16.msra.mxu0 %v3294
    %4740 = vmatpush.bf16.msra.mxu0 %v3287
    %4741 = vmatpush.bf16.msra.mxu0 %v3280
    %4742 = vmatpush.bf16.msra.mxu0 %v3273
    %4743 = vmatpush.bf16.msra.mxu0 %v3266
    %4744 = vmatpush.bf16.msra.mxu0 %v3259
    %4745 = vmatmul.bf16.gmra.mxu0 %v1199
    %v4746 = vpop.f32.mrf.mxu0
    %v4747 = vadd.f32 %v4733, %v4746
    %v4748 = vpop.f32.mrf.mxu0
    %v4749 = vadd.f32 %v4735, %v4748
    %4750 = vdwg.mxu0
    %4751 = vmatpush.bf16.msra.mxu0 %v3364
    %4752 = vmatpush.bf16.msra.mxu0 %v3357
    %4753 = vmatpush.bf16.msra.mxu0 %v3350
    %4754 = vmatpush.bf16.msra.mxu0 %v3343
    %4755 = vmatpush.bf16.msra.mxu0 %v3336
    %4756 = vmatpush.bf16.msra.mxu0 %v3329
    %4757 = vmatpush.bf16.msra.mxu0 %v3322
    %4758 = vmatpush.bf16.msra.mxu0 %v3315
    %4759 = vmatmul.bf16.gmra.mxu0 %v1200
    %v4760 = vpop.f32.mrf.mxu0
    %v4761 = vadd.f32 %v4747, %v4760
    %v4762 = vpop.f32.mrf.mxu0
    %v4763 = vadd.f32 %v4749, %v4762
    %4764 = vdwg.mxu0
    %4765 = vmatpush.bf16.msra.mxu0 %v3420
    %4766 = vmatpush.bf16.msra.mxu0 %v3413
    %4767 = vmatpush.bf16.msra.mxu0 %v3406
    %4768 = vmatpush.bf16.msra.mxu0 %v3399
    %4769 = vmatpush.bf16.msra.mxu0 %v3392
    %4770 = vmatpush.bf16.msra.mxu0 %v3385
    %4771 = vmatpush.bf16.msra.mxu0 %v3378
    %4772 = vmatpush.bf16.msra.mxu0 %v3371
    %4773 = vmatmul.bf16.gmra.mxu0 %v1201
    %v4774 = vpop.f32.mrf.mxu0
    %v4775 = vadd.f32 %v4761, %v4774
    %v4776 = vpop.f32.mrf.mxu0
    %v4777 = vadd.f32 %v4763, %v4776
    %4778 = vdwg.mxu0
    %4779 = vmatpush.bf16.msra.mxu0 %v3476
    %4780 = vmatpush.bf16.msra.mxu0 %v3469
    %4781 = vmatpush.bf16.msra.mxu0 %v3462
    %4782 = vmatpush.bf16.msra.mxu0 %v3455
    %4783 = vmatpush.bf16.msra.mxu0 %v3448
    %4784 = vmatpush.bf16.msra.mxu0 %v3441
    %4785 = vmatpush.bf16.msra.mxu0 %v3434
    %4786 = vmatpush.bf16.msra.mxu0 %v3427
    %4787 = vmatmul.bf16.gmra.mxu0 %v1202
    %v4788 = vpop.f32.mrf.mxu0
    %v4789 = vadd.f32 %v4775, %v4788
    %v4790 = vpop.f32.mrf.mxu0
    %v4791 = vadd.f32 %v4777, %v4790
    %4792 = vdwg.mxu0
    %4793 = vmatpush.bf16.msra.mxu0 %v3532
    %4794 = vmatpush.bf16.msra.mxu0 %v3525
    %4795 = vmatpush.bf16.msra.mxu0 %v3518
    %4796 = vmatpush.bf16.msra.mxu0 %v3511
    %4797 = vmatpush.bf16.msra.mxu0 %v3504
    %4798 = vmatpush.bf16.msra.mxu0 %v3497
    %4799 = vmatpush.bf16.msra.mxu0 %v3490
    %4800 = vmatpush.bf16.msra.mxu0 %v3483
    %4801 = vmatmul.bf16.gmra.mxu0 %v1203
    %v4802 = vpop.f32.mrf.mxu0
    %v4803 = vadd.f32 %v4789, %v4802
    %v4804 = vpop.f32.mrf.mxu0
    %v4805 = vadd.f32 %v4791, %v4804
    %4806 = vdwg.mxu0
    %4807 = vmatpush.bf16.msra.mxu0 %v3588
    %4808 = vmatpush.bf16.msra.mxu0 %v3581
    %4809 = vmatpush.bf16.msra.mxu0 %v3574
    %4810 = vmatpush.bf16.msra.mxu0 %v3567
    %4811 = vmatpush.bf16.msra.mxu0 %v3560
    %4812 = vmatpush.bf16.msra.mxu0 %v3553
    %4813 = vmatpush.bf16.msra.mxu0 %v3546
    %4814 = vmatpush.bf16.msra.mxu0 %v3539
    %4815 = vmatmul.bf16.gmra.mxu0 %v1204
    %v4816 = vpop.f32.mrf.mxu0
    %v4817 = vadd.f32 %v4803, %v4816
    %v4818 = vpop.f32.mrf.mxu0
    %v4819 = vadd.f32 %v4805, %v4818
    %4820 = vdwg.mxu0
    %v4821 = vmax.f32 %v4145, 0.0
    %v4822 = vmax.f32 %v4257, 0.0
    %v4823 = vmax.f32 %v4369, 0.0
    %v4824 = vmax.f32 %v4481, 0.0
    %v4825 = vmax.f32 %v4593, 0.0
    %v4826 = vmax.f32 %v4705, 0.0
    %v4827 = vmax.f32 %v4817, 0.0
    %v4828 = vmax.f32 %v4147, 0.0
    %v4829 = vmax.f32 %v4259, 0.0
    %v4830 = vmax.f32 %v4371, 0.0
    %v4831 = vmax.f32 %v4483, 0.0
    %v4832 = vmax.f32 %v4595, 0.0
    %v4833 = vmax.f32 %v4707, 0.0
    %v4834 = vmax.f32 %v4819, 0.0
    %v4835 = vpack.c.bf16 %v4828, %v4821
    %v4836 = vpack.c.bf16 %v4829, %v4822
    %v4837 = vpack.c.bf16 %v4830, %v4823
    %v4838 = vpack.c.bf16 %v4831, %v4824
    %v4839 = vpack.c.bf16 %v4832, %v4825
    %v4840 = vpack.c.bf16 %v4833, %v4826
    %v4841 = vpack.c.bf16 %v4834, %v4827
    %v4842 = vld [vmem:[#allocation11] sm:$0xff]
    %v4843 = vld [vmem:[#allocation11 + $0x8] sm:$0xff]
    %v4844 = vld [vmem:[#allocation11 + $0x10] sm:$0xff]
    %v4845 = vld [vmem:[#allocation11 + $0x18] sm:$0xff]
    %v4846 = vld [vmem:[#allocation11 + $0x20] sm:$0xff]
    %v4847 = vld [vmem:[#allocation11 + $0x28] sm:$0xff]
    %v4848 = vld [vmem:[#allocation11 + $0x30] sm:$0xff]
    %v4849 = vld [vmem:[#allocation11 + $0x38] sm:$0xff]
    %v4850 = vld [vmem:[#allocation11 + $0x40] sm:$0xff]
    %v4851 = vld [vmem:[#allocation11 + $0x48] sm:$0xff]
    %v4852 = vld [vmem:[#allocation11 + $0x50] sm:$0xff]
    %v4853 = vld [vmem:[#allocation11 + $0x58] sm:$0xff]
    %v4854 = vld [vmem:[#allocation11 + $0x60] sm:$0xff]
    %v4855 = vld [vmem:[#allocation11 + $0x68] sm:$0xff]
    %v4856 = vld [vmem:[#allocation11 + $0x70] sm:$0xff]
    %v4857 = vld [vmem:[#allocation11 + $0x78] sm:$0xff]
    %v4858 = vld [vmem:[#allocation11 + $0x80] sm:$0xff]
    %v4859 = vld [vmem:[#allocation11 + $0x88] sm:$0xff]
    %v4860 = vld [vmem:[#allocation11 + $0x90] sm:$0xff]
    %v4861 = vld [vmem:[#allocation11 + $0x98] sm:$0xff]
    %v4862 = vld [vmem:[#allocation11 + $0xa0] sm:$0xff]
    %v4863 = vld [vmem:[#allocation11 + $0xa8] sm:$0xff]
    %v4864 = vld [vmem:[#allocation11 + $0xb0] sm:$0xff]
    %v4865 = vld [vmem:[#allocation11 + $0xb8] sm:$0xff]
    %v4866 = vld [vmem:[#allocation11 + $0xc0] sm:$0xff]
    %v4867 = vld [vmem:[#allocation11 + $0xc8] sm:$0xff]
    %v4868 = vld [vmem:[#allocation11 + $0xd0] sm:$0xff]
    %v4869 = vld [vmem:[#allocation11 + $0xd8] sm:$0xff]
    %v4870 = vld [vmem:[#allocation11 + $0xe0] sm:$0xff]
    %v4871 = vld [vmem:[#allocation11 + $0xe8] sm:$0xff]
    %v4872 = vld [vmem:[#allocation11 + $0xf0] sm:$0xff]
    %v4873 = vld [vmem:[#allocation11 + $0xf8] sm:$0xff]
    %v4874 = vld [vmem:[#allocation11 + $0x100] sm:$0xff]
    %v4875 = vld [vmem:[#allocation11 + $0x108] sm:$0xff]
    %v4876 = vld [vmem:[#allocation11 + $0x110] sm:$0xff]
    %v4877 = vld [vmem:[#allocation11 + $0x118] sm:$0xff]
    %v4878 = vld [vmem:[#allocation11 + $0x120] sm:$0xff]
    %v4879 = vld [vmem:[#allocation11 + $0x128] sm:$0xff]
    %v4880 = vld [vmem:[#allocation11 + $0x130] sm:$0xff]
    %v4881 = vld [vmem:[#allocation11 + $0x138] sm:$0xff]
    %v4882 = vld [vmem:[#allocation11 + $0x140] sm:$0xff]
    %v4883 = vld [vmem:[#allocation11 + $0x148] sm:$0xff]
    %v4884 = vld [vmem:[#allocation11 + $0x150] sm:$0xff]
    %v4885 = vld [vmem:[#allocation11 + $0x158] sm:$0xff]
    %v4886 = vld [vmem:[#allocation11 + $0x160] sm:$0xff]
    %v4887 = vld [vmem:[#allocation11 + $0x168] sm:$0xff]
    %v4888 = vld [vmem:[#allocation11 + $0x170] sm:$0xff]
    %v4889 = vld [vmem:[#allocation11 + $0x178] sm:$0xff]
    %v4890 = vld [vmem:[#allocation11 + $0x180] sm:$0xff]
    %v4891 = vld [vmem:[#allocation11 + $0x188] sm:$0xff]
    %v4892 = vld [vmem:[#allocation11 + $0x190] sm:$0xff]
    %v4893 = vld [vmem:[#allocation11 + $0x198] sm:$0xff]
    %v4894 = vld [vmem:[#allocation11 + $0x1a0] sm:$0xff]
    %v4895 = vld [vmem:[#allocation11 + $0x1a8] sm:$0xff]
    %v4896 = vld [vmem:[#allocation11 + $0x1b0] sm:$0xff]
    %v4897 = vld [vmem:[#allocation11 + $0x1b8] sm:$0xff]
    %v4898 = vld [vmem:[#allocation11 + $0x1c0] sm:$0xff]
    %v4899 = vld [vmem:[#allocation11 + $0x1c8] sm:$0xff]
    %v4900 = vld [vmem:[#allocation11 + $0x1d0] sm:$0xff]
    %v4901 = vld [vmem:[#allocation11 + $0x1d8] sm:$0xff]
    %v4902 = vld [vmem:[#allocation11 + $0x1e0] sm:$0xff]
    %v4903 = vld [vmem:[#allocation11 + $0x1e8] sm:$0xff]
    %v4904 = vld [vmem:[#allocation11 + $0x1f0] sm:$0xff]
    %v4905 = vld [vmem:[#allocation11 + $0x1f8] sm:$0xff]
    %v4906 = vld [vmem:[#allocation11 + $0x200] sm:$0xff]
    %v4907 = vld [vmem:[#allocation11 + $0x208] sm:$0xff]
    %v4908 = vld [vmem:[#allocation11 + $0x210] sm:$0xff]
    %v4909 = vld [vmem:[#allocation11 + $0x218] sm:$0xff]
    %v4910 = vld [vmem:[#allocation11 + $0x220] sm:$0xff]
    %v4911 = vld [vmem:[#allocation11 + $0x228] sm:$0xff]
    %v4912 = vld [vmem:[#allocation11 + $0x230] sm:$0xff]
    %v4913 = vld [vmem:[#allocation11 + $0x238] sm:$0xff]
    %v4914 = vld [vmem:[#allocation11 + $0x240] sm:$0xff]
    %v4915 = vld [vmem:[#allocation11 + $0x248] sm:$0xff]
    %v4916 = vld [vmem:[#allocation11 + $0x250] sm:$0xff]
    %v4917 = vld [vmem:[#allocation11 + $0x258] sm:$0xff]
    %v4918 = vld [vmem:[#allocation11 + $0x260] sm:$0xff]
    %v4919 = vld [vmem:[#allocation11 + $0x268] sm:$0xff]
    %v4920 = vld [vmem:[#allocation11 + $0x270] sm:$0xff]
    %v4921 = vld [vmem:[#allocation11 + $0x278] sm:$0xff]
    %v4922 = vld [vmem:[#allocation11 + $0x280] sm:$0xff]
    %v4923 = vld [vmem:[#allocation11 + $0x288] sm:$0xff]
    %v4924 = vld [vmem:[#allocation11 + $0x290] sm:$0xff]
    %v4925 = vld [vmem:[#allocation11 + $0x298] sm:$0xff]
    %v4926 = vld [vmem:[#allocation11 + $0x2a0] sm:$0xff]
    %v4927 = vld [vmem:[#allocation11 + $0x2a8] sm:$0xff]
    %v4928 = vld [vmem:[#allocation11 + $0x2b0] sm:$0xff]
    %v4929 = vld [vmem:[#allocation11 + $0x2b8] sm:$0xff]
    %v4930 = vld [vmem:[#allocation11 + $0x2c0] sm:$0xff]
    %v4931 = vld [vmem:[#allocation11 + $0x2c8] sm:$0xff]
    %v4932 = vld [vmem:[#allocation11 + $0x2d0] sm:$0xff]
    %v4933 = vld [vmem:[#allocation11 + $0x2d8] sm:$0xff]
    %v4934 = vld [vmem:[#allocation11 + $0x2e0] sm:$0xff]
    %v4935 = vld [vmem:[#allocation11 + $0x2e8] sm:$0xff]
    %v4936 = vld [vmem:[#allocation11 + $0x2f0] sm:$0xff]
    %v4937 = vld [vmem:[#allocation11 + $0x2f8] sm:$0xff]
    %v4938 = vld [vmem:[#allocation11 + $0x300] sm:$0xff]
    %v4939 = vld [vmem:[#allocation11 + $0x308] sm:$0xff]
    %v4940 = vld [vmem:[#allocation11 + $0x310] sm:$0xff]
    %v4941 = vld [vmem:[#allocation11 + $0x318] sm:$0xff]
    %v4942 = vld [vmem:[#allocation11 + $0x320] sm:$0xff]
    %v4943 = vld [vmem:[#allocation11 + $0x328] sm:$0xff]
    %v4944 = vld [vmem:[#allocation11 + $0x330] sm:$0xff]
    %v4945 = vld [vmem:[#allocation11 + $0x338] sm:$0xff]
    %v4946 = vld [vmem:[#allocation11 + $0x340] sm:$0xff]
    %v4947 = vld [vmem:[#allocation11 + $0x348] sm:$0xff]
    %v4948 = vld [vmem:[#allocation11 + $0x350] sm:$0xff]
    %v4949 = vld [vmem:[#allocation11 + $0x358] sm:$0xff]
    %v4950 = vld [vmem:[#allocation11 + $0x360] sm:$0xff]
    %v4951 = vld [vmem:[#allocation11 + $0x368] sm:$0xff]
    %v4952 = vld [vmem:[#allocation11 + $0x370] sm:$0xff]
    %v4953 = vld [vmem:[#allocation11 + $0x378] sm:$0xff]
    %v4954 = vld [vmem:[#allocation11 + $0x380] sm:$0xff]
    %v4955 = vld [vmem:[#allocation11 + $0x388] sm:$0xff]
    %v4956 = vld [vmem:[#allocation11 + $0x390] sm:$0xff]
    %v4957 = vld [vmem:[#allocation11 + $0x398] sm:$0xff]
    %v4958 = vld [vmem:[#allocation11 + $0x3a0] sm:$0xff]
    %v4959 = vld [vmem:[#allocation11 + $0x3a8] sm:$0xff]
    %v4960 = vld [vmem:[#allocation11 + $0x3b0] sm:$0xff]
    %v4961 = vld [vmem:[#allocation11 + $0x3b8] sm:$0xff]
    %v4962 = vld [vmem:[#allocation11 + $0x3c0] sm:$0xff]
    %v4963 = vld [vmem:[#allocation11 + $0x3c8] sm:$0xff]
    %v4964 = vld [vmem:[#allocation11 + $0x3d0] sm:$0xff]
    %v4965 = vld [vmem:[#allocation11 + $0x3d8] sm:$0xff]
    %v4966 = vld [vmem:[#allocation11 + $0x3e0] sm:$0xff]
    %v4967 = vld [vmem:[#allocation11 + $0x3e8] sm:$0xff]
    %v4968 = vld [vmem:[#allocation11 + $0x3f0] sm:$0xff]
    %v4969 = vld [vmem:[#allocation11 + $0x3f8] sm:$0xff]
    %v4970 = vld [vmem:[#allocation11 + $0x400] sm:$0xff]
    %v4971 = vld [vmem:[#allocation11 + $0x408] sm:$0xff]
    %v4972 = vld [vmem:[#allocation11 + $0x410] sm:$0xff]
    %v4973 = vld [vmem:[#allocation11 + $0x418] sm:$0xff]
    %v4974 = vld [vmem:[#allocation11 + $0x420] sm:$0xff]
    %v4975 = vld [vmem:[#allocation11 + $0x428] sm:$0xff]
    %v4976 = vld [vmem:[#allocation11 + $0x430] sm:$0xff]
    %v4977 = vld [vmem:[#allocation11 + $0x438] sm:$0xff]
    %v4978 = vld [vmem:[#allocation11 + $0x440] sm:$0xff]
    %v4979 = vld [vmem:[#allocation11 + $0x448] sm:$0xff]
    %v4980 = vld [vmem:[#allocation11 + $0x450] sm:$0xff]
    %v4981 = vld [vmem:[#allocation11 + $0x458] sm:$0xff]
    %v4982 = vld [vmem:[#allocation11 + $0x460] sm:$0xff]
    %v4983 = vld [vmem:[#allocation11 + $0x468] sm:$0xff]
    %v4984 = vld [vmem:[#allocation11 + $0x470] sm:$0xff]
    %v4985 = vld [vmem:[#allocation11 + $0x478] sm:$0xff]
    %v4986 = vld [vmem:[#allocation11 + $0x480] sm:$0xff]
    %v4987 = vld [vmem:[#allocation11 + $0x488] sm:$0xff]
    %v4988 = vld [vmem:[#allocation11 + $0x490] sm:$0xff]
    %v4989 = vld [vmem:[#allocation11 + $0x498] sm:$0xff]
    %v4990 = vld [vmem:[#allocation11 + $0x4a0] sm:$0xff]
    %v4991 = vld [vmem:[#allocation11 + $0x4a8] sm:$0xff]
    %v4992 = vld [vmem:[#allocation11 + $0x4b0] sm:$0xff]
    %v4993 = vld [vmem:[#allocation11 + $0x4b8] sm:$0xff]
    %v4994 = vld [vmem:[#allocation11 + $0x4c0] sm:$0xff]
    %v4995 = vld [vmem:[#allocation11 + $0x4c8] sm:$0xff]
    %v4996 = vld [vmem:[#allocation11 + $0x4d0] sm:$0xff]
    %v4997 = vld [vmem:[#allocation11 + $0x4d8] sm:$0xff]
    %v4998 = vld [vmem:[#allocation11 + $0x4e0] sm:$0xff]
    %v4999 = vld [vmem:[#allocation11 + $0x4e8] sm:$0xff]
    %v5000 = vld [vmem:[#allocation11 + $0x4f0] sm:$0xff]
    %v5001 = vld [vmem:[#allocation11 + $0x4f8] sm:$0xff]
    %v5002 = vld [vmem:[#allocation11 + $0x500] sm:$0xff]
    %v5003 = vld [vmem:[#allocation11 + $0x508] sm:$0xff]
    %v5004 = vld [vmem:[#allocation11 + $0x510] sm:$0xff]
    %v5005 = vld [vmem:[#allocation11 + $0x518] sm:$0xff]
    %v5006 = vld [vmem:[#allocation11 + $0x520] sm:$0xff]
    %v5007 = vld [vmem:[#allocation11 + $0x528] sm:$0xff]
    %v5008 = vld [vmem:[#allocation11 + $0x530] sm:$0xff]
    %v5009 = vld [vmem:[#allocation11 + $0x538] sm:$0xff]
    %v5010 = vld [vmem:[#allocation11 + $0x540] sm:$0xff]
    %v5011 = vld [vmem:[#allocation11 + $0x548] sm:$0xff]
    %v5012 = vld [vmem:[#allocation11 + $0x550] sm:$0xff]
    %v5013 = vld [vmem:[#allocation11 + $0x558] sm:$0xff]
    %v5014 = vld [vmem:[#allocation11 + $0x560] sm:$0xff]
    %v5015 = vld [vmem:[#allocation11 + $0x568] sm:$0xff]
    %v5016 = vld [vmem:[#allocation11 + $0x570] sm:$0xff]
    %v5017 = vld [vmem:[#allocation11 + $0x578] sm:$0xff]
    %v5018 = vld [vmem:[#allocation11 + $0x580] sm:$0xff]
    %v5019 = vld [vmem:[#allocation11 + $0x588] sm:$0xff]
    %v5020 = vld [vmem:[#allocation11 + $0x590] sm:$0xff]
    %v5021 = vld [vmem:[#allocation11 + $0x598] sm:$0xff]
    %v5022 = vld [vmem:[#allocation11 + $0x5a0] sm:$0xff]
    %v5023 = vld [vmem:[#allocation11 + $0x5a8] sm:$0xff]
    %v5024 = vld [vmem:[#allocation11 + $0x5b0] sm:$0xff]
    %v5025 = vld [vmem:[#allocation11 + $0x5b8] sm:$0xff]
    %v5026 = vld [vmem:[#allocation11 + $0x5c0] sm:$0xff]
    %v5027 = vld [vmem:[#allocation11 + $0x5c8] sm:$0xff]
    %v5028 = vld [vmem:[#allocation11 + $0x5d0] sm:$0xff]
    %v5029 = vld [vmem:[#allocation11 + $0x5d8] sm:$0xff]
    %v5030 = vld [vmem:[#allocation11 + $0x5e0] sm:$0xff]
    %v5031 = vld [vmem:[#allocation11 + $0x5e8] sm:$0xff]
    %v5032 = vld [vmem:[#allocation11 + $0x5f0] sm:$0xff]
    %v5033 = vld [vmem:[#allocation11 + $0x5f8] sm:$0xff]
    %v5034 = vld [vmem:[#allocation11 + $0x600] sm:$0xff]
    %v5035 = vld [vmem:[#allocation11 + $0x608] sm:$0xff]
    %v5036 = vld [vmem:[#allocation11 + $0x610] sm:$0xff]
    %v5037 = vld [vmem:[#allocation11 + $0x618] sm:$0xff]
    %v5038 = vld [vmem:[#allocation11 + $0x620] sm:$0xff]
    %v5039 = vld [vmem:[#allocation11 + $0x628] sm:$0xff]
    %v5040 = vld [vmem:[#allocation11 + $0x630] sm:$0xff]
    %v5041 = vld [vmem:[#allocation11 + $0x638] sm:$0xff]
    %v5042 = vld [vmem:[#allocation11 + $0x640] sm:$0xff]
    %v5043 = vld [vmem:[#allocation11 + $0x648] sm:$0xff]
    %v5044 = vld [vmem:[#allocation11 + $0x650] sm:$0xff]
    %v5045 = vld [vmem:[#allocation11 + $0x658] sm:$0xff]
    %v5046 = vld [vmem:[#allocation11 + $0x660] sm:$0xff]
    %v5047 = vld [vmem:[#allocation11 + $0x668] sm:$0xff]
    %v5048 = vld [vmem:[#allocation11 + $0x670] sm:$0xff]
    %v5049 = vld [vmem:[#allocation11 + $0x678] sm:$0xff]
    %v5050 = vld [vmem:[#allocation11 + $0x680] sm:$0xff]
    %v5051 = vld [vmem:[#allocation11 + $0x688] sm:$0xff]
    %v5052 = vld [vmem:[#allocation11 + $0x690] sm:$0xff]
    %v5053 = vld [vmem:[#allocation11 + $0x698] sm:$0xff]
    %v5054 = vld [vmem:[#allocation11 + $0x6a0] sm:$0xff]
    %v5055 = vld [vmem:[#allocation11 + $0x6a8] sm:$0xff]
    %v5056 = vld [vmem:[#allocation11 + $0x6b0] sm:$0xff]
    %v5057 = vld [vmem:[#allocation11 + $0x6b8] sm:$0xff]
    %v5058 = vld [vmem:[#allocation11 + $0x6c0] sm:$0xff]
    %v5059 = vld [vmem:[#allocation11 + $0x6c8] sm:$0xff]
    %v5060 = vld [vmem:[#allocation11 + $0x6d0] sm:$0xff]
    %v5061 = vld [vmem:[#allocation11 + $0x6d8] sm:$0xff]
    %v5062 = vld [vmem:[#allocation11 + $0x6e0] sm:$0xff]
    %v5063 = vld [vmem:[#allocation11 + $0x6e8] sm:$0xff]
    %v5064 = vld [vmem:[#allocation11 + $0x6f0] sm:$0xff]
    %v5065 = vld [vmem:[#allocation11 + $0x6f8] sm:$0xff]
    %v5066 = vld [vmem:[#allocation13] sm:$0xf]
    %v5068 = vperm.slane %v5066, 0
    %v5069 = vperm.slane %v5066, 1
    %v5070 = vperm.slane %v5066, 2
    %v5071 = vperm.slane %v5066, 3
    %v5300 = vunpack.c.l.b16 %v4842
    %v5301 = vunpack.c.h.b16 %v4842
    %v5302 = vunpack.c.l.b16 %v4843
    %v5303 = vunpack.c.h.b16 %v4843
    %v5304 = vunpack.c.l.b16 %v4844
    %v5305 = vunpack.c.h.b16 %v4844
    %v5306 = vunpack.c.l.b16 %v4845
    %v5307 = vunpack.c.h.b16 %v4845
    %v5308 = vunpack.c.l.b16 %v4846
    %v5309 = vunpack.c.h.b16 %v4846
    %v5310 = vunpack.c.l.b16 %v4847
    %v5311 = vunpack.c.h.b16 %v4847
    %v5312 = vunpack.c.l.b16 %v4848
    %v5313 = vunpack.c.h.b16 %v4848
    %v5314 = vunpack.c.l.b16 %v4849
    %v5315 = vunpack.c.h.b16 %v4849
    %v5316 = vunpack.c.l.b16 %v4850
    %v5317 = vunpack.c.h.b16 %v4850
    %v5318 = vunpack.c.l.b16 %v4851
    %v5319 = vunpack.c.h.b16 %v4851
    %v5320 = vunpack.c.l.b16 %v4852
    %v5321 = vunpack.c.h.b16 %v4852
    %v5322 = vunpack.c.l.b16 %v4853
    %v5323 = vunpack.c.h.b16 %v4853
    %v5324 = vunpack.c.l.b16 %v4854
    %v5325 = vunpack.c.h.b16 %v4854
    %v5326 = vunpack.c.l.b16 %v4855
    %v5327 = vunpack.c.h.b16 %v4855
    %v5328 = vunpack.c.l.b16 %v4856
    %v5329 = vunpack.c.h.b16 %v4856
    %v5330 = vunpack.c.l.b16 %v4857
    %v5331 = vunpack.c.h.b16 %v4857
    %v5332 = vunpack.c.l.b16 %v4858
    %v5333 = vunpack.c.h.b16 %v4858
    %v5334 = vunpack.c.l.b16 %v4859
    %v5335 = vunpack.c.h.b16 %v4859
    %v5336 = vunpack.c.l.b16 %v4860
    %v5337 = vunpack.c.h.b16 %v4860
    %v5338 = vunpack.c.l.b16 %v4861
    %v5339 = vunpack.c.h.b16 %v4861
    %v5340 = vunpack.c.l.b16 %v4862
    %v5341 = vunpack.c.h.b16 %v4862
    %v5342 = vunpack.c.l.b16 %v4863
    %v5343 = vunpack.c.h.b16 %v4863
    %v5344 = vunpack.c.l.b16 %v4864
    %v5345 = vunpack.c.h.b16 %v4864
    %v5346 = vunpack.c.l.b16 %v4865
    %v5347 = vunpack.c.h.b16 %v4865
    %v5348 = vunpack.c.l.b16 %v4866
    %v5349 = vunpack.c.h.b16 %v4866
    %v5350 = vunpack.c.l.b16 %v4867
    %v5351 = vunpack.c.h.b16 %v4867
    %v5352 = vunpack.c.l.b16 %v4868
    %v5353 = vunpack.c.h.b16 %v4868
    %v5354 = vunpack.c.l.b16 %v4869
    %v5355 = vunpack.c.h.b16 %v4869
    %v5356 = vunpack.c.l.b16 %v4870
    %v5357 = vunpack.c.h.b16 %v4870
    %v5358 = vunpack.c.l.b16 %v4871
    %v5359 = vunpack.c.h.b16 %v4871
    %v5360 = vunpack.c.l.b16 %v4872
    %v5361 = vunpack.c.h.b16 %v4872
    %v5362 = vunpack.c.l.b16 %v4873
    %v5363 = vunpack.c.h.b16 %v4873
    %v5364 = vunpack.c.l.b16 %v4874
    %v5365 = vunpack.c.h.b16 %v4874
    %v5366 = vunpack.c.l.b16 %v4875
    %v5367 = vunpack.c.h.b16 %v4875
    %v5368 = vunpack.c.l.b16 %v4876
    %v5369 = vunpack.c.h.b16 %v4876
    %v5370 = vunpack.c.l.b16 %v4877
    %v5371 = vunpack.c.h.b16 %v4877
    %v5372 = vunpack.c.l.b16 %v4878
    %v5373 = vunpack.c.h.b16 %v4878
    %v5374 = vunpack.c.l.b16 %v4879
    %v5375 = vunpack.c.h.b16 %v4879
    %v5376 = vunpack.c.l.b16 %v4880
    %v5377 = vunpack.c.h.b16 %v4880
    %v5378 = vunpack.c.l.b16 %v4881
    %v5379 = vunpack.c.h.b16 %v4881
    %v5380 = vunpack.c.l.b16 %v4882
    %v5381 = vunpack.c.h.b16 %v4882
    %v5382 = vunpack.c.l.b16 %v4883
    %v5383 = vunpack.c.h.b16 %v4883
    %v5384 = vunpack.c.l.b16 %v4884
    %v5385 = vunpack.c.h.b16 %v4884
    %v5386 = vunpack.c.l.b16 %v4885
    %v5387 = vunpack.c.h.b16 %v4885
    %v5388 = vunpack.c.l.b16 %v4886
    %v5389 = vunpack.c.h.b16 %v4886
    %v5390 = vunpack.c.l.b16 %v4887
    %v5391 = vunpack.c.h.b16 %v4887
    %v5392 = vunpack.c.l.b16 %v4888
    %v5393 = vunpack.c.h.b16 %v4888
    %v5394 = vunpack.c.l.b16 %v4889
    %v5395 = vunpack.c.h.b16 %v4889
    %v5396 = vunpack.c.l.b16 %v4890
    %v5397 = vunpack.c.h.b16 %v4890
    %v5398 = vunpack.c.l.b16 %v4891
    %v5399 = vunpack.c.h.b16 %v4891
    %v5400 = vunpack.c.l.b16 %v4892
    %v5401 = vunpack.c.h.b16 %v4892
    %v5402 = vunpack.c.l.b16 %v4893
    %v5403 = vunpack.c.h.b16 %v4893
    %v5404 = vunpack.c.l.b16 %v4894
    %v5405 = vunpack.c.h.b16 %v4894
    %v5406 = vunpack.c.l.b16 %v4895
    %v5407 = vunpack.c.h.b16 %v4895
    %v5408 = vunpack.c.l.b16 %v4896
    %v5409 = vunpack.c.h.b16 %v4896
    %v5410 = vunpack.c.l.b16 %v4897
    %v5411 = vunpack.c.h.b16 %v4897
    %v5412 = vunpack.c.l.b16 %v4898
    %v5413 = vunpack.c.h.b16 %v4898
    %v5414 = vunpack.c.l.b16 %v4899
    %v5415 = vunpack.c.h.b16 %v4899
    %v5416 = vunpack.c.l.b16 %v4900
    %v5417 = vunpack.c.h.b16 %v4900
    %v5418 = vunpack.c.l.b16 %v4901
    %v5419 = vunpack.c.h.b16 %v4901
    %v5420 = vunpack.c.l.b16 %v4902
    %v5421 = vunpack.c.h.b16 %v4902
    %v5422 = vunpack.c.l.b16 %v4903
    %v5423 = vunpack.c.h.b16 %v4903
    %v5424 = vunpack.c.l.b16 %v4904
    %v5425 = vunpack.c.h.b16 %v4904
    %v5426 = vunpack.c.l.b16 %v4905
    %v5427 = vunpack.c.h.b16 %v4905
    %v5428 = vunpack.c.l.b16 %v4906
    %v5429 = vunpack.c.h.b16 %v4906
    %v5430 = vunpack.c.l.b16 %v4907
    %v5431 = vunpack.c.h.b16 %v4907
    %v5432 = vunpack.c.l.b16 %v4908
    %v5433 = vunpack.c.h.b16 %v4908
    %v5434 = vunpack.c.l.b16 %v4909
    %v5435 = vunpack.c.h.b16 %v4909
    %v5436 = vunpack.c.l.b16 %v4910
    %v5437 = vunpack.c.h.b16 %v4910
    %v5438 = vunpack.c.l.b16 %v4911
    %v5439 = vunpack.c.h.b16 %v4911
    %v5440 = vunpack.c.l.b16 %v4912
    %v5441 = vunpack.c.h.b16 %v4912
    %v5442 = vunpack.c.l.b16 %v4913
    %v5443 = vunpack.c.h.b16 %v4913
    %v5444 = vunpack.c.l.b16 %v4914
    %v5445 = vunpack.c.h.b16 %v4914
    %v5446 = vunpack.c.l.b16 %v4915
    %v5447 = vunpack.c.h.b16 %v4915
    %v5448 = vunpack.c.l.b16 %v4916
    %v5449 = vunpack.c.h.b16 %v4916
    %v5450 = vunpack.c.l.b16 %v4917
    %v5451 = vunpack.c.h.b16 %v4917
    %v5452 = vunpack.c.l.b16 %v4918
    %v5453 = vunpack.c.h.b16 %v4918
    %v5454 = vunpack.c.l.b16 %v4919
    %v5455 = vunpack.c.h.b16 %v4919
    %v5456 = vunpack.c.l.b16 %v4920
    %v5457 = vunpack.c.h.b16 %v4920
    %v5458 = vunpack.c.l.b16 %v4921
    %v5459 = vunpack.c.h.b16 %v4921
    %v5460 = vunpack.c.l.b16 %v4922
    %v5461 = vunpack.c.h.b16 %v4922
    %v5462 = vunpack.c.l.b16 %v4923
    %v5463 = vunpack.c.h.b16 %v4923
    %v5464 = vunpack.c.l.b16 %v4924
    %v5465 = vunpack.c.h.b16 %v4924
    %v5466 = vunpack.c.l.b16 %v4925
    %v5467 = vunpack.c.h.b16 %v4925
    %v5468 = vunpack.c.l.b16 %v4926
    %v5469 = vunpack.c.h.b16 %v4926
    %v5470 = vunpack.c.l.b16 %v4927
    %v5471 = vunpack.c.h.b16 %v4927
    %v5472 = vunpack.c.l.b16 %v4928
    %v5473 = vunpack.c.h.b16 %v4928
    %v5474 = vunpack.c.l.b16 %v4929
    %v5475 = vunpack.c.h.b16 %v4929
    %v5476 = vunpack.c.l.b16 %v4930
    %v5477 = vunpack.c.h.b16 %v4930
    %v5478 = vunpack.c.l.b16 %v4931
    %v5479 = vunpack.c.h.b16 %v4931
    %v5480 = vunpack.c.l.b16 %v4932
    %v5481 = vunpack.c.h.b16 %v4932
    %v5482 = vunpack.c.l.b16 %v4933
    %v5483 = vunpack.c.h.b16 %v4933
    %v5484 = vunpack.c.l.b16 %v4934
    %v5485 = vunpack.c.h.b16 %v4934
    %v5486 = vunpack.c.l.b16 %v4935
    %v5487 = vunpack.c.h.b16 %v4935
    %v5488 = vunpack.c.l.b16 %v4936
    %v5489 = vunpack.c.h.b16 %v4936
    %v5490 = vunpack.c.l.b16 %v4937
    %v5491 = vunpack.c.h.b16 %v4937
    %v5492 = vunpack.c.l.b16 %v4938
    %v5493 = vunpack.c.h.b16 %v4938
    %v5494 = vunpack.c.l.b16 %v4939
    %v5495 = vunpack.c.h.b16 %v4939
    %v5496 = vunpack.c.l.b16 %v4940
    %v5497 = vunpack.c.h.b16 %v4940
    %v5498 = vunpack.c.l.b16 %v4941
    %v5499 = vunpack.c.h.b16 %v4941
    %v5500 = vunpack.c.l.b16 %v4942
    %v5501 = vunpack.c.h.b16 %v4942
    %v5502 = vunpack.c.l.b16 %v4943
    %v5503 = vunpack.c.h.b16 %v4943
    %v5504 = vunpack.c.l.b16 %v4944
    %v5505 = vunpack.c.h.b16 %v4944
    %v5506 = vunpack.c.l.b16 %v4945
    %v5507 = vunpack.c.h.b16 %v4945
    %v5508 = vunpack.c.l.b16 %v4946
    %v5509 = vunpack.c.h.b16 %v4946
    %v5510 = vunpack.c.l.b16 %v4947
    %v5511 = vunpack.c.h.b16 %v4947
    %v5512 = vunpack.c.l.b16 %v4948
    %v5513 = vunpack.c.h.b16 %v4948
    %v5514 = vunpack.c.l.b16 %v4949
    %v5515 = vunpack.c.h.b16 %v4949
    %v5516 = vunpack.c.l.b16 %v4950
    %v5517 = vunpack.c.h.b16 %v4950
    %v5518 = vunpack.c.l.b16 %v4951
    %v5519 = vunpack.c.h.b16 %v4951
    %v5520 = vunpack.c.l.b16 %v4952
    %v5521 = vunpack.c.h.b16 %v4952
    %v5522 = vunpack.c.l.b16 %v4953
    %v5523 = vunpack.c.h.b16 %v4953
    %v5524 = vunpack.c.l.b16 %v4954
    %v5525 = vunpack.c.h.b16 %v4954
    %v5526 = vunpack.c.l.b16 %v4955
    %v5527 = vunpack.c.h.b16 %v4955
    %v5528 = vunpack.c.l.b16 %v4956
    %v5529 = vunpack.c.h.b16 %v4956
    %v5530 = vunpack.c.l.b16 %v4957
    %v5531 = vunpack.c.h.b16 %v4957
    %v5532 = vunpack.c.l.b16 %v4958
    %v5533 = vunpack.c.h.b16 %v4958
    %v5534 = vunpack.c.l.b16 %v4959
    %v5535 = vunpack.c.h.b16 %v4959
    %v5536 = vunpack.c.l.b16 %v4960
    %v5537 = vunpack.c.h.b16 %v4960
    %v5538 = vunpack.c.l.b16 %v4961
    %v5539 = vunpack.c.h.b16 %v4961
    %v5540 = vunpack.c.l.b16 %v4962
    %v5541 = vunpack.c.h.b16 %v4962
    %v5542 = vunpack.c.l.b16 %v4963
    %v5543 = vunpack.c.h.b16 %v4963
    %v5544 = vunpack.c.l.b16 %v4964
    %v5545 = vunpack.c.h.b16 %v4964
    %v5546 = vunpack.c.l.b16 %v4965
    %v5547 = vunpack.c.h.b16 %v4965
    %v5548 = vunpack.c.l.b16 %v4966
    %v5549 = vunpack.c.h.b16 %v4966
    %v5550 = vunpack.c.l.b16 %v4967
    %v5551 = vunpack.c.h.b16 %v4967
    %v5552 = vunpack.c.l.b16 %v4968
    %v5553 = vunpack.c.h.b16 %v4968
    %v5554 = vunpack.c.l.b16 %v4969
    %v5555 = vunpack.c.h.b16 %v4969
    %v5556 = vunpack.c.l.b16 %v4970
    %v5557 = vunpack.c.h.b16 %v4970
    %v5558 = vunpack.c.l.b16 %v4971
    %v5559 = vunpack.c.h.b16 %v4971
    %v5560 = vunpack.c.l.b16 %v4972
    %v5561 = vunpack.c.h.b16 %v4972
    %v5562 = vunpack.c.l.b16 %v4973
    %v5563 = vunpack.c.h.b16 %v4973
    %v5564 = vunpack.c.l.b16 %v4974
    %v5565 = vunpack.c.h.b16 %v4974
    %v5566 = vunpack.c.l.b16 %v4975
    %v5567 = vunpack.c.h.b16 %v4975
    %v5568 = vunpack.c.l.b16 %v4976
    %v5569 = vunpack.c.h.b16 %v4976
    %v5570 = vunpack.c.l.b16 %v4977
    %v5571 = vunpack.c.h.b16 %v4977
    %v5572 = vunpack.c.l.b16 %v4978
    %v5573 = vunpack.c.h.b16 %v4978
    %v5574 = vunpack.c.l.b16 %v4979
    %v5575 = vunpack.c.h.b16 %v4979
    %v5576 = vunpack.c.l.b16 %v4980
    %v5577 = vunpack.c.h.b16 %v4980
    %v5578 = vunpack.c.l.b16 %v4981
    %v5579 = vunpack.c.h.b16 %v4981
    %v5580 = vunpack.c.l.b16 %v4982
    %v5581 = vunpack.c.h.b16 %v4982
    %v5582 = vunpack.c.l.b16 %v4983
    %v5583 = vunpack.c.h.b16 %v4983
    %v5584 = vunpack.c.l.b16 %v4984
    %v5585 = vunpack.c.h.b16 %v4984
    %v5586 = vunpack.c.l.b16 %v4985
    %v5587 = vunpack.c.h.b16 %v4985
    %v5588 = vunpack.c.l.b16 %v4986
    %v5589 = vunpack.c.h.b16 %v4986
    %v5590 = vunpack.c.l.b16 %v4987
    %v5591 = vunpack.c.h.b16 %v4987
    %v5592 = vunpack.c.l.b16 %v4988
    %v5593 = vunpack.c.h.b16 %v4988
    %v5594 = vunpack.c.l.b16 %v4989
    %v5595 = vunpack.c.h.b16 %v4989
    %v5596 = vunpack.c.l.b16 %v4990
    %v5597 = vunpack.c.h.b16 %v4990
    %v5598 = vunpack.c.l.b16 %v4991
    %v5599 = vunpack.c.h.b16 %v4991
    %v5600 = vunpack.c.l.b16 %v4992
    %v5601 = vunpack.c.h.b16 %v4992
    %v5602 = vunpack.c.l.b16 %v4993
    %v5603 = vunpack.c.h.b16 %v4993
    %v5604 = vunpack.c.l.b16 %v4994
    %v5605 = vunpack.c.h.b16 %v4994
    %v5606 = vunpack.c.l.b16 %v4995
    %v5607 = vunpack.c.h.b16 %v4995
    %v5608 = vunpack.c.l.b16 %v4996
    %v5609 = vunpack.c.h.b16 %v4996
    %v5610 = vunpack.c.l.b16 %v4997
    %v5611 = vunpack.c.h.b16 %v4997
    %v5612 = vunpack.c.l.b16 %v4998
    %v5613 = vunpack.c.h.b16 %v4998
    %v5614 = vunpack.c.l.b16 %v4999
    %v5615 = vunpack.c.h.b16 %v4999
    %v5616 = vunpack.c.l.b16 %v5000
    %v5617 = vunpack.c.h.b16 %v5000
    %v5618 = vunpack.c.l.b16 %v5001
    %v5619 = vunpack.c.h.b16 %v5001
    %v5620 = vunpack.c.l.b16 %v5002
    %v5621 = vunpack.c.h.b16 %v5002
    %v5622 = vunpack.c.l.b16 %v5003
    %v5623 = vunpack.c.h.b16 %v5003
    %v5624 = vunpack.c.l.b16 %v5004
    %v5625 = vunpack.c.h.b16 %v5004
    %v5626 = vunpack.c.l.b16 %v5005
    %v5627 = vunpack.c.h.b16 %v5005
    %v5628 = vunpack.c.l.b16 %v5006
    %v5629 = vunpack.c.h.b16 %v5006
    %v5630 = vunpack.c.l.b16 %v5007
    %v5631 = vunpack.c.h.b16 %v5007
    %v5632 = vunpack.c.l.b16 %v5008
    %v5633 = vunpack.c.h.b16 %v5008
    %v5634 = vunpack.c.l.b16 %v5009
    %v5635 = vunpack.c.h.b16 %v5009
    %v5636 = vunpack.c.l.b16 %v5010
    %v5637 = vunpack.c.h.b16 %v5010
    %v5638 = vunpack.c.l.b16 %v5011
    %v5639 = vunpack.c.h.b16 %v5011
    %v5640 = vunpack.c.l.b16 %v5012
    %v5641 = vunpack.c.h.b16 %v5012
    %v5642 = vunpack.c.l.b16 %v5013
    %v5643 = vunpack.c.h.b16 %v5013
    %v5644 = vunpack.c.l.b16 %v5014
    %v5645 = vunpack.c.h.b16 %v5014
    %v5646 = vunpack.c.l.b16 %v5015
    %v5647 = vunpack.c.h.b16 %v5015
    %v5648 = vunpack.c.l.b16 %v5016
    %v5649 = vunpack.c.h.b16 %v5016
    %v5650 = vunpack.c.l.b16 %v5017
    %v5651 = vunpack.c.h.b16 %v5017
    %v5652 = vunpack.c.l.b16 %v5018
    %v5653 = vunpack.c.h.b16 %v5018
    %v5654 = vunpack.c.l.b16 %v5019
    %v5655 = vunpack.c.h.b16 %v5019
    %v5656 = vunpack.c.l.b16 %v5020
    %v5657 = vunpack.c.h.b16 %v5020
    %v5658 = vunpack.c.l.b16 %v5021
    %v5659 = vunpack.c.h.b16 %v5021
    %v5660 = vunpack.c.l.b16 %v5022
    %v5661 = vunpack.c.h.b16 %v5022
    %v5662 = vunpack.c.l.b16 %v5023
    %v5663 = vunpack.c.h.b16 %v5023
    %v5664 = vunpack.c.l.b16 %v5024
    %v5665 = vunpack.c.h.b16 %v5024
    %v5666 = vunpack.c.l.b16 %v5025
    %v5667 = vunpack.c.h.b16 %v5025
    %v5668 = vunpack.c.l.b16 %v5026
    %v5669 = vunpack.c.h.b16 %v5026
    %v5670 = vunpack.c.l.b16 %v5027
    %v5671 = vunpack.c.h.b16 %v5027
    %v5672 = vunpack.c.l.b16 %v5028
    %v5673 = vunpack.c.h.b16 %v5028
    %v5674 = vunpack.c.l.b16 %v5029
    %v5675 = vunpack.c.h.b16 %v5029
    %v5676 = vunpack.c.l.b16 %v5030
    %v5677 = vunpack.c.h.b16 %v5030
    %v5678 = vunpack.c.l.b16 %v5031
    %v5679 = vunpack.c.h.b16 %v5031
    %v5680 = vunpack.c.l.b16 %v5032
    %v5681 = vunpack.c.h.b16 %v5032
    %v5682 = vunpack.c.l.b16 %v5033
    %v5683 = vunpack.c.h.b16 %v5033
    %v5684 = vunpack.c.l.b16 %v5034
    %v5685 = vunpack.c.h.b16 %v5034
    %v5686 = vunpack.c.l.b16 %v5035
    %v5687 = vunpack.c.h.b16 %v5035
    %v5688 = vunpack.c.l.b16 %v5036
    %v5689 = vunpack.c.h.b16 %v5036
    %v5690 = vunpack.c.l.b16 %v5037
    %v5691 = vunpack.c.h.b16 %v5037
    %v5692 = vunpack.c.l.b16 %v5038
    %v5693 = vunpack.c.h.b16 %v5038
    %v5694 = vunpack.c.l.b16 %v5039
    %v5695 = vunpack.c.h.b16 %v5039
    %v5696 = vunpack.c.l.b16 %v5040
    %v5697 = vunpack.c.h.b16 %v5040
    %v5698 = vunpack.c.l.b16 %v5041
    %v5699 = vunpack.c.h.b16 %v5041
    %v5700 = vunpack.c.l.b16 %v5042
    %v5701 = vunpack.c.h.b16 %v5042
    %v5702 = vunpack.c.l.b16 %v5043
    %v5703 = vunpack.c.h.b16 %v5043
    %v5704 = vunpack.c.l.b16 %v5044
    %v5705 = vunpack.c.h.b16 %v5044
    %v5706 = vunpack.c.l.b16 %v5045
    %v5707 = vunpack.c.h.b16 %v5045
    %v5708 = vunpack.c.l.b16 %v5046
    %v5709 = vunpack.c.h.b16 %v5046
    %v5710 = vunpack.c.l.b16 %v5047
    %v5711 = vunpack.c.h.b16 %v5047
    %v5712 = vunpack.c.l.b16 %v5048
    %v5713 = vunpack.c.h.b16 %v5048
    %v5714 = vunpack.c.l.b16 %v5049
    %v5715 = vunpack.c.h.b16 %v5049
    %v5716 = vunpack.c.l.b16 %v5050
    %v5717 = vunpack.c.h.b16 %v5050
    %v5718 = vunpack.c.l.b16 %v5051
    %v5719 = vunpack.c.h.b16 %v5051
    %v5720 = vunpack.c.l.b16 %v5052
    %v5721 = vunpack.c.h.b16 %v5052
    %v5722 = vunpack.c.l.b16 %v5053
    %v5723 = vunpack.c.h.b16 %v5053
    %v5724 = vunpack.c.l.b16 %v5054
    %v5725 = vunpack.c.h.b16 %v5054
    %v5726 = vunpack.c.l.b16 %v5055
    %v5727 = vunpack.c.h.b16 %v5055
    %v5728 = vunpack.c.l.b16 %v5056
    %v5729 = vunpack.c.h.b16 %v5056
    %v5730 = vunpack.c.l.b16 %v5057
    %v5731 = vunpack.c.h.b16 %v5057
    %v5732 = vunpack.c.l.b16 %v5058
    %v5733 = vunpack.c.h.b16 %v5058
    %v5734 = vunpack.c.l.b16 %v5059
    %v5735 = vunpack.c.h.b16 %v5059
    %v5736 = vunpack.c.l.b16 %v5060
    %v5737 = vunpack.c.h.b16 %v5060
    %v5738 = vunpack.c.l.b16 %v5061
    %v5739 = vunpack.c.h.b16 %v5061
    %v5740 = vunpack.c.l.b16 %v5062
    %v5741 = vunpack.c.h.b16 %v5062
    %v5742 = vunpack.c.l.b16 %v5063
    %v5743 = vunpack.c.h.b16 %v5063
    %v5744 = vunpack.c.l.b16 %v5064
    %v5745 = vunpack.c.h.b16 %v5064
    %v5746 = vunpack.c.l.b16 %v5065
    %v5747 = vunpack.c.h.b16 %v5065
    %v5748 = vpack.c.b16 %v5304, %v5300
    %v5749 = vpack.c.b16 %v5305, %v5301
    %v5750 = vpack.c.b16 %v5306, %v5302
    %v5751 = vpack.c.b16 %v5307, %v5303
    %v5752 = vpack.c.b16 %v5312, %v5308
    %v5753 = vpack.c.b16 %v5313, %v5309
    %v5754 = vpack.c.b16 %v5314, %v5310
    %v5755 = vpack.c.b16 %v5315, %v5311
    %v5756 = vpack.c.b16 %v5320, %v5316
    %v5757 = vpack.c.b16 %v5321, %v5317
    %v5758 = vpack.c.b16 %v5322, %v5318
    %v5759 = vpack.c.b16 %v5323, %v5319
    %v5760 = vpack.c.b16 %v5328, %v5324
    %v5761 = vpack.c.b16 %v5329, %v5325
    %v5762 = vpack.c.b16 %v5330, %v5326
    %v5763 = vpack.c.b16 %v5331, %v5327
    %v5764 = vpack.c.b16 %v5336, %v5332
    %v5765 = vpack.c.b16 %v5337, %v5333
    %v5766 = vpack.c.b16 %v5338, %v5334
    %v5767 = vpack.c.b16 %v5339, %v5335
    %v5768 = vpack.c.b16 %v5344, %v5340
    %v5769 = vpack.c.b16 %v5345, %v5341
    %v5770 = vpack.c.b16 %v5346, %v5342
    %v5771 = vpack.c.b16 %v5347, %v5343
    %v5772 = vpack.c.b16 %v5352, %v5348
    %v5773 = vpack.c.b16 %v5353, %v5349
    %v5774 = vpack.c.b16 %v5354, %v5350
    %v5775 = vpack.c.b16 %v5355, %v5351
    %v5776 = vpack.c.b16 %v5360, %v5356
    %v5777 = vpack.c.b16 %v5361, %v5357
    %v5778 = vpack.c.b16 %v5362, %v5358
    %v5779 = vpack.c.b16 %v5363, %v5359
    %v5780 = vpack.c.b16 %v5368, %v5364
    %v5781 = vpack.c.b16 %v5369, %v5365
    %v5782 = vpack.c.b16 %v5370, %v5366
    %v5783 = vpack.c.b16 %v5371, %v5367
    %v5784 = vpack.c.b16 %v5376, %v5372
    %v5785 = vpack.c.b16 %v5377, %v5373
    %v5786 = vpack.c.b16 %v5378, %v5374
    %v5787 = vpack.c.b16 %v5379, %v5375
    %v5788 = vpack.c.b16 %v5384, %v5380
    %v5789 = vpack.c.b16 %v5385, %v5381
    %v5790 = vpack.c.b16 %v5386, %v5382
    %v5791 = vpack.c.b16 %v5387, %v5383
    %v5792 = vpack.c.b16 %v5392, %v5388
    %v5793 = vpack.c.b16 %v5393, %v5389
    %v5794 = vpack.c.b16 %v5394, %v5390
    %v5795 = vpack.c.b16 %v5395, %v5391
    %v5796 = vpack.c.b16 %v5400, %v5396
    %v5797 = vpack.c.b16 %v5401, %v5397
    %v5798 = vpack.c.b16 %v5402, %v5398
    %v5799 = vpack.c.b16 %v5403, %v5399
    %v5800 = vpack.c.b16 %v5408, %v5404
    %v5801 = vpack.c.b16 %v5409, %v5405
    %v5802 = vpack.c.b16 %v5410, %v5406
    %v5803 = vpack.c.b16 %v5411, %v5407
    %v5804 = vpack.c.b16 %v5416, %v5412
    %v5805 = vpack.c.b16 %v5417, %v5413
    %v5806 = vpack.c.b16 %v5418, %v5414
    %v5807 = vpack.c.b16 %v5419, %v5415
    %v5808 = vpack.c.b16 %v5424, %v5420
    %v5809 = vpack.c.b16 %v5425, %v5421
    %v5810 = vpack.c.b16 %v5426, %v5422
    %v5811 = vpack.c.b16 %v5427, %v5423
    %v5812 = vpack.c.b16 %v5432, %v5428
    %v5813 = vpack.c.b16 %v5433, %v5429
    %v5814 = vpack.c.b16 %v5434, %v5430
    %v5815 = vpack.c.b16 %v5435, %v5431
    %v5816 = vpack.c.b16 %v5440, %v5436
    %v5817 = vpack.c.b16 %v5441, %v5437
    %v5818 = vpack.c.b16 %v5442, %v5438
    %v5819 = vpack.c.b16 %v5443, %v5439
    %v5820 = vpack.c.b16 %v5448, %v5444
    %v5821 = vpack.c.b16 %v5449, %v5445
    %v5822 = vpack.c.b16 %v5450, %v5446
    %v5823 = vpack.c.b16 %v5451, %v5447
    %v5824 = vpack.c.b16 %v5456, %v5452
    %v5825 = vpack.c.b16 %v5457, %v5453
    %v5826 = vpack.c.b16 %v5458, %v5454
    %v5827 = vpack.c.b16 %v5459, %v5455
    %v5828 = vpack.c.b16 %v5464, %v5460
    %v5829 = vpack.c.b16 %v5465, %v5461
    %v5830 = vpack.c.b16 %v5466, %v5462
    %v5831 = vpack.c.b16 %v5467, %v5463
    %v5832 = vpack.c.b16 %v5472, %v5468
    %v5833 = vpack.c.b16 %v5473, %v5469
    %v5834 = vpack.c.b16 %v5474, %v5470
    %v5835 = vpack.c.b16 %v5475, %v5471
    %v5836 = vpack.c.b16 %v5480, %v5476
    %v5837 = vpack.c.b16 %v5481, %v5477
    %v5838 = vpack.c.b16 %v5482, %v5478
    %v5839 = vpack.c.b16 %v5483, %v5479
    %v5840 = vpack.c.b16 %v5488, %v5484
    %v5841 = vpack.c.b16 %v5489, %v5485
    %v5842 = vpack.c.b16 %v5490, %v5486
    %v5843 = vpack.c.b16 %v5491, %v5487
    %v5844 = vpack.c.b16 %v5496, %v5492
    %v5845 = vpack.c.b16 %v5497, %v5493
    %v5846 = vpack.c.b16 %v5498, %v5494
    %v5847 = vpack.c.b16 %v5499, %v5495
    %v5848 = vpack.c.b16 %v5504, %v5500
    %v5849 = vpack.c.b16 %v5505, %v5501
    %v5850 = vpack.c.b16 %v5506, %v5502
    %v5851 = vpack.c.b16 %v5507, %v5503
    %v5852 = vpack.c.b16 %v5512, %v5508
    %v5853 = vpack.c.b16 %v5513, %v5509
    %v5854 = vpack.c.b16 %v5514, %v5510
    %v5855 = vpack.c.b16 %v5515, %v5511
    %v5856 = vpack.c.b16 %v5520, %v5516
    %v5857 = vpack.c.b16 %v5521, %v5517
    %v5858 = vpack.c.b16 %v5522, %v5518
    %v5859 = vpack.c.b16 %v5523, %v5519
    %v5860 = vpack.c.b16 %v5528, %v5524
    %v5861 = vpack.c.b16 %v5529, %v5525
    %v5862 = vpack.c.b16 %v5530, %v5526
    %v5863 = vpack.c.b16 %v5531, %v5527
    %v5864 = vpack.c.b16 %v5536, %v5532
    %v5865 = vpack.c.b16 %v5537, %v5533
    %v5866 = vpack.c.b16 %v5538, %v5534
    %v5867 = vpack.c.b16 %v5539, %v5535
    %v5868 = vpack.c.b16 %v5544, %v5540
    %v5869 = vpack.c.b16 %v5545, %v5541
    %v5870 = vpack.c.b16 %v5546, %v5542
    %v5871 = vpack.c.b16 %v5547, %v5543
    %v5872 = vpack.c.b16 %v5552, %v5548
    %v5873 = vpack.c.b16 %v5553, %v5549
    %v5874 = vpack.c.b16 %v5554, %v5550
    %v5875 = vpack.c.b16 %v5555, %v5551
    %v5876 = vpack.c.b16 %v5560, %v5556
    %v5877 = vpack.c.b16 %v5561, %v5557
    %v5878 = vpack.c.b16 %v5562, %v5558
    %v5879 = vpack.c.b16 %v5563, %v5559
    %v5880 = vpack.c.b16 %v5568, %v5564
    %v5881 = vpack.c.b16 %v5569, %v5565
    %v5882 = vpack.c.b16 %v5570, %v5566
    %v5883 = vpack.c.b16 %v5571, %v5567
    %v5884 = vpack.c.b16 %v5576, %v5572
    %v5885 = vpack.c.b16 %v5577, %v5573
    %v5886 = vpack.c.b16 %v5578, %v5574
    %v5887 = vpack.c.b16 %v5579, %v5575
    %v5888 = vpack.c.b16 %v5584, %v5580
    %v5889 = vpack.c.b16 %v5585, %v5581
    %v5890 = vpack.c.b16 %v5586, %v5582
    %v5891 = vpack.c.b16 %v5587, %v5583
    %v5892 = vpack.c.b16 %v5592, %v5588
    %v5893 = vpack.c.b16 %v5593, %v5589
    %v5894 = vpack.c.b16 %v5594, %v5590
    %v5895 = vpack.c.b16 %v5595, %v5591
    %v5896 = vpack.c.b16 %v5600, %v5596
    %v5897 = vpack.c.b16 %v5601, %v5597
    %v5898 = vpack.c.b16 %v5602, %v5598
    %v5899 = vpack.c.b16 %v5603, %v5599
    %v5900 = vpack.c.b16 %v5608, %v5604
    %v5901 = vpack.c.b16 %v5609, %v5605
    %v5902 = vpack.c.b16 %v5610, %v5606
    %v5903 = vpack.c.b16 %v5611, %v5607
    %v5904 = vpack.c.b16 %v5616, %v5612
    %v5905 = vpack.c.b16 %v5617, %v5613
    %v5906 = vpack.c.b16 %v5618, %v5614
    %v5907 = vpack.c.b16 %v5619, %v5615
    %v5908 = vpack.c.b16 %v5624, %v5620
    %v5909 = vpack.c.b16 %v5625, %v5621
    %v5910 = vpack.c.b16 %v5626, %v5622
    %v5911 = vpack.c.b16 %v5627, %v5623
    %v5912 = vpack.c.b16 %v5632, %v5628
    %v5913 = vpack.c.b16 %v5633, %v5629
    %v5914 = vpack.c.b16 %v5634, %v5630
    %v5915 = vpack.c.b16 %v5635, %v5631
    %v5916 = vpack.c.b16 %v5640, %v5636
    %v5917 = vpack.c.b16 %v5641, %v5637
    %v5918 = vpack.c.b16 %v5642, %v5638
    %v5919 = vpack.c.b16 %v5643, %v5639
    %v5920 = vpack.c.b16 %v5648, %v5644
    %v5921 = vpack.c.b16 %v5649, %v5645
    %v5922 = vpack.c.b16 %v5650, %v5646
    %v5923 = vpack.c.b16 %v5651, %v5647
    %v5924 = vpack.c.b16 %v5656, %v5652
    %v5925 = vpack.c.b16 %v5657, %v5653
    %v5926 = vpack.c.b16 %v5658, %v5654
    %v5927 = vpack.c.b16 %v5659, %v5655
    %v5928 = vpack.c.b16 %v5664, %v5660
    %v5929 = vpack.c.b16 %v5665, %v5661
    %v5930 = vpack.c.b16 %v5666, %v5662
    %v5931 = vpack.c.b16 %v5667, %v5663
    %v5932 = vpack.c.b16 %v5672, %v5668
    %v5933 = vpack.c.b16 %v5673, %v5669
    %v5934 = vpack.c.b16 %v5674, %v5670
    %v5935 = vpack.c.b16 %v5675, %v5671
    %v5936 = vpack.c.b16 %v5680, %v5676
    %v5937 = vpack.c.b16 %v5681, %v5677
    %v5938 = vpack.c.b16 %v5682, %v5678
    %v5939 = vpack.c.b16 %v5683, %v5679
    %v5940 = vpack.c.b16 %v5688, %v5684
    %v5941 = vpack.c.b16 %v5689, %v5685
    %v5942 = vpack.c.b16 %v5690, %v5686
    %v5943 = vpack.c.b16 %v5691, %v5687
    %v5944 = vpack.c.b16 %v5696, %v5692
    %v5945 = vpack.c.b16 %v5697, %v5693
    %v5946 = vpack.c.b16 %v5698, %v5694
    %v5947 = vpack.c.b16 %v5699, %v5695
    %v5948 = vpack.c.b16 %v5704, %v5700
    %v5949 = vpack.c.b16 %v5705, %v5701
    %v5950 = vpack.c.b16 %v5706, %v5702
    %v5951 = vpack.c.b16 %v5707, %v5703
    %v5952 = vpack.c.b16 %v5712, %v5708
    %v5953 = vpack.c.b16 %v5713, %v5709
    %v5954 = vpack.c.b16 %v5714, %v5710
    %v5955 = vpack.c.b16 %v5715, %v5711
    %v5956 = vpack.c.b16 %v5720, %v5716
    %v5957 = vpack.c.b16 %v5721, %v5717
    %v5958 = vpack.c.b16 %v5722, %v5718
    %v5959 = vpack.c.b16 %v5723, %v5719
    %v5960 = vpack.c.b16 %v5728, %v5724
    %v5961 = vpack.c.b16 %v5729, %v5725
    %v5962 = vpack.c.b16 %v5730, %v5726
    %v5963 = vpack.c.b16 %v5731, %v5727
    %v5964 = vpack.c.b16 %v5736, %v5732
    %v5965 = vpack.c.b16 %v5737, %v5733
    %v5966 = vpack.c.b16 %v5738, %v5734
    %v5967 = vpack.c.b16 %v5739, %v5735
    %v5968 = vpack.c.b16 %v5744, %v5740
    %v5969 = vpack.c.b16 %v5745, %v5741
    %v5970 = vpack.c.b16 %v5746, %v5742
    %v5971 = vpack.c.b16 %v5747, %v5743
    %6196 = vmatpush.bf16.msra.mxu0 %v5776
    %6197 = vmatpush.bf16.msra.mxu0 %v5772
    %6198 = vmatpush.bf16.msra.mxu0 %v5768
    %6199 = vmatpush.bf16.msra.mxu0 %v5764
    %6200 = vmatpush.bf16.msra.mxu0 %v5760
    %6201 = vmatpush.bf16.msra.mxu0 %v5756
    %6202 = vmatpush.bf16.msra.mxu0 %v5752
    %6203 = vmatpush.bf16.msra.mxu0 %v5748
    %6204 = vmatmul.bf16.gmra.mxu0 %v4835
    %v6205 = vpop.f32.mrf.mxu0
    %v6206 = vadd.f32 %v5068, %v6205
    %v6207 = vpop.f32.mrf.mxu0
    %v6208 = vadd.f32 %v5068, %v6207
    %6209 = vdwg.mxu0
    %6210 = vmatpush.bf16.msra.mxu0 %v5808
    %6211 = vmatpush.bf16.msra.mxu0 %v5804
    %6212 = vmatpush.bf16.msra.mxu0 %v5800
    %6213 = vmatpush.bf16.msra.mxu0 %v5796
    %6214 = vmatpush.bf16.msra.mxu0 %v5792
    %6215 = vmatpush.bf16.msra.mxu0 %v5788
    %6216 = vmatpush.bf16.msra.mxu0 %v5784
    %6217 = vmatpush.bf16.msra.mxu0 %v5780
    %6218 = vmatmul.bf16.gmra.mxu0 %v4836
    %v6219 = vpop.f32.mrf.mxu0
    %v6220 = vadd.f32 %v6206, %v6219
    %v6221 = vpop.f32.mrf.mxu0
    %v6222 = vadd.f32 %v6208, %v6221
    %6223 = vdwg.mxu0
    %6224 = vmatpush.bf16.msra.mxu0 %v5840
    %6225 = vmatpush.bf16.msra.mxu0 %v5836
    %6226 = vmatpush.bf16.msra.mxu0 %v5832
    %6227 = vmatpush.bf16.msra.mxu0 %v5828
    %6228 = vmatpush.bf16.msra.mxu0 %v5824
    %6229 = vmatpush.bf16.msra.mxu0 %v5820
    %6230 = vmatpush.bf16.msra.mxu0 %v5816
    %6231 = vmatpush.bf16.msra.mxu0 %v5812
    %6232 = vmatmul.bf16.gmra.mxu0 %v4837
    %v6233 = vpop.f32.mrf.mxu0
    %v6234 = vadd.f32 %v6220, %v6233
    %v6235 = vpop.f32.mrf.mxu0
    %v6236 = vadd.f32 %v6222, %v6235
    %6237 = vdwg.mxu0
    %6238 = vmatpush.bf16.msra.mxu0 %v5872
    %6239 = vmatpush.bf16.msra.mxu0 %v5868
    %6240 = vmatpush.bf16.msra.mxu0 %v5864
    %6241 = vmatpush.bf16.msra.mxu0 %v5860
    %6242 = vmatpush.bf16.msra.mxu0 %v5856
    %6243 = vmatpush.bf16.msra.mxu0 %v5852
    %6244 = vmatpush.bf16.msra.mxu0 %v5848
    %6245 = vmatpush.bf16.msra.mxu0 %v5844
    %6246 = vmatmul.bf16.gmra.mxu0 %v4838
    %v6247 = vpop.f32.mrf.mxu0
    %v6248 = vadd.f32 %v6234, %v6247
    %v6249 = vpop.f32.mrf.mxu0
    %v6250 = vadd.f32 %v6236, %v6249
    %6251 = vdwg.mxu0
    %6252 = vmatpush.bf16.msra.mxu0 %v5904
    %6253 = vmatpush.bf16.msra.mxu0 %v5900
    %6254 = vmatpush.bf16.msra.mxu0 %v5896
    %6255 = vmatpush.bf16.msra.mxu0 %v5892
    %6256 = vmatpush.bf16.msra.mxu0 %v5888
    %6257 = vmatpush.bf16.msra.mxu0 %v5884
    %6258 = vmatpush.bf16.msra.mxu0 %v5880
    %6259 = vmatpush.bf16.msra.mxu0 %v5876
    %6260 = vmatmul.bf16.gmra.mxu0 %v4839
    %v6261 = vpop.f32.mrf.mxu0
    %v6262 = vadd.f32 %v6248, %v6261
    %v6263 = vpop.f32.mrf.mxu0
    %v6264 = vadd.f32 %v6250, %v6263
    %6265 = vdwg.mxu0
    %6266 = vmatpush.bf16.msra.mxu0 %v5936
    %6267 = vmatpush.bf16.msra.mxu0 %v5932
    %6268 = vmatpush.bf16.msra.mxu0 %v5928
    %6269 = vmatpush.bf16.msra.mxu0 %v5924
    %6270 = vmatpush.bf16.msra.mxu0 %v5920
    %6271 = vmatpush.bf16.msra.mxu0 %v5916
    %6272 = vmatpush.bf16.msra.mxu0 %v5912
    %6273 = vmatpush.bf16.msra.mxu0 %v5908
    %6274 = vmatmul.bf16.gmra.mxu0 %v4840
    %v6275 = vpop.f32.mrf.mxu0
    %v6276 = vadd.f32 %v6262, %v6275
    %v6277 = vpop.f32.mrf.mxu0
    %v6278 = vadd.f32 %v6264, %v6277
    %6279 = vdwg.mxu0
    %6280 = vmatpush.bf16.msra.mxu0 %v5968
    %6281 = vmatpush.bf16.msra.mxu0 %v5964
    %6282 = vmatpush.bf16.msra.mxu0 %v5960
    %6283 = vmatpush.bf16.msra.mxu0 %v5956
    %6284 = vmatpush.bf16.msra.mxu0 %v5952
    %6285 = vmatpush.bf16.msra.mxu0 %v5948
    %6286 = vmatpush.bf16.msra.mxu0 %v5944
    %6287 = vmatpush.bf16.msra.mxu0 %v5940
    %6288 = vmatmul.bf16.gmra.mxu0 %v4841
    %v6289 = vpop.f32.mrf.mxu0
    %v6290 = vadd.f32 %v6276, %v6289
    %v6291 = vpop.f32.mrf.mxu0
    %v6292 = vadd.f32 %v6278, %v6291
    %6293 = vdwg.mxu0
    %6294 = vmatpush.bf16.msra.mxu0 %v5777
    %6295 = vmatpush.bf16.msra.mxu0 %v5773
    %6296 = vmatpush.bf16.msra.mxu0 %v5769
    %6297 = vmatpush.bf16.msra.mxu0 %v5765
    %6298 = vmatpush.bf16.msra.mxu0 %v5761
    %6299 = vmatpush.bf16.msra.mxu0 %v5757
    %6300 = vmatpush.bf16.msra.mxu0 %v5753
    %6301 = vmatpush.bf16.msra.mxu0 %v5749
    %6302 = vmatmul.bf16.gmra.mxu0 %v4835
    %v6303 = vpop.f32.mrf.mxu0
    %v6304 = vadd.f32 %v5069, %v6303
    %v6305 = vpop.f32.mrf.mxu0
    %v6306 = vadd.f32 %v5069, %v6305
    %6307 = vdwg.mxu0
    %6308 = vmatpush.bf16.msra.mxu0 %v5809
    %6309 = vmatpush.bf16.msra.mxu0 %v5805
    %6310 = vmatpush.bf16.msra.mxu0 %v5801
    %6311 = vmatpush.bf16.msra.mxu0 %v5797
    %6312 = vmatpush.bf16.msra.mxu0 %v5793
    %6313 = vmatpush.bf16.msra.mxu0 %v5789
    %6314 = vmatpush.bf16.msra.mxu0 %v5785
    %6315 = vmatpush.bf16.msra.mxu0 %v5781
    %6316 = vmatmul.bf16.gmra.mxu0 %v4836
    %v6317 = vpop.f32.mrf.mxu0
    %v6318 = vadd.f32 %v6304, %v6317
    %v6319 = vpop.f32.mrf.mxu0
    %v6320 = vadd.f32 %v6306, %v6319
    %6321 = vdwg.mxu0
    %6322 = vmatpush.bf16.msra.mxu0 %v5841
    %6323 = vmatpush.bf16.msra.mxu0 %v5837
    %6324 = vmatpush.bf16.msra.mxu0 %v5833
    %6325 = vmatpush.bf16.msra.mxu0 %v5829
    %6326 = vmatpush.bf16.msra.mxu0 %v5825
    %6327 = vmatpush.bf16.msra.mxu0 %v5821
    %6328 = vmatpush.bf16.msra.mxu0 %v5817
    %6329 = vmatpush.bf16.msra.mxu0 %v5813
    %6330 = vmatmul.bf16.gmra.mxu0 %v4837
    %v6331 = vpop.f32.mrf.mxu0
    %v6332 = vadd.f32 %v6318, %v6331
    %v6333 = vpop.f32.mrf.mxu0
    %v6334 = vadd.f32 %v6320, %v6333
    %6335 = vdwg.mxu0
    %6336 = vmatpush.bf16.msra.mxu0 %v5873
    %6337 = vmatpush.bf16.msra.mxu0 %v5869
    %6338 = vmatpush.bf16.msra.mxu0 %v5865
    %6339 = vmatpush.bf16.msra.mxu0 %v5861
    %6340 = vmatpush.bf16.msra.mxu0 %v5857
    %6341 = vmatpush.bf16.msra.mxu0 %v5853
    %6342 = vmatpush.bf16.msra.mxu0 %v5849
    %6343 = vmatpush.bf16.msra.mxu0 %v5845
    %6344 = vmatmul.bf16.gmra.mxu0 %v4838
    %v6345 = vpop.f32.mrf.mxu0
    %v6346 = vadd.f32 %v6332, %v6345
    %v6347 = vpop.f32.mrf.mxu0
    %v6348 = vadd.f32 %v6334, %v6347
    %6349 = vdwg.mxu0
    %6350 = vmatpush.bf16.msra.mxu0 %v5905
    %6351 = vmatpush.bf16.msra.mxu0 %v5901
    %6352 = vmatpush.bf16.msra.mxu0 %v5897
    %6353 = vmatpush.bf16.msra.mxu0 %v5893
    %6354 = vmatpush.bf16.msra.mxu0 %v5889
    %6355 = vmatpush.bf16.msra.mxu0 %v5885
    %6356 = vmatpush.bf16.msra.mxu0 %v5881
    %6357 = vmatpush.bf16.msra.mxu0 %v5877
    %6358 = vmatmul.bf16.gmra.mxu0 %v4839
    %v6359 = vpop.f32.mrf.mxu0
    %v6360 = vadd.f32 %v6346, %v6359
    %v6361 = vpop.f32.mrf.mxu0
    %v6362 = vadd.f32 %v6348, %v6361
    %6363 = vdwg.mxu0
    %6364 = vmatpush.bf16.msra.mxu0 %v5937
    %6365 = vmatpush.bf16.msra.mxu0 %v5933
    %6366 = vmatpush.bf16.msra.mxu0 %v5929
    %6367 = vmatpush.bf16.msra.mxu0 %v5925
    %6368 = vmatpush.bf16.msra.mxu0 %v5921
    %6369 = vmatpush.bf16.msra.mxu0 %v5917
    %6370 = vmatpush.bf16.msra.mxu0 %v5913
    %6371 = vmatpush.bf16.msra.mxu0 %v5909
    %6372 = vmatmul.bf16.gmra.mxu0 %v4840
    %v6373 = vpop.f32.mrf.mxu0
    %v6374 = vadd.f32 %v6360, %v6373
    %v6375 = vpop.f32.mrf.mxu0
    %v6376 = vadd.f32 %v6362, %v6375
    %6377 = vdwg.mxu0
    %6378 = vmatpush.bf16.msra.mxu0 %v5969
    %6379 = vmatpush.bf16.msra.mxu0 %v5965
    %6380 = vmatpush.bf16.msra.mxu0 %v5961
    %6381 = vmatpush.bf16.msra.mxu0 %v5957
    %6382 = vmatpush.bf16.msra.mxu0 %v5953
    %6383 = vmatpush.bf16.msra.mxu0 %v5949
    %6384 = vmatpush.bf16.msra.mxu0 %v5945
    %6385 = vmatpush.bf16.msra.mxu0 %v5941
    %6386 = vmatmul.bf16.gmra.mxu0 %v4841
    %v6387 = vpop.f32.mrf.mxu0
    %v6388 = vadd.f32 %v6374, %v6387
    %v6389 = vpop.f32.mrf.mxu0
    %v6390 = vadd.f32 %v6376, %v6389
    %6391 = vdwg.mxu0
    %6392 = vmatpush.bf16.msra.mxu0 %v5778
    %6393 = vmatpush.bf16.msra.mxu0 %v5774
    %6394 = vmatpush.bf16.msra.mxu0 %v5770
    %6395 = vmatpush.bf16.msra.mxu0 %v5766
    %6396 = vmatpush.bf16.msra.mxu0 %v5762
    %6397 = vmatpush.bf16.msra.mxu0 %v5758
    %6398 = vmatpush.bf16.msra.mxu0 %v5754
    %6399 = vmatpush.bf16.msra.mxu0 %v5750
    %6400 = vmatmul.bf16.gmra.mxu0 %v4835
    %v6401 = vpop.f32.mrf.mxu0
    %v6402 = vadd.f32 %v5070, %v6401
    %v6403 = vpop.f32.mrf.mxu0
    %v6404 = vadd.f32 %v5070, %v6403
    %6405 = vdwg.mxu0
    %6406 = vmatpush.bf16.msra.mxu0 %v5810
    %6407 = vmatpush.bf16.msra.mxu0 %v5806
    %6408 = vmatpush.bf16.msra.mxu0 %v5802
    %6409 = vmatpush.bf16.msra.mxu0 %v5798
    %6410 = vmatpush.bf16.msra.mxu0 %v5794
    %6411 = vmatpush.bf16.msra.mxu0 %v5790
    %6412 = vmatpush.bf16.msra.mxu0 %v5786
    %6413 = vmatpush.bf16.msra.mxu0 %v5782
    %6414 = vmatmul.bf16.gmra.mxu0 %v4836
    %v6415 = vpop.f32.mrf.mxu0
    %v6416 = vadd.f32 %v6402, %v6415
    %v6417 = vpop.f32.mrf.mxu0
    %v6418 = vadd.f32 %v6404, %v6417
    %6419 = vdwg.mxu0
    %6420 = vmatpush.bf16.msra.mxu0 %v5842
    %6421 = vmatpush.bf16.msra.mxu0 %v5838
    %6422 = vmatpush.bf16.msra.mxu0 %v5834
    %6423 = vmatpush.bf16.msra.mxu0 %v5830
    %6424 = vmatpush.bf16.msra.mxu0 %v5826
    %6425 = vmatpush.bf16.msra.mxu0 %v5822
    %6426 = vmatpush.bf16.msra.mxu0 %v5818
    %6427 = vmatpush.bf16.msra.mxu0 %v5814
    %6428 = vmatmul.bf16.gmra.mxu0 %v4837
    %v6429 = vpop.f32.mrf.mxu0
    %v6430 = vadd.f32 %v6416, %v6429
    %v6431 = vpop.f32.mrf.mxu0
    %v6432 = vadd.f32 %v6418, %v6431
    %6433 = vdwg.mxu0
    %6434 = vmatpush.bf16.msra.mxu0 %v5874
    %6435 = vmatpush.bf16.msra.mxu0 %v5870
    %6436 = vmatpush.bf16.msra.mxu0 %v5866
    %6437 = vmatpush.bf16.msra.mxu0 %v5862
    %6438 = vmatpush.bf16.msra.mxu0 %v5858
    %6439 = vmatpush.bf16.msra.mxu0 %v5854
    %6440 = vmatpush.bf16.msra.mxu0 %v5850
    %6441 = vmatpush.bf16.msra.mxu0 %v5846
    %6442 = vmatmul.bf16.gmra.mxu0 %v4838
    %v6443 = vpop.f32.mrf.mxu0
    %v6444 = vadd.f32 %v6430, %v6443
    %v6445 = vpop.f32.mrf.mxu0
    %v6446 = vadd.f32 %v6432, %v6445
    %6447 = vdwg.mxu0
    %6448 = vmatpush.bf16.msra.mxu0 %v5906
    %6449 = vmatpush.bf16.msra.mxu0 %v5902
    %6450 = vmatpush.bf16.msra.mxu0 %v5898
    %6451 = vmatpush.bf16.msra.mxu0 %v5894
    %6452 = vmatpush.bf16.msra.mxu0 %v5890
    %6453 = vmatpush.bf16.msra.mxu0 %v5886
    %6454 = vmatpush.bf16.msra.mxu0 %v5882
    %6455 = vmatpush.bf16.msra.mxu0 %v5878
    %6456 = vmatmul.bf16.gmra.mxu0 %v4839
    %v6457 = vpop.f32.mrf.mxu0
    %v6458 = vadd.f32 %v6444, %v6457
    %v6459 = vpop.f32.mrf.mxu0
    %v6460 = vadd.f32 %v6446, %v6459
    %6461 = vdwg.mxu0
    %6462 = vmatpush.bf16.msra.mxu0 %v5938
    %6463 = vmatpush.bf16.msra.mxu0 %v5934
    %6464 = vmatpush.bf16.msra.mxu0 %v5930
    %6465 = vmatpush.bf16.msra.mxu0 %v5926
    %6466 = vmatpush.bf16.msra.mxu0 %v5922
    %6467 = vmatpush.bf16.msra.mxu0 %v5918
    %6468 = vmatpush.bf16.msra.mxu0 %v5914
    %6469 = vmatpush.bf16.msra.mxu0 %v5910
    %6470 = vmatmul.bf16.gmra.mxu0 %v4840
    %v6471 = vpop.f32.mrf.mxu0
    %v6472 = vadd.f32 %v6458, %v6471
    %v6473 = vpop.f32.mrf.mxu0
    %v6474 = vadd.f32 %v6460, %v6473
    %6475 = vdwg.mxu0
    %6476 = vmatpush.bf16.msra.mxu0 %v5970
    %6477 = vmatpush.bf16.msra.mxu0 %v5966
    %6478 = vmatpush.bf16.msra.mxu0 %v5962
    %6479 = vmatpush.bf16.msra.mxu0 %v5958
    %6480 = vmatpush.bf16.msra.mxu0 %v5954
    %6481 = vmatpush.bf16.msra.mxu0 %v5950
    %6482 = vmatpush.bf16.msra.mxu0 %v5946
    %6483 = vmatpush.bf16.msra.mxu0 %v5942
    %6484 = vmatmul.bf16.gmra.mxu0 %v4841
    %v6485 = vpop.f32.mrf.mxu0
    %v6486 = vadd.f32 %v6472, %v6485
    %v6487 = vpop.f32.mrf.mxu0
    %v6488 = vadd.f32 %v6474, %v6487
    %6489 = vdwg.mxu0
    %6490 = vmatpush.bf16.msra.mxu0 %v5779
    %6491 = vmatpush.bf16.msra.mxu0 %v5775
    %6492 = vmatpush.bf16.msra.mxu0 %v5771
    %6493 = vmatpush.bf16.msra.mxu0 %v5767
    %6494 = vmatpush.bf16.msra.mxu0 %v5763
    %6495 = vmatpush.bf16.msra.mxu0 %v5759
    %6496 = vmatpush.bf16.msra.mxu0 %v5755
    %6497 = vmatpush.bf16.msra.mxu0 %v5751
    %6498 = vmatmul.bf16.gmra.mxu0 %v4835
    %v6499 = vpop.f32.mrf.mxu0
    %v6500 = vadd.f32 %v5071, %v6499
    %v6501 = vpop.f32.mrf.mxu0
    %v6502 = vadd.f32 %v5071, %v6501
    %6503 = vdwg.mxu0
    %6504 = vmatpush.bf16.msra.mxu0 %v5811
    %6505 = vmatpush.bf16.msra.mxu0 %v5807
    %6506 = vmatpush.bf16.msra.mxu0 %v5803
    %6507 = vmatpush.bf16.msra.mxu0 %v5799
    %6508 = vmatpush.bf16.msra.mxu0 %v5795
    %6509 = vmatpush.bf16.msra.mxu0 %v5791
    %6510 = vmatpush.bf16.msra.mxu0 %v5787
    %6511 = vmatpush.bf16.msra.mxu0 %v5783
    %6512 = vmatmul.bf16.gmra.mxu0 %v4836
    %v6513 = vpop.f32.mrf.mxu0
    %v6514 = vadd.f32 %v6500, %v6513
    %v6515 = vpop.f32.mrf.mxu0
    %v6516 = vadd.f32 %v6502, %v6515
    %6517 = vdwg.mxu0
    %6518 = vmatpush.bf16.msra.mxu0 %v5843
    %6519 = vmatpush.bf16.msra.mxu0 %v5839
    %6520 = vmatpush.bf16.msra.mxu0 %v5835
    %6521 = vmatpush.bf16.msra.mxu0 %v5831
    %6522 = vmatpush.bf16.msra.mxu0 %v5827
    %6523 = vmatpush.bf16.msra.mxu0 %v5823
    %6524 = vmatpush.bf16.msra.mxu0 %v5819
    %6525 = vmatpush.bf16.msra.mxu0 %v5815
    %6526 = vmatmul.bf16.gmra.mxu0 %v4837
    %v6527 = vpop.f32.mrf.mxu0
    %v6528 = vadd.f32 %v6514, %v6527
    %v6529 = vpop.f32.mrf.mxu0
    %v6530 = vadd.f32 %v6516, %v6529
    %6531 = vdwg.mxu0
    %6532 = vmatpush.bf16.msra.mxu0 %v5875
    %6533 = vmatpush.bf16.msra.mxu0 %v5871
    %6534 = vmatpush.bf16.msra.mxu0 %v5867
    %6535 = vmatpush.bf16.msra.mxu0 %v5863
    %6536 = vmatpush.bf16.msra.mxu0 %v5859
    %6537 = vmatpush.bf16.msra.mxu0 %v5855
    %6538 = vmatpush.bf16.msra.mxu0 %v5851
    %6539 = vmatpush.bf16.msra.mxu0 %v5847
    %6540 = vmatmul.bf16.gmra.mxu0 %v4838
    %v6541 = vpop.f32.mrf.mxu0
    %v6542 = vadd.f32 %v6528, %v6541
    %v6543 = vpop.f32.mrf.mxu0
    %v6544 = vadd.f32 %v6530, %v6543
    %6545 = vdwg.mxu0
    %6546 = vmatpush.bf16.msra.mxu0 %v5907
    %6547 = vmatpush.bf16.msra.mxu0 %v5903
    %6548 = vmatpush.bf16.msra.mxu0 %v5899
    %6549 = vmatpush.bf16.msra.mxu0 %v5895
    %6550 = vmatpush.bf16.msra.mxu0 %v5891
    %6551 = vmatpush.bf16.msra.mxu0 %v5887
    %6552 = vmatpush.bf16.msra.mxu0 %v5883
    %6553 = vmatpush.bf16.msra.mxu0 %v5879
    %6554 = vmatmul.bf16.gmra.mxu0 %v4839
    %v6555 = vpop.f32.mrf.mxu0
    %v6556 = vadd.f32 %v6542, %v6555
    %v6557 = vpop.f32.mrf.mxu0
    %v6558 = vadd.f32 %v6544, %v6557
    %6559 = vdwg.mxu0
    %6560 = vmatpush.bf16.msra.mxu0 %v5939
    %6561 = vmatpush.bf16.msra.mxu0 %v5935
    %6562 = vmatpush.bf16.msra.mxu0 %v5931
    %6563 = vmatpush.bf16.msra.mxu0 %v5927
    %6564 = vmatpush.bf16.msra.mxu0 %v5923
    %6565 = vmatpush.bf16.msra.mxu0 %v5919
    %6566 = vmatpush.bf16.msra.mxu0 %v5915
    %6567 = vmatpush.bf16.msra.mxu0 %v5911
    %6568 = vmatmul.bf16.gmra.mxu0 %v4840
    %v6569 = vpop.f32.mrf.mxu0
    %v6570 = vadd.f32 %v6556, %v6569
    %v6571 = vpop.f32.mrf.mxu0
    %v6572 = vadd.f32 %v6558, %v6571
    %6573 = vdwg.mxu0
    %6574 = vmatpush.bf16.msra.mxu0 %v5971
    %6575 = vmatpush.bf16.msra.mxu0 %v5967
    %6576 = vmatpush.bf16.msra.mxu0 %v5963
    %6577 = vmatpush.bf16.msra.mxu0 %v5959
    %6578 = vmatpush.bf16.msra.mxu0 %v5955
    %6579 = vmatpush.bf16.msra.mxu0 %v5951
    %6580 = vmatpush.bf16.msra.mxu0 %v5947
    %6581 = vmatpush.bf16.msra.mxu0 %v5943
    %6582 = vmatmul.bf16.gmra.mxu0 %v4841
    %v6583 = vpop.f32.mrf.mxu0
    %v6584 = vadd.f32 %v6570, %v6583
    %v6585 = vpop.f32.mrf.mxu0
    %v6586 = vadd.f32 %v6572, %v6585
    %6587 = vdwg.mxu0
    %v6588 = vmax.f32 %v6290, 0.0
    %v6589 = vmax.f32 %v6388, 0.0
    %v6590 = vmax.f32 %v6486, 0.0
    %v6591 = vmax.f32 %v6584, 0.0
    %v6592 = vmax.f32 %v6292, 0.0
    %v6593 = vmax.f32 %v6390, 0.0
    %v6594 = vmax.f32 %v6488, 0.0
    %v6595 = vmax.f32 %v6586, 0.0
    %v6596 = vpack.c.bf16 %v6592, %v6588
    %v6597 = vpack.c.bf16 %v6593, %v6589
    %v6598 = vpack.c.bf16 %v6594, %v6590
    %v6599 = vpack.c.bf16 %v6595, %v6591
    %v6600 = vld [vmem:[#allocation14] sm:$0xf]
    %v6601 = vld [vmem:[#allocation14 + $0x4] sm:$0xf]
    %v6602 = vld [vmem:[#allocation14 + $0x8] sm:$0xf]
    %v6603 = vld [vmem:[#allocation14 + $0xc] sm:$0xf]
    %v6604 = vld [vmem:[#allocation14 + $0x10] sm:$0xf]
    %v6605 = vld [vmem:[#allocation14 + $0x14] sm:$0xf]
    %v6606 = vld [vmem:[#allocation14 + $0x18] sm:$0xf]
    %v6607 = vld [vmem:[#allocation14 + $0x1c] sm:$0xf]
    %v6608 = vld [vmem:[#allocation14 + $0x20] sm:$0xf]
    %v6609 = vld [vmem:[#allocation14 + $0x24] sm:$0xf]
    %v6610 = vld [vmem:[#allocation14 + $0x28] sm:$0xf]
    %v6611 = vld [vmem:[#allocation14 + $0x2c] sm:$0xf]
    %v6612 = vld [vmem:[#allocation14 + $0x30] sm:$0xf]
    %v6613 = vld [vmem:[#allocation14 + $0x34] sm:$0xf]
    %v6614 = vld [vmem:[#allocation14 + $0x38] sm:$0xf]
    %v6615 = vld [vmem:[#allocation14 + $0x3c] sm:$0xf]
    %v6616 = vld [vmem:[#allocation14 + $0x40] sm:$0xf]
    %v6617 = vld [vmem:[#allocation14 + $0x44] sm:$0xf]
    %v6618 = vld [vmem:[#allocation14 + $0x48] sm:$0xf]
    %v6619 = vld [vmem:[#allocation14 + $0x4c] sm:$0xf]
    %v6620 = vld [vmem:[#allocation14 + $0x50] sm:$0xf]
    %v6621 = vld [vmem:[#allocation14 + $0x54] sm:$0xf]
    %v6622 = vld [vmem:[#allocation14 + $0x58] sm:$0xf]
    %v6623 = vld [vmem:[#allocation14 + $0x5c] sm:$0xf]
    %v6624 = vld [vmem:[#allocation14 + $0x60] sm:$0xf]
    %v6625 = vld [vmem:[#allocation14 + $0x64] sm:$0xf]
    %v6626 = vld [vmem:[#allocation14 + $0x68] sm:$0xf]
    %v6627 = vld [vmem:[#allocation14 + $0x6c] sm:$0xf]
    %v6628 = vld [vmem:[#allocation14 + $0x70] sm:$0xf]
    %v6629 = vld [vmem:[#allocation14 + $0x74] sm:$0xf]
    %v6630 = vld [vmem:[#allocation14 + $0x78] sm:$0xf]
    %v6631 = vld [vmem:[#allocation14 + $0x7c] sm:$0xf]
    %v6632 = vld [vmem:[#allocation14 + $0x80] sm:$0xf]
    %v6633 = vld [vmem:[#allocation14 + $0x84] sm:$0xf]
    %v6634 = vld [vmem:[#allocation14 + $0x88] sm:$0xf]
    %v6635 = vld [vmem:[#allocation14 + $0x8c] sm:$0xf]
    %v6636 = vld [vmem:[#allocation14 + $0x90] sm:$0xf]
    %v6637 = vld [vmem:[#allocation14 + $0x94] sm:$0xf]
    %v6638 = vld [vmem:[#allocation14 + $0x98] sm:$0xf]
    %v6639 = vld [vmem:[#allocation14 + $0x9c] sm:$0xf]
    %v6640 = vld [vmem:[#allocation14 + $0xa0] sm:$0xf]
    %v6641 = vld [vmem:[#allocation14 + $0xa4] sm:$0xf]
    %v6642 = vld [vmem:[#allocation14 + $0xa8] sm:$0xf]
    %v6643 = vld [vmem:[#allocation14 + $0xac] sm:$0xf]
    %v6644 = vld [vmem:[#allocation14 + $0xb0] sm:$0xf]
    %v6645 = vld [vmem:[#allocation14 + $0xb4] sm:$0xf]
    %v6646 = vld [vmem:[#allocation14 + $0xb8] sm:$0xf]
    %v6647 = vld [vmem:[#allocation14 + $0xbc] sm:$0xf]
    %v6648 = vld [vmem:[#allocation14 + $0xc0] sm:$0xf]
    %v6649 = vld [vmem:[#allocation14 + $0xc4] sm:$0xf]
    %v6650 = vld [vmem:[#allocation14 + $0xc8] sm:$0xf]
    %v6651 = vld [vmem:[#allocation14 + $0xcc] sm:$0xf]
    %v6652 = vld [vmem:[#allocation14 + $0xd0] sm:$0xf]
    %v6653 = vld [vmem:[#allocation14 + $0xd4] sm:$0xf]
    %v6654 = vld [vmem:[#allocation14 + $0xd8] sm:$0xf]
    %v6655 = vld [vmem:[#allocation14 + $0xdc] sm:$0xf]
    %v6656 = vld [vmem:[#allocation14 + $0xe0] sm:$0xf]
    %v6657 = vld [vmem:[#allocation14 + $0xe4] sm:$0xf]
    %v6658 = vld [vmem:[#allocation14 + $0xe8] sm:$0xf]
    %v6659 = vld [vmem:[#allocation14 + $0xec] sm:$0xf]
    %v6660 = vld [vmem:[#allocation14 + $0xf0] sm:$0xf]
    %v6661 = vld [vmem:[#allocation14 + $0xf4] sm:$0xf]
    %v6662 = vld [vmem:[#allocation14 + $0xf8] sm:$0xf]
    %v6663 = vld [vmem:[#allocation14 + $0xfc] sm:$0xf]
    %v6664 = vld [vmem:[#allocation16] sm:$0x1]
    %v6666 = vperm.slane %v6664, 0
    %v6732 = vunpack.c.l.b16 %v6600
    %v6733 = vunpack.c.l.b16 %v6601
    %v6734 = vunpack.c.l.b16 %v6602
    %v6735 = vunpack.c.l.b16 %v6603
    %v6736 = vunpack.c.l.b16 %v6604
    %v6737 = vunpack.c.l.b16 %v6605
    %v6738 = vunpack.c.l.b16 %v6606
    %v6739 = vunpack.c.l.b16 %v6607
    %v6740 = vunpack.c.l.b16 %v6608
    %v6741 = vunpack.c.l.b16 %v6609
    %v6742 = vunpack.c.l.b16 %v6610
    %v6743 = vunpack.c.l.b16 %v6611
    %v6744 = vunpack.c.l.b16 %v6612
    %v6745 = vunpack.c.l.b16 %v6613
    %v6746 = vunpack.c.l.b16 %v6614
    %v6747 = vunpack.c.l.b16 %v6615
    %v6748 = vunpack.c.l.b16 %v6616
    %v6749 = vunpack.c.l.b16 %v6617
    %v6750 = vunpack.c.l.b16 %v6618
    %v6751 = vunpack.c.l.b16 %v6619
    %v6752 = vunpack.c.l.b16 %v6620
    %v6753 = vunpack.c.l.b16 %v6621
    %v6754 = vunpack.c.l.b16 %v6622
    %v6755 = vunpack.c.l.b16 %v6623
    %v6756 = vunpack.c.l.b16 %v6624
    %v6757 = vunpack.c.l.b16 %v6625
    %v6758 = vunpack.c.l.b16 %v6626
    %v6759 = vunpack.c.l.b16 %v6627
    %v6760 = vunpack.c.l.b16 %v6628
    %v6761 = vunpack.c.l.b16 %v6629
    %v6762 = vunpack.c.l.b16 %v6630
    %v6763 = vunpack.c.l.b16 %v6631
    %v6764 = vunpack.c.l.b16 %v6632
    %v6765 = vunpack.c.l.b16 %v6633
    %v6766 = vunpack.c.l.b16 %v6634
    %v6767 = vunpack.c.l.b16 %v6635
    %v6768 = vunpack.c.l.b16 %v6636
    %v6769 = vunpack.c.l.b16 %v6637
    %v6770 = vunpack.c.l.b16 %v6638
    %v6771 = vunpack.c.l.b16 %v6639
    %v6772 = vunpack.c.l.b16 %v6640
    %v6773 = vunpack.c.l.b16 %v6641
    %v6774 = vunpack.c.l.b16 %v6642
    %v6775 = vunpack.c.l.b16 %v6643
    %v6776 = vunpack.c.l.b16 %v6644
    %v6777 = vunpack.c.l.b16 %v6645
    %v6778 = vunpack.c.l.b16 %v6646
    %v6779 = vunpack.c.l.b16 %v6647
    %v6780 = vunpack.c.l.b16 %v6648
    %v6781 = vunpack.c.l.b16 %v6649
    %v6782 = vunpack.c.l.b16 %v6650
    %v6783 = vunpack.c.l.b16 %v6651
    %v6784 = vunpack.c.l.b16 %v6652
    %v6785 = vunpack.c.l.b16 %v6653
    %v6786 = vunpack.c.l.b16 %v6654
    %v6787 = vunpack.c.l.b16 %v6655
    %v6788 = vunpack.c.l.b16 %v6656
    %v6789 = vunpack.c.l.b16 %v6657
    %v6790 = vunpack.c.l.b16 %v6658
    %v6791 = vunpack.c.l.b16 %v6659
    %v6792 = vunpack.c.l.b16 %v6660
    %v6793 = vunpack.c.l.b16 %v6661
    %v6794 = vunpack.c.l.b16 %v6662
    %v6795 = vunpack.c.l.b16 %v6663
    %v6796 = vpack.c.b16 %v6733, %v6732
    %v6797 = vpack.c.b16 %v6735, %v6734
    %v6798 = vpack.c.b16 %v6737, %v6736
    %v6799 = vpack.c.b16 %v6739, %v6738
    %v6800 = vpack.c.b16 %v6741, %v6740
    %v6801 = vpack.c.b16 %v6743, %v6742
    %v6802 = vpack.c.b16 %v6745, %v6744
    %v6803 = vpack.c.b16 %v6747, %v6746
    %v6804 = vpack.c.b16 %v6749, %v6748
    %v6805 = vpack.c.b16 %v6751, %v6750
    %v6806 = vpack.c.b16 %v6753, %v6752
    %v6807 = vpack.c.b16 %v6755, %v6754
    %v6808 = vpack.c.b16 %v6757, %v6756
    %v6809 = vpack.c.b16 %v6759, %v6758
    %v6810 = vpack.c.b16 %v6761, %v6760
    %v6811 = vpack.c.b16 %v6763, %v6762
    %v6812 = vpack.c.b16 %v6765, %v6764
    %v6813 = vpack.c.b16 %v6767, %v6766
    %v6814 = vpack.c.b16 %v6769, %v6768
    %v6815 = vpack.c.b16 %v6771, %v6770
    %v6816 = vpack.c.b16 %v6773, %v6772
    %v6817 = vpack.c.b16 %v6775, %v6774
    %v6818 = vpack.c.b16 %v6777, %v6776
    %v6819 = vpack.c.b16 %v6779, %v6778
    %v6820 = vpack.c.b16 %v6781, %v6780
    %v6821 = vpack.c.b16 %v6783, %v6782
    %v6822 = vpack.c.b16 %v6785, %v6784
    %v6823 = vpack.c.b16 %v6787, %v6786
    %v6824 = vpack.c.b16 %v6789, %v6788
    %v6825 = vpack.c.b16 %v6791, %v6790
    %v6826 = vpack.c.b16 %v6793, %v6792
    %v6827 = vpack.c.b16 %v6795, %v6794
    %6860 = vmatpush.bf16.msra.mxu0 %v6803
    %6861 = vmatpush.bf16.msra.mxu0 %v6802
    %6862 = vmatpush.bf16.msra.mxu0 %v6801
    %6863 = vmatpush.bf16.msra.mxu0 %v6800
    %6864 = vmatpush.bf16.msra.mxu0 %v6799
    %6865 = vmatpush.bf16.msra.mxu0 %v6798
    %6866 = vmatpush.bf16.msra.mxu0 %v6797
    %6867 = vmatpush.bf16.msra.mxu0 %v6796
    %6868 = vmatmul.bf16.gmra.mxu0 %v6596
    %v6869 = vpop.f32.mrf.mxu0
    %v6870 = vadd.f32 %v6666, %v6869
    %v6871 = vpop.f32.mrf.mxu0
    %v6872 = vadd.f32 %v6666, %v6871
    %6873 = vdwg.mxu0
    %6874 = vmatpush.bf16.msra.mxu0 %v6811
    %6875 = vmatpush.bf16.msra.mxu0 %v6810
    %6876 = vmatpush.bf16.msra.mxu0 %v6809
    %6877 = vmatpush.bf16.msra.mxu0 %v6808
    %6878 = vmatpush.bf16.msra.mxu0 %v6807
    %6879 = vmatpush.bf16.msra.mxu0 %v6806
    %6880 = vmatpush.bf16.msra.mxu0 %v6805
    %6881 = vmatpush.bf16.msra.mxu0 %v6804
    %6882 = vmatmul.bf16.gmra.mxu0 %v6597
    %v6883 = vpop.f32.mrf.mxu0
    %v6884 = vadd.f32 %v6870, %v6883
    %v6885 = vpop.f32.mrf.mxu0
    %v6886 = vadd.f32 %v6872, %v6885
    %6887 = vdwg.mxu0
    %6888 = vmatpush.bf16.msra.mxu0 %v6819
    %6889 = vmatpush.bf16.msra.mxu0 %v6818
    %6890 = vmatpush.bf16.msra.mxu0 %v6817
    %6891 = vmatpush.bf16.msra.mxu0 %v6816
    %6892 = vmatpush.bf16.msra.mxu0 %v6815
    %6893 = vmatpush.bf16.msra.mxu0 %v6814
    %6894 = vmatpush.bf16.msra.mxu0 %v6813
    %6895 = vmatpush.bf16.msra.mxu0 %v6812
    %6896 = vmatmul.bf16.gmra.mxu0 %v6598
    %v6897 = vpop.f32.mrf.mxu0
    %v6898 = vadd.f32 %v6884, %v6897
    %v6899 = vpop.f32.mrf.mxu0
    %v6900 = vadd.f32 %v6886, %v6899
    %6901 = vdwg.mxu0
    %6902 = vmatpush.bf16.msra.mxu0 %v6827
    %6903 = vmatpush.bf16.msra.mxu0 %v6826
    %6904 = vmatpush.bf16.msra.mxu0 %v6825
    %6905 = vmatpush.bf16.msra.mxu0 %v6824
    %6906 = vmatpush.bf16.msra.mxu0 %v6823
    %6907 = vmatpush.bf16.msra.mxu0 %v6822
    %6908 = vmatpush.bf16.msra.mxu0 %v6821
    %6909 = vmatpush.bf16.msra.mxu0 %v6820
    %6910 = vmatmul.bf16.gmra.mxu0 %v6599
    %v6911 = vpop.f32.mrf.mxu0
    %v6912 = vadd.f32 %v6898, %v6911
    %v6913 = vpop.f32.mrf.mxu0
    %v6914 = vadd.f32 %v6900, %v6913
    %6915 = vdwg.mxu0
    %v6916 = vmax.f32 %v6912, 0.0
    %v6917 = vmax.f32 %v6914, 0.0
    %v6918 = vpack.c.bf16 %v6916, %v6916
    %v6919 = vpack.c.bf16 %v6917, %v6917
    %6920 = vst [vmem:[#allocation17] sm:$0xf] %v6918
    %6921 = vst [vmem:[#allocation17 + $0x4] sm:$0xf] %v6919
    // Predicated region
    $region74: #{tpu_custom_call.1} parent=1 // pred_check
      _
    $region75: #{tpu_custom_call.1} parent=1 // pred_check_branch
      %6923 = sbr.rel (0) target = $region77
    $region76: #{tpu_custom_call.1} parent=1 // pred_region
      %6925 = vsyncadd [#allocation4], 0
      %s6926 = sshll.u32 [#allocation17], 4
      %s6927 = int_to_ptr.vmem [resolvable:$true] %s6926
      %s6928 = sshll.u32 %s9, 4
      %s6929 = int_to_ptr.hbm [resolvable:$true] %s6928
      %6934 = dma.vmem_to_hbm [thread:$0]  %s6927, 128, %s6929, [#allocation4], 64, 64, 4
    $region77: #{tpu_custom_call.1} parent=1 // pred_fallthru
      _
    // Predicated region
    $region78: #{tpu_custom_call.1} parent=1 // pred_check
      _
    $region79: #{tpu_custom_call.1} parent=1 // pred_check_branch
      %6936 = sbr.rel (0) target = $region81
    $region80: #{tpu_custom_call.1} parent=1 // pred_region
      %6938 = dma.done [#allocation4], 128
    $region81: #{tpu_custom_call.1} parent=1 // pred_fallthru
      _
    %6939 = vsyncpa [#allocation3], 1
    %6940 = vsyncpa [#allocation6], 1
    %6941 = vsyncpa [#allocation9], 1
    %6942 = vsyncpa [#allocation12], 1
    %6943 = vsyncpa [#allocation15], 1
    %6944 = vsyncpa [#allocation4], 1

</llo_original>
